<compile_context>
chip_gen: v7x
topology: tpu7x:2x2x1
jax: 0.10.0
libtpu: 0.0.40
codegen_flags: <defaults>
</compile_context>

<pallas_src>
import functools
import math

import jax
import jax.numpy as jnp
from jax.experimental import pallas as pl
from jax.experimental.pallas import tpu as pltpu

# ----------------------------- config ---------------------------------------
HID = 32
N_HEADS = 4
HEAD_DIM = HID // N_HEADS
PF_DIM = 64
N_LAYERS = 2
SRC_VOCAB = 20
TRG_VOCAB = 24
MAX_LEN = 32
SRC_PAD_IDX = 0
TRG_PAD_IDX = 0
EPS = 1e-5
INV_SCALE = 1.0 / math.sqrt(HEAD_DIM)
EMB_SCALE = math.sqrt(HID)


# --------------------- in-kernel compute helpers -----------------------------


def _ln(x, g, b):
    """LayerNorm over the last (hidden) dim; x: (T, H), g/b: (1, H)."""
    mean = jnp.mean(x, axis=-1, keepdims=True)
    var = jnp.mean((x - mean) ** 2, axis=-1, keepdims=True)
    return (x - mean) * jax.lax.rsqrt(var + EPS) * g + b


def _mha(xq, xkv, mask, w_qkv, b_qkv, wo, bo, *, fused, want_probs):
    """Multi-head attention on VMEM-resident values.

    xq: (Tq, H), xkv: (Tk, H), mask: (1, Tk) or (Tq, Tk) int32 (1 = keep).
    w_qkv: (H, 3H), b_qkv: (1, 3H), wo: (H, H), bo: (1, H).
    Returns (out (Tq, H), probs list of N_HEADS x (Tq, Tk) or None).
    """
    if fused:
        qkv = jnp.dot(xq, w_qkv, preferred_element_type=jnp.float32) + b_qkv
        q = qkv[:, :HID]
        k = qkv[:, HID:2 * HID]
        v = qkv[:, 2 * HID:]
    else:
        q = (jnp.dot(xq, w_qkv[:, :HID], preferred_element_type=jnp.float32)
             + b_qkv[:, :HID])
        kv = (jnp.dot(xkv, w_qkv[:, HID:], preferred_element_type=jnp.float32)
              + b_qkv[:, HID:])
        k = kv[:, :HID]
        v = kv[:, HID:]

    heads = []
    probs = []
    for h in range(N_HEADS):
        sl = slice(h * HEAD_DIM, (h + 1) * HEAD_DIM)
        qh, kh, vh = q[:, sl], k[:, sl], v[:, sl]
        e = jax.lax.dot_general(
            qh, kh, (((1,), (1,)), ((), ())),
            preferred_element_type=jnp.float32) * INV_SCALE
        e = jnp.where(mask > 0, e, -1e10)
        emax = jnp.max(e, axis=-1, keepdims=True)
        p = jnp.exp(e - emax)
        p = p / jnp.sum(p, axis=-1, keepdims=True)
        if want_probs:
            probs.append(p)
        heads.append(jnp.dot(p, vh, preferred_element_type=jnp.float32))

    out = jnp.concatenate(heads, axis=-1)                      # (Tq, H)
    out = jnp.dot(out, wo, preferred_element_type=jnp.float32) + bo
    return out, (probs if want_probs else None)


def _ffn(x, fc1w, fc1b, fc2w, fc2b):
    h = jnp.maximum(
        jnp.dot(x, fc1w, preferred_element_type=jnp.float32) + fc1b, 0.0)
    return jnp.dot(h, fc2w, preferred_element_type=jnp.float32) + fc2b


# --------------------------- fused layer kernels ------------------------------


def _enc_layer_kernel(x_ref, sm_ref,
                      w_qkv, b_qkv, wo, bo, ln1g, ln1b,
                      fc1w, fc1b, fc2w, fc2b, ln2g, ln2b,
                      o_ref):
    x = x_ref[0]                    # (S, H)
    mask = sm_ref[0]                # (1, S) int32
    a, _ = _mha(x, x, mask, w_qkv[...], b_qkv[...], wo[...], bo[...],
                fused=True, want_probs=False)
    x = _ln(x + a, ln1g[...], ln1b[...])
    f = _ffn(x, fc1w[...], fc1b[...], fc2w[...], fc2b[...])
    x = _ln(x + f, ln2g[...], ln2b[...])
    o_ref[0] = x


def _dec_layer_body(x, enc, tmask, smask,
                    sa_wqkv, sa_bqkv, sa_wo, sa_bo, ln1g, ln1b,
                    ca_wqkv, ca_bqkv, ca_wo, ca_bo, ln2g, ln2b,
                    fc1w, fc1b, fc2w, fc2b, ln3g, ln3b,
                    want_probs):
    a, _ = _mha(x, x, tmask, sa_wqkv, sa_bqkv, sa_wo, sa_bo,
                fused=True, want_probs=False)
    x = _ln(x + a, ln1g, ln1b)
    a, probs = _mha(x, enc, smask, ca_wqkv, ca_bqkv, ca_wo, ca_bo,
                    fused=False, want_probs=want_probs)
    x = _ln(x + a, ln2g, ln2b)
    f = _ffn(x, fc1w, fc1b, fc2w, fc2b)
    x = _ln(x + f, ln3g, ln3b)
    return x, probs


def _dec_layer_kernel(x_ref, e_ref, tm_ref, sm_ref,
                      sa_wqkv, sa_bqkv, sa_wo, sa_bo, ln1g, ln1b,
                      ca_wqkv, ca_bqkv, ca_wo, ca_bo, ln2g, ln2b,
                      fc1w, fc1b, fc2w, fc2b, ln3g, ln3b,
                      o_ref):
    x, _ = _dec_layer_body(
        x_ref[0], e_ref[0], tm_ref[0], sm_ref[0],
        sa_wqkv[...], sa_bqkv[...], sa_wo[...], sa_bo[...], ln1g[...], ln1b[...],
        ca_wqkv[...], ca_bqkv[...], ca_wo[...], ca_bo[...], ln2g[...], ln2b[...],
        fc1w[...], fc1b[...], fc2w[...], fc2b[...], ln3g[...], ln3b[...],
        want_probs=False)
    o_ref[0] = x


def _dec_layer_last_kernel(x_ref, e_ref, tm_ref, sm_ref,
                           sa_wqkv, sa_bqkv, sa_wo, sa_bo, ln1g, ln1b,
                           ca_wqkv, ca_bqkv, ca_wo, ca_bo, ln2g, ln2b,
                           fc1w, fc1b, fc2w, fc2b, ln3g, ln3b,
                           fco_w, fco_b,
                           logits_ref, attn_ref):
    x, probs = _dec_layer_body(
        x_ref[0], e_ref[0], tm_ref[0], sm_ref[0],
        sa_wqkv[...], sa_bqkv[...], sa_wo[...], sa_bo[...], ln1g[...], ln1b[...],
        ca_wqkv[...], ca_bqkv[...], ca_wo[...], ca_bo[...], ln2g[...], ln2b[...],
        fc1w[...], fc1b[...], fc2w[...], fc2b[...], ln3g[...], ln3b[...],
        want_probs=True)
    logits_ref[0] = (
        jnp.dot(x, fco_w[...], preferred_element_type=jnp.float32) + fco_b[...])
    for h in range(N_HEADS):
        attn_ref[0, h] = probs[h]


# --------------------------- pallas_call wrappers -----------------------------


def _rep_spec(a):
    """Full-array block replicated across the batch grid axis."""
    return pl.BlockSpec(a.shape, lambda b, _n=a.ndim: (0,) * _n)


def encoder_layer(x, src_mask_i, lp):
    B, S, _ = x.shape
    ap = lp["attn"]
    weights = [ap["w_qkv"], ap["b_qkv"], ap["wo"], ap["bo"],
               lp["ln1_g"], lp["ln1_b"],
               lp["fc1_w"], lp["fc1_b"], lp["fc2_w"], lp["fc2_b"],
               lp["ln2_g"], lp["ln2_b"]]
    return pl.pallas_call(
        _enc_layer_kernel,
        grid=(B,),
        in_specs=[pl.BlockSpec((1, S, HID), lambda b: (b, 0, 0)),
                  pl.BlockSpec((1, 1, S), lambda b: (b, 0, 0))]
                 + [_rep_spec(a) for a in weights],
        out_specs=pl.BlockSpec((1, S, HID), lambda b: (b, 0, 0)),
        out_shape=jax.ShapeDtypeStruct((B, S, HID), jnp.float32),
        compiler_params=pltpu.CompilerParams(
            dimension_semantics=("parallel",)),
    )(x, src_mask_i, *weights)


def _dec_weights(lp):
    sa, ca = lp["self_attn"], lp["cross_attn"]
    return [sa["w_qkv"], sa["b_qkv"], sa["wo"], sa["bo"],
            lp["ln1_g"], lp["ln1_b"],
            ca["w_qkv"], ca["b_qkv"], ca["wo"], ca["bo"],
            lp["ln2_g"], lp["ln2_b"],
            lp["fc1_w"], lp["fc1_b"], lp["fc2_w"], lp["fc2_b"],
            lp["ln3_g"], lp["ln3_b"]]


def decoder_layer(x, enc_src, trg_mask_i, src_mask_i, lp):
    B, T, _ = x.shape
    S = enc_src.shape[1]
    weights = _dec_weights(lp)
    return pl.pallas_call(
        _dec_layer_kernel,
        grid=(B,),
        in_specs=[pl.BlockSpec((1, T, HID), lambda b: (b, 0, 0)),
                  pl.BlockSpec((1, S, HID), lambda b: (b, 0, 0)),
                  pl.BlockSpec((1, T, T), lambda b: (b, 0, 0)),
                  pl.BlockSpec((1, 1, S), lambda b: (b, 0, 0))]
                 + [_rep_spec(a) for a in weights],
        out_specs=pl.BlockSpec((1, T, HID), lambda b: (b, 0, 0)),
        out_shape=jax.ShapeDtypeStruct((B, T, HID), jnp.float32),
        compiler_params=pltpu.CompilerParams(
            dimension_semantics=("parallel",)),
    )(x, enc_src, trg_mask_i, src_mask_i, *weights)


def decoder_layer_last(x, enc_src, trg_mask_i, src_mask_i, lp,
                       fc_out_w, fc_out_b):
    B, T, _ = x.shape
    S = enc_src.shape[1]
    weights = _dec_weights(lp) + [fc_out_w, fc_out_b]
    logits, attn = pl.pallas_call(
        _dec_layer_last_kernel,
        grid=(B,),
        in_specs=[pl.BlockSpec((1, T, HID), lambda b: (b, 0, 0)),
                  pl.BlockSpec((1, S, HID), lambda b: (b, 0, 0)),
                  pl.BlockSpec((1, T, T), lambda b: (b, 0, 0)),
                  pl.BlockSpec((1, 1, S), lambda b: (b, 0, 0))]
                 + [_rep_spec(a) for a in weights],
        out_specs=[pl.BlockSpec((1, T, TRG_VOCAB), lambda b: (b, 0, 0)),
                   pl.BlockSpec((1, N_HEADS, T, S), lambda b: (b, 0, 0, 0))],
        out_shape=[jax.ShapeDtypeStruct((B, T, TRG_VOCAB), jnp.float32),
                   jax.ShapeDtypeStruct((B, N_HEADS, T, S), jnp.float32)],
        compiler_params=pltpu.CompilerParams(
            dimension_semantics=("parallel",)),
    )(x, enc_src, trg_mask_i, src_mask_i, *weights)
    return logits, attn


# --------------------------- model forward ------------------------------------


def make_src_mask(src):
    # (src != pad).unsqueeze(1).unsqueeze(2) -> pass compactly as [B, 1, S] int32
    return (src != SRC_PAD_IDX).astype(jnp.int32)[:, None, :]


def make_trg_mask(trg):
    # pad mask over keys & causal tril -> [B, T, T] int32
    T = trg.shape[1]
    pad = (trg != TRG_PAD_IDX)
    sub = jnp.tril(jnp.ones((T, T), dtype=bool))
    return (pad[:, None, :] & sub[None, :, :]).astype(jnp.int32)


def encoder_forward(p, src, src_mask_i):
    S = src.shape[1]
    x = p["tok_emb"][src] * EMB_SCALE + p["pos_emb"][:S][None, :, :]
    for lp in p["layers"]:
        x = encoder_layer(x, src_mask_i, lp)
    return x


def decoder_forward(p, trg, enc_src, trg_mask_i, src_mask_i):
    T = trg.shape[1]
    x = p["tok_emb"][trg] * EMB_SCALE + p["pos_emb"][:T][None, :, :]
    n = len(p["layers"])
    logits = attn = None
    for i, lp in enumerate(p["layers"]):
        if i < n - 1:
            x = decoder_layer(x, enc_src, trg_mask_i, src_mask_i, lp)
        else:
            logits, attn = decoder_layer_last(
                x, enc_src, trg_mask_i, src_mask_i, lp,
                p["fc_out_w"], p["fc_out_b"])
    return logits, attn


def seq2seq_forward(params, src, trg):
    src_mask_i = make_src_mask(src)
    trg_mask_i = make_trg_mask(trg)
    enc_src = encoder_forward(params["encoder"], src, src_mask_i)
    output, attention = decoder_forward(
        params["decoder"], trg, enc_src, trg_mask_i, src_mask_i)
    return output, attention


# --------------------------- parameter init ----------------------------------


def _dense_init(key, fan_in, fan_out):
    w = jax.random.normal(key, (fan_in, fan_out), jnp.float32) * 0.02
    b = jnp.zeros((1, fan_out), jnp.float32)
    return w, b


def _init_mha(key):
    k1, k2 = jax.random.split(key, 2)
    w_qkv = jax.random.normal(k1, (HID, 3 * HID), jnp.float32) * 0.02
    b_qkv = jnp.zeros((1, 3 * HID), jnp.float32)
    wo, bo = _dense_init(k2, HID, HID)
    return {"w_qkv": w_qkv, "b_qkv": b_qkv, "wo": wo, "bo": bo}


def _init_enc_layer(key):
    k1, k2, k3 = jax.random.split(key, 3)
    fc1_w, fc1_b = _dense_init(k2, HID, PF_DIM)
    fc2_w, fc2_b = _dense_init(k3, PF_DIM, HID)
    return {
        "attn": _init_mha(k1),
        "ln1_g": jnp.ones((1, HID), jnp.float32),
        "ln1_b": jnp.zeros((1, HID), jnp.float32),
        "fc1_w": fc1_w, "fc1_b": fc1_b,
        "fc2_w": fc2_w, "fc2_b": fc2_b,
        "ln2_g": jnp.ones((1, HID), jnp.float32),
        "ln2_b": jnp.zeros((1, HID), jnp.float32),
    }


def _init_dec_layer(key):
    k1, k2, k3, k4 = jax.random.split(key, 4)
    fc1_w, fc1_b = _dense_init(k3, HID, PF_DIM)
    fc2_w, fc2_b = _dense_init(k4, PF_DIM, HID)
    return {
        "self_attn": _init_mha(k1),
        "cross_attn": _init_mha(k2),
        "ln1_g": jnp.ones((1, HID), jnp.float32),
        "ln1_b": jnp.zeros((1, HID), jnp.float32),
        "ln2_g": jnp.ones((1, HID), jnp.float32),
        "ln2_b": jnp.zeros((1, HID), jnp.float32),
        "ln3_g": jnp.ones((1, HID), jnp.float32),
        "ln3_b": jnp.zeros((1, HID), jnp.float32),
        "fc1_w": fc1_w, "fc1_b": fc1_b,
        "fc2_w": fc2_w, "fc2_b": fc2_b,
    }


def init_params(key):
    ke, kd = jax.random.split(key)
    ks = jax.random.split(ke, N_LAYERS + 2)
    enc = {
        "tok_emb": jax.random.normal(ks[0], (SRC_VOCAB, HID), jnp.float32) * 0.02,
        "pos_emb": jax.random.normal(ks[1], (MAX_LEN, HID), jnp.float32) * 0.02,
        "layers": [_init_enc_layer(ks[2 + i]) for i in range(N_LAYERS)],
    }
    kds = jax.random.split(kd, N_LAYERS + 3)
    fc_out_w, fc_out_b = _dense_init(kds[2], HID, TRG_VOCAB)
    dec = {
        "tok_emb": jax.random.normal(kds[0], (TRG_VOCAB, HID), jnp.float32) * 0.02,
        "pos_emb": jax.random.normal(kds[1], (MAX_LEN, HID), jnp.float32) * 0.02,
        "fc_out_w": fc_out_w,
        "fc_out_b": fc_out_b,
        "layers": [_init_dec_layer(kds[3 + i]) for i in range(N_LAYERS)],
    }
    return {"encoder": enc, "decoder": dec}


# ------------------------------- main -----------------------------------------

if __name__ == "__main__":
    key = jax.random.PRNGKey(0)
    kp, ks, kt = jax.random.split(key, 3)
    params = init_params(kp)

    B, S, T = 2, 8, 6
    src = jax.random.randint(ks, (B, S), 1, SRC_VOCAB, dtype=jnp.int32)
    trg = jax.random.randint(kt, (B, T), 1, TRG_VOCAB, dtype=jnp.int32)
    # introduce some padding so the masks actually do something
    src = src.at[0, -2:].set(SRC_PAD_IDX)
    trg = trg.at[1, -1].set(TRG_PAD_IDX)

    fwd = jax.jit(seq2seq_forward)
    output, attention = fwd(params, src, trg)
    (output, attention) = jax.block_until_ready((output, attention))

    assert output.shape == (B, T, TRG_VOCAB), output.shape
    assert attention.shape == (B, N_HEADS, T, S), attention.shape
    assert not bool(jnp.isnan(output).any())
    assert not bool(jnp.isnan(attention).any())
    print("KERNEL_OK")
</pallas_src>

<mosaic_0001>
module attributes {stable_mosaic.version = 11 : i64} {
  func.func @_dec_layer_kernel(%arg0: i32, %arg1: memref<1x6x32xf32, #tpu.memory_space<vmem>>, %arg2: memref<1x8x32xf32, #tpu.memory_space<vmem>>, %arg3: memref<1x6x6xi32, #tpu.memory_space<vmem>>, %arg4: memref<1x1x8xi32, #tpu.memory_space<vmem>>, %arg5: memref<32x96xf32, #tpu.memory_space<vmem>>, %arg6: memref<1x96xf32, #tpu.memory_space<vmem>>, %arg7: memref<32x32xf32, #tpu.memory_space<vmem>>, %arg8: memref<1x32xf32, #tpu.memory_space<vmem>>, %arg9: memref<1x32xf32, #tpu.memory_space<vmem>>, %arg10: memref<1x32xf32, #tpu.memory_space<vmem>>, %arg11: memref<32x96xf32, #tpu.memory_space<vmem>>, %arg12: memref<1x96xf32, #tpu.memory_space<vmem>>, %arg13: memref<32x32xf32, #tpu.memory_space<vmem>>, %arg14: memref<1x32xf32, #tpu.memory_space<vmem>>, %arg15: memref<1x32xf32, #tpu.memory_space<vmem>>, %arg16: memref<1x32xf32, #tpu.memory_space<vmem>>, %arg17: memref<32x64xf32, #tpu.memory_space<vmem>>, %arg18: memref<1x64xf32, #tpu.memory_space<vmem>>, %arg19: memref<64x32xf32, #tpu.memory_space<vmem>>, %arg20: memref<1x32xf32, #tpu.memory_space<vmem>>, %arg21: memref<1x32xf32, #tpu.memory_space<vmem>>, %arg22: memref<1x32xf32, #tpu.memory_space<vmem>>, %arg23: memref<1x6x32xf32, #tpu.memory_space<vmem>>) attributes {dimension_semantics = [#tpu.dimension_semantics<parallel>], iteration_bounds = array<i64: 2>, scalar_prefetch = 0 : i64, scratch_operands = 0 : i64, tpu.core_type = #tpu.core_type<tc>, window_params = [{transform_indices = @transform_0, window_bounds = array<i64: 1, 6, 32>}, {transform_indices = @transform_1, window_bounds = array<i64: 1, 8, 32>}, {transform_indices = @transform_2, window_bounds = array<i64: 1, 6, 6>}, {transform_indices = @transform_3, window_bounds = array<i64: 1, 1, 8>}, {pipeline_mode = #tpu.pipeline_mode<synchronous>, transform_indices = @transform_4, window_bounds = array<i64: 32, 96>}, {pipeline_mode = #tpu.pipeline_mode<synchronous>, transform_indices = @transform_5, window_bounds = array<i64: 1, 96>}, {pipeline_mode = #tpu.pipeline_mode<synchronous>, transform_indices = @transform_6, window_bounds = array<i64: 32, 32>}, {pipeline_mode = #tpu.pipeline_mode<synchronous>, transform_indices = @transform_7, window_bounds = array<i64: 1, 32>}, {pipeline_mode = #tpu.pipeline_mode<synchronous>, transform_indices = @transform_8, window_bounds = array<i64: 1, 32>}, {pipeline_mode = #tpu.pipeline_mode<synchronous>, transform_indices = @transform_9, window_bounds = array<i64: 1, 32>}, {pipeline_mode = #tpu.pipeline_mode<synchronous>, transform_indices = @transform_10, window_bounds = array<i64: 32, 96>}, {pipeline_mode = #tpu.pipeline_mode<synchronous>, transform_indices = @transform_11, window_bounds = array<i64: 1, 96>}, {pipeline_mode = #tpu.pipeline_mode<synchronous>, transform_indices = @transform_12, window_bounds = array<i64: 32, 32>}, {pipeline_mode = #tpu.pipeline_mode<synchronous>, transform_indices = @transform_13, window_bounds = array<i64: 1, 32>}, {pipeline_mode = #tpu.pipeline_mode<synchronous>, transform_indices = @transform_14, window_bounds = array<i64: 1, 32>}, {pipeline_mode = #tpu.pipeline_mode<synchronous>, transform_indices = @transform_15, window_bounds = array<i64: 1, 32>}, {pipeline_mode = #tpu.pipeline_mode<synchronous>, transform_indices = @transform_16, window_bounds = array<i64: 32, 64>}, {pipeline_mode = #tpu.pipeline_mode<synchronous>, transform_indices = @transform_17, window_bounds = array<i64: 1, 64>}, {pipeline_mode = #tpu.pipeline_mode<synchronous>, transform_indices = @transform_18, window_bounds = array<i64: 64, 32>}, {pipeline_mode = #tpu.pipeline_mode<synchronous>, transform_indices = @transform_19, window_bounds = array<i64: 1, 32>}, {pipeline_mode = #tpu.pipeline_mode<synchronous>, transform_indices = @transform_20, window_bounds = array<i64: 1, 32>}, {pipeline_mode = #tpu.pipeline_mode<synchronous>, transform_indices = @transform_21, window_bounds = array<i64: 1, 32>}, {transform_indices = @transform_22, window_bounds = array<i64: 1, 6, 32>}]} {
    %c0 = arith.constant 0 : index
    %c0_0 = arith.constant 0 : index
    %c0_1 = arith.constant 0 : index
    %0 = vector.load %arg1[%c0, %c0_0, %c0_1] : memref<1x6x32xf32, #tpu.memory_space<vmem>>, vector<1x6x32xf32>
    %1 = vector.shape_cast %0 : vector<1x6x32xf32> to vector<6x32xf32>
    %c0_2 = arith.constant 0 : index
    %c0_3 = arith.constant 0 : index
    %c0_4 = arith.constant 0 : index
    %2 = vector.load %arg2[%c0_2, %c0_3, %c0_4] : memref<1x8x32xf32, #tpu.memory_space<vmem>>, vector<1x8x32xf32>
    %3 = vector.shape_cast %2 : vector<1x8x32xf32> to vector<8x32xf32>
    %c0_5 = arith.constant 0 : index
    %c0_6 = arith.constant 0 : index
    %c0_7 = arith.constant 0 : index
    %4 = vector.load %arg3[%c0_5, %c0_6, %c0_7] : memref<1x6x6xi32, #tpu.memory_space<vmem>>, vector<1x6x6xi32>
    %5 = vector.shape_cast %4 : vector<1x6x6xi32> to vector<6x6xi32>
    %c0_8 = arith.constant 0 : index
    %c0_9 = arith.constant 0 : index
    %c0_10 = arith.constant 0 : index
    %6 = vector.load %arg4[%c0_8, %c0_9, %c0_10] : memref<1x1x8xi32, #tpu.memory_space<vmem>>, vector<1x1x8xi32>
    %7 = vector.shape_cast %6 : vector<1x1x8xi32> to vector<1x8xi32>
    %c0_11 = arith.constant 0 : index
    %c0_12 = arith.constant 0 : index
    %8 = vector.load %arg5[%c0_11, %c0_12] : memref<32x96xf32, #tpu.memory_space<vmem>>, vector<32x96xf32>
    %c0_13 = arith.constant 0 : index
    %c0_14 = arith.constant 0 : index
    %9 = vector.load %arg6[%c0_13, %c0_14] : memref<1x96xf32, #tpu.memory_space<vmem>>, vector<1x96xf32>
    %c0_15 = arith.constant 0 : index
    %c0_16 = arith.constant 0 : index
    %10 = vector.load %arg7[%c0_15, %c0_16] : memref<32x32xf32, #tpu.memory_space<vmem>>, vector<32x32xf32>
    %c0_17 = arith.constant 0 : index
    %c0_18 = arith.constant 0 : index
    %11 = vector.load %arg8[%c0_17, %c0_18] : memref<1x32xf32, #tpu.memory_space<vmem>>, vector<1x32xf32>
    %c0_19 = arith.constant 0 : index
    %c0_20 = arith.constant 0 : index
    %12 = vector.load %arg9[%c0_19, %c0_20] : memref<1x32xf32, #tpu.memory_space<vmem>>, vector<1x32xf32>
    %c0_21 = arith.constant 0 : index
    %c0_22 = arith.constant 0 : index
    %13 = vector.load %arg10[%c0_21, %c0_22] : memref<1x32xf32, #tpu.memory_space<vmem>>, vector<1x32xf32>
    %c0_23 = arith.constant 0 : index
    %c0_24 = arith.constant 0 : index
    %14 = vector.load %arg11[%c0_23, %c0_24] : memref<32x96xf32, #tpu.memory_space<vmem>>, vector<32x96xf32>
    %c0_25 = arith.constant 0 : index
    %c0_26 = arith.constant 0 : index
    %15 = vector.load %arg12[%c0_25, %c0_26] : memref<1x96xf32, #tpu.memory_space<vmem>>, vector<1x96xf32>
    %c0_27 = arith.constant 0 : index
    %c0_28 = arith.constant 0 : index
    %16 = vector.load %arg13[%c0_27, %c0_28] : memref<32x32xf32, #tpu.memory_space<vmem>>, vector<32x32xf32>
    %c0_29 = arith.constant 0 : index
    %c0_30 = arith.constant 0 : index
    %17 = vector.load %arg14[%c0_29, %c0_30] : memref<1x32xf32, #tpu.memory_space<vmem>>, vector<1x32xf32>
    %c0_31 = arith.constant 0 : index
    %c0_32 = arith.constant 0 : index
    %18 = vector.load %arg15[%c0_31, %c0_32] : memref<1x32xf32, #tpu.memory_space<vmem>>, vector<1x32xf32>
    %c0_33 = arith.constant 0 : index
    %c0_34 = arith.constant 0 : index
    %19 = vector.load %arg16[%c0_33, %c0_34] : memref<1x32xf32, #tpu.memory_space<vmem>>, vector<1x32xf32>
    %c0_35 = arith.constant 0 : index
    %c0_36 = arith.constant 0 : index
    %20 = vector.load %arg17[%c0_35, %c0_36] : memref<32x64xf32, #tpu.memory_space<vmem>>, vector<32x64xf32>
    %c0_37 = arith.constant 0 : index
    %c0_38 = arith.constant 0 : index
    %21 = vector.load %arg18[%c0_37, %c0_38] : memref<1x64xf32, #tpu.memory_space<vmem>>, vector<1x64xf32>
    %c0_39 = arith.constant 0 : index
    %c0_40 = arith.constant 0 : index
    %22 = vector.load %arg19[%c0_39, %c0_40] : memref<64x32xf32, #tpu.memory_space<vmem>>, vector<64x32xf32>
    %c0_41 = arith.constant 0 : index
    %c0_42 = arith.constant 0 : index
    %23 = vector.load %arg20[%c0_41, %c0_42] : memref<1x32xf32, #tpu.memory_space<vmem>>, vector<1x32xf32>
    %c0_43 = arith.constant 0 : index
    %c0_44 = arith.constant 0 : index
    %24 = vector.load %arg21[%c0_43, %c0_44] : memref<1x32xf32, #tpu.memory_space<vmem>>, vector<1x32xf32>
    %c0_45 = arith.constant 0 : index
    %c0_46 = arith.constant 0 : index
    %25 = vector.load %arg22[%c0_45, %c0_46] : memref<1x32xf32, #tpu.memory_space<vmem>>, vector<1x32xf32>
    %cst = arith.constant dense<0.000000e+00> : vector<6x96xf32>
    %26 = tpu.matmul %1, %8, %cst {dimension_numbers = #tpu.dot_dimension_numbers<[1], [0], [0], [1], [0, 0, 1, 1], [], []>} : vector<6x32xf32>, vector<32x96xf32>, vector<6x96xf32> -> vector<6x96xf32>
    %27 = vector.broadcast %9 : vector<1x96xf32> to vector<6x96xf32>
    %28 = arith.addf %26, %27 : vector<6x96xf32>
    %29 = vector.extract_strided_slice %28 {offsets = [0, 0], sizes = [6, 32], strides = [1, 1]} : vector<6x96xf32> to vector<6x32xf32>
    %30 = vector.extract_strided_slice %28 {offsets = [0, 32], sizes = [6, 32], strides = [1, 1]} : vector<6x96xf32> to vector<6x32xf32>
    %31 = vector.extract_strided_slice %28 {offsets = [0, 64], sizes = [6, 32], strides = [1, 1]} : vector<6x96xf32> to vector<6x32xf32>
    %32 = vector.extract_strided_slice %29 {offsets = [0, 0], sizes = [6, 8], strides = [1, 1]} : vector<6x32xf32> to vector<6x8xf32>
    %33 = vector.extract_strided_slice %30 {offsets = [0, 0], sizes = [6, 8], strides = [1, 1]} : vector<6x32xf32> to vector<6x8xf32>
    %34 = vector.extract_strided_slice %31 {offsets = [0, 0], sizes = [6, 8], strides = [1, 1]} : vector<6x32xf32> to vector<6x8xf32>
    %cst_47 = arith.constant dense<0.000000e+00> : vector<6x6xf32>
    %35 = tpu.matmul %32, %33, %cst_47 {dimension_numbers = #tpu.dot_dimension_numbers<[1], [1], [0], [0], [0, 0, 1, 0], [], []>} : vector<6x8xf32>, vector<6x8xf32>, vector<6x6xf32> -> vector<6x6xf32>
    %cst_48 = arith.constant 0.353553385 : f32
    %36 = vector.broadcast %cst_48 : f32 to vector<6x6xf32>
    %37 = arith.mulf %35, %36 : vector<6x6xf32>
    %c0_i32 = arith.constant 0 : i32
    %38 = vector.broadcast %c0_i32 : i32 to vector<6x6xi32>
    %39 = arith.cmpi sgt, %5, %38 : vector<6x6xi32>
    %cst_49 = arith.constant -1.000000e+10 : f32
    %40 = vector.broadcast %cst_49 : f32 to vector<6x6xf32>
    %41 = arith.select %39, %37, %40 : vector<6x6xi1>, vector<6x6xf32>
    %cst_50 = arith.constant dense<0xFF800000> : vector<6xf32>
    %42 = vector.multi_reduction <maximumf>, %41, %cst_50 [1] : vector<6x6xf32> to vector<6xf32>
    %43 = vector.shape_cast %42 : vector<6xf32> to vector<6x1xf32>
    %44 = vector.broadcast %43 : vector<6x1xf32> to vector<6x6xf32>
    %45 = arith.subf %41, %44 : vector<6x6xf32>
    %46 = math.exp %45 : vector<6x6xf32>
    %cst_51 = arith.constant dense<0.000000e+00> : vector<6xf32>
    %47 = vector.multi_reduction <add>, %46, %cst_51 [1] : vector<6x6xf32> to vector<6xf32>
    %48 = vector.shape_cast %47 : vector<6xf32> to vector<6x1xf32>
    %49 = vector.broadcast %48 : vector<6x1xf32> to vector<6x6xf32>
    %50 = arith.divf %46, %49 : vector<6x6xf32>
    %cst_52 = arith.constant dense<0.000000e+00> : vector<6x8xf32>
    %51 = tpu.matmul %50, %34, %cst_52 {dimension_numbers = #tpu.dot_dimension_numbers<[1], [0], [0], [1], [0, 0, 1, 1], [], []>} : vector<6x6xf32>, vector<6x8xf32>, vector<6x8xf32> -> vector<6x8xf32>
    %52 = vector.extract_strided_slice %29 {offsets = [0, 8], sizes = [6, 8], strides = [1, 1]} : vector<6x32xf32> to vector<6x8xf32>
    %53 = vector.extract_strided_slice %30 {offsets = [0, 8], sizes = [6, 8], strides = [1, 1]} : vector<6x32xf32> to vector<6x8xf32>
    %54 = vector.extract_strided_slice %31 {offsets = [0, 8], sizes = [6, 8], strides = [1, 1]} : vector<6x32xf32> to vector<6x8xf32>
    %cst_53 = arith.constant dense<0.000000e+00> : vector<6x6xf32>
    %55 = tpu.matmul %52, %53, %cst_53 {dimension_numbers = #tpu.dot_dimension_numbers<[1], [1], [0], [0], [0, 0, 1, 0], [], []>} : vector<6x8xf32>, vector<6x8xf32>, vector<6x6xf32> -> vector<6x6xf32>
    %cst_54 = arith.constant 0.353553385 : f32
    %56 = vector.broadcast %cst_54 : f32 to vector<6x6xf32>
    %57 = arith.mulf %55, %56 : vector<6x6xf32>
    %c0_i32_55 = arith.constant 0 : i32
    %58 = vector.broadcast %c0_i32_55 : i32 to vector<6x6xi32>
    %59 = arith.cmpi sgt, %5, %58 : vector<6x6xi32>
    %cst_56 = arith.constant -1.000000e+10 : f32
    %60 = vector.broadcast %cst_56 : f32 to vector<6x6xf32>
    %61 = arith.select %59, %57, %60 : vector<6x6xi1>, vector<6x6xf32>
    %cst_57 = arith.constant dense<0xFF800000> : vector<6xf32>
    %62 = vector.multi_reduction <maximumf>, %61, %cst_57 [1] : vector<6x6xf32> to vector<6xf32>
    %63 = vector.shape_cast %62 : vector<6xf32> to vector<6x1xf32>
    %64 = vector.broadcast %63 : vector<6x1xf32> to vector<6x6xf32>
    %65 = arith.subf %61, %64 : vector<6x6xf32>
    %66 = math.exp %65 : vector<6x6xf32>
    %cst_58 = arith.constant dense<0.000000e+00> : vector<6xf32>
    %67 = vector.multi_reduction <add>, %66, %cst_58 [1] : vector<6x6xf32> to vector<6xf32>
    %68 = vector.shape_cast %67 : vector<6xf32> to vector<6x1xf32>
    %69 = vector.broadcast %68 : vector<6x1xf32> to vector<6x6xf32>
    %70 = arith.divf %66, %69 : vector<6x6xf32>
    %cst_59 = arith.constant dense<0.000000e+00> : vector<6x8xf32>
    %71 = tpu.matmul %70, %54, %cst_59 {dimension_numbers = #tpu.dot_dimension_numbers<[1], [0], [0], [1], [0, 0, 1, 1], [], []>} : vector<6x6xf32>, vector<6x8xf32>, vector<6x8xf32> -> vector<6x8xf32>
    %72 = vector.extract_strided_slice %29 {offsets = [0, 16], sizes = [6, 8], strides = [1, 1]} : vector<6x32xf32> to vector<6x8xf32>
    %73 = vector.extract_strided_slice %30 {offsets = [0, 16], sizes = [6, 8], strides = [1, 1]} : vector<6x32xf32> to vector<6x8xf32>
    %74 = vector.extract_strided_slice %31 {offsets = [0, 16], sizes = [6, 8], strides = [1, 1]} : vector<6x32xf32> to vector<6x8xf32>
    %cst_60 = arith.constant dense<0.000000e+00> : vector<6x6xf32>
    %75 = tpu.matmul %72, %73, %cst_60 {dimension_numbers = #tpu.dot_dimension_numbers<[1], [1], [0], [0], [0, 0, 1, 0], [], []>} : vector<6x8xf32>, vector<6x8xf32>, vector<6x6xf32> -> vector<6x6xf32>
    %cst_61 = arith.constant 0.353553385 : f32
    %76 = vector.broadcast %cst_61 : f32 to vector<6x6xf32>
    %77 = arith.mulf %75, %76 : vector<6x6xf32>
    %c0_i32_62 = arith.constant 0 : i32
    %78 = vector.broadcast %c0_i32_62 : i32 to vector<6x6xi32>
    %79 = arith.cmpi sgt, %5, %78 : vector<6x6xi32>
    %cst_63 = arith.constant -1.000000e+10 : f32
    %80 = vector.broadcast %cst_63 : f32 to vector<6x6xf32>
    %81 = arith.select %79, %77, %80 : vector<6x6xi1>, vector<6x6xf32>
    %cst_64 = arith.constant dense<0xFF800000> : vector<6xf32>
    %82 = vector.multi_reduction <maximumf>, %81, %cst_64 [1] : vector<6x6xf32> to vector<6xf32>
    %83 = vector.shape_cast %82 : vector<6xf32> to vector<6x1xf32>
    %84 = vector.broadcast %83 : vector<6x1xf32> to vector<6x6xf32>
    %85 = arith.subf %81, %84 : vector<6x6xf32>
    %86 = math.exp %85 : vector<6x6xf32>
    %cst_65 = arith.constant dense<0.000000e+00> : vector<6xf32>
    %87 = vector.multi_reduction <add>, %86, %cst_65 [1] : vector<6x6xf32> to vector<6xf32>
    %88 = vector.shape_cast %87 : vector<6xf32> to vector<6x1xf32>
    %89 = vector.broadcast %88 : vector<6x1xf32> to vector<6x6xf32>
    %90 = arith.divf %86, %89 : vector<6x6xf32>
    %cst_66 = arith.constant dense<0.000000e+00> : vector<6x8xf32>
    %91 = tpu.matmul %90, %74, %cst_66 {dimension_numbers = #tpu.dot_dimension_numbers<[1], [0], [0], [1], [0, 0, 1, 1], [], []>} : vector<6x6xf32>, vector<6x8xf32>, vector<6x8xf32> -> vector<6x8xf32>
    %92 = vector.extract_strided_slice %29 {offsets = [0, 24], sizes = [6, 8], strides = [1, 1]} : vector<6x32xf32> to vector<6x8xf32>
    %93 = vector.extract_strided_slice %30 {offsets = [0, 24], sizes = [6, 8], strides = [1, 1]} : vector<6x32xf32> to vector<6x8xf32>
    %94 = vector.extract_strided_slice %31 {offsets = [0, 24], sizes = [6, 8], strides = [1, 1]} : vector<6x32xf32> to vector<6x8xf32>
    %cst_67 = arith.constant dense<0.000000e+00> : vector<6x6xf32>
    %95 = tpu.matmul %92, %93, %cst_67 {dimension_numbers = #tpu.dot_dimension_numbers<[1], [1], [0], [0], [0, 0, 1, 0], [], []>} : vector<6x8xf32>, vector<6x8xf32>, vector<6x6xf32> -> vector<6x6xf32>
    %cst_68 = arith.constant 0.353553385 : f32
    %96 = vector.broadcast %cst_68 : f32 to vector<6x6xf32>
    %97 = arith.mulf %95, %96 : vector<6x6xf32>
    %c0_i32_69 = arith.constant 0 : i32
    %98 = vector.broadcast %c0_i32_69 : i32 to vector<6x6xi32>
    %99 = arith.cmpi sgt, %5, %98 : vector<6x6xi32>
    %cst_70 = arith.constant -1.000000e+10 : f32
    %100 = vector.broadcast %cst_70 : f32 to vector<6x6xf32>
    %101 = arith.select %99, %97, %100 : vector<6x6xi1>, vector<6x6xf32>
    %cst_71 = arith.constant dense<0xFF800000> : vector<6xf32>
    %102 = vector.multi_reduction <maximumf>, %101, %cst_71 [1] : vector<6x6xf32> to vector<6xf32>
    %103 = vector.shape_cast %102 : vector<6xf32> to vector<6x1xf32>
    %104 = vector.broadcast %103 : vector<6x1xf32> to vector<6x6xf32>
    %105 = arith.subf %101, %104 : vector<6x6xf32>
    %106 = math.exp %105 : vector<6x6xf32>
    %cst_72 = arith.constant dense<0.000000e+00> : vector<6xf32>
    %107 = vector.multi_reduction <add>, %106, %cst_72 [1] : vector<6x6xf32> to vector<6xf32>
    %108 = vector.shape_cast %107 : vector<6xf32> to vector<6x1xf32>
    %109 = vector.broadcast %108 : vector<6x1xf32> to vector<6x6xf32>
    %110 = arith.divf %106, %109 : vector<6x6xf32>
    %cst_73 = arith.constant dense<0.000000e+00> : vector<6x8xf32>
    %111 = tpu.matmul %110, %94, %cst_73 {dimension_numbers = #tpu.dot_dimension_numbers<[1], [0], [0], [1], [0, 0, 1, 1], [], []>} : vector<6x6xf32>, vector<6x8xf32>, vector<6x8xf32> -> vector<6x8xf32>
    %112 = tpu.concatenate %51, %71, %91, %111 in 1 : vector<6x8xf32>, vector<6x8xf32>, vector<6x8xf32>, vector<6x8xf32> -> vector<6x32xf32>
    %cst_74 = arith.constant dense<0.000000e+00> : vector<6x32xf32>
    %113 = tpu.matmul %112, %10, %cst_74 {dimension_numbers = #tpu.dot_dimension_numbers<[1], [0], [0], [1], [0, 0, 1, 1], [], []>} : vector<6x32xf32>, vector<32x32xf32>, vector<6x32xf32> -> vector<6x32xf32>
    %114 = vector.broadcast %11 : vector<1x32xf32> to vector<6x32xf32>
    %115 = arith.addf %113, %114 : vector<6x32xf32>
    %116 = arith.addf %1, %115 : vector<6x32xf32>
    %cst_75 = arith.constant dense<0.000000e+00> : vector<6xf32>
    %117 = vector.multi_reduction <add>, %116, %cst_75 [1] : vector<6x32xf32> to vector<6xf32>
    %118 = vector.shape_cast %117 : vector<6xf32> to vector<6x1xf32>
    %cst_76 = arith.constant 3.200000e+01 : f32
    %119 = vector.broadcast %cst_76 : f32 to vector<6x1xf32>
    %120 = arith.divf %118, %119 : vector<6x1xf32>
    %121 = vector.broadcast %120 : vector<6x1xf32> to vector<6x32xf32>
    %122 = arith.subf %116, %121 : vector<6x32xf32>
    %123 = arith.mulf %122, %122 : vector<6x32xf32>
    %cst_77 = arith.constant dense<0.000000e+00> : vector<6xf32>
    %124 = vector.multi_reduction <add>, %123, %cst_77 [1] : vector<6x32xf32> to vector<6xf32>
    %125 = vector.shape_cast %124 : vector<6xf32> to vector<6x1xf32>
    %cst_78 = arith.constant 3.200000e+01 : f32
    %126 = vector.broadcast %cst_78 : f32 to vector<6x1xf32>
    %127 = arith.divf %125, %126 : vector<6x1xf32>
    %128 = vector.broadcast %120 : vector<6x1xf32> to vector<6x32xf32>
    %129 = arith.subf %116, %128 : vector<6x32xf32>
    %cst_79 = arith.constant 9.99999974E-6 : f32
    %130 = vector.broadcast %cst_79 : f32 to vector<6x1xf32>
    %131 = arith.addf %127, %130 : vector<6x1xf32>
    %132 = math.rsqrt %131 : vector<6x1xf32>
    %133 = vector.broadcast %132 : vector<6x1xf32> to vector<6x32xf32>
    %134 = arith.mulf %129, %133 : vector<6x32xf32>
    %135 = vector.broadcast %12 : vector<1x32xf32> to vector<6x32xf32>
    %136 = arith.mulf %134, %135 : vector<6x32xf32>
    %137 = vector.broadcast %13 : vector<1x32xf32> to vector<6x32xf32>
    %138 = arith.addf %136, %137 : vector<6x32xf32>
    %139 = vector.extract_strided_slice %14 {offsets = [0, 0], sizes = [32, 32], strides = [1, 1]} : vector<32x96xf32> to vector<32x32xf32>
    %cst_80 = arith.constant dense<0.000000e+00> : vector<6x32xf32>
    %140 = tpu.matmul %138, %139, %cst_80 {dimension_numbers = #tpu.dot_dimension_numbers<[1], [0], [0], [1], [0, 0, 1, 1], [], []>} : vector<6x32xf32>, vector<32x32xf32>, vector<6x32xf32> -> vector<6x32xf32>
    %141 = vector.extract_strided_slice %15 {offsets = [0, 0], sizes = [1, 32], strides = [1, 1]} : vector<1x96xf32> to vector<1x32xf32>
    %142 = vector.broadcast %141 : vector<1x32xf32> to vector<6x32xf32>
    %143 = arith.addf %140, %142 : vector<6x32xf32>
    %144 = vector.extract_strided_slice %14 {offsets = [0, 32], sizes = [32, 64], strides = [1, 1]} : vector<32x96xf32> to vector<32x64xf32>
    %cst_81 = arith.constant dense<0.000000e+00> : vector<8x64xf32>
    %145 = tpu.matmul %3, %144, %cst_81 {dimension_numbers = #tpu.dot_dimension_numbers<[1], [0], [0], [1], [0, 0, 1, 1], [], []>} : vector<8x32xf32>, vector<32x64xf32>, vector<8x64xf32> -> vector<8x64xf32>
    %146 = vector.extract_strided_slice %15 {offsets = [0, 32], sizes = [1, 64], strides = [1, 1]} : vector<1x96xf32> to vector<1x64xf32>
    %147 = vector.broadcast %146 : vector<1x64xf32> to vector<8x64xf32>
    %148 = arith.addf %145, %147 : vector<8x64xf32>
    %149 = vector.extract_strided_slice %148 {offsets = [0, 0], sizes = [8, 32], strides = [1, 1]} : vector<8x64xf32> to vector<8x32xf32>
    %150 = vector.extract_strided_slice %148 {offsets = [0, 32], sizes = [8, 32], strides = [1, 1]} : vector<8x64xf32> to vector<8x32xf32>
    %151 = vector.extract_strided_slice %143 {offsets = [0, 0], sizes = [6, 8], strides = [1, 1]} : vector<6x32xf32> to vector<6x8xf32>
    %152 = vector.extract_strided_slice %149 {offsets = [0, 0], sizes = [8, 8], strides = [1, 1]} : vector<8x32xf32> to vector<8x8xf32>
    %153 = vector.extract_strided_slice %150 {offsets = [0, 0], sizes = [8, 8], strides = [1, 1]} : vector<8x32xf32> to vector<8x8xf32>
    %cst_82 = arith.constant dense<0.000000e+00> : vector<6x8xf32>
    %154 = tpu.matmul %151, %152, %cst_82 {dimension_numbers = #tpu.dot_dimension_numbers<[1], [1], [0], [0], [0, 0, 1, 0], [], []>} : vector<6x8xf32>, vector<8x8xf32>, vector<6x8xf32> -> vector<6x8xf32>
    %cst_83 = arith.constant 0.353553385 : f32
    %155 = vector.broadcast %cst_83 : f32 to vector<6x8xf32>
    %156 = arith.mulf %154, %155 : vector<6x8xf32>
    %c0_i32_84 = arith.constant 0 : i32
    %157 = vector.broadcast %c0_i32_84 : i32 to vector<1x8xi32>
    %158 = arith.cmpi sgt, %7, %157 : vector<1x8xi32>
    %cst_85 = arith.constant -1.000000e+10 : f32
    %159 = vector.shape_cast %158 : vector<1x8xi1> to vector<1x8xi1>
    %160 = vector.broadcast %159 : vector<1x8xi1> to vector<6x8xi1>
    %161 = vector.broadcast %cst_85 : f32 to vector<6x8xf32>
    %162 = arith.select %160, %156, %161 : vector<6x8xi1>, vector<6x8xf32>
    %cst_86 = arith.constant dense<0xFF800000> : vector<6xf32>
    %163 = vector.multi_reduction <maximumf>, %162, %cst_86 [1] : vector<6x8xf32> to vector<6xf32>
    %164 = vector.shape_cast %163 : vector<6xf32> to vector<6x1xf32>
    %165 = vector.broadcast %164 : vector<6x1xf32> to vector<6x8xf32>
    %166 = arith.subf %162, %165 : vector<6x8xf32>
    %167 = math.exp %166 : vector<6x8xf32>
    %cst_87 = arith.constant dense<0.000000e+00> : vector<6xf32>
    %168 = vector.multi_reduction <add>, %167, %cst_87 [1] : vector<6x8xf32> to vector<6xf32>
    %169 = vector.shape_cast %168 : vector<6xf32> to vector<6x1xf32>
    %170 = vector.broadcast %169 : vector<6x1xf32> to vector<6x8xf32>
    %171 = arith.divf %167, %170 : vector<6x8xf32>
    %cst_88 = arith.constant dense<0.000000e+00> : vector<6x8xf32>
    %172 = tpu.matmul %171, %153, %cst_88 {dimension_numbers = #tpu.dot_dimension_numbers<[1], [0], [0], [1], [0, 0, 1, 1], [], []>} : vector<6x8xf32>, vector<8x8xf32>, vector<6x8xf32> -> vector<6x8xf32>
    %173 = vector.extract_strided_slice %143 {offsets = [0, 8], sizes = [6, 8], strides = [1, 1]} : vector<6x32xf32> to vector<6x8xf32>
    %174 = vector.extract_strided_slice %149 {offsets = [0, 8], sizes = [8, 8], strides = [1, 1]} : vector<8x32xf32> to vector<8x8xf32>
    %175 = vector.extract_strided_slice %150 {offsets = [0, 8], sizes = [8, 8], strides = [1, 1]} : vector<8x32xf32> to vector<8x8xf32>
    %cst_89 = arith.constant dense<0.000000e+00> : vector<6x8xf32>
    %176 = tpu.matmul %173, %174, %cst_89 {dimension_numbers = #tpu.dot_dimension_numbers<[1], [1], [0], [0], [0, 0, 1, 0], [], []>} : vector<6x8xf32>, vector<8x8xf32>, vector<6x8xf32> -> vector<6x8xf32>
    %cst_90 = arith.constant 0.353553385 : f32
    %177 = vector.broadcast %cst_90 : f32 to vector<6x8xf32>
    %178 = arith.mulf %176, %177 : vector<6x8xf32>
    %c0_i32_91 = arith.constant 0 : i32
    %179 = vector.broadcast %c0_i32_91 : i32 to vector<1x8xi32>
    %180 = arith.cmpi sgt, %7, %179 : vector<1x8xi32>
    %cst_92 = arith.constant -1.000000e+10 : f32
    %181 = vector.shape_cast %180 : vector<1x8xi1> to vector<1x8xi1>
    %182 = vector.broadcast %181 : vector<1x8xi1> to vector<6x8xi1>
    %183 = vector.broadcast %cst_92 : f32 to vector<6x8xf32>
    %184 = arith.select %182, %178, %183 : vector<6x8xi1>, vector<6x8xf32>
    %cst_93 = arith.constant dense<0xFF800000> : vector<6xf32>
    %185 = vector.multi_reduction <maximumf>, %184, %cst_93 [1] : vector<6x8xf32> to vector<6xf32>
    %186 = vector.shape_cast %185 : vector<6xf32> to vector<6x1xf32>
    %187 = vector.broadcast %186 : vector<6x1xf32> to vector<6x8xf32>
    %188 = arith.subf %184, %187 : vector<6x8xf32>
    %189 = math.exp %188 : vector<6x8xf32>
    %cst_94 = arith.constant dense<0.000000e+00> : vector<6xf32>
    %190 = vector.multi_reduction <add>, %189, %cst_94 [1] : vector<6x8xf32> to vector<6xf32>
    %191 = vector.shape_cast %190 : vector<6xf32> to vector<6x1xf32>
    %192 = vector.broadcast %191 : vector<6x1xf32> to vector<6x8xf32>
    %193 = arith.divf %189, %192 : vector<6x8xf32>
    %cst_95 = arith.constant dense<0.000000e+00> : vector<6x8xf32>
    %194 = tpu.matmul %193, %175, %cst_95 {dimension_numbers = #tpu.dot_dimension_numbers<[1], [0], [0], [1], [0, 0, 1, 1], [], []>} : vector<6x8xf32>, vector<8x8xf32>, vector<6x8xf32> -> vector<6x8xf32>
    %195 = vector.extract_strided_slice %143 {offsets = [0, 16], sizes = [6, 8], strides = [1, 1]} : vector<6x32xf32> to vector<6x8xf32>
    %196 = vector.extract_strided_slice %149 {offsets = [0, 16], sizes = [8, 8], strides = [1, 1]} : vector<8x32xf32> to vector<8x8xf32>
    %197 = vector.extract_strided_slice %150 {offsets = [0, 16], sizes = [8, 8], strides = [1, 1]} : vector<8x32xf32> to vector<8x8xf32>
    %cst_96 = arith.constant dense<0.000000e+00> : vector<6x8xf32>
    %198 = tpu.matmul %195, %196, %cst_96 {dimension_numbers = #tpu.dot_dimension_numbers<[1], [1], [0], [0], [0, 0, 1, 0], [], []>} : vector<6x8xf32>, vector<8x8xf32>, vector<6x8xf32> -> vector<6x8xf32>
    %cst_97 = arith.constant 0.353553385 : f32
    %199 = vector.broadcast %cst_97 : f32 to vector<6x8xf32>
    %200 = arith.mulf %198, %199 : vector<6x8xf32>
    %c0_i32_98 = arith.constant 0 : i32
    %201 = vector.broadcast %c0_i32_98 : i32 to vector<1x8xi32>
    %202 = arith.cmpi sgt, %7, %201 : vector<1x8xi32>
    %cst_99 = arith.constant -1.000000e+10 : f32
    %203 = vector.shape_cast %202 : vector<1x8xi1> to vector<1x8xi1>
    %204 = vector.broadcast %203 : vector<1x8xi1> to vector<6x8xi1>
    %205 = vector.broadcast %cst_99 : f32 to vector<6x8xf32>
    %206 = arith.select %204, %200, %205 : vector<6x8xi1>, vector<6x8xf32>
    %cst_100 = arith.constant dense<0xFF800000> : vector<6xf32>
    %207 = vector.multi_reduction <maximumf>, %206, %cst_100 [1] : vector<6x8xf32> to vector<6xf32>
    %208 = vector.shape_cast %207 : vector<6xf32> to vector<6x1xf32>
    %209 = vector.broadcast %208 : vector<6x1xf32> to vector<6x8xf32>
    %210 = arith.subf %206, %209 : vector<6x8xf32>
    %211 = math.exp %210 : vector<6x8xf32>
    %cst_101 = arith.constant dense<0.000000e+00> : vector<6xf32>
    %212 = vector.multi_reduction <add>, %211, %cst_101 [1] : vector<6x8xf32> to vector<6xf32>
    %213 = vector.shape_cast %212 : vector<6xf32> to vector<6x1xf32>
    %214 = vector.broadcast %213 : vector<6x1xf32> to vector<6x8xf32>
    %215 = arith.divf %211, %214 : vector<6x8xf32>
    %cst_102 = arith.constant dense<0.000000e+00> : vector<6x8xf32>
    %216 = tpu.matmul %215, %197, %cst_102 {dimension_numbers = #tpu.dot_dimension_numbers<[1], [0], [0], [1], [0, 0, 1, 1], [], []>} : vector<6x8xf32>, vector<8x8xf32>, vector<6x8xf32> -> vector<6x8xf32>
    %217 = vector.extract_strided_slice %143 {offsets = [0, 24], sizes = [6, 8], strides = [1, 1]} : vector<6x32xf32> to vector<6x8xf32>
    %218 = vector.extract_strided_slice %149 {offsets = [0, 24], sizes = [8, 8], strides = [1, 1]} : vector<8x32xf32> to vector<8x8xf32>
    %219 = vector.extract_strided_slice %150 {offsets = [0, 24], sizes = [8, 8], strides = [1, 1]} : vector<8x32xf32> to vector<8x8xf32>
    %cst_103 = arith.constant dense<0.000000e+00> : vector<6x8xf32>
    %220 = tpu.matmul %217, %218, %cst_103 {dimension_numbers = #tpu.dot_dimension_numbers<[1], [1], [0], [0], [0, 0, 1, 0], [], []>} : vector<6x8xf32>, vector<8x8xf32>, vector<6x8xf32> -> vector<6x8xf32>
    %cst_104 = arith.constant 0.353553385 : f32
    %221 = vector.broadcast %cst_104 : f32 to vector<6x8xf32>
    %222 = arith.mulf %220, %221 : vector<6x8xf32>
    %c0_i32_105 = arith.constant 0 : i32
    %223 = vector.broadcast %c0_i32_105 : i32 to vector<1x8xi32>
    %224 = arith.cmpi sgt, %7, %223 : vector<1x8xi32>
    %cst_106 = arith.constant -1.000000e+10 : f32
    %225 = vector.shape_cast %224 : vector<1x8xi1> to vector<1x8xi1>
    %226 = vector.broadcast %225 : vector<1x8xi1> to vector<6x8xi1>
    %227 = vector.broadcast %cst_106 : f32 to vector<6x8xf32>
    %228 = arith.select %226, %222, %227 : vector<6x8xi1>, vector<6x8xf32>
    %cst_107 = arith.constant dense<0xFF800000> : vector<6xf32>
    %229 = vector.multi_reduction <maximumf>, %228, %cst_107 [1] : vector<6x8xf32> to vector<6xf32>
    %230 = vector.shape_cast %229 : vector<6xf32> to vector<6x1xf32>
    %231 = vector.broadcast %230 : vector<6x1xf32> to vector<6x8xf32>
    %232 = arith.subf %228, %231 : vector<6x8xf32>
    %233 = math.exp %232 : vector<6x8xf32>
    %cst_108 = arith.constant dense<0.000000e+00> : vector<6xf32>
    %234 = vector.multi_reduction <add>, %233, %cst_108 [1] : vector<6x8xf32> to vector<6xf32>
    %235 = vector.shape_cast %234 : vector<6xf32> to vector<6x1xf32>
    %236 = vector.broadcast %235 : vector<6x1xf32> to vector<6x8xf32>
    %237 = arith.divf %233, %236 : vector<6x8xf32>
    %cst_109 = arith.constant dense<0.000000e+00> : vector<6x8xf32>
    %238 = tpu.matmul %237, %219, %cst_109 {dimension_numbers = #tpu.dot_dimension_numbers<[1], [0], [0], [1], [0, 0, 1, 1], [], []>} : vector<6x8xf32>, vector<8x8xf32>, vector<6x8xf32> -> vector<6x8xf32>
    %239 = tpu.concatenate %172, %194, %216, %238 in 1 : vector<6x8xf32>, vector<6x8xf32>, vector<6x8xf32>, vector<6x8xf32> -> vector<6x32xf32>
    %cst_110 = arith.constant dense<0.000000e+00> : vector<6x32xf32>
    %240 = tpu.matmul %239, %16, %cst_110 {dimension_numbers = #tpu.dot_dimension_numbers<[1], [0], [0], [1], [0, 0, 1, 1], [], []>} : vector<6x32xf32>, vector<32x32xf32>, vector<6x32xf32> -> vector<6x32xf32>
    %241 = vector.broadcast %17 : vector<1x32xf32> to vector<6x32xf32>
    %242 = arith.addf %240, %241 : vector<6x32xf32>
    %243 = arith.addf %138, %242 : vector<6x32xf32>
    %cst_111 = arith.constant dense<0.000000e+00> : vector<6xf32>
    %244 = vector.multi_reduction <add>, %243, %cst_111 [1] : vector<6x32xf32> to vector<6xf32>
    %245 = vector.shape_cast %244 : vector<6xf32> to vector<6x1xf32>
    %cst_112 = arith.constant 3.200000e+01 : f32
    %246 = vector.broadcast %cst_112 : f32 to vector<6x1xf32>
    %247 = arith.divf %245, %246 : vector<6x1xf32>
    %248 = vector.broadcast %247 : vector<6x1xf32> to vector<6x32xf32>
    %249 = arith.subf %243, %248 : vector<6x32xf32>
    %250 = arith.mulf %249, %249 : vector<6x32xf32>
    %cst_113 = arith.constant dense<0.000000e+00> : vector<6xf32>
    %251 = vector.multi_reduction <add>, %250, %cst_113 [1] : vector<6x32xf32> to vector<6xf32>
    %252 = vector.shape_cast %251 : vector<6xf32> to vector<6x1xf32>
    %cst_114 = arith.constant 3.200000e+01 : f32
    %253 = vector.broadcast %cst_114 : f32 to vector<6x1xf32>
    %254 = arith.divf %252, %253 : vector<6x1xf32>
    %255 = vector.broadcast %247 : vector<6x1xf32> to vector<6x32xf32>
    %256 = arith.subf %243, %255 : vector<6x32xf32>
    %cst_115 = arith.constant 9.99999974E-6 : f32
    %257 = vector.broadcast %cst_115 : f32 to vector<6x1xf32>
    %258 = arith.addf %254, %257 : vector<6x1xf32>
    %259 = math.rsqrt %258 : vector<6x1xf32>
    %260 = vector.broadcast %259 : vector<6x1xf32> to vector<6x32xf32>
    %261 = arith.mulf %256, %260 : vector<6x32xf32>
    %262 = vector.broadcast %18 : vector<1x32xf32> to vector<6x32xf32>
    %263 = arith.mulf %261, %262 : vector<6x32xf32>
    %264 = vector.broadcast %19 : vector<1x32xf32> to vector<6x32xf32>
    %265 = arith.addf %263, %264 : vector<6x32xf32>
    %cst_116 = arith.constant dense<0.000000e+00> : vector<6x64xf32>
    %266 = tpu.matmul %265, %20, %cst_116 {dimension_numbers = #tpu.dot_dimension_numbers<[1], [0], [0], [1], [0, 0, 1, 1], [], []>} : vector<6x32xf32>, vector<32x64xf32>, vector<6x64xf32> -> vector<6x64xf32>
    %267 = vector.broadcast %21 : vector<1x64xf32> to vector<6x64xf32>
    %268 = arith.addf %266, %267 : vector<6x64xf32>
    %cst_117 = arith.constant 0.000000e+00 : f32
    %269 = vector.broadcast %cst_117 : f32 to vector<6x64xf32>
    %270 = arith.maximumf %268, %269 : vector<6x64xf32>
    %cst_118 = arith.constant dense<0.000000e+00> : vector<6x32xf32>
    %271 = tpu.matmul %270, %22, %cst_118 {dimension_numbers = #tpu.dot_dimension_numbers<[1], [0], [0], [1], [0, 0, 1, 1], [], []>} : vector<6x64xf32>, vector<64x32xf32>, vector<6x32xf32> -> vector<6x32xf32>
    %272 = vector.broadcast %23 : vector<1x32xf32> to vector<6x32xf32>
    %273 = arith.addf %271, %272 : vector<6x32xf32>
    %274 = arith.addf %265, %273 : vector<6x32xf32>
    %cst_119 = arith.constant dense<0.000000e+00> : vector<6xf32>
    %275 = vector.multi_reduction <add>, %274, %cst_119 [1] : vector<6x32xf32> to vector<6xf32>
    %276 = vector.shape_cast %275 : vector<6xf32> to vector<6x1xf32>
    %cst_120 = arith.constant 3.200000e+01 : f32
    %277 = vector.broadcast %cst_120 : f32 to vector<6x1xf32>
    %278 = arith.divf %276, %277 : vector<6x1xf32>
    %279 = vector.broadcast %278 : vector<6x1xf32> to vector<6x32xf32>
    %280 = arith.subf %274, %279 : vector<6x32xf32>
    %281 = arith.mulf %280, %280 : vector<6x32xf32>
    %cst_121 = arith.constant dense<0.000000e+00> : vector<6xf32>
    %282 = vector.multi_reduction <add>, %281, %cst_121 [1] : vector<6x32xf32> to vector<6xf32>
    %283 = vector.shape_cast %282 : vector<6xf32> to vector<6x1xf32>
    %cst_122 = arith.constant 3.200000e+01 : f32
    %284 = vector.broadcast %cst_122 : f32 to vector<6x1xf32>
    %285 = arith.divf %283, %284 : vector<6x1xf32>
    %286 = vector.broadcast %278 : vector<6x1xf32> to vector<6x32xf32>
    %287 = arith.subf %274, %286 : vector<6x32xf32>
    %cst_123 = arith.constant 9.99999974E-6 : f32
    %288 = vector.broadcast %cst_123 : f32 to vector<6x1xf32>
    %289 = arith.addf %285, %288 : vector<6x1xf32>
    %290 = math.rsqrt %289 : vector<6x1xf32>
    %291 = vector.broadcast %290 : vector<6x1xf32> to vector<6x32xf32>
    %292 = arith.mulf %287, %291 : vector<6x32xf32>
    %293 = vector.broadcast %24 : vector<1x32xf32> to vector<6x32xf32>
    %294 = arith.mulf %292, %293 : vector<6x32xf32>
    %295 = vector.broadcast %25 : vector<1x32xf32> to vector<6x32xf32>
    %296 = arith.addf %294, %295 : vector<6x32xf32>
    %c0_124 = arith.constant 0 : index
    %c0_125 = arith.constant 0 : index
    %c0_126 = arith.constant 0 : index
    %297 = vector.load %arg23[%c0_124, %c0_125, %c0_126] : memref<1x6x32xf32, #tpu.memory_space<vmem>>, vector<1x6x32xf32>
    %298 = vector.shape_cast %297 : vector<1x6x32xf32> to vector<6x32xf32>
    %299 = vector.shape_cast %296 : vector<6x32xf32> to vector<1x6x32xf32>
    tpu.vector_store %arg23[%c0_124, %c0_125, %c0_126], %299 {strides = array<i32>} : memref<1x6x32xf32, #tpu.memory_space<vmem>>, vector<1x6x32xf32>,
    return
  }
  func.func @transform_0(%arg0: i32) -> (i32, i32, i32) {
    %c0_i32 = arith.constant 0 : i32
    %c0_i32_0 = arith.constant 0 : i32
    %c0_i32_1 = arith.constant 0 : i32
    return %arg0, %c0_i32, %c0_i32_0 : i32, i32, i32
  }
  func.func @transform_1(%arg0: i32) -> (i32, i32, i32) {
    %c0_i32 = arith.constant 0 : i32
    %c0_i32_0 = arith.constant 0 : i32
    %c0_i32_1 = arith.constant 0 : i32
    return %arg0, %c0_i32, %c0_i32_0 : i32, i32, i32
  }
  func.func @transform_2(%arg0: i32) -> (i32, i32, i32) {
    %c0_i32 = arith.constant 0 : i32
    %c0_i32_0 = arith.constant 0 : i32
    %c0_i32_1 = arith.constant 0 : i32
    return %arg0, %c0_i32, %c0_i32_0 : i32, i32, i32
  }
  func.func @transform_3(%arg0: i32) -> (i32, i32, i32) {
    %c0_i32 = arith.constant 0 : i32
    %c0_i32_0 = arith.constant 0 : i32
    %c0_i32_1 = arith.constant 0 : i32
    return %arg0, %c0_i32, %c0_i32_0 : i32, i32, i32
  }
  func.func @transform_4(%arg0: i32) -> (i32, i32) {
    %c0_i32 = arith.constant 0 : i32
    %c0_i32_0 = arith.constant 0 : i32
    %c0_i32_1 = arith.constant 0 : i32
    return %c0_i32, %c0_i32_0 : i32, i32
  }
  func.func @transform_5(%arg0: i32) -> (i32, i32) {
    %c0_i32 = arith.constant 0 : i32
    %c0_i32_0 = arith.constant 0 : i32
    %c0_i32_1 = arith.constant 0 : i32
    return %c0_i32, %c0_i32_0 : i32, i32
  }
  func.func @transform_6(%arg0: i32) -> (i32, i32) {
    %c0_i32 = arith.constant 0 : i32
    %c0_i32_0 = arith.constant 0 : i32
    %c0_i32_1 = arith.constant 0 : i32
    return %c0_i32, %c0_i32_0 : i32, i32
  }
  func.func @transform_7(%arg0: i32) -> (i32, i32) {
    %c0_i32 = arith.constant 0 : i32
    %c0_i32_0 = arith.constant 0 : i32
    %c0_i32_1 = arith.constant 0 : i32
    return %c0_i32, %c0_i32_0 : i32, i32
  }
  func.func @transform_8(%arg0: i32) -> (i32, i32) {
    %c0_i32 = arith.constant 0 : i32
    %c0_i32_0 = arith.constant 0 : i32
    %c0_i32_1 = arith.constant 0 : i32
    return %c0_i32, %c0_i32_0 : i32, i32
  }
  func.func @transform_9(%arg0: i32) -> (i32, i32) {
    %c0_i32 = arith.constant 0 : i32
    %c0_i32_0 = arith.constant 0 : i32
    %c0_i32_1 = arith.constant 0 : i32
    return %c0_i32, %c0_i32_0 : i32, i32
  }
  func.func @transform_10(%arg0: i32) -> (i32, i32) {
    %c0_i32 = arith.constant 0 : i32
    %c0_i32_0 = arith.constant 0 : i32
    %c0_i32_1 = arith.constant 0 : i32
    return %c0_i32, %c0_i32_0 : i32, i32
  }
  func.func @transform_11(%arg0: i32) -> (i32, i32) {
    %c0_i32 = arith.constant 0 : i32
    %c0_i32_0 = arith.constant 0 : i32
    %c0_i32_1 = arith.constant 0 : i32
    return %c0_i32, %c0_i32_0 : i32, i32
  }
  func.func @transform_12(%arg0: i32) -> (i32, i32) {
    %c0_i32 = arith.constant 0 : i32
    %c0_i32_0 = arith.constant 0 : i32
    %c0_i32_1 = arith.constant 0 : i32
    return %c0_i32, %c0_i32_0 : i32, i32
  }
  func.func @transform_13(%arg0: i32) -> (i32, i32) {
    %c0_i32 = arith.constant 0 : i32
    %c0_i32_0 = arith.constant 0 : i32
    %c0_i32_1 = arith.constant 0 : i32
    return %c0_i32, %c0_i32_0 : i32, i32
  }
  func.func @transform_14(%arg0: i32) -> (i32, i32) {
    %c0_i32 = arith.constant 0 : i32
    %c0_i32_0 = arith.constant 0 : i32
    %c0_i32_1 = arith.constant 0 : i32
    return %c0_i32, %c0_i32_0 : i32, i32
  }
  func.func @transform_15(%arg0: i32) -> (i32, i32) {
    %c0_i32 = arith.constant 0 : i32
    %c0_i32_0 = arith.constant 0 : i32
    %c0_i32_1 = arith.constant 0 : i32
    return %c0_i32, %c0_i32_0 : i32, i32
  }
  func.func @transform_16(%arg0: i32) -> (i32, i32) {
    %c0_i32 = arith.constant 0 : i32
    %c0_i32_0 = arith.constant 0 : i32
    %c0_i32_1 = arith.constant 0 : i32
    return %c0_i32, %c0_i32_0 : i32, i32
  }
  func.func @transform_17(%arg0: i32) -> (i32, i32) {
    %c0_i32 = arith.constant 0 : i32
    %c0_i32_0 = arith.constant 0 : i32
    %c0_i32_1 = arith.constant 0 : i32
    return %c0_i32, %c0_i32_0 : i32, i32
  }
  func.func @transform_18(%arg0: i32) -> (i32, i32) {
    %c0_i32 = arith.constant 0 : i32
    %c0_i32_0 = arith.constant 0 : i32
    %c0_i32_1 = arith.constant 0 : i32
    return %c0_i32, %c0_i32_0 : i32, i32
  }
  func.func @transform_19(%arg0: i32) -> (i32, i32) {
    %c0_i32 = arith.constant 0 : i32
    %c0_i32_0 = arith.constant 0 : i32
    %c0_i32_1 = arith.constant 0 : i32
    return %c0_i32, %c0_i32_0 : i32, i32
  }
  func.func @transform_20(%arg0: i32) -> (i32, i32) {
    %c0_i32 = arith.constant 0 : i32
    %c0_i32_0 = arith.constant 0 : i32
    %c0_i32_1 = arith.constant 0 : i32
    return %c0_i32, %c0_i32_0 : i32, i32
  }
  func.func @transform_21(%arg0: i32) -> (i32, i32) {
    %c0_i32 = arith.constant 0 : i32
    %c0_i32_0 = arith.constant 0 : i32
    %c0_i32_1 = arith.constant 0 : i32
    return %c0_i32, %c0_i32_0 : i32, i32
  }
  func.func @transform_22(%arg0: i32) -> (i32, i32, i32) {
    %c0_i32 = arith.constant 0 : i32
    %c0_i32_0 = arith.constant 0 : i32
    %c0_i32_1 = arith.constant 0 : i32
    return %arg0, %c0_i32, %c0_i32_0 : i32, i32, i32
  }
}

module attributes {stable_mosaic.version = 11 : i64} {
  func.func @_enc_layer_kernel(%arg0: i32, %arg1: memref<1x8x32xf32, #tpu.memory_space<vmem>>, %arg2: memref<1x1x8xi32, #tpu.memory_space<vmem>>, %arg3: memref<32x96xf32, #tpu.memory_space<vmem>>, %arg4: memref<1x96xf32, #tpu.memory_space<vmem>>, %arg5: memref<32x32xf32, #tpu.memory_space<vmem>>, %arg6: memref<1x32xf32, #tpu.memory_space<vmem>>, %arg7: memref<1x32xf32, #tpu.memory_space<vmem>>, %arg8: memref<1x32xf32, #tpu.memory_space<vmem>>, %arg9: memref<32x64xf32, #tpu.memory_space<vmem>>, %arg10: memref<1x64xf32, #tpu.memory_space<vmem>>, %arg11: memref<64x32xf32, #tpu.memory_space<vmem>>, %arg12: memref<1x32xf32, #tpu.memory_space<vmem>>, %arg13: memref<1x32xf32, #tpu.memory_space<vmem>>, %arg14: memref<1x32xf32, #tpu.memory_space<vmem>>, %arg15: memref<1x8x32xf32, #tpu.memory_space<vmem>>) attributes {dimension_semantics = [#tpu.dimension_semantics<parallel>], iteration_bounds = array<i64: 2>, scalar_prefetch = 0 : i64, scratch_operands = 0 : i64, tpu.core_type = #tpu.core_type<tc>, window_params = [{transform_indices = @transform_0, window_bounds = array<i64: 1, 8, 32>}, {transform_indices = @transform_1, window_bounds = array<i64: 1, 1, 8>}, {pipeline_mode = #tpu.pipeline_mode<synchronous>, transform_indices = @transform_2, window_bounds = array<i64: 32, 96>}, {pipeline_mode = #tpu.pipeline_mode<synchronous>, transform_indices = @transform_3, window_bounds = array<i64: 1, 96>}, {pipeline_mode = #tpu.pipeline_mode<synchronous>, transform_indices = @transform_4, window_bounds = array<i64: 32, 32>}, {pipeline_mode = #tpu.pipeline_mode<synchronous>, transform_indices = @transform_5, window_bounds = array<i64: 1, 32>}, {pipeline_mode = #tpu.pipeline_mode<synchronous>, transform_indices = @transform_6, window_bounds = array<i64: 1, 32>}, {pipeline_mode = #tpu.pipeline_mode<synchronous>, transform_indices = @transform_7, window_bounds = array<i64: 1, 32>}, {pipeline_mode = #tpu.pipeline_mode<synchronous>, transform_indices = @transform_8, window_bounds = array<i64: 32, 64>}, {pipeline_mode = #tpu.pipeline_mode<synchronous>, transform_indices = @transform_9, window_bounds = array<i64: 1, 64>}, {pipeline_mode = #tpu.pipeline_mode<synchronous>, transform_indices = @transform_10, window_bounds = array<i64: 64, 32>}, {pipeline_mode = #tpu.pipeline_mode<synchronous>, transform_indices = @transform_11, window_bounds = array<i64: 1, 32>}, {pipeline_mode = #tpu.pipeline_mode<synchronous>, transform_indices = @transform_12, window_bounds = array<i64: 1, 32>}, {pipeline_mode = #tpu.pipeline_mode<synchronous>, transform_indices = @transform_13, window_bounds = array<i64: 1, 32>}, {transform_indices = @transform_14, window_bounds = array<i64: 1, 8, 32>}]} {
    %c0 = arith.constant 0 : index
    %c0_0 = arith.constant 0 : index
    %c0_1 = arith.constant 0 : index
    %0 = vector.load %arg1[%c0, %c0_0, %c0_1] : memref<1x8x32xf32, #tpu.memory_space<vmem>>, vector<1x8x32xf32>
    %1 = vector.shape_cast %0 : vector<1x8x32xf32> to vector<8x32xf32>
    %c0_2 = arith.constant 0 : index
    %c0_3 = arith.constant 0 : index
    %c0_4 = arith.constant 0 : index
    %2 = vector.load %arg2[%c0_2, %c0_3, %c0_4] : memref<1x1x8xi32, #tpu.memory_space<vmem>>, vector<1x1x8xi32>
    %3 = vector.shape_cast %2 : vector<1x1x8xi32> to vector<1x8xi32>
    %c0_5 = arith.constant 0 : index
    %c0_6 = arith.constant 0 : index
    %4 = vector.load %arg3[%c0_5, %c0_6] : memref<32x96xf32, #tpu.memory_space<vmem>>, vector<32x96xf32>
    %c0_7 = arith.constant 0 : index
    %c0_8 = arith.constant 0 : index
    %5 = vector.load %arg4[%c0_7, %c0_8] : memref<1x96xf32, #tpu.memory_space<vmem>>, vector<1x96xf32>
    %c0_9 = arith.constant 0 : index
    %c0_10 = arith.constant 0 : index
    %6 = vector.load %arg5[%c0_9, %c0_10] : memref<32x32xf32, #tpu.memory_space<vmem>>, vector<32x32xf32>
    %c0_11 = arith.constant 0 : index
    %c0_12 = arith.constant 0 : index
    %7 = vector.load %arg6[%c0_11, %c0_12] : memref<1x32xf32, #tpu.memory_space<vmem>>, vector<1x32xf32>
    %cst = arith.constant dense<0.000000e+00> : vector<8x96xf32>
    %8 = tpu.matmul %1, %4, %cst {dimension_numbers = #tpu.dot_dimension_numbers<[1], [0], [0], [1], [0, 0, 1, 1], [], []>} : vector<8x32xf32>, vector<32x96xf32>, vector<8x96xf32> -> vector<8x96xf32>
    %9 = vector.broadcast %5 : vector<1x96xf32> to vector<8x96xf32>
    %10 = arith.addf %8, %9 : vector<8x96xf32>
    %11 = vector.extract_strided_slice %10 {offsets = [0, 0], sizes = [8, 32], strides = [1, 1]} : vector<8x96xf32> to vector<8x32xf32>
    %12 = vector.extract_strided_slice %10 {offsets = [0, 32], sizes = [8, 32], strides = [1, 1]} : vector<8x96xf32> to vector<8x32xf32>
    %13 = vector.extract_strided_slice %10 {offsets = [0, 64], sizes = [8, 32], strides = [1, 1]} : vector<8x96xf32> to vector<8x32xf32>
    %14 = vector.extract_strided_slice %11 {offsets = [0, 0], sizes = [8, 8], strides = [1, 1]} : vector<8x32xf32> to vector<8x8xf32>
    %15 = vector.extract_strided_slice %12 {offsets = [0, 0], sizes = [8, 8], strides = [1, 1]} : vector<8x32xf32> to vector<8x8xf32>
    %16 = vector.extract_strided_slice %13 {offsets = [0, 0], sizes = [8, 8], strides = [1, 1]} : vector<8x32xf32> to vector<8x8xf32>
    %cst_13 = arith.constant dense<0.000000e+00> : vector<8x8xf32>
    %17 = tpu.matmul %14, %15, %cst_13 {dimension_numbers = #tpu.dot_dimension_numbers<[1], [1], [0], [0], [0, 0, 1, 0], [], []>} : vector<8x8xf32>, vector<8x8xf32>, vector<8x8xf32> -> vector<8x8xf32>
    %cst_14 = arith.constant 0.353553385 : f32
    %18 = vector.broadcast %cst_14 : f32 to vector<8x8xf32>
    %19 = arith.mulf %17, %18 : vector<8x8xf32>
    %c0_i32 = arith.constant 0 : i32
    %20 = vector.broadcast %c0_i32 : i32 to vector<1x8xi32>
    %21 = arith.cmpi sgt, %3, %20 : vector<1x8xi32>
    %cst_15 = arith.constant -1.000000e+10 : f32
    %22 = vector.shape_cast %21 : vector<1x8xi1> to vector<1x8xi1>
    %23 = vector.broadcast %22 : vector<1x8xi1> to vector<8x8xi1>
    %24 = vector.broadcast %cst_15 : f32 to vector<8x8xf32>
    %25 = arith.select %23, %19, %24 : vector<8x8xi1>, vector<8x8xf32>
    %cst_16 = arith.constant dense<0xFF800000> : vector<8xf32>
    %26 = vector.multi_reduction <maximumf>, %25, %cst_16 [1] : vector<8x8xf32> to vector<8xf32>
    %27 = vector.shape_cast %26 : vector<8xf32> to vector<8x1xf32>
    %28 = vector.broadcast %27 : vector<8x1xf32> to vector<8x8xf32>
    %29 = arith.subf %25, %28 : vector<8x8xf32>
    %30 = math.exp %29 : vector<8x8xf32>
    %cst_17 = arith.constant dense<0.000000e+00> : vector<8xf32>
    %31 = vector.multi_reduction <add>, %30, %cst_17 [1] : vector<8x8xf32> to vector<8xf32>
    %32 = vector.shape_cast %31 : vector<8xf32> to vector<8x1xf32>
    %33 = vector.broadcast %32 : vector<8x1xf32> to vector<8x8xf32>
    %34 = arith.divf %30, %33 : vector<8x8xf32>
    %cst_18 = arith.constant dense<0.000000e+00> : vector<8x8xf32>
    %35 = tpu.matmul %34, %16, %cst_18 {dimension_numbers = #tpu.dot_dimension_numbers<[1], [0], [0], [1], [0, 0, 1, 1], [], []>} : vector<8x8xf32>, vector<8x8xf32>, vector<8x8xf32> -> vector<8x8xf32>
    %36 = vector.extract_strided_slice %11 {offsets = [0, 8], sizes = [8, 8], strides = [1, 1]} : vector<8x32xf32> to vector<8x8xf32>
    %37 = vector.extract_strided_slice %12 {offsets = [0, 8], sizes = [8, 8], strides = [1, 1]} : vector<8x32xf32> to vector<8x8xf32>
    %38 = vector.extract_strided_slice %13 {offsets = [0, 8], sizes = [8, 8], strides = [1, 1]} : vector<8x32xf32> to vector<8x8xf32>
    %cst_19 = arith.constant dense<0.000000e+00> : vector<8x8xf32>
    %39 = tpu.matmul %36, %37, %cst_19 {dimension_numbers = #tpu.dot_dimension_numbers<[1], [1], [0], [0], [0, 0, 1, 0], [], []>} : vector<8x8xf32>, vector<8x8xf32>, vector<8x8xf32> -> vector<8x8xf32>
    %cst_20 = arith.constant 0.353553385 : f32
    %40 = vector.broadcast %cst_20 : f32 to vector<8x8xf32>
    %41 = arith.mulf %39, %40 : vector<8x8xf32>
    %c0_i32_21 = arith.constant 0 : i32
    %42 = vector.broadcast %c0_i32_21 : i32 to vector<1x8xi32>
    %43 = arith.cmpi sgt, %3, %42 : vector<1x8xi32>
    %cst_22 = arith.constant -1.000000e+10 : f32
    %44 = vector.shape_cast %43 : vector<1x8xi1> to vector<1x8xi1>
    %45 = vector.broadcast %44 : vector<1x8xi1> to vector<8x8xi1>
    %46 = vector.broadcast %cst_22 : f32 to vector<8x8xf32>
    %47 = arith.select %45, %41, %46 : vector<8x8xi1>, vector<8x8xf32>
    %cst_23 = arith.constant dense<0xFF800000> : vector<8xf32>
    %48 = vector.multi_reduction <maximumf>, %47, %cst_23 [1] : vector<8x8xf32> to vector<8xf32>
    %49 = vector.shape_cast %48 : vector<8xf32> to vector<8x1xf32>
    %50 = vector.broadcast %49 : vector<8x1xf32> to vector<8x8xf32>
    %51 = arith.subf %47, %50 : vector<8x8xf32>
    %52 = math.exp %51 : vector<8x8xf32>
    %cst_24 = arith.constant dense<0.000000e+00> : vector<8xf32>
    %53 = vector.multi_reduction <add>, %52, %cst_24 [1] : vector<8x8xf32> to vector<8xf32>
    %54 = vector.shape_cast %53 : vector<8xf32> to vector<8x1xf32>
    %55 = vector.broadcast %54 : vector<8x1xf32> to vector<8x8xf32>
    %56 = arith.divf %52, %55 : vector<8x8xf32>
    %cst_25 = arith.constant dense<0.000000e+00> : vector<8x8xf32>
    %57 = tpu.matmul %56, %38, %cst_25 {dimension_numbers = #tpu.dot_dimension_numbers<[1], [0], [0], [1], [0, 0, 1, 1], [], []>} : vector<8x8xf32>, vector<8x8xf32>, vector<8x8xf32> -> vector<8x8xf32>
    %58 = vector.extract_strided_slice %11 {offsets = [0, 16], sizes = [8, 8], strides = [1, 1]} : vector<8x32xf32> to vector<8x8xf32>
    %59 = vector.extract_strided_slice %12 {offsets = [0, 16], sizes = [8, 8], strides = [1, 1]} : vector<8x32xf32> to vector<8x8xf32>
    %60 = vector.extract_strided_slice %13 {offsets = [0, 16], sizes = [8, 8], strides = [1, 1]} : vector<8x32xf32> to vector<8x8xf32>
    %cst_26 = arith.constant dense<0.000000e+00> : vector<8x8xf32>
    %61 = tpu.matmul %58, %59, %cst_26 {dimension_numbers = #tpu.dot_dimension_numbers<[1], [1], [0], [0], [0, 0, 1, 0], [], []>} : vector<8x8xf32>, vector<8x8xf32>, vector<8x8xf32> -> vector<8x8xf32>
    %cst_27 = arith.constant 0.353553385 : f32
    %62 = vector.broadcast %cst_27 : f32 to vector<8x8xf32>
    %63 = arith.mulf %61, %62 : vector<8x8xf32>
    %c0_i32_28 = arith.constant 0 : i32
    %64 = vector.broadcast %c0_i32_28 : i32 to vector<1x8xi32>
    %65 = arith.cmpi sgt, %3, %64 : vector<1x8xi32>
    %cst_29 = arith.constant -1.000000e+10 : f32
    %66 = vector.shape_cast %65 : vector<1x8xi1> to vector<1x8xi1>
    %67 = vector.broadcast %66 : vector<1x8xi1> to vector<8x8xi1>
    %68 = vector.broadcast %cst_29 : f32 to vector<8x8xf32>
    %69 = arith.select %67, %63, %68 : vector<8x8xi1>, vector<8x8xf32>
    %cst_30 = arith.constant dense<0xFF800000> : vector<8xf32>
    %70 = vector.multi_reduction <maximumf>, %69, %cst_30 [1] : vector<8x8xf32> to vector<8xf32>
    %71 = vector.shape_cast %70 : vector<8xf32> to vector<8x1xf32>
    %72 = vector.broadcast %71 : vector<8x1xf32> to vector<8x8xf32>
    %73 = arith.subf %69, %72 : vector<8x8xf32>
    %74 = math.exp %73 : vector<8x8xf32>
    %cst_31 = arith.constant dense<0.000000e+00> : vector<8xf32>
    %75 = vector.multi_reduction <add>, %74, %cst_31 [1] : vector<8x8xf32> to vector<8xf32>
    %76 = vector.shape_cast %75 : vector<8xf32> to vector<8x1xf32>
    %77 = vector.broadcast %76 : vector<8x1xf32> to vector<8x8xf32>
    %78 = arith.divf %74, %77 : vector<8x8xf32>
    %cst_32 = arith.constant dense<0.000000e+00> : vector<8x8xf32>
    %79 = tpu.matmul %78, %60, %cst_32 {dimension_numbers = #tpu.dot_dimension_numbers<[1], [0], [0], [1], [0, 0, 1, 1], [], []>} : vector<8x8xf32>, vector<8x8xf32>, vector<8x8xf32> -> vector<8x8xf32>
    %80 = vector.extract_strided_slice %11 {offsets = [0, 24], sizes = [8, 8], strides = [1, 1]} : vector<8x32xf32> to vector<8x8xf32>
    %81 = vector.extract_strided_slice %12 {offsets = [0, 24], sizes = [8, 8], strides = [1, 1]} : vector<8x32xf32> to vector<8x8xf32>
    %82 = vector.extract_strided_slice %13 {offsets = [0, 24], sizes = [8, 8], strides = [1, 1]} : vector<8x32xf32> to vector<8x8xf32>
    %cst_33 = arith.constant dense<0.000000e+00> : vector<8x8xf32>
    %83 = tpu.matmul %80, %81, %cst_33 {dimension_numbers = #tpu.dot_dimension_numbers<[1], [1], [0], [0], [0, 0, 1, 0], [], []>} : vector<8x8xf32>, vector<8x8xf32>, vector<8x8xf32> -> vector<8x8xf32>
    %cst_34 = arith.constant 0.353553385 : f32
    %84 = vector.broadcast %cst_34 : f32 to vector<8x8xf32>
    %85 = arith.mulf %83, %84 : vector<8x8xf32>
    %c0_i32_35 = arith.constant 0 : i32
    %86 = vector.broadcast %c0_i32_35 : i32 to vector<1x8xi32>
    %87 = arith.cmpi sgt, %3, %86 : vector<1x8xi32>
    %cst_36 = arith.constant -1.000000e+10 : f32
    %88 = vector.shape_cast %87 : vector<1x8xi1> to vector<1x8xi1>
    %89 = vector.broadcast %88 : vector<1x8xi1> to vector<8x8xi1>
    %90 = vector.broadcast %cst_36 : f32 to vector<8x8xf32>
    %91 = arith.select %89, %85, %90 : vector<8x8xi1>, vector<8x8xf32>
    %cst_37 = arith.constant dense<0xFF800000> : vector<8xf32>
    %92 = vector.multi_reduction <maximumf>, %91, %cst_37 [1] : vector<8x8xf32> to vector<8xf32>
    %93 = vector.shape_cast %92 : vector<8xf32> to vector<8x1xf32>
    %94 = vector.broadcast %93 : vector<8x1xf32> to vector<8x8xf32>
    %95 = arith.subf %91, %94 : vector<8x8xf32>
    %96 = math.exp %95 : vector<8x8xf32>
    %cst_38 = arith.constant dense<0.000000e+00> : vector<8xf32>
    %97 = vector.multi_reduction <add>, %96, %cst_38 [1] : vector<8x8xf32> to vector<8xf32>
    %98 = vector.shape_cast %97 : vector<8xf32> to vector<8x1xf32>
    %99 = vector.broadcast %98 : vector<8x1xf32> to vector<8x8xf32>
    %100 = arith.divf %96, %99 : vector<8x8xf32>
    %cst_39 = arith.constant dense<0.000000e+00> : vector<8x8xf32>
    %101 = tpu.matmul %100, %82, %cst_39 {dimension_numbers = #tpu.dot_dimension_numbers<[1], [0], [0], [1], [0, 0, 1, 1], [], []>} : vector<8x8xf32>, vector<8x8xf32>, vector<8x8xf32> -> vector<8x8xf32>
    %102 = tpu.concatenate %35, %57, %79, %101 in 1 : vector<8x8xf32>, vector<8x8xf32>, vector<8x8xf32>, vector<8x8xf32> -> vector<8x32xf32>
    %cst_40 = arith.constant dense<0.000000e+00> : vector<8x32xf32>
    %103 = tpu.matmul %102, %6, %cst_40 {dimension_numbers = #tpu.dot_dimension_numbers<[1], [0], [0], [1], [0, 0, 1, 1], [], []>} : vector<8x32xf32>, vector<32x32xf32>, vector<8x32xf32> -> vector<8x32xf32>
    %104 = vector.broadcast %7 : vector<1x32xf32> to vector<8x32xf32>
    %105 = arith.addf %103, %104 : vector<8x32xf32>
    %106 = arith.addf %1, %105 : vector<8x32xf32>
    %c0_41 = arith.constant 0 : index
    %c0_42 = arith.constant 0 : index
    %107 = vector.load %arg7[%c0_41, %c0_42] : memref<1x32xf32, #tpu.memory_space<vmem>>, vector<1x32xf32>
    %c0_43 = arith.constant 0 : index
    %c0_44 = arith.constant 0 : index
    %108 = vector.load %arg8[%c0_43, %c0_44] : memref<1x32xf32, #tpu.memory_space<vmem>>, vector<1x32xf32>
    %cst_45 = arith.constant dense<0.000000e+00> : vector<8xf32>
    %109 = vector.multi_reduction <add>, %106, %cst_45 [1] : vector<8x32xf32> to vector<8xf32>
    %110 = vector.shape_cast %109 : vector<8xf32> to vector<8x1xf32>
    %cst_46 = arith.constant 3.200000e+01 : f32
    %111 = vector.broadcast %cst_46 : f32 to vector<8x1xf32>
    %112 = arith.divf %110, %111 : vector<8x1xf32>
    %113 = vector.broadcast %112 : vector<8x1xf32> to vector<8x32xf32>
    %114 = arith.subf %106, %113 : vector<8x32xf32>
    %115 = arith.mulf %114, %114 : vector<8x32xf32>
    %cst_47 = arith.constant dense<0.000000e+00> : vector<8xf32>
    %116 = vector.multi_reduction <add>, %115, %cst_47 [1] : vector<8x32xf32> to vector<8xf32>
    %117 = vector.shape_cast %116 : vector<8xf32> to vector<8x1xf32>
    %cst_48 = arith.constant 3.200000e+01 : f32
    %118 = vector.broadcast %cst_48 : f32 to vector<8x1xf32>
    %119 = arith.divf %117, %118 : vector<8x1xf32>
    %120 = vector.broadcast %112 : vector<8x1xf32> to vector<8x32xf32>
    %121 = arith.subf %106, %120 : vector<8x32xf32>
    %cst_49 = arith.constant 9.99999974E-6 : f32
    %122 = vector.broadcast %cst_49 : f32 to vector<8x1xf32>
    %123 = arith.addf %119, %122 : vector<8x1xf32>
    %124 = math.rsqrt %123 : vector<8x1xf32>
    %125 = vector.broadcast %124 : vector<8x1xf32> to vector<8x32xf32>
    %126 = arith.mulf %121, %125 : vector<8x32xf32>
    %127 = vector.broadcast %107 : vector<1x32xf32> to vector<8x32xf32>
    %128 = arith.mulf %126, %127 : vector<8x32xf32>
    %129 = vector.broadcast %108 : vector<1x32xf32> to vector<8x32xf32>
    %130 = arith.addf %128, %129 : vector<8x32xf32>
    %c0_50 = arith.constant 0 : index
    %c0_51 = arith.constant 0 : index
    %131 = vector.load %arg9[%c0_50, %c0_51] : memref<32x64xf32, #tpu.memory_space<vmem>>, vector<32x64xf32>
    %c0_52 = arith.constant 0 : index
    %c0_53 = arith.constant 0 : index
    %132 = vector.load %arg10[%c0_52, %c0_53] : memref<1x64xf32, #tpu.memory_space<vmem>>, vector<1x64xf32>
    %c0_54 = arith.constant 0 : index
    %c0_55 = arith.constant 0 : index
    %133 = vector.load %arg11[%c0_54, %c0_55] : memref<64x32xf32, #tpu.memory_space<vmem>>, vector<64x32xf32>
    %c0_56 = arith.constant 0 : index
    %c0_57 = arith.constant 0 : index
    %134 = vector.load %arg12[%c0_56, %c0_57] : memref<1x32xf32, #tpu.memory_space<vmem>>, vector<1x32xf32>
    %cst_58 = arith.constant dense<0.000000e+00> : vector<8x64xf32>
    %135 = tpu.matmul %130, %131, %cst_58 {dimension_numbers = #tpu.dot_dimension_numbers<[1], [0], [0], [1], [0, 0, 1, 1], [], []>} : vector<8x32xf32>, vector<32x64xf32>, vector<8x64xf32> -> vector<8x64xf32>
    %136 = vector.broadcast %132 : vector<1x64xf32> to vector<8x64xf32>
    %137 = arith.addf %135, %136 : vector<8x64xf32>
    %cst_59 = arith.constant 0.000000e+00 : f32
    %138 = vector.broadcast %cst_59 : f32 to vector<8x64xf32>
    %139 = arith.maximumf %137, %138 : vector<8x64xf32>
    %cst_60 = arith.constant dense<0.000000e+00> : vector<8x32xf32>
    %140 = tpu.matmul %139, %133, %cst_60 {dimension_numbers = #tpu.dot_dimension_numbers<[1], [0], [0], [1], [0, 0, 1, 1], [], []>} : vector<8x64xf32>, vector<64x32xf32>, vector<8x32xf32> -> vector<8x32xf32>
    %141 = vector.broadcast %134 : vector<1x32xf32> to vector<8x32xf32>
    %142 = arith.addf %140, %141 : vector<8x32xf32>
    %143 = arith.addf %130, %142 : vector<8x32xf32>
    %c0_61 = arith.constant 0 : index
    %c0_62 = arith.constant 0 : index
    %144 = vector.load %arg13[%c0_61, %c0_62] : memref<1x32xf32, #tpu.memory_space<vmem>>, vector<1x32xf32>
    %c0_63 = arith.constant 0 : index
    %c0_64 = arith.constant 0 : index
    %145 = vector.load %arg14[%c0_63, %c0_64] : memref<1x32xf32, #tpu.memory_space<vmem>>, vector<1x32xf32>
    %cst_65 = arith.constant dense<0.000000e+00> : vector<8xf32>
    %146 = vector.multi_reduction <add>, %143, %cst_65 [1] : vector<8x32xf32> to vector<8xf32>
    %147 = vector.shape_cast %146 : vector<8xf32> to vector<8x1xf32>
    %cst_66 = arith.constant 3.200000e+01 : f32
    %148 = vector.broadcast %cst_66 : f32 to vector<8x1xf32>
    %149 = arith.divf %147, %148 : vector<8x1xf32>
    %150 = vector.broadcast %149 : vector<8x1xf32> to vector<8x32xf32>
    %151 = arith.subf %143, %150 : vector<8x32xf32>
    %152 = arith.mulf %151, %151 : vector<8x32xf32>
    %cst_67 = arith.constant dense<0.000000e+00> : vector<8xf32>
    %153 = vector.multi_reduction <add>, %152, %cst_67 [1] : vector<8x32xf32> to vector<8xf32>
    %154 = vector.shape_cast %153 : vector<8xf32> to vector<8x1xf32>
    %cst_68 = arith.constant 3.200000e+01 : f32
    %155 = vector.broadcast %cst_68 : f32 to vector<8x1xf32>
    %156 = arith.divf %154, %155 : vector<8x1xf32>
    %157 = vector.broadcast %149 : vector<8x1xf32> to vector<8x32xf32>
    %158 = arith.subf %143, %157 : vector<8x32xf32>
    %cst_69 = arith.constant 9.99999974E-6 : f32
    %159 = vector.broadcast %cst_69 : f32 to vector<8x1xf32>
    %160 = arith.addf %156, %159 : vector<8x1xf32>
    %161 = math.rsqrt %160 : vector<8x1xf32>
    %162 = vector.broadcast %161 : vector<8x1xf32> to vector<8x32xf32>
    %163 = arith.mulf %158, %162 : vector<8x32xf32>
    %164 = vector.broadcast %144 : vector<1x32xf32> to vector<8x32xf32>
    %165 = arith.mulf %163, %164 : vector<8x32xf32>
    %166 = vector.broadcast %145 : vector<1x32xf32> to vector<8x32xf32>
    %167 = arith.addf %165, %166 : vector<8x32xf32>
    %c0_70 = arith.constant 0 : index
    %c0_71 = arith.constant 0 : index
    %c0_72 = arith.constant 0 : index
    %168 = vector.load %arg15[%c0_70, %c0_71, %c0_72] : memref<1x8x32xf32, #tpu.memory_space<vmem>>, vector<1x8x32xf32>
    %169 = vector.shape_cast %168 : vector<1x8x32xf32> to vector<8x32xf32>
    %170 = vector.shape_cast %167 : vector<8x32xf32> to vector<1x8x32xf32>
    tpu.vector_store %arg15[%c0_70, %c0_71, %c0_72], %170 {strides = array<i32>} : memref<1x8x32xf32, #tpu.memory_space<vmem>>, vector<1x8x32xf32>,
    return
  }
  func.func @transform_0(%arg0: i32) -> (i32, i32, i32) {
    %c0_i32 = arith.constant 0 : i32
    %c0_i32_0 = arith.constant 0 : i32
    %c0_i32_1 = arith.constant 0 : i32
    return %arg0, %c0_i32, %c0_i32_0 : i32, i32, i32
  }
  func.func @transform_1(%arg0: i32) -> (i32, i32, i32) {
    %c0_i32 = arith.constant 0 : i32
    %c0_i32_0 = arith.constant 0 : i32
    %c0_i32_1 = arith.constant 0 : i32
    return %arg0, %c0_i32, %c0_i32_0 : i32, i32, i32
  }
  func.func @transform_2(%arg0: i32) -> (i32, i32) {
    %c0_i32 = arith.constant 0 : i32
    %c0_i32_0 = arith.constant 0 : i32
    %c0_i32_1 = arith.constant 0 : i32
    return %c0_i32, %c0_i32_0 : i32, i32
  }
  func.func @transform_3(%arg0: i32) -> (i32, i32) {
    %c0_i32 = arith.constant 0 : i32
    %c0_i32_0 = arith.constant 0 : i32
    %c0_i32_1 = arith.constant 0 : i32
    return %c0_i32, %c0_i32_0 : i32, i32
  }
  func.func @transform_4(%arg0: i32) -> (i32, i32) {
    %c0_i32 = arith.constant 0 : i32
    %c0_i32_0 = arith.constant 0 : i32
    %c0_i32_1 = arith.constant 0 : i32
    return %c0_i32, %c0_i32_0 : i32, i32
  }
  func.func @transform_5(%arg0: i32) -> (i32, i32) {
    %c0_i32 = arith.constant 0 : i32
    %c0_i32_0 = arith.constant 0 : i32
    %c0_i32_1 = arith.constant 0 : i32
    return %c0_i32, %c0_i32_0 : i32, i32
  }
  func.func @transform_6(%arg0: i32) -> (i32, i32) {
    %c0_i32 = arith.constant 0 : i32
    %c0_i32_0 = arith.constant 0 : i32
    %c0_i32_1 = arith.constant 0 : i32
    return %c0_i32, %c0_i32_0 : i32, i32
  }
  func.func @transform_7(%arg0: i32) -> (i32, i32) {
    %c0_i32 = arith.constant 0 : i32
    %c0_i32_0 = arith.constant 0 : i32
    %c0_i32_1 = arith.constant 0 : i32
    return %c0_i32, %c0_i32_0 : i32, i32
  }
  func.func @transform_8(%arg0: i32) -> (i32, i32) {
    %c0_i32 = arith.constant 0 : i32
    %c0_i32_0 = arith.constant 0 : i32
    %c0_i32_1 = arith.constant 0 : i32
    return %c0_i32, %c0_i32_0 : i32, i32
  }
  func.func @transform_9(%arg0: i32) -> (i32, i32) {
    %c0_i32 = arith.constant 0 : i32
    %c0_i32_0 = arith.constant 0 : i32
    %c0_i32_1 = arith.constant 0 : i32
    return %c0_i32, %c0_i32_0 : i32, i32
  }
  func.func @transform_10(%arg0: i32) -> (i32, i32) {
    %c0_i32 = arith.constant 0 : i32
    %c0_i32_0 = arith.constant 0 : i32
    %c0_i32_1 = arith.constant 0 : i32
    return %c0_i32, %c0_i32_0 : i32, i32
  }
  func.func @transform_11(%arg0: i32) -> (i32, i32) {
    %c0_i32 = arith.constant 0 : i32
    %c0_i32_0 = arith.constant 0 : i32
    %c0_i32_1 = arith.constant 0 : i32
    return %c0_i32, %c0_i32_0 : i32, i32
  }
  func.func @transform_12(%arg0: i32) -> (i32, i32) {
    %c0_i32 = arith.constant 0 : i32
    %c0_i32_0 = arith.constant 0 : i32
    %c0_i32_1 = arith.constant 0 : i32
    return %c0_i32, %c0_i32_0 : i32, i32
  }
  func.func @transform_13(%arg0: i32) -> (i32, i32) {
    %c0_i32 = arith.constant 0 : i32
    %c0_i32_0 = arith.constant 0 : i32
    %c0_i32_1 = arith.constant 0 : i32
    return %c0_i32, %c0_i32_0 : i32, i32
  }
  func.func @transform_14(%arg0: i32) -> (i32, i32, i32) {
    %c0_i32 = arith.constant 0 : i32
    %c0_i32_0 = arith.constant 0 : i32
    %c0_i32_1 = arith.constant 0 : i32
    return %arg0, %c0_i32, %c0_i32_0 : i32, i32, i32
  }
}

module attributes {stable_mosaic.version = 11 : i64} {
  func.func @_dec_layer_last_kernel(%arg0: i32, %arg1: memref<1x6x32xf32, #tpu.memory_space<vmem>>, %arg2: memref<1x8x32xf32, #tpu.memory_space<vmem>>, %arg3: memref<1x6x6xi32, #tpu.memory_space<vmem>>, %arg4: memref<1x1x8xi32, #tpu.memory_space<vmem>>, %arg5: memref<32x96xf32, #tpu.memory_space<vmem>>, %arg6: memref<1x96xf32, #tpu.memory_space<vmem>>, %arg7: memref<32x32xf32, #tpu.memory_space<vmem>>, %arg8: memref<1x32xf32, #tpu.memory_space<vmem>>, %arg9: memref<1x32xf32, #tpu.memory_space<vmem>>, %arg10: memref<1x32xf32, #tpu.memory_space<vmem>>, %arg11: memref<32x96xf32, #tpu.memory_space<vmem>>, %arg12: memref<1x96xf32, #tpu.memory_space<vmem>>, %arg13: memref<32x32xf32, #tpu.memory_space<vmem>>, %arg14: memref<1x32xf32, #tpu.memory_space<vmem>>, %arg15: memref<1x32xf32, #tpu.memory_space<vmem>>, %arg16: memref<1x32xf32, #tpu.memory_space<vmem>>, %arg17: memref<32x64xf32, #tpu.memory_space<vmem>>, %arg18: memref<1x64xf32, #tpu.memory_space<vmem>>, %arg19: memref<64x32xf32, #tpu.memory_space<vmem>>, %arg20: memref<1x32xf32, #tpu.memory_space<vmem>>, %arg21: memref<1x32xf32, #tpu.memory_space<vmem>>, %arg22: memref<1x32xf32, #tpu.memory_space<vmem>>, %arg23: memref<32x24xf32, #tpu.memory_space<vmem>>, %arg24: memref<1x24xf32, #tpu.memory_space<vmem>>, %arg25: memref<1x6x24xf32, #tpu.memory_space<vmem>>, %arg26: memref<1x4x6x8xf32, #tpu.memory_space<vmem>>) attributes {dimension_semantics = [#tpu.dimension_semantics<parallel>], iteration_bounds = array<i64: 2>, scalar_prefetch = 0 : i64, scratch_operands = 0 : i64, tpu.core_type = #tpu.core_type<tc>, window_params = [{transform_indices = @transform_0, window_bounds = array<i64: 1, 6, 32>}, {transform_indices = @transform_1, window_bounds = array<i64: 1, 8, 32>}, {transform_indices = @transform_2, window_bounds = array<i64: 1, 6, 6>}, {transform_indices = @transform_3, window_bounds = array<i64: 1, 1, 8>}, {pipeline_mode = #tpu.pipeline_mode<synchronous>, transform_indices = @transform_4, window_bounds = array<i64: 32, 96>}, {pipeline_mode = #tpu.pipeline_mode<synchronous>, transform_indices = @transform_5, window_bounds = array<i64: 1, 96>}, {pipeline_mode = #tpu.pipeline_mode<synchronous>, transform_indices = @transform_6, window_bounds = array<i64: 32, 32>}, {pipeline_mode = #tpu.pipeline_mode<synchronous>, transform_indices = @transform_7, window_bounds = array<i64: 1, 32>}, {pipeline_mode = #tpu.pipeline_mode<synchronous>, transform_indices = @transform_8, window_bounds = array<i64: 1, 32>}, {pipeline_mode = #tpu.pipeline_mode<synchronous>, transform_indices = @transform_9, window_bounds = array<i64: 1, 32>}, {pipeline_mode = #tpu.pipeline_mode<synchronous>, transform_indices = @transform_10, window_bounds = array<i64: 32, 96>}, {pipeline_mode = #tpu.pipeline_mode<synchronous>, transform_indices = @transform_11, window_bounds = array<i64: 1, 96>}, {pipeline_mode = #tpu.pipeline_mode<synchronous>, transform_indices = @transform_12, window_bounds = array<i64: 32, 32>}, {pipeline_mode = #tpu.pipeline_mode<synchronous>, transform_indices = @transform_13, window_bounds = array<i64: 1, 32>}, {pipeline_mode = #tpu.pipeline_mode<synchronous>, transform_indices = @transform_14, window_bounds = array<i64: 1, 32>}, {pipeline_mode = #tpu.pipeline_mode<synchronous>, transform_indices = @transform_15, window_bounds = array<i64: 1, 32>}, {pipeline_mode = #tpu.pipeline_mode<synchronous>, transform_indices = @transform_16, window_bounds = array<i64: 32, 64>}, {pipeline_mode = #tpu.pipeline_mode<synchronous>, transform_indices = @transform_17, window_bounds = array<i64: 1, 64>}, {pipeline_mode = #tpu.pipeline_mode<synchronous>, transform_indices = @transform_18, window_bounds = array<i64: 64, 32>}, {pipeline_mode = #tpu.pipeline_mode<synchronous>, transform_indices = @transform_19, window_bounds = array<i64: 1, 32>}, {pipeline_mode = #tpu.pipeline_mode<synchronous>, transform_indices = @transform_20, window_bounds = array<i64: 1, 32>}, {pipeline_mode = #tpu.pipeline_mode<synchronous>, transform_indices = @transform_21, window_bounds = array<i64: 1, 32>}, {pipeline_mode = #tpu.pipeline_mode<synchronous>, transform_indices = @transform_22, window_bounds = array<i64: 32, 24>}, {pipeline_mode = #tpu.pipeline_mode<synchronous>, transform_indices = @transform_23, window_bounds = array<i64: 1, 24>}, {transform_indices = @transform_24, window_bounds = array<i64: 1, 6, 24>}, {transform_indices = @transform_25, window_bounds = array<i64: 1, 4, 6, 8>}]} {
    %c0 = arith.constant 0 : index
    %c0_0 = arith.constant 0 : index
    %c0_1 = arith.constant 0 : index
    %0 = vector.load %arg1[%c0, %c0_0, %c0_1] : memref<1x6x32xf32, #tpu.memory_space<vmem>>, vector<1x6x32xf32>
    %1 = vector.shape_cast %0 : vector<1x6x32xf32> to vector<6x32xf32>
    %c0_2 = arith.constant 0 : index
    %c0_3 = arith.constant 0 : index
    %c0_4 = arith.constant 0 : index
    %2 = vector.load %arg2[%c0_2, %c0_3, %c0_4] : memref<1x8x32xf32, #tpu.memory_space<vmem>>, vector<1x8x32xf32>
    %3 = vector.shape_cast %2 : vector<1x8x32xf32> to vector<8x32xf32>
    %c0_5 = arith.constant 0 : index
    %c0_6 = arith.constant 0 : index
    %c0_7 = arith.constant 0 : index
    %4 = vector.load %arg3[%c0_5, %c0_6, %c0_7] : memref<1x6x6xi32, #tpu.memory_space<vmem>>, vector<1x6x6xi32>
    %5 = vector.shape_cast %4 : vector<1x6x6xi32> to vector<6x6xi32>
    %c0_8 = arith.constant 0 : index
    %c0_9 = arith.constant 0 : index
    %c0_10 = arith.constant 0 : index
    %6 = vector.load %arg4[%c0_8, %c0_9, %c0_10] : memref<1x1x8xi32, #tpu.memory_space<vmem>>, vector<1x1x8xi32>
    %7 = vector.shape_cast %6 : vector<1x1x8xi32> to vector<1x8xi32>
    %c0_11 = arith.constant 0 : index
    %c0_12 = arith.constant 0 : index
    %8 = vector.load %arg5[%c0_11, %c0_12] : memref<32x96xf32, #tpu.memory_space<vmem>>, vector<32x96xf32>
    %c0_13 = arith.constant 0 : index
    %c0_14 = arith.constant 0 : index
    %9 = vector.load %arg6[%c0_13, %c0_14] : memref<1x96xf32, #tpu.memory_space<vmem>>, vector<1x96xf32>
    %c0_15 = arith.constant 0 : index
    %c0_16 = arith.constant 0 : index
    %10 = vector.load %arg7[%c0_15, %c0_16] : memref<32x32xf32, #tpu.memory_space<vmem>>, vector<32x32xf32>
    %c0_17 = arith.constant 0 : index
    %c0_18 = arith.constant 0 : index
    %11 = vector.load %arg8[%c0_17, %c0_18] : memref<1x32xf32, #tpu.memory_space<vmem>>, vector<1x32xf32>
    %c0_19 = arith.constant 0 : index
    %c0_20 = arith.constant 0 : index
    %12 = vector.load %arg9[%c0_19, %c0_20] : memref<1x32xf32, #tpu.memory_space<vmem>>, vector<1x32xf32>
    %c0_21 = arith.constant 0 : index
    %c0_22 = arith.constant 0 : index
    %13 = vector.load %arg10[%c0_21, %c0_22] : memref<1x32xf32, #tpu.memory_space<vmem>>, vector<1x32xf32>
    %c0_23 = arith.constant 0 : index
    %c0_24 = arith.constant 0 : index
    %14 = vector.load %arg11[%c0_23, %c0_24] : memref<32x96xf32, #tpu.memory_space<vmem>>, vector<32x96xf32>
    %c0_25 = arith.constant 0 : index
    %c0_26 = arith.constant 0 : index
    %15 = vector.load %arg12[%c0_25, %c0_26] : memref<1x96xf32, #tpu.memory_space<vmem>>, vector<1x96xf32>
    %c0_27 = arith.constant 0 : index
    %c0_28 = arith.constant 0 : index
    %16 = vector.load %arg13[%c0_27, %c0_28] : memref<32x32xf32, #tpu.memory_space<vmem>>, vector<32x32xf32>
    %c0_29 = arith.constant 0 : index
    %c0_30 = arith.constant 0 : index
    %17 = vector.load %arg14[%c0_29, %c0_30] : memref<1x32xf32, #tpu.memory_space<vmem>>, vector<1x32xf32>
    %c0_31 = arith.constant 0 : index
    %c0_32 = arith.constant 0 : index
    %18 = vector.load %arg15[%c0_31, %c0_32] : memref<1x32xf32, #tpu.memory_space<vmem>>, vector<1x32xf32>
    %c0_33 = arith.constant 0 : index
    %c0_34 = arith.constant 0 : index
    %19 = vector.load %arg16[%c0_33, %c0_34] : memref<1x32xf32, #tpu.memory_space<vmem>>, vector<1x32xf32>
    %c0_35 = arith.constant 0 : index
    %c0_36 = arith.constant 0 : index
    %20 = vector.load %arg17[%c0_35, %c0_36] : memref<32x64xf32, #tpu.memory_space<vmem>>, vector<32x64xf32>
    %c0_37 = arith.constant 0 : index
    %c0_38 = arith.constant 0 : index
    %21 = vector.load %arg18[%c0_37, %c0_38] : memref<1x64xf32, #tpu.memory_space<vmem>>, vector<1x64xf32>
    %c0_39 = arith.constant 0 : index
    %c0_40 = arith.constant 0 : index
    %22 = vector.load %arg19[%c0_39, %c0_40] : memref<64x32xf32, #tpu.memory_space<vmem>>, vector<64x32xf32>
    %c0_41 = arith.constant 0 : index
    %c0_42 = arith.constant 0 : index
    %23 = vector.load %arg20[%c0_41, %c0_42] : memref<1x32xf32, #tpu.memory_space<vmem>>, vector<1x32xf32>
    %c0_43 = arith.constant 0 : index
    %c0_44 = arith.constant 0 : index
    %24 = vector.load %arg21[%c0_43, %c0_44] : memref<1x32xf32, #tpu.memory_space<vmem>>, vector<1x32xf32>
    %c0_45 = arith.constant 0 : index
    %c0_46 = arith.constant 0 : index
    %25 = vector.load %arg22[%c0_45, %c0_46] : memref<1x32xf32, #tpu.memory_space<vmem>>, vector<1x32xf32>
    %cst = arith.constant dense<0.000000e+00> : vector<6x96xf32>
    %26 = tpu.matmul %1, %8, %cst {dimension_numbers = #tpu.dot_dimension_numbers<[1], [0], [0], [1], [0, 0, 1, 1], [], []>} : vector<6x32xf32>, vector<32x96xf32>, vector<6x96xf32> -> vector<6x96xf32>
    %27 = vector.broadcast %9 : vector<1x96xf32> to vector<6x96xf32>
    %28 = arith.addf %26, %27 : vector<6x96xf32>
    %29 = vector.extract_strided_slice %28 {offsets = [0, 0], sizes = [6, 32], strides = [1, 1]} : vector<6x96xf32> to vector<6x32xf32>
    %30 = vector.extract_strided_slice %28 {offsets = [0, 32], sizes = [6, 32], strides = [1, 1]} : vector<6x96xf32> to vector<6x32xf32>
    %31 = vector.extract_strided_slice %28 {offsets = [0, 64], sizes = [6, 32], strides = [1, 1]} : vector<6x96xf32> to vector<6x32xf32>
    %32 = vector.extract_strided_slice %29 {offsets = [0, 0], sizes = [6, 8], strides = [1, 1]} : vector<6x32xf32> to vector<6x8xf32>
    %33 = vector.extract_strided_slice %30 {offsets = [0, 0], sizes = [6, 8], strides = [1, 1]} : vector<6x32xf32> to vector<6x8xf32>
    %34 = vector.extract_strided_slice %31 {offsets = [0, 0], sizes = [6, 8], strides = [1, 1]} : vector<6x32xf32> to vector<6x8xf32>
    %cst_47 = arith.constant dense<0.000000e+00> : vector<6x6xf32>
    %35 = tpu.matmul %32, %33, %cst_47 {dimension_numbers = #tpu.dot_dimension_numbers<[1], [1], [0], [0], [0, 0, 1, 0], [], []>} : vector<6x8xf32>, vector<6x8xf32>, vector<6x6xf32> -> vector<6x6xf32>
    %cst_48 = arith.constant 0.353553385 : f32
    %36 = vector.broadcast %cst_48 : f32 to vector<6x6xf32>
    %37 = arith.mulf %35, %36 : vector<6x6xf32>
    %c0_i32 = arith.constant 0 : i32
    %38 = vector.broadcast %c0_i32 : i32 to vector<6x6xi32>
    %39 = arith.cmpi sgt, %5, %38 : vector<6x6xi32>
    %cst_49 = arith.constant -1.000000e+10 : f32
    %40 = vector.broadcast %cst_49 : f32 to vector<6x6xf32>
    %41 = arith.select %39, %37, %40 : vector<6x6xi1>, vector<6x6xf32>
    %cst_50 = arith.constant dense<0xFF800000> : vector<6xf32>
    %42 = vector.multi_reduction <maximumf>, %41, %cst_50 [1] : vector<6x6xf32> to vector<6xf32>
    %43 = vector.shape_cast %42 : vector<6xf32> to vector<6x1xf32>
    %44 = vector.broadcast %43 : vector<6x1xf32> to vector<6x6xf32>
    %45 = arith.subf %41, %44 : vector<6x6xf32>
    %46 = math.exp %45 : vector<6x6xf32>
    %cst_51 = arith.constant dense<0.000000e+00> : vector<6xf32>
    %47 = vector.multi_reduction <add>, %46, %cst_51 [1] : vector<6x6xf32> to vector<6xf32>
    %48 = vector.shape_cast %47 : vector<6xf32> to vector<6x1xf32>
    %49 = vector.broadcast %48 : vector<6x1xf32> to vector<6x6xf32>
    %50 = arith.divf %46, %49 : vector<6x6xf32>
    %cst_52 = arith.constant dense<0.000000e+00> : vector<6x8xf32>
    %51 = tpu.matmul %50, %34, %cst_52 {dimension_numbers = #tpu.dot_dimension_numbers<[1], [0], [0], [1], [0, 0, 1, 1], [], []>} : vector<6x6xf32>, vector<6x8xf32>, vector<6x8xf32> -> vector<6x8xf32>
    %52 = vector.extract_strided_slice %29 {offsets = [0, 8], sizes = [6, 8], strides = [1, 1]} : vector<6x32xf32> to vector<6x8xf32>
    %53 = vector.extract_strided_slice %30 {offsets = [0, 8], sizes = [6, 8], strides = [1, 1]} : vector<6x32xf32> to vector<6x8xf32>
    %54 = vector.extract_strided_slice %31 {offsets = [0, 8], sizes = [6, 8], strides = [1, 1]} : vector<6x32xf32> to vector<6x8xf32>
    %cst_53 = arith.constant dense<0.000000e+00> : vector<6x6xf32>
    %55 = tpu.matmul %52, %53, %cst_53 {dimension_numbers = #tpu.dot_dimension_numbers<[1], [1], [0], [0], [0, 0, 1, 0], [], []>} : vector<6x8xf32>, vector<6x8xf32>, vector<6x6xf32> -> vector<6x6xf32>
    %cst_54 = arith.constant 0.353553385 : f32
    %56 = vector.broadcast %cst_54 : f32 to vector<6x6xf32>
    %57 = arith.mulf %55, %56 : vector<6x6xf32>
    %c0_i32_55 = arith.constant 0 : i32
    %58 = vector.broadcast %c0_i32_55 : i32 to vector<6x6xi32>
    %59 = arith.cmpi sgt, %5, %58 : vector<6x6xi32>
    %cst_56 = arith.constant -1.000000e+10 : f32
    %60 = vector.broadcast %cst_56 : f32 to vector<6x6xf32>
    %61 = arith.select %59, %57, %60 : vector<6x6xi1>, vector<6x6xf32>
    %cst_57 = arith.constant dense<0xFF800000> : vector<6xf32>
    %62 = vector.multi_reduction <maximumf>, %61, %cst_57 [1] : vector<6x6xf32> to vector<6xf32>
    %63 = vector.shape_cast %62 : vector<6xf32> to vector<6x1xf32>
    %64 = vector.broadcast %63 : vector<6x1xf32> to vector<6x6xf32>
    %65 = arith.subf %61, %64 : vector<6x6xf32>
    %66 = math.exp %65 : vector<6x6xf32>
    %cst_58 = arith.constant dense<0.000000e+00> : vector<6xf32>
    %67 = vector.multi_reduction <add>, %66, %cst_58 [1] : vector<6x6xf32> to vector<6xf32>
    %68 = vector.shape_cast %67 : vector<6xf32> to vector<6x1xf32>
    %69 = vector.broadcast %68 : vector<6x1xf32> to vector<6x6xf32>
    %70 = arith.divf %66, %69 : vector<6x6xf32>
    %cst_59 = arith.constant dense<0.000000e+00> : vector<6x8xf32>
    %71 = tpu.matmul %70, %54, %cst_59 {dimension_numbers = #tpu.dot_dimension_numbers<[1], [0], [0], [1], [0, 0, 1, 1], [], []>} : vector<6x6xf32>, vector<6x8xf32>, vector<6x8xf32> -> vector<6x8xf32>
    %72 = vector.extract_strided_slice %29 {offsets = [0, 16], sizes = [6, 8], strides = [1, 1]} : vector<6x32xf32> to vector<6x8xf32>
    %73 = vector.extract_strided_slice %30 {offsets = [0, 16], sizes = [6, 8], strides = [1, 1]} : vector<6x32xf32> to vector<6x8xf32>
    %74 = vector.extract_strided_slice %31 {offsets = [0, 16], sizes = [6, 8], strides = [1, 1]} : vector<6x32xf32> to vector<6x8xf32>
    %cst_60 = arith.constant dense<0.000000e+00> : vector<6x6xf32>
    %75 = tpu.matmul %72, %73, %cst_60 {dimension_numbers = #tpu.dot_dimension_numbers<[1], [1], [0], [0], [0, 0, 1, 0], [], []>} : vector<6x8xf32>, vector<6x8xf32>, vector<6x6xf32> -> vector<6x6xf32>
    %cst_61 = arith.constant 0.353553385 : f32
    %76 = vector.broadcast %cst_61 : f32 to vector<6x6xf32>
    %77 = arith.mulf %75, %76 : vector<6x6xf32>
    %c0_i32_62 = arith.constant 0 : i32
    %78 = vector.broadcast %c0_i32_62 : i32 to vector<6x6xi32>
    %79 = arith.cmpi sgt, %5, %78 : vector<6x6xi32>
    %cst_63 = arith.constant -1.000000e+10 : f32
    %80 = vector.broadcast %cst_63 : f32 to vector<6x6xf32>
    %81 = arith.select %79, %77, %80 : vector<6x6xi1>, vector<6x6xf32>
    %cst_64 = arith.constant dense<0xFF800000> : vector<6xf32>
    %82 = vector.multi_reduction <maximumf>, %81, %cst_64 [1] : vector<6x6xf32> to vector<6xf32>
    %83 = vector.shape_cast %82 : vector<6xf32> to vector<6x1xf32>
    %84 = vector.broadcast %83 : vector<6x1xf32> to vector<6x6xf32>
    %85 = arith.subf %81, %84 : vector<6x6xf32>
    %86 = math.exp %85 : vector<6x6xf32>
    %cst_65 = arith.constant dense<0.000000e+00> : vector<6xf32>
    %87 = vector.multi_reduction <add>, %86, %cst_65 [1] : vector<6x6xf32> to vector<6xf32>
    %88 = vector.shape_cast %87 : vector<6xf32> to vector<6x1xf32>
    %89 = vector.broadcast %88 : vector<6x1xf32> to vector<6x6xf32>
    %90 = arith.divf %86, %89 : vector<6x6xf32>
    %cst_66 = arith.constant dense<0.000000e+00> : vector<6x8xf32>
    %91 = tpu.matmul %90, %74, %cst_66 {dimension_numbers = #tpu.dot_dimension_numbers<[1], [0], [0], [1], [0, 0, 1, 1], [], []>} : vector<6x6xf32>, vector<6x8xf32>, vector<6x8xf32> -> vector<6x8xf32>
    %92 = vector.extract_strided_slice %29 {offsets = [0, 24], sizes = [6, 8], strides = [1, 1]} : vector<6x32xf32> to vector<6x8xf32>
    %93 = vector.extract_strided_slice %30 {offsets = [0, 24], sizes = [6, 8], strides = [1, 1]} : vector<6x32xf32> to vector<6x8xf32>
    %94 = vector.extract_strided_slice %31 {offsets = [0, 24], sizes = [6, 8], strides = [1, 1]} : vector<6x32xf32> to vector<6x8xf32>
    %cst_67 = arith.constant dense<0.000000e+00> : vector<6x6xf32>
    %95 = tpu.matmul %92, %93, %cst_67 {dimension_numbers = #tpu.dot_dimension_numbers<[1], [1], [0], [0], [0, 0, 1, 0], [], []>} : vector<6x8xf32>, vector<6x8xf32>, vector<6x6xf32> -> vector<6x6xf32>
    %cst_68 = arith.constant 0.353553385 : f32
    %96 = vector.broadcast %cst_68 : f32 to vector<6x6xf32>
    %97 = arith.mulf %95, %96 : vector<6x6xf32>
    %c0_i32_69 = arith.constant 0 : i32
    %98 = vector.broadcast %c0_i32_69 : i32 to vector<6x6xi32>
    %99 = arith.cmpi sgt, %5, %98 : vector<6x6xi32>
    %cst_70 = arith.constant -1.000000e+10 : f32
    %100 = vector.broadcast %cst_70 : f32 to vector<6x6xf32>
    %101 = arith.select %99, %97, %100 : vector<6x6xi1>, vector<6x6xf32>
    %cst_71 = arith.constant dense<0xFF800000> : vector<6xf32>
    %102 = vector.multi_reduction <maximumf>, %101, %cst_71 [1] : vector<6x6xf32> to vector<6xf32>
    %103 = vector.shape_cast %102 : vector<6xf32> to vector<6x1xf32>
    %104 = vector.broadcast %103 : vector<6x1xf32> to vector<6x6xf32>
    %105 = arith.subf %101, %104 : vector<6x6xf32>
    %106 = math.exp %105 : vector<6x6xf32>
    %cst_72 = arith.constant dense<0.000000e+00> : vector<6xf32>
    %107 = vector.multi_reduction <add>, %106, %cst_72 [1] : vector<6x6xf32> to vector<6xf32>
    %108 = vector.shape_cast %107 : vector<6xf32> to vector<6x1xf32>
    %109 = vector.broadcast %108 : vector<6x1xf32> to vector<6x6xf32>
    %110 = arith.divf %106, %109 : vector<6x6xf32>
    %cst_73 = arith.constant dense<0.000000e+00> : vector<6x8xf32>
    %111 = tpu.matmul %110, %94, %cst_73 {dimension_numbers = #tpu.dot_dimension_numbers<[1], [0], [0], [1], [0, 0, 1, 1], [], []>} : vector<6x6xf32>, vector<6x8xf32>, vector<6x8xf32> -> vector<6x8xf32>
    %112 = tpu.concatenate %51, %71, %91, %111 in 1 : vector<6x8xf32>, vector<6x8xf32>, vector<6x8xf32>, vector<6x8xf32> -> vector<6x32xf32>
    %cst_74 = arith.constant dense<0.000000e+00> : vector<6x32xf32>
    %113 = tpu.matmul %112, %10, %cst_74 {dimension_numbers = #tpu.dot_dimension_numbers<[1], [0], [0], [1], [0, 0, 1, 1], [], []>} : vector<6x32xf32>, vector<32x32xf32>, vector<6x32xf32> -> vector<6x32xf32>
    %114 = vector.broadcast %11 : vector<1x32xf32> to vector<6x32xf32>
    %115 = arith.addf %113, %114 : vector<6x32xf32>
    %116 = arith.addf %1, %115 : vector<6x32xf32>
    %cst_75 = arith.constant dense<0.000000e+00> : vector<6xf32>
    %117 = vector.multi_reduction <add>, %116, %cst_75 [1] : vector<6x32xf32> to vector<6xf32>
    %118 = vector.shape_cast %117 : vector<6xf32> to vector<6x1xf32>
    %cst_76 = arith.constant 3.200000e+01 : f32
    %119 = vector.broadcast %cst_76 : f32 to vector<6x1xf32>
    %120 = arith.divf %118, %119 : vector<6x1xf32>
    %121 = vector.broadcast %120 : vector<6x1xf32> to vector<6x32xf32>
    %122 = arith.subf %116, %121 : vector<6x32xf32>
    %123 = arith.mulf %122, %122 : vector<6x32xf32>
    %cst_77 = arith.constant dense<0.000000e+00> : vector<6xf32>
    %124 = vector.multi_reduction <add>, %123, %cst_77 [1] : vector<6x32xf32> to vector<6xf32>
    %125 = vector.shape_cast %124 : vector<6xf32> to vector<6x1xf32>
    %cst_78 = arith.constant 3.200000e+01 : f32
    %126 = vector.broadcast %cst_78 : f32 to vector<6x1xf32>
    %127 = arith.divf %125, %126 : vector<6x1xf32>
    %128 = vector.broadcast %120 : vector<6x1xf32> to vector<6x32xf32>
    %129 = arith.subf %116, %128 : vector<6x32xf32>
    %cst_79 = arith.constant 9.99999974E-6 : f32
    %130 = vector.broadcast %cst_79 : f32 to vector<6x1xf32>
    %131 = arith.addf %127, %130 : vector<6x1xf32>
    %132 = math.rsqrt %131 : vector<6x1xf32>
    %133 = vector.broadcast %132 : vector<6x1xf32> to vector<6x32xf32>
    %134 = arith.mulf %129, %133 : vector<6x32xf32>
    %135 = vector.broadcast %12 : vector<1x32xf32> to vector<6x32xf32>
    %136 = arith.mulf %134, %135 : vector<6x32xf32>
    %137 = vector.broadcast %13 : vector<1x32xf32> to vector<6x32xf32>
    %138 = arith.addf %136, %137 : vector<6x32xf32>
    %139 = vector.extract_strided_slice %14 {offsets = [0, 0], sizes = [32, 32], strides = [1, 1]} : vector<32x96xf32> to vector<32x32xf32>
    %cst_80 = arith.constant dense<0.000000e+00> : vector<6x32xf32>
    %140 = tpu.matmul %138, %139, %cst_80 {dimension_numbers = #tpu.dot_dimension_numbers<[1], [0], [0], [1], [0, 0, 1, 1], [], []>} : vector<6x32xf32>, vector<32x32xf32>, vector<6x32xf32> -> vector<6x32xf32>
    %141 = vector.extract_strided_slice %15 {offsets = [0, 0], sizes = [1, 32], strides = [1, 1]} : vector<1x96xf32> to vector<1x32xf32>
    %142 = vector.broadcast %141 : vector<1x32xf32> to vector<6x32xf32>
    %143 = arith.addf %140, %142 : vector<6x32xf32>
    %144 = vector.extract_strided_slice %14 {offsets = [0, 32], sizes = [32, 64], strides = [1, 1]} : vector<32x96xf32> to vector<32x64xf32>
    %cst_81 = arith.constant dense<0.000000e+00> : vector<8x64xf32>
    %145 = tpu.matmul %3, %144, %cst_81 {dimension_numbers = #tpu.dot_dimension_numbers<[1], [0], [0], [1], [0, 0, 1, 1], [], []>} : vector<8x32xf32>, vector<32x64xf32>, vector<8x64xf32> -> vector<8x64xf32>
    %146 = vector.extract_strided_slice %15 {offsets = [0, 32], sizes = [1, 64], strides = [1, 1]} : vector<1x96xf32> to vector<1x64xf32>
    %147 = vector.broadcast %146 : vector<1x64xf32> to vector<8x64xf32>
    %148 = arith.addf %145, %147 : vector<8x64xf32>
    %149 = vector.extract_strided_slice %148 {offsets = [0, 0], sizes = [8, 32], strides = [1, 1]} : vector<8x64xf32> to vector<8x32xf32>
    %150 = vector.extract_strided_slice %148 {offsets = [0, 32], sizes = [8, 32], strides = [1, 1]} : vector<8x64xf32> to vector<8x32xf32>
    %151 = vector.extract_strided_slice %143 {offsets = [0, 0], sizes = [6, 8], strides = [1, 1]} : vector<6x32xf32> to vector<6x8xf32>
    %152 = vector.extract_strided_slice %149 {offsets = [0, 0], sizes = [8, 8], strides = [1, 1]} : vector<8x32xf32> to vector<8x8xf32>
    %153 = vector.extract_strided_slice %150 {offsets = [0, 0], sizes = [8, 8], strides = [1, 1]} : vector<8x32xf32> to vector<8x8xf32>
    %cst_82 = arith.constant dense<0.000000e+00> : vector<6x8xf32>
    %154 = tpu.matmul %151, %152, %cst_82 {dimension_numbers = #tpu.dot_dimension_numbers<[1], [1], [0], [0], [0, 0, 1, 0], [], []>} : vector<6x8xf32>, vector<8x8xf32>, vector<6x8xf32> -> vector<6x8xf32>
    %cst_83 = arith.constant 0.353553385 : f32
    %155 = vector.broadcast %cst_83 : f32 to vector<6x8xf32>
    %156 = arith.mulf %154, %155 : vector<6x8xf32>
    %c0_i32_84 = arith.constant 0 : i32
    %157 = vector.broadcast %c0_i32_84 : i32 to vector<1x8xi32>
    %158 = arith.cmpi sgt, %7, %157 : vector<1x8xi32>
    %cst_85 = arith.constant -1.000000e+10 : f32
    %159 = vector.shape_cast %158 : vector<1x8xi1> to vector<1x8xi1>
    %160 = vector.broadcast %159 : vector<1x8xi1> to vector<6x8xi1>
    %161 = vector.broadcast %cst_85 : f32 to vector<6x8xf32>
    %162 = arith.select %160, %156, %161 : vector<6x8xi1>, vector<6x8xf32>
    %cst_86 = arith.constant dense<0xFF800000> : vector<6xf32>
    %163 = vector.multi_reduction <maximumf>, %162, %cst_86 [1] : vector<6x8xf32> to vector<6xf32>
    %164 = vector.shape_cast %163 : vector<6xf32> to vector<6x1xf32>
    %165 = vector.broadcast %164 : vector<6x1xf32> to vector<6x8xf32>
    %166 = arith.subf %162, %165 : vector<6x8xf32>
    %167 = math.exp %166 : vector<6x8xf32>
    %cst_87 = arith.constant dense<0.000000e+00> : vector<6xf32>
    %168 = vector.multi_reduction <add>, %167, %cst_87 [1] : vector<6x8xf32> to vector<6xf32>
    %169 = vector.shape_cast %168 : vector<6xf32> to vector<6x1xf32>
    %170 = vector.broadcast %169 : vector<6x1xf32> to vector<6x8xf32>
    %171 = arith.divf %167, %170 : vector<6x8xf32>
    %cst_88 = arith.constant dense<0.000000e+00> : vector<6x8xf32>
    %172 = tpu.matmul %171, %153, %cst_88 {dimension_numbers = #tpu.dot_dimension_numbers<[1], [0], [0], [1], [0, 0, 1, 1], [], []>} : vector<6x8xf32>, vector<8x8xf32>, vector<6x8xf32> -> vector<6x8xf32>
    %173 = vector.extract_strided_slice %143 {offsets = [0, 8], sizes = [6, 8], strides = [1, 1]} : vector<6x32xf32> to vector<6x8xf32>
    %174 = vector.extract_strided_slice %149 {offsets = [0, 8], sizes = [8, 8], strides = [1, 1]} : vector<8x32xf32> to vector<8x8xf32>
    %175 = vector.extract_strided_slice %150 {offsets = [0, 8], sizes = [8, 8], strides = [1, 1]} : vector<8x32xf32> to vector<8x8xf32>
    %cst_89 = arith.constant dense<0.000000e+00> : vector<6x8xf32>
    %176 = tpu.matmul %173, %174, %cst_89 {dimension_numbers = #tpu.dot_dimension_numbers<[1], [1], [0], [0], [0, 0, 1, 0], [], []>} : vector<6x8xf32>, vector<8x8xf32>, vector<6x8xf32> -> vector<6x8xf32>
    %cst_90 = arith.constant 0.353553385 : f32
    %177 = vector.broadcast %cst_90 : f32 to vector<6x8xf32>
    %178 = arith.mulf %176, %177 : vector<6x8xf32>
    %c0_i32_91 = arith.constant 0 : i32
    %179 = vector.broadcast %c0_i32_91 : i32 to vector<1x8xi32>
    %180 = arith.cmpi sgt, %7, %179 : vector<1x8xi32>
    %cst_92 = arith.constant -1.000000e+10 : f32
    %181 = vector.shape_cast %180 : vector<1x8xi1> to vector<1x8xi1>
    %182 = vector.broadcast %181 : vector<1x8xi1> to vector<6x8xi1>
    %183 = vector.broadcast %cst_92 : f32 to vector<6x8xf32>
    %184 = arith.select %182, %178, %183 : vector<6x8xi1>, vector<6x8xf32>
    %cst_93 = arith.constant dense<0xFF800000> : vector<6xf32>
    %185 = vector.multi_reduction <maximumf>, %184, %cst_93 [1] : vector<6x8xf32> to vector<6xf32>
    %186 = vector.shape_cast %185 : vector<6xf32> to vector<6x1xf32>
    %187 = vector.broadcast %186 : vector<6x1xf32> to vector<6x8xf32>
    %188 = arith.subf %184, %187 : vector<6x8xf32>
    %189 = math.exp %188 : vector<6x8xf32>
    %cst_94 = arith.constant dense<0.000000e+00> : vector<6xf32>
    %190 = vector.multi_reduction <add>, %189, %cst_94 [1] : vector<6x8xf32> to vector<6xf32>
    %191 = vector.shape_cast %190 : vector<6xf32> to vector<6x1xf32>
    %192 = vector.broadcast %191 : vector<6x1xf32> to vector<6x8xf32>
    %193 = arith.divf %189, %192 : vector<6x8xf32>
    %cst_95 = arith.constant dense<0.000000e+00> : vector<6x8xf32>
    %194 = tpu.matmul %193, %175, %cst_95 {dimension_numbers = #tpu.dot_dimension_numbers<[1], [0], [0], [1], [0, 0, 1, 1], [], []>} : vector<6x8xf32>, vector<8x8xf32>, vector<6x8xf32> -> vector<6x8xf32>
    %195 = vector.extract_strided_slice %143 {offsets = [0, 16], sizes = [6, 8], strides = [1, 1]} : vector<6x32xf32> to vector<6x8xf32>
    %196 = vector.extract_strided_slice %149 {offsets = [0, 16], sizes = [8, 8], strides = [1, 1]} : vector<8x32xf32> to vector<8x8xf32>
    %197 = vector.extract_strided_slice %150 {offsets = [0, 16], sizes = [8, 8], strides = [1, 1]} : vector<8x32xf32> to vector<8x8xf32>
    %cst_96 = arith.constant dense<0.000000e+00> : vector<6x8xf32>
    %198 = tpu.matmul %195, %196, %cst_96 {dimension_numbers = #tpu.dot_dimension_numbers<[1], [1], [0], [0], [0, 0, 1, 0], [], []>} : vector<6x8xf32>, vector<8x8xf32>, vector<6x8xf32> -> vector<6x8xf32>
    %cst_97 = arith.constant 0.353553385 : f32
    %199 = vector.broadcast %cst_97 : f32 to vector<6x8xf32>
    %200 = arith.mulf %198, %199 : vector<6x8xf32>
    %c0_i32_98 = arith.constant 0 : i32
    %201 = vector.broadcast %c0_i32_98 : i32 to vector<1x8xi32>
    %202 = arith.cmpi sgt, %7, %201 : vector<1x8xi32>
    %cst_99 = arith.constant -1.000000e+10 : f32
    %203 = vector.shape_cast %202 : vector<1x8xi1> to vector<1x8xi1>
    %204 = vector.broadcast %203 : vector<1x8xi1> to vector<6x8xi1>
    %205 = vector.broadcast %cst_99 : f32 to vector<6x8xf32>
    %206 = arith.select %204, %200, %205 : vector<6x8xi1>, vector<6x8xf32>
    %cst_100 = arith.constant dense<0xFF800000> : vector<6xf32>
    %207 = vector.multi_reduction <maximumf>, %206, %cst_100 [1] : vector<6x8xf32> to vector<6xf32>
    %208 = vector.shape_cast %207 : vector<6xf32> to vector<6x1xf32>
    %209 = vector.broadcast %208 : vector<6x1xf32> to vector<6x8xf32>
    %210 = arith.subf %206, %209 : vector<6x8xf32>
    %211 = math.exp %210 : vector<6x8xf32>
    %cst_101 = arith.constant dense<0.000000e+00> : vector<6xf32>
    %212 = vector.multi_reduction <add>, %211, %cst_101 [1] : vector<6x8xf32> to vector<6xf32>
    %213 = vector.shape_cast %212 : vector<6xf32> to vector<6x1xf32>
    %214 = vector.broadcast %213 : vector<6x1xf32> to vector<6x8xf32>
    %215 = arith.divf %211, %214 : vector<6x8xf32>
    %cst_102 = arith.constant dense<0.000000e+00> : vector<6x8xf32>
    %216 = tpu.matmul %215, %197, %cst_102 {dimension_numbers = #tpu.dot_dimension_numbers<[1], [0], [0], [1], [0, 0, 1, 1], [], []>} : vector<6x8xf32>, vector<8x8xf32>, vector<6x8xf32> -> vector<6x8xf32>
    %217 = vector.extract_strided_slice %143 {offsets = [0, 24], sizes = [6, 8], strides = [1, 1]} : vector<6x32xf32> to vector<6x8xf32>
    %218 = vector.extract_strided_slice %149 {offsets = [0, 24], sizes = [8, 8], strides = [1, 1]} : vector<8x32xf32> to vector<8x8xf32>
    %219 = vector.extract_strided_slice %150 {offsets = [0, 24], sizes = [8, 8], strides = [1, 1]} : vector<8x32xf32> to vector<8x8xf32>
    %cst_103 = arith.constant dense<0.000000e+00> : vector<6x8xf32>
    %220 = tpu.matmul %217, %218, %cst_103 {dimension_numbers = #tpu.dot_dimension_numbers<[1], [1], [0], [0], [0, 0, 1, 0], [], []>} : vector<6x8xf32>, vector<8x8xf32>, vector<6x8xf32> -> vector<6x8xf32>
    %cst_104 = arith.constant 0.353553385 : f32
    %221 = vector.broadcast %cst_104 : f32 to vector<6x8xf32>
    %222 = arith.mulf %220, %221 : vector<6x8xf32>
    %c0_i32_105 = arith.constant 0 : i32
    %223 = vector.broadcast %c0_i32_105 : i32 to vector<1x8xi32>
    %224 = arith.cmpi sgt, %7, %223 : vector<1x8xi32>
    %cst_106 = arith.constant -1.000000e+10 : f32
    %225 = vector.shape_cast %224 : vector<1x8xi1> to vector<1x8xi1>
    %226 = vector.broadcast %225 : vector<1x8xi1> to vector<6x8xi1>
    %227 = vector.broadcast %cst_106 : f32 to vector<6x8xf32>
    %228 = arith.select %226, %222, %227 : vector<6x8xi1>, vector<6x8xf32>
    %cst_107 = arith.constant dense<0xFF800000> : vector<6xf32>
    %229 = vector.multi_reduction <maximumf>, %228, %cst_107 [1] : vector<6x8xf32> to vector<6xf32>
    %230 = vector.shape_cast %229 : vector<6xf32> to vector<6x1xf32>
    %231 = vector.broadcast %230 : vector<6x1xf32> to vector<6x8xf32>
    %232 = arith.subf %228, %231 : vector<6x8xf32>
    %233 = math.exp %232 : vector<6x8xf32>
    %cst_108 = arith.constant dense<0.000000e+00> : vector<6xf32>
    %234 = vector.multi_reduction <add>, %233, %cst_108 [1] : vector<6x8xf32> to vector<6xf32>
    %235 = vector.shape_cast %234 : vector<6xf32> to vector<6x1xf32>
    %236 = vector.broadcast %235 : vector<6x1xf32> to vector<6x8xf32>
    %237 = arith.divf %233, %236 : vector<6x8xf32>
    %cst_109 = arith.constant dense<0.000000e+00> : vector<6x8xf32>
    %238 = tpu.matmul %237, %219, %cst_109 {dimension_numbers = #tpu.dot_dimension_numbers<[1], [0], [0], [1], [0, 0, 1, 1], [], []>} : vector<6x8xf32>, vector<8x8xf32>, vector<6x8xf32> -> vector<6x8xf32>
    %239 = tpu.concatenate %172, %194, %216, %238 in 1 : vector<6x8xf32>, vector<6x8xf32>, vector<6x8xf32>, vector<6x8xf32> -> vector<6x32xf32>
    %cst_110 = arith.constant dense<0.000000e+00> : vector<6x32xf32>
    %240 = tpu.matmul %239, %16, %cst_110 {dimension_numbers = #tpu.dot_dimension_numbers<[1], [0], [0], [1], [0, 0, 1, 1], [], []>} : vector<6x32xf32>, vector<32x32xf32>, vector<6x32xf32> -> vector<6x32xf32>
    %241 = vector.broadcast %17 : vector<1x32xf32> to vector<6x32xf32>
    %242 = arith.addf %240, %241 : vector<6x32xf32>
    %243 = arith.addf %138, %242 : vector<6x32xf32>
    %cst_111 = arith.constant dense<0.000000e+00> : vector<6xf32>
    %244 = vector.multi_reduction <add>, %243, %cst_111 [1] : vector<6x32xf32> to vector<6xf32>
    %245 = vector.shape_cast %244 : vector<6xf32> to vector<6x1xf32>
    %cst_112 = arith.constant 3.200000e+01 : f32
    %246 = vector.broadcast %cst_112 : f32 to vector<6x1xf32>
    %247 = arith.divf %245, %246 : vector<6x1xf32>
    %248 = vector.broadcast %247 : vector<6x1xf32> to vector<6x32xf32>
    %249 = arith.subf %243, %248 : vector<6x32xf32>
    %250 = arith.mulf %249, %249 : vector<6x32xf32>
    %cst_113 = arith.constant dense<0.000000e+00> : vector<6xf32>
    %251 = vector.multi_reduction <add>, %250, %cst_113 [1] : vector<6x32xf32> to vector<6xf32>
    %252 = vector.shape_cast %251 : vector<6xf32> to vector<6x1xf32>
    %cst_114 = arith.constant 3.200000e+01 : f32
    %253 = vector.broadcast %cst_114 : f32 to vector<6x1xf32>
    %254 = arith.divf %252, %253 : vector<6x1xf32>
    %255 = vector.broadcast %247 : vector<6x1xf32> to vector<6x32xf32>
    %256 = arith.subf %243, %255 : vector<6x32xf32>
    %cst_115 = arith.constant 9.99999974E-6 : f32
    %257 = vector.broadcast %cst_115 : f32 to vector<6x1xf32>
    %258 = arith.addf %254, %257 : vector<6x1xf32>
    %259 = math.rsqrt %258 : vector<6x1xf32>
    %260 = vector.broadcast %259 : vector<6x1xf32> to vector<6x32xf32>
    %261 = arith.mulf %256, %260 : vector<6x32xf32>
    %262 = vector.broadcast %18 : vector<1x32xf32> to vector<6x32xf32>
    %263 = arith.mulf %261, %262 : vector<6x32xf32>
    %264 = vector.broadcast %19 : vector<1x32xf32> to vector<6x32xf32>
    %265 = arith.addf %263, %264 : vector<6x32xf32>
    %cst_116 = arith.constant dense<0.000000e+00> : vector<6x64xf32>
    %266 = tpu.matmul %265, %20, %cst_116 {dimension_numbers = #tpu.dot_dimension_numbers<[1], [0], [0], [1], [0, 0, 1, 1], [], []>} : vector<6x32xf32>, vector<32x64xf32>, vector<6x64xf32> -> vector<6x64xf32>
    %267 = vector.broadcast %21 : vector<1x64xf32> to vector<6x64xf32>
    %268 = arith.addf %266, %267 : vector<6x64xf32>
    %cst_117 = arith.constant 0.000000e+00 : f32
    %269 = vector.broadcast %cst_117 : f32 to vector<6x64xf32>
    %270 = arith.maximumf %268, %269 : vector<6x64xf32>
    %cst_118 = arith.constant dense<0.000000e+00> : vector<6x32xf32>
    %271 = tpu.matmul %270, %22, %cst_118 {dimension_numbers = #tpu.dot_dimension_numbers<[1], [0], [0], [1], [0, 0, 1, 1], [], []>} : vector<6x64xf32>, vector<64x32xf32>, vector<6x32xf32> -> vector<6x32xf32>
    %272 = vector.broadcast %23 : vector<1x32xf32> to vector<6x32xf32>
    %273 = arith.addf %271, %272 : vector<6x32xf32>
    %274 = arith.addf %265, %273 : vector<6x32xf32>
    %cst_119 = arith.constant dense<0.000000e+00> : vector<6xf32>
    %275 = vector.multi_reduction <add>, %274, %cst_119 [1] : vector<6x32xf32> to vector<6xf32>
    %276 = vector.shape_cast %275 : vector<6xf32> to vector<6x1xf32>
    %cst_120 = arith.constant 3.200000e+01 : f32
    %277 = vector.broadcast %cst_120 : f32 to vector<6x1xf32>
    %278 = arith.divf %276, %277 : vector<6x1xf32>
    %279 = vector.broadcast %278 : vector<6x1xf32> to vector<6x32xf32>
    %280 = arith.subf %274, %279 : vector<6x32xf32>
    %281 = arith.mulf %280, %280 : vector<6x32xf32>
    %cst_121 = arith.constant dense<0.000000e+00> : vector<6xf32>
    %282 = vector.multi_reduction <add>, %281, %cst_121 [1] : vector<6x32xf32> to vector<6xf32>
    %283 = vector.shape_cast %282 : vector<6xf32> to vector<6x1xf32>
    %cst_122 = arith.constant 3.200000e+01 : f32
    %284 = vector.broadcast %cst_122 : f32 to vector<6x1xf32>
    %285 = arith.divf %283, %284 : vector<6x1xf32>
    %286 = vector.broadcast %278 : vector<6x1xf32> to vector<6x32xf32>
    %287 = arith.subf %274, %286 : vector<6x32xf32>
    %cst_123 = arith.constant 9.99999974E-6 : f32
    %288 = vector.broadcast %cst_123 : f32 to vector<6x1xf32>
    %289 = arith.addf %285, %288 : vector<6x1xf32>
    %290 = math.rsqrt %289 : vector<6x1xf32>
    %291 = vector.broadcast %290 : vector<6x1xf32> to vector<6x32xf32>
    %292 = arith.mulf %287, %291 : vector<6x32xf32>
    %293 = vector.broadcast %24 : vector<1x32xf32> to vector<6x32xf32>
    %294 = arith.mulf %292, %293 : vector<6x32xf32>
    %295 = vector.broadcast %25 : vector<1x32xf32> to vector<6x32xf32>
    %296 = arith.addf %294, %295 : vector<6x32xf32>
    %c0_124 = arith.constant 0 : index
    %c0_125 = arith.constant 0 : index
    %297 = vector.load %arg23[%c0_124, %c0_125] : memref<32x24xf32, #tpu.memory_space<vmem>>, vector<32x24xf32>
    %cst_126 = arith.constant dense<0.000000e+00> : vector<6x24xf32>
    %298 = tpu.matmul %296, %297, %cst_126 {dimension_numbers = #tpu.dot_dimension_numbers<[1], [0], [0], [1], [0, 0, 1, 1], [], []>} : vector<6x32xf32>, vector<32x24xf32>, vector<6x24xf32> -> vector<6x24xf32>
    %c0_127 = arith.constant 0 : index
    %c0_128 = arith.constant 0 : index
    %299 = vector.load %arg24[%c0_127, %c0_128] : memref<1x24xf32, #tpu.memory_space<vmem>>, vector<1x24xf32>
    %300 = vector.broadcast %299 : vector<1x24xf32> to vector<6x24xf32>
    %301 = arith.addf %298, %300 : vector<6x24xf32>
    %c0_129 = arith.constant 0 : index
    %c0_130 = arith.constant 0 : index
    %c0_131 = arith.constant 0 : index
    %302 = vector.load %arg25[%c0_129, %c0_130, %c0_131] : memref<1x6x24xf32, #tpu.memory_space<vmem>>, vector<1x6x24xf32>
    %303 = vector.shape_cast %302 : vector<1x6x24xf32> to vector<6x24xf32>
    %304 = vector.shape_cast %301 : vector<6x24xf32> to vector<1x6x24xf32>
    tpu.vector_store %arg25[%c0_129, %c0_130, %c0_131], %304 {strides = array<i32>} : memref<1x6x24xf32, #tpu.memory_space<vmem>>, vector<1x6x24xf32>,
    %c0_132 = arith.constant 0 : index
    %c0_133 = arith.constant 0 : index
    %c0_134 = arith.constant 0 : index
    %c0_135 = arith.constant 0 : index
    %305 = vector.load %arg26[%c0_132, %c0_133, %c0_134, %c0_135] : memref<1x4x6x8xf32, #tpu.memory_space<vmem>>, vector<1x1x6x8xf32>
    %306 = vector.shape_cast %305 : vector<1x1x6x8xf32> to vector<6x8xf32>
    %307 = vector.shape_cast %171 : vector<6x8xf32> to vector<1x1x6x8xf32>
    tpu.vector_store %arg26[%c0_132, %c0_133, %c0_134, %c0_135], %307 {strides = array<i32>} : memref<1x4x6x8xf32, #tpu.memory_space<vmem>>, vector<1x1x6x8xf32>,
    %c0_136 = arith.constant 0 : index
    %c1 = arith.constant 1 : index
    %c0_137 = arith.constant 0 : index
    %c0_138 = arith.constant 0 : index
    %308 = vector.load %arg26[%c0_136, %c1, %c0_137, %c0_138] : memref<1x4x6x8xf32, #tpu.memory_space<vmem>>, vector<1x1x6x8xf32>
    %309 = vector.shape_cast %308 : vector<1x1x6x8xf32> to vector<6x8xf32>
    %310 = vector.shape_cast %193 : vector<6x8xf32> to vector<1x1x6x8xf32>
    tpu.vector_store %arg26[%c0_136, %c1, %c0_137, %c0_138], %310 {strides = array<i32>} : memref<1x4x6x8xf32, #tpu.memory_space<vmem>>, vector<1x1x6x8xf32>,
    %c0_139 = arith.constant 0 : index
    %c2 = arith.constant 2 : index
    %c0_140 = arith.constant 0 : index
    %c0_141 = arith.constant 0 : index
    %311 = vector.load %arg26[%c0_139, %c2, %c0_140, %c0_141] : memref<1x4x6x8xf32, #tpu.memory_space<vmem>>, vector<1x1x6x8xf32>
    %312 = vector.shape_cast %311 : vector<1x1x6x8xf32> to vector<6x8xf32>
    %313 = vector.shape_cast %215 : vector<6x8xf32> to vector<1x1x6x8xf32>
    tpu.vector_store %arg26[%c0_139, %c2, %c0_140, %c0_141], %313 {strides = array<i32>} : memref<1x4x6x8xf32, #tpu.memory_space<vmem>>, vector<1x1x6x8xf32>,
    %c0_142 = arith.constant 0 : index
    %c3 = arith.constant 3 : index
    %c0_143 = arith.constant 0 : index
    %c0_144 = arith.constant 0 : index
    %314 = vector.load %arg26[%c0_142, %c3, %c0_143, %c0_144] : memref<1x4x6x8xf32, #tpu.memory_space<vmem>>, vector<1x1x6x8xf32>
    %315 = vector.shape_cast %314 : vector<1x1x6x8xf32> to vector<6x8xf32>
    %316 = vector.shape_cast %237 : vector<6x8xf32> to vector<1x1x6x8xf32>
    tpu.vector_store %arg26[%c0_142, %c3, %c0_143, %c0_144], %316 {strides = array<i32>} : memref<1x4x6x8xf32, #tpu.memory_space<vmem>>, vector<1x1x6x8xf32>,
    return
  }
  func.func @transform_0(%arg0: i32) -> (i32, i32, i32) {
    %c0_i32 = arith.constant 0 : i32
    %c0_i32_0 = arith.constant 0 : i32
    %c0_i32_1 = arith.constant 0 : i32
    return %arg0, %c0_i32, %c0_i32_0 : i32, i32, i32
  }
  func.func @transform_1(%arg0: i32) -> (i32, i32, i32) {
    %c0_i32 = arith.constant 0 : i32
    %c0_i32_0 = arith.constant 0 : i32
    %c0_i32_1 = arith.constant 0 : i32
    return %arg0, %c0_i32, %c0_i32_0 : i32, i32, i32
  }
  func.func @transform_2(%arg0: i32) -> (i32, i32, i32) {
    %c0_i32 = arith.constant 0 : i32
    %c0_i32_0 = arith.constant 0 : i32
    %c0_i32_1 = arith.constant 0 : i32
    return %arg0, %c0_i32, %c0_i32_0 : i32, i32, i32
  }
  func.func @transform_3(%arg0: i32) -> (i32, i32, i32) {
    %c0_i32 = arith.constant 0 : i32
    %c0_i32_0 = arith.constant 0 : i32
    %c0_i32_1 = arith.constant 0 : i32
    return %arg0, %c0_i32, %c0_i32_0 : i32, i32, i32
  }
  func.func @transform_4(%arg0: i32) -> (i32, i32) {
    %c0_i32 = arith.constant 0 : i32
    %c0_i32_0 = arith.constant 0 : i32
    %c0_i32_1 = arith.constant 0 : i32
    return %c0_i32, %c0_i32_0 : i32, i32
  }
  func.func @transform_5(%arg0: i32) -> (i32, i32) {
    %c0_i32 = arith.constant 0 : i32
    %c0_i32_0 = arith.constant 0 : i32
    %c0_i32_1 = arith.constant 0 : i32
    return %c0_i32, %c0_i32_0 : i32, i32
  }
  func.func @transform_6(%arg0: i32) -> (i32, i32) {
    %c0_i32 = arith.constant 0 : i32
    %c0_i32_0 = arith.constant 0 : i32
    %c0_i32_1 = arith.constant 0 : i32
    return %c0_i32, %c0_i32_0 : i32, i32
  }
  func.func @transform_7(%arg0: i32) -> (i32, i32) {
    %c0_i32 = arith.constant 0 : i32
    %c0_i32_0 = arith.constant 0 : i32
    %c0_i32_1 = arith.constant 0 : i32
    return %c0_i32, %c0_i32_0 : i32, i32
  }
  func.func @transform_8(%arg0: i32) -> (i32, i32) {
    %c0_i32 = arith.constant 0 : i32
    %c0_i32_0 = arith.constant 0 : i32
    %c0_i32_1 = arith.constant 0 : i32
    return %c0_i32, %c0_i32_0 : i32, i32
  }
  func.func @transform_9(%arg0: i32) -> (i32, i32) {
    %c0_i32 = arith.constant 0 : i32
    %c0_i32_0 = arith.constant 0 : i32
    %c0_i32_1 = arith.constant 0 : i32
    return %c0_i32, %c0_i32_0 : i32, i32
  }
  func.func @transform_10(%arg0: i32) -> (i32, i32) {
    %c0_i32 = arith.constant 0 : i32
    %c0_i32_0 = arith.constant 0 : i32
    %c0_i32_1 = arith.constant 0 : i32
    return %c0_i32, %c0_i32_0 : i32, i32
  }
  func.func @transform_11(%arg0: i32) -> (i32, i32) {
    %c0_i32 = arith.constant 0 : i32
    %c0_i32_0 = arith.constant 0 : i32
    %c0_i32_1 = arith.constant 0 : i32
    return %c0_i32, %c0_i32_0 : i32, i32
  }
  func.func @transform_12(%arg0: i32) -> (i32, i32) {
    %c0_i32 = arith.constant 0 : i32
    %c0_i32_0 = arith.constant 0 : i32
    %c0_i32_1 = arith.constant 0 : i32
    return %c0_i32, %c0_i32_0 : i32, i32
  }
  func.func @transform_13(%arg0: i32) -> (i32, i32) {
    %c0_i32 = arith.constant 0 : i32
    %c0_i32_0 = arith.constant 0 : i32
    %c0_i32_1 = arith.constant 0 : i32
    return %c0_i32, %c0_i32_0 : i32, i32
  }
  func.func @transform_14(%arg0: i32) -> (i32, i32) {
    %c0_i32 = arith.constant 0 : i32
    %c0_i32_0 = arith.constant 0 : i32
    %c0_i32_1 = arith.constant 0 : i32
    return %c0_i32, %c0_i32_0 : i32, i32
  }
  func.func @transform_15(%arg0: i32) -> (i32, i32) {
    %c0_i32 = arith.constant 0 : i32
    %c0_i32_0 = arith.constant 0 : i32
    %c0_i32_1 = arith.constant 0 : i32
    return %c0_i32, %c0_i32_0 : i32, i32
  }
  func.func @transform_16(%arg0: i32) -> (i32, i32) {
    %c0_i32 = arith.constant 0 : i32
    %c0_i32_0 = arith.constant 0 : i32
    %c0_i32_1 = arith.constant 0 : i32
    return %c0_i32, %c0_i32_0 : i32, i32
  }
  func.func @transform_17(%arg0: i32) -> (i32, i32) {
    %c0_i32 = arith.constant 0 : i32
    %c0_i32_0 = arith.constant 0 : i32
    %c0_i32_1 = arith.constant 0 : i32
    return %c0_i32, %c0_i32_0 : i32, i32
  }
  func.func @transform_18(%arg0: i32) -> (i32, i32) {
    %c0_i32 = arith.constant 0 : i32
    %c0_i32_0 = arith.constant 0 : i32
    %c0_i32_1 = arith.constant 0 : i32
    return %c0_i32, %c0_i32_0 : i32, i32
  }
  func.func @transform_19(%arg0: i32) -> (i32, i32) {
    %c0_i32 = arith.constant 0 : i32
    %c0_i32_0 = arith.constant 0 : i32
    %c0_i32_1 = arith.constant 0 : i32
    return %c0_i32, %c0_i32_0 : i32, i32
  }
  func.func @transform_20(%arg0: i32) -> (i32, i32) {
    %c0_i32 = arith.constant 0 : i32
    %c0_i32_0 = arith.constant 0 : i32
    %c0_i32_1 = arith.constant 0 : i32
    return %c0_i32, %c0_i32_0 : i32, i32
  }
  func.func @transform_21(%arg0: i32) -> (i32, i32) {
    %c0_i32 = arith.constant 0 : i32
    %c0_i32_0 = arith.constant 0 : i32
    %c0_i32_1 = arith.constant 0 : i32
    return %c0_i32, %c0_i32_0 : i32, i32
  }
  func.func @transform_22(%arg0: i32) -> (i32, i32) {
    %c0_i32 = arith.constant 0 : i32
    %c0_i32_0 = arith.constant 0 : i32
    %c0_i32_1 = arith.constant 0 : i32
    return %c0_i32, %c0_i32_0 : i32, i32
  }
  func.func @transform_23(%arg0: i32) -> (i32, i32) {
    %c0_i32 = arith.constant 0 : i32
    %c0_i32_0 = arith.constant 0 : i32
    %c0_i32_1 = arith.constant 0 : i32
    return %c0_i32, %c0_i32_0 : i32, i32
  }
  func.func @transform_24(%arg0: i32) -> (i32, i32, i32) {
    %c0_i32 = arith.constant 0 : i32
    %c0_i32_0 = arith.constant 0 : i32
    %c0_i32_1 = arith.constant 0 : i32
    return %arg0, %c0_i32, %c0_i32_0 : i32, i32, i32
  }
  func.func @transform_25(%arg0: i32) -> (i32, i32, i32, i32) {
    %c0_i32 = arith.constant 0 : i32
    %c0_i32_0 = arith.constant 0 : i32
    %c0_i32_1 = arith.constant 0 : i32
    %c0_i32_2 = arith.constant 0 : i32
    return %arg0, %c0_i32, %c0_i32_0, %c0_i32_1 : i32, i32, i32, i32
  }
}

</mosaic_0001>

<llo_original>
// kernel: seq2seq_forward.4
$region0: #{seq2seq_forward.4}
  #allocation0 [shape = 'u32[]', space=smem, size = 0x4, offset = 0x4, fixed_abs, tag = 'smem constant byte address 0x4 - core index']
  #allocation1 [shape = 'u32[144,128]{1,0:T(1,128)}', space=vmem, size = 0x12000, scoped, tag = 'internal scratch']
  %s0 = inlined_call_operand.vmem [shape: f32[2,8,32], index: 0, kind: input, shape index: {}]
  %s1 = inlined_call_operand.vmem [shape: s32[2,1,8], index: 1, kind: input, shape index: {}]
  %s2 = inlined_call_operand.vmem [shape: f32[32,96], index: 2, kind: input, shape index: {}]
  %s3 = inlined_call_operand.vmem [shape: f32[1,96], index: 3, kind: input, shape index: {}]
  %s4 = inlined_call_operand.vmem [shape: f32[32,32], index: 4, kind: input, shape index: {}]
  %s5 = inlined_call_operand.vmem [shape: f32[1,32], index: 5, kind: input, shape index: {}]
  %s6 = inlined_call_operand.vmem [shape: f32[1,32], index: 6, kind: input, shape index: {}]
  %s7 = inlined_call_operand.vmem [shape: f32[1,32], index: 7, kind: input, shape index: {}]
  %s8 = inlined_call_operand.vmem [shape: f32[32,64], index: 8, kind: input, shape index: {}]
  %s9 = inlined_call_operand.vmem [shape: f32[1,64], index: 9, kind: input, shape index: {}]
  %s10 = inlined_call_operand.vmem [shape: f32[64,32], index: 10, kind: input, shape index: {}]
  %s11 = inlined_call_operand.vmem [shape: f32[1,32], index: 11, kind: input, shape index: {}]
  %s12 = inlined_call_operand.vmem [shape: f32[1,32], index: 12, kind: input, shape index: {}]
  %s13 = inlined_call_operand.vmem [shape: f32[1,32], index: 13, kind: input, shape index: {}]
  %s14 = inlined_call_operand.vmem [shape: f32[2,8,32], index: 14, kind: output, shape index: {}]
  %s15 = sld [smem:[#allocation0]]
  $region89: #{seq2seq_forward.4} parent=0
    _
  %s17 = ssub.s32 1, %s15
  %s18 = scalar_select 0, %s17, %s15
  loop: start=0, step=1, limit=4
  $region2: #{seq2seq_forward.4} parent=0 // loop_pre_header
    _
  $region3: #{seq2seq_forward.4} parent=0 // loop_header
    %s20 = sphi 0, %s24
    %p21 = scmp.ge.s32.totalorder %s20, 4
    %s30 = sphi 0, %s32
    %s33 = sphi 0, %s30
    %s34 = sphi 0, %s33
    %s50 = sphi 0, %s34
    %s56 = sphi 0, %s58
    %s59 = sphi 0, %s56
    %s60 = sphi 0, %s59
    %s76 = sphi 0, %s60
    %s80 = sphi 0, %s80
    %s82 = sphi 0, %s80
    %s83 = sphi 0, %s82
    %s97 = sphi 0, %s83
    %s101 = sphi 0, %s101
    %s103 = sphi 0, %s101
    %s104 = sphi 0, %s103
    %s118 = sphi 0, %s104
    %s122 = sphi 0, %s122
    %s124 = sphi 0, %s122
    %s125 = sphi 0, %s124
    %s139 = sphi 0, %s125
    %s143 = sphi 0, %s143
    %s145 = sphi 0, %s143
    %s146 = sphi 0, %s145
    %s160 = sphi 0, %s146
    %s164 = sphi 0, %s164
    %s166 = sphi 0, %s164
    %s167 = sphi 0, %s166
    %s181 = sphi 0, %s167
    %s185 = sphi 0, %s185
    %s187 = sphi 0, %s185
    %s188 = sphi 0, %s187
    %s202 = sphi 0, %s188
    %s206 = sphi 0, %s206
    %s208 = sphi 0, %s206
    %s209 = sphi 0, %s208
    %s223 = sphi 0, %s209
    %s227 = sphi 0, %s227
    %s229 = sphi 0, %s227
    %s230 = sphi 0, %s229
    %s244 = sphi 0, %s230
    %s248 = sphi 0, %s248
    %s250 = sphi 0, %s248
    %s251 = sphi 0, %s250
    %s265 = sphi 0, %s251
    %s269 = sphi 0, %s269
    %s271 = sphi 0, %s269
    %s272 = sphi 0, %s271
    %s286 = sphi 0, %s272
    %s290 = sphi 0, %s290
    %s292 = sphi 0, %s290
    %s293 = sphi 0, %s292
    %s307 = sphi 0, %s293
    %s311 = sphi 0, %s311
    %s313 = sphi 0, %s311
    %s314 = sphi 0, %s313
    %s328 = sphi 0, %s314
    %s334 = sphi 0, %s336
    %s337 = sphi 0, %s334
    %s338 = sphi 0, %s337
    %s354 = sphi 0, %s338
  $region4: #{seq2seq_forward.4} parent=0 // loop_header_branch
    %23 = sbr.rel (%p21) target = $region8
  $region5: #{seq2seq_forward.4} parent=0 // loop_body
    %s25 = ssub.s32 %s20, 1
    %s26 = ssub.s32 %s20, 2
    %s27 = sadd.s32 %s20, 1
    %s28 = ssub.s32 %s20, %s27
    %p29 = scmp.eq.s32.totalorder %s28, 0
    %s31 = sadd.s32 %s30, 1
    %s32 = scalar_select %p29, %s30, %s31
    %p35 = pneg %p29
    %p36 = scmp.eq.s32.totalorder %s20, 1
    %p37 = por %p35, %p36
    %p38 = scmp.ne.s32.totalorder %s30, %s33
    %p39 = scmp.eq.s32.totalorder %s20, 0
    %p40 = por %p38, %p39
    %p41 = scmp.ne.s32.totalorder %s30, %s33
    %p42 = scmp.eq.s32.totalorder %s25, 1
    %p43 = por %p41, %p42
    %p44 = scmp.ne.s32.totalorder %s33, %s34
    %p45 = scmp.eq.s32.totalorder %s25, 0
    %p46 = por %p44, %p45
    %p47 = scmp.ne.s32.totalorder %s33, %s34
    %p48 = scmp.eq.s32.totalorder %s26, 1
    %p49 = por %p47, %p48
    %p51 = scmp.ne.s32.totalorder %s34, %s50
    %p52 = scmp.eq.s32.totalorder %s26, 0
    %p53 = por %p51, %p52
    %s54 = ssub.s32 %s20, %s27
    %p55 = scmp.eq.s32.totalorder %s54, 0
    %s57 = sadd.s32 %s56, 1
    %s58 = scalar_select %p55, %s56, %s57
    %p61 = pneg %p55
    %p62 = scmp.eq.s32.totalorder %s20, 1
    %p63 = por %p61, %p62
    %p64 = scmp.ne.s32.totalorder %s56, %s59
    %p65 = scmp.eq.s32.totalorder %s20, 0
    %p66 = por %p64, %p65
    %p67 = scmp.ne.s32.totalorder %s56, %s59
    %p68 = scmp.eq.s32.totalorder %s25, 1
    %p69 = por %p67, %p68
    %p70 = scmp.ne.s32.totalorder %s59, %s60
    %p71 = scmp.eq.s32.totalorder %s25, 0
    %p72 = por %p70, %p71
    %p73 = scmp.ne.s32.totalorder %s59, %s60
    %p74 = scmp.eq.s32.totalorder %s26, 1
    %p75 = por %p73, %p74
    %p77 = scmp.ne.s32.totalorder %s60, %s76
    %p78 = scmp.eq.s32.totalorder %s26, 0
    %p79 = por %p77, %p78
    %s81 = sadd.s32 %s80, 1
    %p84 = scmp.eq.s32.totalorder %s20, 1
    %p85 = scmp.ne.s32.totalorder %s80, %s82
    %p86 = scmp.eq.s32.totalorder %s20, 0
    %p87 = por %p85, %p86
    %p88 = scmp.ne.s32.totalorder %s80, %s82
    %p89 = scmp.eq.s32.totalorder %s25, 1
    %p90 = por %p88, %p89
    %p91 = scmp.ne.s32.totalorder %s82, %s83
    %p92 = scmp.eq.s32.totalorder %s25, 0
    %p93 = por %p91, %p92
    %p94 = scmp.ne.s32.totalorder %s82, %s83
    %p95 = scmp.eq.s32.totalorder %s26, 1
    %p96 = por %p94, %p95
    %p98 = scmp.ne.s32.totalorder %s83, %s97
    %p99 = scmp.eq.s32.totalorder %s26, 0
    %p100 = por %p98, %p99
    %s102 = sadd.s32 %s101, 1
    %p105 = scmp.eq.s32.totalorder %s20, 1
    %p106 = scmp.ne.s32.totalorder %s101, %s103
    %p107 = scmp.eq.s32.totalorder %s20, 0
    %p108 = por %p106, %p107
    %p109 = scmp.ne.s32.totalorder %s101, %s103
    %p110 = scmp.eq.s32.totalorder %s25, 1
    %p111 = por %p109, %p110
    %p112 = scmp.ne.s32.totalorder %s103, %s104
    %p113 = scmp.eq.s32.totalorder %s25, 0
    %p114 = por %p112, %p113
    %p115 = scmp.ne.s32.totalorder %s103, %s104
    %p116 = scmp.eq.s32.totalorder %s26, 1
    %p117 = por %p115, %p116
    %p119 = scmp.ne.s32.totalorder %s104, %s118
    %p120 = scmp.eq.s32.totalorder %s26, 0
    %p121 = por %p119, %p120
    %s123 = sadd.s32 %s122, 1
    %p126 = scmp.eq.s32.totalorder %s20, 1
    %p127 = scmp.ne.s32.totalorder %s122, %s124
    %p128 = scmp.eq.s32.totalorder %s20, 0
    %p129 = por %p127, %p128
    %p130 = scmp.ne.s32.totalorder %s122, %s124
    %p131 = scmp.eq.s32.totalorder %s25, 1
    %p132 = por %p130, %p131
    %p133 = scmp.ne.s32.totalorder %s124, %s125
    %p134 = scmp.eq.s32.totalorder %s25, 0
    %p135 = por %p133, %p134
    %p136 = scmp.ne.s32.totalorder %s124, %s125
    %p137 = scmp.eq.s32.totalorder %s26, 1
    %p138 = por %p136, %p137
    %p140 = scmp.ne.s32.totalorder %s125, %s139
    %p141 = scmp.eq.s32.totalorder %s26, 0
    %p142 = por %p140, %p141
    %s144 = sadd.s32 %s143, 1
    %p147 = scmp.eq.s32.totalorder %s20, 1
    %p148 = scmp.ne.s32.totalorder %s143, %s145
    %p149 = scmp.eq.s32.totalorder %s20, 0
    %p150 = por %p148, %p149
    %p151 = scmp.ne.s32.totalorder %s143, %s145
    %p152 = scmp.eq.s32.totalorder %s25, 1
    %p153 = por %p151, %p152
    %p154 = scmp.ne.s32.totalorder %s145, %s146
    %p155 = scmp.eq.s32.totalorder %s25, 0
    %p156 = por %p154, %p155
    %p157 = scmp.ne.s32.totalorder %s145, %s146
    %p158 = scmp.eq.s32.totalorder %s26, 1
    %p159 = por %p157, %p158
    %p161 = scmp.ne.s32.totalorder %s146, %s160
    %p162 = scmp.eq.s32.totalorder %s26, 0
    %p163 = por %p161, %p162
    %s165 = sadd.s32 %s164, 1
    %p168 = scmp.eq.s32.totalorder %s20, 1
    %p169 = scmp.ne.s32.totalorder %s164, %s166
    %p170 = scmp.eq.s32.totalorder %s20, 0
    %p171 = por %p169, %p170
    %p172 = scmp.ne.s32.totalorder %s164, %s166
    %p173 = scmp.eq.s32.totalorder %s25, 1
    %p174 = por %p172, %p173
    %p175 = scmp.ne.s32.totalorder %s166, %s167
    %p176 = scmp.eq.s32.totalorder %s25, 0
    %p177 = por %p175, %p176
    %p178 = scmp.ne.s32.totalorder %s166, %s167
    %p179 = scmp.eq.s32.totalorder %s26, 1
    %p180 = por %p178, %p179
    %p182 = scmp.ne.s32.totalorder %s167, %s181
    %p183 = scmp.eq.s32.totalorder %s26, 0
    %p184 = por %p182, %p183
    %s186 = sadd.s32 %s185, 1
    %p189 = scmp.eq.s32.totalorder %s20, 1
    %p190 = scmp.ne.s32.totalorder %s185, %s187
    %p191 = scmp.eq.s32.totalorder %s20, 0
    %p192 = por %p190, %p191
    %p193 = scmp.ne.s32.totalorder %s185, %s187
    %p194 = scmp.eq.s32.totalorder %s25, 1
    %p195 = por %p193, %p194
    %p196 = scmp.ne.s32.totalorder %s187, %s188
    %p197 = scmp.eq.s32.totalorder %s25, 0
    %p198 = por %p196, %p197
    %p199 = scmp.ne.s32.totalorder %s187, %s188
    %p200 = scmp.eq.s32.totalorder %s26, 1
    %p201 = por %p199, %p200
    %p203 = scmp.ne.s32.totalorder %s188, %s202
    %p204 = scmp.eq.s32.totalorder %s26, 0
    %p205 = por %p203, %p204
    %s207 = sadd.s32 %s206, 1
    %p210 = scmp.eq.s32.totalorder %s20, 1
    %p211 = scmp.ne.s32.totalorder %s206, %s208
    %p212 = scmp.eq.s32.totalorder %s20, 0
    %p213 = por %p211, %p212
    %p214 = scmp.ne.s32.totalorder %s206, %s208
    %p215 = scmp.eq.s32.totalorder %s25, 1
    %p216 = por %p214, %p215
    %p217 = scmp.ne.s32.totalorder %s208, %s209
    %p218 = scmp.eq.s32.totalorder %s25, 0
    %p219 = por %p217, %p218
    %p220 = scmp.ne.s32.totalorder %s208, %s209
    %p221 = scmp.eq.s32.totalorder %s26, 1
    %p222 = por %p220, %p221
    %p224 = scmp.ne.s32.totalorder %s209, %s223
    %p225 = scmp.eq.s32.totalorder %s26, 0
    %p226 = por %p224, %p225
    %s228 = sadd.s32 %s227, 1
    %p231 = scmp.eq.s32.totalorder %s20, 1
    %p232 = scmp.ne.s32.totalorder %s227, %s229
    %p233 = scmp.eq.s32.totalorder %s20, 0
    %p234 = por %p232, %p233
    %p235 = scmp.ne.s32.totalorder %s227, %s229
    %p236 = scmp.eq.s32.totalorder %s25, 1
    %p237 = por %p235, %p236
    %p238 = scmp.ne.s32.totalorder %s229, %s230
    %p239 = scmp.eq.s32.totalorder %s25, 0
    %p240 = por %p238, %p239
    %p241 = scmp.ne.s32.totalorder %s229, %s230
    %p242 = scmp.eq.s32.totalorder %s26, 1
    %p243 = por %p241, %p242
    %p245 = scmp.ne.s32.totalorder %s230, %s244
    %p246 = scmp.eq.s32.totalorder %s26, 0
    %p247 = por %p245, %p246
    %s249 = sadd.s32 %s248, 1
    %p252 = scmp.eq.s32.totalorder %s20, 1
    %p253 = scmp.ne.s32.totalorder %s248, %s250
    %p254 = scmp.eq.s32.totalorder %s20, 0
    %p255 = por %p253, %p254
    %p256 = scmp.ne.s32.totalorder %s248, %s250
    %p257 = scmp.eq.s32.totalorder %s25, 1
    %p258 = por %p256, %p257
    %p259 = scmp.ne.s32.totalorder %s250, %s251
    %p260 = scmp.eq.s32.totalorder %s25, 0
    %p261 = por %p259, %p260
    %p262 = scmp.ne.s32.totalorder %s250, %s251
    %p263 = scmp.eq.s32.totalorder %s26, 1
    %p264 = por %p262, %p263
    %p266 = scmp.ne.s32.totalorder %s251, %s265
    %p267 = scmp.eq.s32.totalorder %s26, 0
    %p268 = por %p266, %p267
    %s270 = sadd.s32 %s269, 1
    %p273 = scmp.eq.s32.totalorder %s20, 1
    %p274 = scmp.ne.s32.totalorder %s269, %s271
    %p275 = scmp.eq.s32.totalorder %s20, 0
    %p276 = por %p274, %p275
    %p277 = scmp.ne.s32.totalorder %s269, %s271
    %p278 = scmp.eq.s32.totalorder %s25, 1
    %p279 = por %p277, %p278
    %p280 = scmp.ne.s32.totalorder %s271, %s272
    %p281 = scmp.eq.s32.totalorder %s25, 0
    %p282 = por %p280, %p281
    %p283 = scmp.ne.s32.totalorder %s271, %s272
    %p284 = scmp.eq.s32.totalorder %s26, 1
    %p285 = por %p283, %p284
    %p287 = scmp.ne.s32.totalorder %s272, %s286
    %p288 = scmp.eq.s32.totalorder %s26, 0
    %p289 = por %p287, %p288
    %s291 = sadd.s32 %s290, 1
    %p294 = scmp.eq.s32.totalorder %s20, 1
    %p295 = scmp.ne.s32.totalorder %s290, %s292
    %p296 = scmp.eq.s32.totalorder %s20, 0
    %p297 = por %p295, %p296
    %p298 = scmp.ne.s32.totalorder %s290, %s292
    %p299 = scmp.eq.s32.totalorder %s25, 1
    %p300 = por %p298, %p299
    %p301 = scmp.ne.s32.totalorder %s292, %s293
    %p302 = scmp.eq.s32.totalorder %s25, 0
    %p303 = por %p301, %p302
    %p304 = scmp.ne.s32.totalorder %s292, %s293
    %p305 = scmp.eq.s32.totalorder %s26, 1
    %p306 = por %p304, %p305
    %p308 = scmp.ne.s32.totalorder %s293, %s307
    %p309 = scmp.eq.s32.totalorder %s26, 0
    %p310 = por %p308, %p309
    %s312 = sadd.s32 %s311, 1
    %p315 = scmp.eq.s32.totalorder %s20, 1
    %p316 = scmp.ne.s32.totalorder %s311, %s313
    %p317 = scmp.eq.s32.totalorder %s20, 0
    %p318 = por %p316, %p317
    %p319 = scmp.ne.s32.totalorder %s311, %s313
    %p320 = scmp.eq.s32.totalorder %s25, 1
    %p321 = por %p319, %p320
    %p322 = scmp.ne.s32.totalorder %s313, %s314
    %p323 = scmp.eq.s32.totalorder %s25, 0
    %p324 = por %p322, %p323
    %p325 = scmp.ne.s32.totalorder %s313, %s314
    %p326 = scmp.eq.s32.totalorder %s26, 1
    %p327 = por %p325, %p326
    %p329 = scmp.ne.s32.totalorder %s314, %s328
    %p330 = scmp.eq.s32.totalorder %s26, 0
    %p331 = por %p329, %p330
    %s332 = ssub.s32 %s20, %s27
    %p333 = scmp.eq.s32.totalorder %s332, 0
    %s335 = sadd.s32 %s334, 1
    %s336 = scalar_select %p333, %s334, %s335
    %p339 = pneg %p333
    %p340 = scmp.eq.s32.totalorder %s20, 1
    %p341 = por %p339, %p340
    %p342 = scmp.ne.s32.totalorder %s334, %s337
    %p343 = scmp.eq.s32.totalorder %s20, 0
    %p344 = por %p342, %p343
    %p345 = scmp.ne.s32.totalorder %s334, %s337
    %p346 = scmp.eq.s32.totalorder %s25, 1
    %p347 = por %p345, %p346
    %p348 = scmp.ne.s32.totalorder %s337, %s338
    %p349 = scmp.eq.s32.totalorder %s25, 0
    %p350 = por %p348, %p349
    %p351 = scmp.ne.s32.totalorder %s337, %s338
    %p352 = scmp.eq.s32.totalorder %s26, 1
    %p353 = por %p351, %p352
    %p355 = scmp.ne.s32.totalorder %s338, %s354
    %p356 = scmp.eq.s32.totalorder %s26, 0
    %p357 = por %p355, %p356
    %p358 = scmp.le.s32.totalorder 1, %s20
    %p359 = scmp.lt.s32.totalorder %s20, 3
    %p360 = pnand %p358, %p359
    %p361 = pneg %p360
    // Predicated region
    $region9: #{seq2seq_forward.4} parent=5 // pred_check
      _
    $region10: #{seq2seq_forward.4} parent=5 // pred_check_branch
      %363 = sbr.rel (%p360) target = $region12
    $region11: #{seq2seq_forward.4} parent=5 // pred_region
      %s364 = ssub.s32 %s20, 1
      // Predicated region
      $region13: #{seq2seq_forward.4} parent=11 // pred_check
        %p365 = pneg %p93
      $region14: #{seq2seq_forward.4} parent=11 // pred_check_branch
        %367 = sbr.rel (%p365) target = $region16
      $region15: #{seq2seq_forward.4} parent=11 // pred_region
        _
      $region16: #{seq2seq_forward.4} parent=11 // pred_fallthru
        _
      // Predicated region
      $region17: #{seq2seq_forward.4} parent=11 // pred_check
        %p368 = pneg %p114
      $region18: #{seq2seq_forward.4} parent=11 // pred_check_branch
        %370 = sbr.rel (%p368) target = $region20
      $region19: #{seq2seq_forward.4} parent=11 // pred_region
        _
      $region20: #{seq2seq_forward.4} parent=11 // pred_fallthru
        _
      // Predicated region
      $region21: #{seq2seq_forward.4} parent=11 // pred_check
        %p371 = pneg %p135
      $region22: #{seq2seq_forward.4} parent=11 // pred_check_branch
        %373 = sbr.rel (%p371) target = $region24
      $region23: #{seq2seq_forward.4} parent=11 // pred_region
        _
      $region24: #{seq2seq_forward.4} parent=11 // pred_fallthru
        _
      // Predicated region
      $region25: #{seq2seq_forward.4} parent=11 // pred_check
        %p374 = pneg %p156
      $region26: #{seq2seq_forward.4} parent=11 // pred_check_branch
        %376 = sbr.rel (%p374) target = $region28
      $region27: #{seq2seq_forward.4} parent=11 // pred_region
        _
      $region28: #{seq2seq_forward.4} parent=11 // pred_fallthru
        _
      // Predicated region
      $region29: #{seq2seq_forward.4} parent=11 // pred_check
        %p377 = pneg %p177
      $region30: #{seq2seq_forward.4} parent=11 // pred_check_branch
        %379 = sbr.rel (%p377) target = $region32
      $region31: #{seq2seq_forward.4} parent=11 // pred_region
        _
      $region32: #{seq2seq_forward.4} parent=11 // pred_fallthru
        _
      // Predicated region
      $region33: #{seq2seq_forward.4} parent=11 // pred_check
        %p380 = pneg %p198
      $region34: #{seq2seq_forward.4} parent=11 // pred_check_branch
        %382 = sbr.rel (%p380) target = $region36
      $region35: #{seq2seq_forward.4} parent=11 // pred_region
        _
      $region36: #{seq2seq_forward.4} parent=11 // pred_fallthru
        _
      // Predicated region
      $region37: #{seq2seq_forward.4} parent=11 // pred_check
        %p383 = pneg %p219
      $region38: #{seq2seq_forward.4} parent=11 // pred_check_branch
        %385 = sbr.rel (%p383) target = $region40
      $region39: #{seq2seq_forward.4} parent=11 // pred_region
        _
      $region40: #{seq2seq_forward.4} parent=11 // pred_fallthru
        _
      // Predicated region
      $region41: #{seq2seq_forward.4} parent=11 // pred_check
        %p386 = pneg %p240
      $region42: #{seq2seq_forward.4} parent=11 // pred_check_branch
        %388 = sbr.rel (%p386) target = $region44
      $region43: #{seq2seq_forward.4} parent=11 // pred_region
        _
      $region44: #{seq2seq_forward.4} parent=11 // pred_fallthru
        _
      // Predicated region
      $region45: #{seq2seq_forward.4} parent=11 // pred_check
        %p389 = pneg %p261
      $region46: #{seq2seq_forward.4} parent=11 // pred_check_branch
        %391 = sbr.rel (%p389) target = $region48
      $region47: #{seq2seq_forward.4} parent=11 // pred_region
        _
      $region48: #{seq2seq_forward.4} parent=11 // pred_fallthru
        _
      // Predicated region
      $region49: #{seq2seq_forward.4} parent=11 // pred_check
        %p392 = pneg %p282
      $region50: #{seq2seq_forward.4} parent=11 // pred_check_branch
        %394 = sbr.rel (%p392) target = $region52
      $region51: #{seq2seq_forward.4} parent=11 // pred_region
        _
      $region52: #{seq2seq_forward.4} parent=11 // pred_fallthru
        _
      // Predicated region
      $region53: #{seq2seq_forward.4} parent=11 // pred_check
        %p395 = pneg %p303
      $region54: #{seq2seq_forward.4} parent=11 // pred_check_branch
        %397 = sbr.rel (%p395) target = $region56
      $region55: #{seq2seq_forward.4} parent=11 // pred_region
        _
      $region56: #{seq2seq_forward.4} parent=11 // pred_fallthru
        _
      // Predicated region
      $region57: #{seq2seq_forward.4} parent=11 // pred_check
        %p398 = pneg %p324
      $region58: #{seq2seq_forward.4} parent=11 // pred_check_branch
        %400 = sbr.rel (%p398) target = $region60
      $region59: #{seq2seq_forward.4} parent=11 // pred_region
        _
      $region60: #{seq2seq_forward.4} parent=11 // pred_fallthru
        _
    $region12: #{seq2seq_forward.4} parent=5 // pred_fallthru
      _
    %p401 = scmp.lt.s32.totalorder %s20, 2
    // Predicated region
    $region61: #{seq2seq_forward.4} parent=5 // pred_check
      %p402 = pneg %p401
    $region62: #{seq2seq_forward.4} parent=5 // pred_check_branch
      %404 = sbr.rel (%p402) target = $region64
    $region63: #{seq2seq_forward.4} parent=5 // pred_region
      // Predicated region
      $region65: #{seq2seq_forward.4} parent=63 // pred_check
        %p405 = pneg %p40
      $region66: #{seq2seq_forward.4} parent=63 // pred_check_branch
        %407 = sbr.rel (%p405) target = $region68
      $region67: #{seq2seq_forward.4} parent=63 // pred_region
        %p408 = scmp.lt.s32.totalorder %s20, 1
        %s409 = scalar_select %p408, %s20, 1
        %s410 = smul.addr %s409, 8
        %s411 = scalar_lea.vmem %s0, %s410
      $region68: #{seq2seq_forward.4} parent=63 // pred_fallthru
        _
      // Predicated region
      $region69: #{seq2seq_forward.4} parent=63 // pred_check
        %p412 = pneg %p66
      $region70: #{seq2seq_forward.4} parent=63 // pred_check_branch
        %414 = sbr.rel (%p412) target = $region72
      $region71: #{seq2seq_forward.4} parent=63 // pred_region
        %p415 = scmp.lt.s32.totalorder %s20, 1
        %s416 = scalar_select %p415, %s20, 1
        %s417 = scalar_lea.vmem %s1, %s416
      $region72: #{seq2seq_forward.4} parent=63 // pred_fallthru
        _
    $region64: #{seq2seq_forward.4} parent=5 // pred_fallthru
      _
    %p418 = scmp.le.s32.totalorder 1, %s20
    %p419 = scmp.lt.s32.totalorder %s20, 3
    %p420 = pnand %p418, %p419
    %p421 = pneg %p420
    // Predicated region
    $region73: #{seq2seq_forward.4} parent=5 // pred_check
      _
    $region74: #{seq2seq_forward.4} parent=5 // pred_check_branch
      %423 = sbr.rel (%p420) target = $region76
    $region75: #{seq2seq_forward.4} parent=5 // pred_region
      %s424 = ssub.s32 %s20, 1
      %p425 = scmp.lt.s32.totalorder %s25, 1
      %s426 = scalar_select %p425, %s25, 1
      %s427 = smul.addr %s426, 8
      %s428 = scalar_lea.vmem %s0, %s427
      %p429 = pneg %p46
      %p430 = pneg %p43
      %p431 = scmp.lt.s32.totalorder %s25, 1
      %s432 = scalar_select %p431, %s25, 1
      %s433 = scalar_lea.vmem %s1, %s432
      %p434 = pneg %p72
      %p435 = pneg %p69
      %p436 = pneg %p93
      %p437 = pneg %p90
      %p438 = pneg %p114
      %p439 = pneg %p111
      %p440 = pneg %p135
      %p441 = pneg %p132
      %p442 = pneg %p156
      %p443 = pneg %p153
      %p444 = pneg %p177
      %p445 = pneg %p174
      %p446 = pneg %p198
      %p447 = pneg %p195
      %p448 = pneg %p219
      %p449 = pneg %p216
      %p450 = pneg %p240
      %p451 = pneg %p237
      %p452 = pneg %p261
      %p453 = pneg %p258
      %p454 = pneg %p282
      %p455 = pneg %p279
      %p456 = pneg %p303
      %p457 = pneg %p300
      %p458 = pneg %p324
      %p459 = pneg %p321
      %p460 = pneg %p350
      %p461 = pneg %p347
      %p462 = scmp.lt.s32.totalorder %s25, 1
      %s463 = scalar_select %p462, %s25, 1
      %s464 = smul.addr %s463, 8
      %s465 = scalar_lea.vmem %s14, %s464
      %p466 = scmp.lt.s32.totalorder %s25, 1
      %s467 = scalar_select %p466, %s25, 1
      %s468 = smul.addr %s467, 8
      %s469 = scalar_lea.vmem %s0, %s468
      %p470 = scmp.lt.s32.totalorder %s25, 1
      %s471 = scalar_select %p470, %s25, 1
      %s472 = scalar_lea.vmem %s1, %s471
      %p473 = scmp.lt.s32.totalorder %s25, 1
      %s474 = scalar_select %p473, %s25, 1
      %s475 = smul.addr %s474, 8
      %s476 = scalar_lea.vmem %s14, %s475
      %v477 = vld [vmem:[%s469] sm:$0xff]
      %v478 = vld [vmem:[%s472] sm:$0x1]
      %v479 = vld [vmem:[%s2] sm:$0xff]
      %v480 = vld [vmem:[%s2 + $0x8] sm:$0xff]
      %v481 = vld [vmem:[%s2 + $0x10] sm:$0xff]
      %v482 = vld [vmem:[%s2 + $0x18] sm:$0xff]
      %v483 = vld [vmem:[%s3] sm:$0x1]
      %v484 = vld [vmem:[%s4] sm:$0xff]
      %v485 = vld [vmem:[%s4 + $0x8] sm:$0xff]
      %v486 = vld [vmem:[%s4 + $0x10] sm:$0xff]
      %v487 = vld [vmem:[%s4 + $0x18] sm:$0xff]
      %v488 = vld [vmem:[%s5] sm:$0x1]
      %v490 = vlaneseq
      %v491 = vshrl.u32 %v490, 7
      %v492 = vsub.s32 0, %v491
      %v493 = vrot.slane %v483, %v492
      %vm495 = vcmask 261120
      %v497 = vsel %vm495, %v477, 0
      %499 = vmatprep.subr.mxu0 0.0
      %500 = vmatpush1.msra.mxu0 %v479
      %501 = vmatprep.subr.mxu0 0.0
      %502 = vmatpush1.msra.mxu0 %v480
      %503 = vmatprep.subr.mxu0 0.0
      %504 = vmatpush1.msra.mxu0 %v481
      %505 = vmatprep.subr.mxu0 0.0
      %506 = vmatpush1.msra.mxu0 %v482
      %507 = vmatprep.subr.mxu0 0.0
      %508 = vmatpush1.msra.mxu0 0.0
      %509 = vmatprep.subr.mxu0 0.0
      %510 = vmatpush1.msra.mxu0 0.0
      %511 = vmatprep.subr.mxu0 0.0
      %512 = vmatpush1.msra.mxu0 0.0
      %513 = vmatprep.subr.mxu0 0.0
      %514 = vmatpush1.msra.mxu0 0.0
      %515 = vmatprep.subr.mxu0 0.0
      %516 = vmatpush1.msra.mxu0 0.0
      %517 = vmatprep.subr.mxu0 0.0
      %518 = vmatpush1.msra.mxu0 0.0
      %519 = vmatprep.subr.mxu0 0.0
      %520 = vmatpush1.msra.mxu0 0.0
      %521 = vmatprep.subr.mxu0 0.0
      %522 = vmatpush1.msra.mxu0 0.0
      %523 = vmatprep.subr.mxu0 0.0
      %524 = vmatpush1.msra.mxu0 0.0
      %525 = vmatprep.subr.mxu0 0.0
      %526 = vmatpush1.msra.mxu0 0.0
      %527 = vmatprep.subr.mxu0 0.0
      %528 = vmatpush1.msra.mxu0 0.0
      %529 = vmatprep.subr.mxu0 0.0
      %530 = vmatpush1.msra.mxu0 0.0
      %531 = vmatprep.subr.mxu0 0.0
      %532 = vmatpush1.msra.mxu0 0.0
      %533 = vmatprep.subr.mxu0 0.0
      %534 = vmatpush1.msra.mxu0 0.0
      %535 = vmatprep.subr.mxu0 0.0
      %536 = vmatpush1.msra.mxu0 0.0
      %537 = vmatprep.subr.mxu0 0.0
      %538 = vmatpush1.msra.mxu0 0.0
      %539 = vmatprep.subr.mxu0 0.0
      %540 = vmatpush1.msra.mxu0 0.0
      %541 = vmatprep.subr.mxu0 0.0
      %542 = vmatpush1.msra.mxu0 0.0
      %543 = vmatprep.subr.mxu0 0.0
      %544 = vmatpush1.msra.mxu0 0.0
      %545 = vmatprep.subr.mxu0 0.0
      %546 = vmatpush1.msra.mxu0 0.0
      %547 = vmatprep.subr.mxu0 0.0
      %548 = vmatpush1.msra.mxu0 0.0
      %549 = vmatprep.subr.mxu0 0.0
      %550 = vmatpush1.msra.mxu0 0.0
      %551 = vmatprep.subr.mxu0 0.0
      %552 = vmatpush1.msra.mxu0 0.0
      %553 = vmatprep.subr.mxu0 0.0
      %554 = vmatpush1.msra.mxu0 0.0
      %555 = vmatprep.subr.mxu0 0.0
      %556 = vmatpush1.msra.mxu0 0.0
      %557 = vmatprep.subr.mxu0 0.0
      %558 = vmatpush1.msra.mxu0 0.0
      %559 = vmatprep.subr.mxu0 0.0
      %560 = vmatpush1.msra.mxu0 0.0
      %561 = vmatprep.subr.mxu0 0.0
      %562 = vmatpush1.msra.mxu0 0.0
      %563 = vmatprep.mubr.f32.mxu0 0.0
      %564 = vmatmul.mubr.f32.gmra.mrb[0].mxu0 %v497
      %v565 = vpop.f32.mrb[0].mxu0
      %v566 = vadd.f32 %v493, %v565
      %v567 = vpop.f32.mrb[0].mxu0
      %568 = vdwg.mxu0
      %570 = vrot.lane.b32.xlu0 %v566, 96
      %v571 = vpop.permute.xlu0 %570
      %vm572 = vcmask 64512
      %v573 = vsel %vm572, %v566, 0
      %v575 = vsel %vm572, %v571, 0
      %577 = vmatprep.subr.mxu0 0.0
      %578 = vmatpush1.xpose.msra.mxu0 %v575
      %579 = vmatprep.subr.mxu0 0.0
      %580 = vmatpush1.xpose.msra.mxu0 0.0
      %581 = vmatprep.subr.mxu0 0.0
      %582 = vmatpush1.xpose.msra.mxu0 0.0
      %583 = vmatprep.subr.mxu0 0.0
      %584 = vmatpush1.xpose.msra.mxu0 0.0
      %585 = vmatprep.subr.mxu0 0.0
      %586 = vmatpush1.xpose.msra.mxu0 0.0
      %587 = vmatprep.subr.mxu0 0.0
      %588 = vmatpush1.xpose.msra.mxu0 0.0
      %589 = vmatprep.subr.mxu0 0.0
      %590 = vmatpush1.xpose.msra.mxu0 0.0
      %591 = vmatprep.subr.mxu0 0.0
      %592 = vmatpush1.xpose.msra.mxu0 0.0
      %593 = vmatprep.subr.mxu0 0.0
      %594 = vmatpush1.xpose.msra.mxu0 0.0
      %595 = vmatprep.subr.mxu0 0.0
      %596 = vmatpush1.xpose.msra.mxu0 0.0
      %597 = vmatprep.subr.mxu0 0.0
      %598 = vmatpush1.xpose.msra.mxu0 0.0
      %599 = vmatprep.subr.mxu0 0.0
      %600 = vmatpush1.xpose.msra.mxu0 0.0
      %601 = vmatprep.subr.mxu0 0.0
      %602 = vmatpush1.xpose.msra.mxu0 0.0
      %603 = vmatprep.subr.mxu0 0.0
      %604 = vmatpush1.xpose.msra.mxu0 0.0
      %605 = vmatprep.subr.mxu0 0.0
      %606 = vmatpush1.xpose.msra.mxu0 0.0
      %607 = vmatprep.subr.mxu0 0.0
      %608 = vmatpush1.xpose.msra.mxu0 0.0
      %609 = vmatprep.subr.mxu0 0.0
      %610 = vmatpush1.xpose.msra.mxu0 0.0
      %611 = vmatprep.subr.mxu0 0.0
      %612 = vmatpush1.xpose.msra.mxu0 0.0
      %613 = vmatprep.subr.mxu0 0.0
      %614 = vmatpush1.xpose.msra.mxu0 0.0
      %615 = vmatprep.subr.mxu0 0.0
      %616 = vmatpush1.xpose.msra.mxu0 0.0
      %617 = vmatprep.subr.mxu0 0.0
      %618 = vmatpush1.xpose.msra.mxu0 0.0
      %619 = vmatprep.subr.mxu0 0.0
      %620 = vmatpush1.xpose.msra.mxu0 0.0
      %621 = vmatprep.subr.mxu0 0.0
      %622 = vmatpush1.xpose.msra.mxu0 0.0
      %623 = vmatprep.subr.mxu0 0.0
      %624 = vmatpush1.xpose.msra.mxu0 0.0
      %625 = vmatprep.subr.mxu0 0.0
      %626 = vmatpush1.xpose.msra.mxu0 0.0
      %627 = vmatprep.subr.mxu0 0.0
      %628 = vmatpush1.xpose.msra.mxu0 0.0
      %629 = vmatprep.subr.mxu0 0.0
      %630 = vmatpush1.xpose.msra.mxu0 0.0
      %631 = vmatprep.subr.mxu0 0.0
      %632 = vmatpush1.xpose.msra.mxu0 0.0
      %633 = vmatprep.subr.mxu0 0.0
      %634 = vmatpush1.xpose.msra.mxu0 0.0
      %635 = vmatprep.subr.mxu0 0.0
      %636 = vmatpush1.xpose.msra.mxu0 0.0
      %637 = vmatprep.subr.mxu0 0.0
      %638 = vmatpush1.xpose.msra.mxu0 0.0
      %639 = vmatprep.subr.mxu0 0.0
      %640 = vmatpush1.xpose.msra.mxu0 0.0
      %641 = vmatprep.mubr.f32.mxu0 0.0
      %642 = vmatmul.mubr.f32.gmra.mrb[0].mxu0 %v573
      %v643 = vpop.f32.mrb[0].mxu0
      %v644 = vadd.f32 0.0, %v643
      %v645 = vpop.f32.mrb[0].mxu0
      %646 = vdwg.mxu0
      %v647 = vmul.f32 %v644, 0.35355338
      %vm648 = vcmp.gt.s32.totalorder %v478, 0
      %v649 = vsel %vm648, 1, 0
      %v650 = vlaneseq
      %v651 = vshrl.u32 %v650, 7
      %v652 = vsub.s32 0, %v651
      %v653 = vrot.slane %v649, %v652
      %vm654 = vcmp.eq.s32.totalorder %v653, 1
      %v655 = vsel %vm654, %v647, -1e+10
      %v656 = vsel %vm572, %v655, -inf
      %657 = vmax.xlane.f32.xlu0 %v656
      %v658 = vpop.xlane.xlu0 %657
      %v659 = vsub.f32 %v655, %v658
      %v660 = vmul.f32 %v659, 1.442695
      %v661 = vpow.pop %v660
      %v662 = vsel %vm572, %v661, 0.0
      %663 = vadd.xlane.f32.xlu0 %v662
      %v664 = vpop.xlane.xlu0 %663
      %v665 = vrcp.pop %v664
      %v666 = vmul.f32 %v661, %v665
      %667 = vrot.lane.b32.xlu0 %v566, 64
      %v668 = vpop.permute.xlu0 %667
      %v671 = vsel %vm572, %v666, 0
      %673 = vmatprep.subr.mxu0 0.0
      %674 = vmatpush1.msra.mxu0 %v668
      %675 = vmatprep.subr.mxu0 0.0
      %676 = vmatpush1.msra.mxu0 0.0
      %677 = vmatprep.subr.mxu0 0.0
      %678 = vmatpush1.msra.mxu0 0.0
      %679 = vmatprep.subr.mxu0 0.0
      %680 = vmatpush1.msra.mxu0 0.0
      %681 = vmatprep.subr.mxu0 0.0
      %682 = vmatpush1.msra.mxu0 0.0
      %683 = vmatprep.subr.mxu0 0.0
      %684 = vmatpush1.msra.mxu0 0.0
      %685 = vmatprep.subr.mxu0 0.0
      %686 = vmatpush1.msra.mxu0 0.0
      %687 = vmatprep.subr.mxu0 0.0
      %688 = vmatpush1.msra.mxu0 0.0
      %689 = vmatprep.subr.mxu0 0.0
      %690 = vmatpush1.msra.mxu0 0.0
      %691 = vmatprep.subr.mxu0 0.0
      %692 = vmatpush1.msra.mxu0 0.0
      %693 = vmatprep.subr.mxu0 0.0
      %694 = vmatpush1.msra.mxu0 0.0
      %695 = vmatprep.subr.mxu0 0.0
      %696 = vmatpush1.msra.mxu0 0.0
      %697 = vmatprep.subr.mxu0 0.0
      %698 = vmatpush1.msra.mxu0 0.0
      %699 = vmatprep.subr.mxu0 0.0
      %700 = vmatpush1.msra.mxu0 0.0
      %701 = vmatprep.subr.mxu0 0.0
      %702 = vmatpush1.msra.mxu0 0.0
      %703 = vmatprep.subr.mxu0 0.0
      %704 = vmatpush1.msra.mxu0 0.0
      %705 = vmatprep.subr.mxu0 0.0
      %706 = vmatpush1.msra.mxu0 0.0
      %707 = vmatprep.subr.mxu0 0.0
      %708 = vmatpush1.msra.mxu0 0.0
      %709 = vmatprep.subr.mxu0 0.0
      %710 = vmatpush1.msra.mxu0 0.0
      %711 = vmatprep.subr.mxu0 0.0
      %712 = vmatpush1.msra.mxu0 0.0
      %713 = vmatprep.subr.mxu0 0.0
      %714 = vmatpush1.msra.mxu0 0.0
      %715 = vmatprep.subr.mxu0 0.0
      %716 = vmatpush1.msra.mxu0 0.0
      %717 = vmatprep.subr.mxu0 0.0
      %718 = vmatpush1.msra.mxu0 0.0
      %719 = vmatprep.subr.mxu0 0.0
      %720 = vmatpush1.msra.mxu0 0.0
      %721 = vmatprep.subr.mxu0 0.0
      %722 = vmatpush1.msra.mxu0 0.0
      %723 = vmatprep.subr.mxu0 0.0
      %724 = vmatpush1.msra.mxu0 0.0
      %725 = vmatprep.subr.mxu0 0.0
      %726 = vmatpush1.msra.mxu0 0.0
      %727 = vmatprep.subr.mxu0 0.0
      %728 = vmatpush1.msra.mxu0 0.0
      %729 = vmatprep.subr.mxu0 0.0
      %730 = vmatpush1.msra.mxu0 0.0
      %731 = vmatprep.subr.mxu0 0.0
      %732 = vmatpush1.msra.mxu0 0.0
      %733 = vmatprep.subr.mxu0 0.0
      %734 = vmatpush1.msra.mxu0 0.0
      %735 = vmatprep.subr.mxu0 0.0
      %736 = vmatpush1.msra.mxu0 0.0
      %737 = vmatprep.mubr.f32.mxu0 0.0
      %738 = vmatmul.mubr.f32.gmra.mrb[0].mxu0 %v671
      %v739 = vpop.f32.mrb[0].mxu0
      %v740 = vadd.f32 0.0, %v739
      %v741 = vpop.f32.mrb[0].mxu0
      %742 = vdwg.mxu0
      %743 = vrot.lane.b32.xlu0 %v566, 120
      %v744 = vpop.permute.xlu0 %743
      %745 = vrot.lane.b32.xlu0 %v566, 88
      %v746 = vpop.permute.xlu0 %745
      %v747 = vsel %vm572, %v744, 0
      %v749 = vsel %vm572, %v746, 0
      %751 = vmatprep.subr.mxu0 0.0
      %752 = vmatpush1.xpose.msra.mxu0 %v749
      %753 = vmatprep.subr.mxu0 0.0
      %754 = vmatpush1.xpose.msra.mxu0 0.0
      %755 = vmatprep.subr.mxu0 0.0
      %756 = vmatpush1.xpose.msra.mxu0 0.0
      %757 = vmatprep.subr.mxu0 0.0
      %758 = vmatpush1.xpose.msra.mxu0 0.0
      %759 = vmatprep.subr.mxu0 0.0
      %760 = vmatpush1.xpose.msra.mxu0 0.0
      %761 = vmatprep.subr.mxu0 0.0
      %762 = vmatpush1.xpose.msra.mxu0 0.0
      %763 = vmatprep.subr.mxu0 0.0
      %764 = vmatpush1.xpose.msra.mxu0 0.0
      %765 = vmatprep.subr.mxu0 0.0
      %766 = vmatpush1.xpose.msra.mxu0 0.0
      %767 = vmatprep.subr.mxu0 0.0
      %768 = vmatpush1.xpose.msra.mxu0 0.0
      %769 = vmatprep.subr.mxu0 0.0
      %770 = vmatpush1.xpose.msra.mxu0 0.0
      %771 = vmatprep.subr.mxu0 0.0
      %772 = vmatpush1.xpose.msra.mxu0 0.0
      %773 = vmatprep.subr.mxu0 0.0
      %774 = vmatpush1.xpose.msra.mxu0 0.0
      %775 = vmatprep.subr.mxu0 0.0
      %776 = vmatpush1.xpose.msra.mxu0 0.0
      %777 = vmatprep.subr.mxu0 0.0
      %778 = vmatpush1.xpose.msra.mxu0 0.0
      %779 = vmatprep.subr.mxu0 0.0
      %780 = vmatpush1.xpose.msra.mxu0 0.0
      %781 = vmatprep.subr.mxu0 0.0
      %782 = vmatpush1.xpose.msra.mxu0 0.0
      %783 = vmatprep.subr.mxu0 0.0
      %784 = vmatpush1.xpose.msra.mxu0 0.0
      %785 = vmatprep.subr.mxu0 0.0
      %786 = vmatpush1.xpose.msra.mxu0 0.0
      %787 = vmatprep.subr.mxu0 0.0
      %788 = vmatpush1.xpose.msra.mxu0 0.0
      %789 = vmatprep.subr.mxu0 0.0
      %790 = vmatpush1.xpose.msra.mxu0 0.0
      %791 = vmatprep.subr.mxu0 0.0
      %792 = vmatpush1.xpose.msra.mxu0 0.0
      %793 = vmatprep.subr.mxu0 0.0
      %794 = vmatpush1.xpose.msra.mxu0 0.0
      %795 = vmatprep.subr.mxu0 0.0
      %796 = vmatpush1.xpose.msra.mxu0 0.0
      %797 = vmatprep.subr.mxu0 0.0
      %798 = vmatpush1.xpose.msra.mxu0 0.0
      %799 = vmatprep.subr.mxu0 0.0
      %800 = vmatpush1.xpose.msra.mxu0 0.0
      %801 = vmatprep.subr.mxu0 0.0
      %802 = vmatpush1.xpose.msra.mxu0 0.0
      %803 = vmatprep.subr.mxu0 0.0
      %804 = vmatpush1.xpose.msra.mxu0 0.0
      %805 = vmatprep.subr.mxu0 0.0
      %806 = vmatpush1.xpose.msra.mxu0 0.0
      %807 = vmatprep.subr.mxu0 0.0
      %808 = vmatpush1.xpose.msra.mxu0 0.0
      %809 = vmatprep.subr.mxu0 0.0
      %810 = vmatpush1.xpose.msra.mxu0 0.0
      %811 = vmatprep.subr.mxu0 0.0
      %812 = vmatpush1.xpose.msra.mxu0 0.0
      %813 = vmatprep.subr.mxu0 0.0
      %814 = vmatpush1.xpose.msra.mxu0 0.0
      %815 = vmatprep.mubr.f32.mxu0 0.0
      %816 = vmatmul.mubr.f32.gmra.mrb[0].mxu0 %v747
      %v817 = vpop.f32.mrb[0].mxu0
      %v818 = vadd.f32 0.0, %v817
      %v819 = vpop.f32.mrb[0].mxu0
      %820 = vdwg.mxu0
      %v821 = vmul.f32 %v818, 0.35355338
      %v822 = vsel %vm654, %v821, -1e+10
      %v823 = vsel %vm572, %v822, -inf
      %824 = vmax.xlane.f32.xlu0 %v823
      %v825 = vpop.xlane.xlu0 %824
      %v826 = vsub.f32 %v822, %v825
      %v827 = vmul.f32 %v826, 1.442695
      %v828 = vpow.pop %v827
      %v829 = vsel %vm572, %v828, 0.0
      %830 = vadd.xlane.f32.xlu0 %v829
      %v831 = vpop.xlane.xlu0 %830
      %v832 = vrcp.pop %v831
      %v833 = vmul.f32 %v828, %v832
      %834 = vrot.lane.b32.xlu0 %v566, 56
      %v835 = vpop.permute.xlu0 %834
      %v838 = vsel %vm572, %v833, 0
      %840 = vmatprep.subr.mxu0 0.0
      %841 = vmatpush1.msra.mxu0 %v835
      %842 = vmatprep.subr.mxu0 0.0
      %843 = vmatpush1.msra.mxu0 0.0
      %844 = vmatprep.subr.mxu0 0.0
      %845 = vmatpush1.msra.mxu0 0.0
      %846 = vmatprep.subr.mxu0 0.0
      %847 = vmatpush1.msra.mxu0 0.0
      %848 = vmatprep.subr.mxu0 0.0
      %849 = vmatpush1.msra.mxu0 0.0
      %850 = vmatprep.subr.mxu0 0.0
      %851 = vmatpush1.msra.mxu0 0.0
      %852 = vmatprep.subr.mxu0 0.0
      %853 = vmatpush1.msra.mxu0 0.0
      %854 = vmatprep.subr.mxu0 0.0
      %855 = vmatpush1.msra.mxu0 0.0
      %856 = vmatprep.subr.mxu0 0.0
      %857 = vmatpush1.msra.mxu0 0.0
      %858 = vmatprep.subr.mxu0 0.0
      %859 = vmatpush1.msra.mxu0 0.0
      %860 = vmatprep.subr.mxu0 0.0
      %861 = vmatpush1.msra.mxu0 0.0
      %862 = vmatprep.subr.mxu0 0.0
      %863 = vmatpush1.msra.mxu0 0.0
      %864 = vmatprep.subr.mxu0 0.0
      %865 = vmatpush1.msra.mxu0 0.0
      %866 = vmatprep.subr.mxu0 0.0
      %867 = vmatpush1.msra.mxu0 0.0
      %868 = vmatprep.subr.mxu0 0.0
      %869 = vmatpush1.msra.mxu0 0.0
      %870 = vmatprep.subr.mxu0 0.0
      %871 = vmatpush1.msra.mxu0 0.0
      %872 = vmatprep.subr.mxu0 0.0
      %873 = vmatpush1.msra.mxu0 0.0
      %874 = vmatprep.subr.mxu0 0.0
      %875 = vmatpush1.msra.mxu0 0.0
      %876 = vmatprep.subr.mxu0 0.0
      %877 = vmatpush1.msra.mxu0 0.0
      %878 = vmatprep.subr.mxu0 0.0
      %879 = vmatpush1.msra.mxu0 0.0
      %880 = vmatprep.subr.mxu0 0.0
      %881 = vmatpush1.msra.mxu0 0.0
      %882 = vmatprep.subr.mxu0 0.0
      %883 = vmatpush1.msra.mxu0 0.0
      %884 = vmatprep.subr.mxu0 0.0
      %885 = vmatpush1.msra.mxu0 0.0
      %886 = vmatprep.subr.mxu0 0.0
      %887 = vmatpush1.msra.mxu0 0.0
      %888 = vmatprep.subr.mxu0 0.0
      %889 = vmatpush1.msra.mxu0 0.0
      %890 = vmatprep.subr.mxu0 0.0
      %891 = vmatpush1.msra.mxu0 0.0
      %892 = vmatprep.subr.mxu0 0.0
      %893 = vmatpush1.msra.mxu0 0.0
      %894 = vmatprep.subr.mxu0 0.0
      %895 = vmatpush1.msra.mxu0 0.0
      %896 = vmatprep.subr.mxu0 0.0
      %897 = vmatpush1.msra.mxu0 0.0
      %898 = vmatprep.subr.mxu0 0.0
      %899 = vmatpush1.msra.mxu0 0.0
      %900 = vmatprep.subr.mxu0 0.0
      %901 = vmatpush1.msra.mxu0 0.0
      %902 = vmatprep.subr.mxu0 0.0
      %903 = vmatpush1.msra.mxu0 0.0
      %904 = vmatprep.mubr.f32.mxu0 0.0
      %905 = vmatmul.mubr.f32.gmra.mrb[0].mxu0 %v838
      %v906 = vpop.f32.mrb[0].mxu0
      %v907 = vadd.f32 0.0, %v906
      %v908 = vpop.f32.mrb[0].mxu0
      %909 = vdwg.mxu0
      %910 = vrot.lane.b32.xlu0 %v566, 112
      %v911 = vpop.permute.xlu0 %910
      %912 = vrot.lane.b32.xlu0 %v566, 80
      %v913 = vpop.permute.xlu0 %912
      %v914 = vsel %vm572, %v911, 0
      %v916 = vsel %vm572, %v913, 0
      %918 = vmatprep.subr.mxu0 0.0
      %919 = vmatpush1.xpose.msra.mxu0 %v916
      %920 = vmatprep.subr.mxu0 0.0
      %921 = vmatpush1.xpose.msra.mxu0 0.0
      %922 = vmatprep.subr.mxu0 0.0
      %923 = vmatpush1.xpose.msra.mxu0 0.0
      %924 = vmatprep.subr.mxu0 0.0
      %925 = vmatpush1.xpose.msra.mxu0 0.0
      %926 = vmatprep.subr.mxu0 0.0
      %927 = vmatpush1.xpose.msra.mxu0 0.0
      %928 = vmatprep.subr.mxu0 0.0
      %929 = vmatpush1.xpose.msra.mxu0 0.0
      %930 = vmatprep.subr.mxu0 0.0
      %931 = vmatpush1.xpose.msra.mxu0 0.0
      %932 = vmatprep.subr.mxu0 0.0
      %933 = vmatpush1.xpose.msra.mxu0 0.0
      %934 = vmatprep.subr.mxu0 0.0
      %935 = vmatpush1.xpose.msra.mxu0 0.0
      %936 = vmatprep.subr.mxu0 0.0
      %937 = vmatpush1.xpose.msra.mxu0 0.0
      %938 = vmatprep.subr.mxu0 0.0
      %939 = vmatpush1.xpose.msra.mxu0 0.0
      %940 = vmatprep.subr.mxu0 0.0
      %941 = vmatpush1.xpose.msra.mxu0 0.0
      %942 = vmatprep.subr.mxu0 0.0
      %943 = vmatpush1.xpose.msra.mxu0 0.0
      %944 = vmatprep.subr.mxu0 0.0
      %945 = vmatpush1.xpose.msra.mxu0 0.0
      %946 = vmatprep.subr.mxu0 0.0
      %947 = vmatpush1.xpose.msra.mxu0 0.0
      %948 = vmatprep.subr.mxu0 0.0
      %949 = vmatpush1.xpose.msra.mxu0 0.0
      %950 = vmatprep.subr.mxu0 0.0
      %951 = vmatpush1.xpose.msra.mxu0 0.0
      %952 = vmatprep.subr.mxu0 0.0
      %953 = vmatpush1.xpose.msra.mxu0 0.0
      %954 = vmatprep.subr.mxu0 0.0
      %955 = vmatpush1.xpose.msra.mxu0 0.0
      %956 = vmatprep.subr.mxu0 0.0
      %957 = vmatpush1.xpose.msra.mxu0 0.0
      %958 = vmatprep.subr.mxu0 0.0
      %959 = vmatpush1.xpose.msra.mxu0 0.0
      %960 = vmatprep.subr.mxu0 0.0
      %961 = vmatpush1.xpose.msra.mxu0 0.0
      %962 = vmatprep.subr.mxu0 0.0
      %963 = vmatpush1.xpose.msra.mxu0 0.0
      %964 = vmatprep.subr.mxu0 0.0
      %965 = vmatpush1.xpose.msra.mxu0 0.0
      %966 = vmatprep.subr.mxu0 0.0
      %967 = vmatpush1.xpose.msra.mxu0 0.0
      %968 = vmatprep.subr.mxu0 0.0
      %969 = vmatpush1.xpose.msra.mxu0 0.0
      %970 = vmatprep.subr.mxu0 0.0
      %971 = vmatpush1.xpose.msra.mxu0 0.0
      %972 = vmatprep.subr.mxu0 0.0
      %973 = vmatpush1.xpose.msra.mxu0 0.0
      %974 = vmatprep.subr.mxu0 0.0
      %975 = vmatpush1.xpose.msra.mxu0 0.0
      %976 = vmatprep.subr.mxu0 0.0
      %977 = vmatpush1.xpose.msra.mxu0 0.0
      %978 = vmatprep.subr.mxu0 0.0
      %979 = vmatpush1.xpose.msra.mxu0 0.0
      %980 = vmatprep.subr.mxu0 0.0
      %981 = vmatpush1.xpose.msra.mxu0 0.0
      %982 = vmatprep.mubr.f32.mxu0 0.0
      %983 = vmatmul.mubr.f32.gmra.mrb[0].mxu0 %v914
      %v984 = vpop.f32.mrb[0].mxu0
      %v985 = vadd.f32 0.0, %v984
      %v986 = vpop.f32.mrb[0].mxu0
      %987 = vdwg.mxu0
      %v988 = vmul.f32 %v985, 0.35355338
      %v989 = vsel %vm654, %v988, -1e+10
      %v990 = vsel %vm572, %v989, -inf
      %991 = vmax.xlane.f32.xlu0 %v990
      %v992 = vpop.xlane.xlu0 %991
      %v993 = vsub.f32 %v989, %v992
      %v994 = vmul.f32 %v993, 1.442695
      %v995 = vpow.pop %v994
      %v996 = vsel %vm572, %v995, 0.0
      %997 = vadd.xlane.f32.xlu0 %v996
      %v998 = vpop.xlane.xlu0 %997
      %v999 = vrcp.pop %v998
      %v1000 = vmul.f32 %v995, %v999
      %1001 = vrot.lane.b32.xlu0 %v566, 48
      %v1002 = vpop.permute.xlu0 %1001
      %v1005 = vsel %vm572, %v1000, 0
      %1007 = vmatprep.subr.mxu0 0.0
      %1008 = vmatpush1.msra.mxu0 %v1002
      %1009 = vmatprep.subr.mxu0 0.0
      %1010 = vmatpush1.msra.mxu0 0.0
      %1011 = vmatprep.subr.mxu0 0.0
      %1012 = vmatpush1.msra.mxu0 0.0
      %1013 = vmatprep.subr.mxu0 0.0
      %1014 = vmatpush1.msra.mxu0 0.0
      %1015 = vmatprep.subr.mxu0 0.0
      %1016 = vmatpush1.msra.mxu0 0.0
      %1017 = vmatprep.subr.mxu0 0.0
      %1018 = vmatpush1.msra.mxu0 0.0
      %1019 = vmatprep.subr.mxu0 0.0
      %1020 = vmatpush1.msra.mxu0 0.0
      %1021 = vmatprep.subr.mxu0 0.0
      %1022 = vmatpush1.msra.mxu0 0.0
      %1023 = vmatprep.subr.mxu0 0.0
      %1024 = vmatpush1.msra.mxu0 0.0
      %1025 = vmatprep.subr.mxu0 0.0
      %1026 = vmatpush1.msra.mxu0 0.0
      %1027 = vmatprep.subr.mxu0 0.0
      %1028 = vmatpush1.msra.mxu0 0.0
      %1029 = vmatprep.subr.mxu0 0.0
      %1030 = vmatpush1.msra.mxu0 0.0
      %1031 = vmatprep.subr.mxu0 0.0
      %1032 = vmatpush1.msra.mxu0 0.0
      %1033 = vmatprep.subr.mxu0 0.0
      %1034 = vmatpush1.msra.mxu0 0.0
      %1035 = vmatprep.subr.mxu0 0.0
      %1036 = vmatpush1.msra.mxu0 0.0
      %1037 = vmatprep.subr.mxu0 0.0
      %1038 = vmatpush1.msra.mxu0 0.0
      %1039 = vmatprep.subr.mxu0 0.0
      %1040 = vmatpush1.msra.mxu0 0.0
      %1041 = vmatprep.subr.mxu0 0.0
      %1042 = vmatpush1.msra.mxu0 0.0
      %1043 = vmatprep.subr.mxu0 0.0
      %1044 = vmatpush1.msra.mxu0 0.0
      %1045 = vmatprep.subr.mxu0 0.0
      %1046 = vmatpush1.msra.mxu0 0.0
      %1047 = vmatprep.subr.mxu0 0.0
      %1048 = vmatpush1.msra.mxu0 0.0
      %1049 = vmatprep.subr.mxu0 0.0
      %1050 = vmatpush1.msra.mxu0 0.0
      %1051 = vmatprep.subr.mxu0 0.0
      %1052 = vmatpush1.msra.mxu0 0.0
      %1053 = vmatprep.subr.mxu0 0.0
      %1054 = vmatpush1.msra.mxu0 0.0
      %1055 = vmatprep.subr.mxu0 0.0
      %1056 = vmatpush1.msra.mxu0 0.0
      %1057 = vmatprep.subr.mxu0 0.0
      %1058 = vmatpush1.msra.mxu0 0.0
      %1059 = vmatprep.subr.mxu0 0.0
      %1060 = vmatpush1.msra.mxu0 0.0
      %1061 = vmatprep.subr.mxu0 0.0
      %1062 = vmatpush1.msra.mxu0 0.0
      %1063 = vmatprep.subr.mxu0 0.0
      %1064 = vmatpush1.msra.mxu0 0.0
      %1065 = vmatprep.subr.mxu0 0.0
      %1066 = vmatpush1.msra.mxu0 0.0
      %1067 = vmatprep.subr.mxu0 0.0
      %1068 = vmatpush1.msra.mxu0 0.0
      %1069 = vmatprep.subr.mxu0 0.0
      %1070 = vmatpush1.msra.mxu0 0.0
      %1071 = vmatprep.mubr.f32.mxu0 0.0
      %1072 = vmatmul.mubr.f32.gmra.mrb[0].mxu0 %v1005
      %v1073 = vpop.f32.mrb[0].mxu0
      %v1074 = vadd.f32 0.0, %v1073
      %v1075 = vpop.f32.mrb[0].mxu0
      %1076 = vdwg.mxu0
      %1077 = vrot.lane.b32.xlu0 %v566, 104
      %v1078 = vpop.permute.xlu0 %1077
      %1079 = vrot.lane.b32.xlu0 %v566, 72
      %v1080 = vpop.permute.xlu0 %1079
      %v1081 = vsel %vm572, %v1078, 0
      %v1083 = vsel %vm572, %v1080, 0
      %1085 = vmatprep.subr.mxu0 0.0
      %1086 = vmatpush1.xpose.msra.mxu0 %v1083
      %1087 = vmatprep.subr.mxu0 0.0
      %1088 = vmatpush1.xpose.msra.mxu0 0.0
      %1089 = vmatprep.subr.mxu0 0.0
      %1090 = vmatpush1.xpose.msra.mxu0 0.0
      %1091 = vmatprep.subr.mxu0 0.0
      %1092 = vmatpush1.xpose.msra.mxu0 0.0
      %1093 = vmatprep.subr.mxu0 0.0
      %1094 = vmatpush1.xpose.msra.mxu0 0.0
      %1095 = vmatprep.subr.mxu0 0.0
      %1096 = vmatpush1.xpose.msra.mxu0 0.0
      %1097 = vmatprep.subr.mxu0 0.0
      %1098 = vmatpush1.xpose.msra.mxu0 0.0
      %1099 = vmatprep.subr.mxu0 0.0
      %1100 = vmatpush1.xpose.msra.mxu0 0.0
      %1101 = vmatprep.subr.mxu0 0.0
      %1102 = vmatpush1.xpose.msra.mxu0 0.0
      %1103 = vmatprep.subr.mxu0 0.0
      %1104 = vmatpush1.xpose.msra.mxu0 0.0
      %1105 = vmatprep.subr.mxu0 0.0
      %1106 = vmatpush1.xpose.msra.mxu0 0.0
      %1107 = vmatprep.subr.mxu0 0.0
      %1108 = vmatpush1.xpose.msra.mxu0 0.0
      %1109 = vmatprep.subr.mxu0 0.0
      %1110 = vmatpush1.xpose.msra.mxu0 0.0
      %1111 = vmatprep.subr.mxu0 0.0
      %1112 = vmatpush1.xpose.msra.mxu0 0.0
      %1113 = vmatprep.subr.mxu0 0.0
      %1114 = vmatpush1.xpose.msra.mxu0 0.0
      %1115 = vmatprep.subr.mxu0 0.0
      %1116 = vmatpush1.xpose.msra.mxu0 0.0
      %1117 = vmatprep.subr.mxu0 0.0
      %1118 = vmatpush1.xpose.msra.mxu0 0.0
      %1119 = vmatprep.subr.mxu0 0.0
      %1120 = vmatpush1.xpose.msra.mxu0 0.0
      %1121 = vmatprep.subr.mxu0 0.0
      %1122 = vmatpush1.xpose.msra.mxu0 0.0
      %1123 = vmatprep.subr.mxu0 0.0
      %1124 = vmatpush1.xpose.msra.mxu0 0.0
      %1125 = vmatprep.subr.mxu0 0.0
      %1126 = vmatpush1.xpose.msra.mxu0 0.0
      %1127 = vmatprep.subr.mxu0 0.0
      %1128 = vmatpush1.xpose.msra.mxu0 0.0
      %1129 = vmatprep.subr.mxu0 0.0
      %1130 = vmatpush1.xpose.msra.mxu0 0.0
      %1131 = vmatprep.subr.mxu0 0.0
      %1132 = vmatpush1.xpose.msra.mxu0 0.0
      %1133 = vmatprep.subr.mxu0 0.0
      %1134 = vmatpush1.xpose.msra.mxu0 0.0
      %1135 = vmatprep.subr.mxu0 0.0
      %1136 = vmatpush1.xpose.msra.mxu0 0.0
      %1137 = vmatprep.subr.mxu0 0.0
      %1138 = vmatpush1.xpose.msra.mxu0 0.0
      %1139 = vmatprep.subr.mxu0 0.0
      %1140 = vmatpush1.xpose.msra.mxu0 0.0
      %1141 = vmatprep.subr.mxu0 0.0
      %1142 = vmatpush1.xpose.msra.mxu0 0.0
      %1143 = vmatprep.subr.mxu0 0.0
      %1144 = vmatpush1.xpose.msra.mxu0 0.0
      %1145 = vmatprep.subr.mxu0 0.0
      %1146 = vmatpush1.xpose.msra.mxu0 0.0
      %1147 = vmatprep.subr.mxu0 0.0
      %1148 = vmatpush1.xpose.msra.mxu0 0.0
      %1149 = vmatprep.mubr.f32.mxu0 0.0
      %1150 = vmatmul.mubr.f32.gmra.mrb[0].mxu0 %v1081
      %v1151 = vpop.f32.mrb[0].mxu0
      %v1152 = vadd.f32 0.0, %v1151
      %v1153 = vpop.f32.mrb[0].mxu0
      %1154 = vdwg.mxu0
      %v1155 = vmul.f32 %v1152, 0.35355338
      %v1156 = vsel %vm654, %v1155, -1e+10
      %v1157 = vsel %vm572, %v1156, -inf
      %1158 = vmax.xlane.f32.xlu0 %v1157
      %v1159 = vpop.xlane.xlu0 %1158
      %v1160 = vsub.f32 %v1156, %v1159
      %v1161 = vmul.f32 %v1160, 1.442695
      %v1162 = vpow.pop %v1161
      %v1163 = vsel %vm572, %v1162, 0.0
      %1164 = vadd.xlane.f32.xlu0 %v1163
      %v1165 = vpop.xlane.xlu0 %1164
      %v1166 = vrcp.pop %v1165
      %v1167 = vmul.f32 %v1162, %v1166
      %1168 = vrot.lane.b32.xlu0 %v566, 40
      %v1169 = vpop.permute.xlu0 %1168
      %v1172 = vsel %vm572, %v1167, 0
      %1174 = vmatprep.subr.mxu0 0.0
      %1175 = vmatpush1.msra.mxu0 %v1169
      %1176 = vmatprep.subr.mxu0 0.0
      %1177 = vmatpush1.msra.mxu0 0.0
      %1178 = vmatprep.subr.mxu0 0.0
      %1179 = vmatpush1.msra.mxu0 0.0
      %1180 = vmatprep.subr.mxu0 0.0
      %1181 = vmatpush1.msra.mxu0 0.0
      %1182 = vmatprep.subr.mxu0 0.0
      %1183 = vmatpush1.msra.mxu0 0.0
      %1184 = vmatprep.subr.mxu0 0.0
      %1185 = vmatpush1.msra.mxu0 0.0
      %1186 = vmatprep.subr.mxu0 0.0
      %1187 = vmatpush1.msra.mxu0 0.0
      %1188 = vmatprep.subr.mxu0 0.0
      %1189 = vmatpush1.msra.mxu0 0.0
      %1190 = vmatprep.subr.mxu0 0.0
      %1191 = vmatpush1.msra.mxu0 0.0
      %1192 = vmatprep.subr.mxu0 0.0
      %1193 = vmatpush1.msra.mxu0 0.0
      %1194 = vmatprep.subr.mxu0 0.0
      %1195 = vmatpush1.msra.mxu0 0.0
      %1196 = vmatprep.subr.mxu0 0.0
      %1197 = vmatpush1.msra.mxu0 0.0
      %1198 = vmatprep.subr.mxu0 0.0
      %1199 = vmatpush1.msra.mxu0 0.0
      %1200 = vmatprep.subr.mxu0 0.0
      %1201 = vmatpush1.msra.mxu0 0.0
      %1202 = vmatprep.subr.mxu0 0.0
      %1203 = vmatpush1.msra.mxu0 0.0
      %1204 = vmatprep.subr.mxu0 0.0
      %1205 = vmatpush1.msra.mxu0 0.0
      %1206 = vmatprep.subr.mxu0 0.0
      %1207 = vmatpush1.msra.mxu0 0.0
      %1208 = vmatprep.subr.mxu0 0.0
      %1209 = vmatpush1.msra.mxu0 0.0
      %1210 = vmatprep.subr.mxu0 0.0
      %1211 = vmatpush1.msra.mxu0 0.0
      %1212 = vmatprep.subr.mxu0 0.0
      %1213 = vmatpush1.msra.mxu0 0.0
      %1214 = vmatprep.subr.mxu0 0.0
      %1215 = vmatpush1.msra.mxu0 0.0
      %1216 = vmatprep.subr.mxu0 0.0
      %1217 = vmatpush1.msra.mxu0 0.0
      %1218 = vmatprep.subr.mxu0 0.0
      %1219 = vmatpush1.msra.mxu0 0.0
      %1220 = vmatprep.subr.mxu0 0.0
      %1221 = vmatpush1.msra.mxu0 0.0
      %1222 = vmatprep.subr.mxu0 0.0
      %1223 = vmatpush1.msra.mxu0 0.0
      %1224 = vmatprep.subr.mxu0 0.0
      %1225 = vmatpush1.msra.mxu0 0.0
      %1226 = vmatprep.subr.mxu0 0.0
      %1227 = vmatpush1.msra.mxu0 0.0
      %1228 = vmatprep.subr.mxu0 0.0
      %1229 = vmatpush1.msra.mxu0 0.0
      %1230 = vmatprep.subr.mxu0 0.0
      %1231 = vmatpush1.msra.mxu0 0.0
      %1232 = vmatprep.subr.mxu0 0.0
      %1233 = vmatpush1.msra.mxu0 0.0
      %1234 = vmatprep.subr.mxu0 0.0
      %1235 = vmatpush1.msra.mxu0 0.0
      %1236 = vmatprep.subr.mxu0 0.0
      %1237 = vmatpush1.msra.mxu0 0.0
      %1238 = vmatprep.mubr.f32.mxu0 0.0
      %1239 = vmatmul.mubr.f32.gmra.mrb[0].mxu0 %v1172
      %v1240 = vpop.f32.mrb[0].mxu0
      %v1241 = vadd.f32 0.0, %v1240
      %v1242 = vpop.f32.mrb[0].mxu0
      %1243 = vdwg.mxu0
      %1245 = vrot.lane.b32.xlu0 %v907, 8
      %v1246 = vpop.permute.xlu0 %1245
      %1249 = vrot.lane.b32.xlu0 %v1074, 16
      %v1250 = vpop.permute.xlu0 %1249
      %1253 = vrot.lane.b32.xlu0 %v1241, 24
      %v1254 = vpop.permute.xlu0 %1253
      %v1256 = vsel %vm572, %v740, %v1246
      %vm1257 = vcmask 130048
      %v1258 = vsel %vm1257, %v1256, %v1250
      %vm1259 = vcmask 195584
      %v1260 = vsel %vm1259, %v1258, %v1254
      %v1262 = vlaneseq
      %v1263 = vshrl.u32 %v1262, 7
      %v1264 = vsub.s32 0, %v1263
      %v1265 = vrot.slane %v488, %v1264
      %v1268 = vsel %vm495, %v1260, 0
      %1270 = vmatprep.subr.mxu0 0.0
      %1271 = vmatpush1.msra.mxu0 %v484
      %1272 = vmatprep.subr.mxu0 0.0
      %1273 = vmatpush1.msra.mxu0 %v485
      %1274 = vmatprep.subr.mxu0 0.0
      %1275 = vmatpush1.msra.mxu0 %v486
      %1276 = vmatprep.subr.mxu0 0.0
      %1277 = vmatpush1.msra.mxu0 %v487
      %1278 = vmatprep.subr.mxu0 0.0
      %1279 = vmatpush1.msra.mxu0 0.0
      %1280 = vmatprep.subr.mxu0 0.0
      %1281 = vmatpush1.msra.mxu0 0.0
      %1282 = vmatprep.subr.mxu0 0.0
      %1283 = vmatpush1.msra.mxu0 0.0
      %1284 = vmatprep.subr.mxu0 0.0
      %1285 = vmatpush1.msra.mxu0 0.0
      %1286 = vmatprep.subr.mxu0 0.0
      %1287 = vmatpush1.msra.mxu0 0.0
      %1288 = vmatprep.subr.mxu0 0.0
      %1289 = vmatpush1.msra.mxu0 0.0
      %1290 = vmatprep.subr.mxu0 0.0
      %1291 = vmatpush1.msra.mxu0 0.0
      %1292 = vmatprep.subr.mxu0 0.0
      %1293 = vmatpush1.msra.mxu0 0.0
      %1294 = vmatprep.subr.mxu0 0.0
      %1295 = vmatpush1.msra.mxu0 0.0
      %1296 = vmatprep.subr.mxu0 0.0
      %1297 = vmatpush1.msra.mxu0 0.0
      %1298 = vmatprep.subr.mxu0 0.0
      %1299 = vmatpush1.msra.mxu0 0.0
      %1300 = vmatprep.subr.mxu0 0.0
      %1301 = vmatpush1.msra.mxu0 0.0
      %1302 = vmatprep.subr.mxu0 0.0
      %1303 = vmatpush1.msra.mxu0 0.0
      %1304 = vmatprep.subr.mxu0 0.0
      %1305 = vmatpush1.msra.mxu0 0.0
      %1306 = vmatprep.subr.mxu0 0.0
      %1307 = vmatpush1.msra.mxu0 0.0
      %1308 = vmatprep.subr.mxu0 0.0
      %1309 = vmatpush1.msra.mxu0 0.0
      %1310 = vmatprep.subr.mxu0 0.0
      %1311 = vmatpush1.msra.mxu0 0.0
      %1312 = vmatprep.subr.mxu0 0.0
      %1313 = vmatpush1.msra.mxu0 0.0
      %1314 = vmatprep.subr.mxu0 0.0
      %1315 = vmatpush1.msra.mxu0 0.0
      %1316 = vmatprep.subr.mxu0 0.0
      %1317 = vmatpush1.msra.mxu0 0.0
      %1318 = vmatprep.subr.mxu0 0.0
      %1319 = vmatpush1.msra.mxu0 0.0
      %1320 = vmatprep.subr.mxu0 0.0
      %1321 = vmatpush1.msra.mxu0 0.0
      %1322 = vmatprep.subr.mxu0 0.0
      %1323 = vmatpush1.msra.mxu0 0.0
      %1324 = vmatprep.subr.mxu0 0.0
      %1325 = vmatpush1.msra.mxu0 0.0
      %1326 = vmatprep.subr.mxu0 0.0
      %1327 = vmatpush1.msra.mxu0 0.0
      %1328 = vmatprep.subr.mxu0 0.0
      %1329 = vmatpush1.msra.mxu0 0.0
      %1330 = vmatprep.subr.mxu0 0.0
      %1331 = vmatpush1.msra.mxu0 0.0
      %1332 = vmatprep.subr.mxu0 0.0
      %1333 = vmatpush1.msra.mxu0 0.0
      %1334 = vmatprep.mubr.f32.mxu0 0.0
      %1335 = vmatmul.mubr.f32.gmra.mrb[0].mxu0 %v1268
      %v1336 = vpop.f32.mrb[0].mxu0
      %v1337 = vadd.f32 %v1265, %v1336
      %v1338 = vpop.f32.mrb[0].mxu0
      %1339 = vdwg.mxu0
      %v1340 = vadd.f32 %v477, %v1337
      %v1341 = vld [vmem:[%s6] sm:$0x1]
      %v1342 = vld [vmem:[%s7] sm:$0x1]
      %v1343 = vsel %vm495, %v1340, 0.0
      %1344 = vadd.xlane.f32.xlu0 %v1343
      %v1345 = vpop.xlane.xlu0 %1344
      %v1346 = vrcp.pop 32.0
      %v1347 = vmul.f32 %v1345, %v1346
      %v1348 = vsub.f32 %v1340, %v1347
      %v1349 = vmul.f32 %v1348, %v1348
      %v1350 = vsel %vm495, %v1349, 0.0
      %1351 = vadd.xlane.f32.xlu0 %v1350
      %v1352 = vpop.xlane.xlu0 %1351
      %v1353 = vmul.f32 %v1352, %v1346
      %v1354 = vadd.f32 %v1353, 1e-05
      %v1355 = vrsqrt.pop %v1354
      %v1356 = vmul.f32 %v1348, %v1355
      %v1358 = vlaneseq
      %v1359 = vshrl.u32 %v1358, 7
      %v1360 = vsub.s32 0, %v1359
      %v1361 = vrot.slane %v1341, %v1360
      %v1363 = vmul.f32 %v1356, %v1361
      %v1365 = vlaneseq
      %v1366 = vshrl.u32 %v1365, 7
      %v1367 = vsub.s32 0, %v1366
      %v1368 = vrot.slane %v1342, %v1367
      %v1370 = vadd.f32 %v1363, %v1368
      %v1371 = vld [vmem:[%s8] sm:$0xff]
      %v1372 = vld [vmem:[%s8 + $0x8] sm:$0xff]
      %v1373 = vld [vmem:[%s8 + $0x10] sm:$0xff]
      %v1374 = vld [vmem:[%s8 + $0x18] sm:$0xff]
      %v1375 = vld [vmem:[%s9] sm:$0x1]
      %v1376 = vld [vmem:[%s10] sm:$0xff]
      %v1377 = vld [vmem:[%s10 + $0x8] sm:$0xff]
      %v1378 = vld [vmem:[%s10 + $0x10] sm:$0xff]
      %v1379 = vld [vmem:[%s10 + $0x18] sm:$0xff]
      %v1380 = vld [vmem:[%s10 + $0x20] sm:$0xff]
      %v1381 = vld [vmem:[%s10 + $0x28] sm:$0xff]
      %v1382 = vld [vmem:[%s10 + $0x30] sm:$0xff]
      %v1383 = vld [vmem:[%s10 + $0x38] sm:$0xff]
      %v1384 = vld [vmem:[%s11] sm:$0x1]
      %v1386 = vlaneseq
      %v1387 = vshrl.u32 %v1386, 7
      %v1388 = vsub.s32 0, %v1387
      %v1389 = vrot.slane %v1375, %v1388
      %v1392 = vsel %vm495, %v1370, 0
      %1394 = vmatprep.subr.mxu0 0.0
      %1395 = vmatpush1.msra.mxu0 %v1371
      %1396 = vmatprep.subr.mxu0 0.0
      %1397 = vmatpush1.msra.mxu0 %v1372
      %1398 = vmatprep.subr.mxu0 0.0
      %1399 = vmatpush1.msra.mxu0 %v1373
      %1400 = vmatprep.subr.mxu0 0.0
      %1401 = vmatpush1.msra.mxu0 %v1374
      %1402 = vmatprep.subr.mxu0 0.0
      %1403 = vmatpush1.msra.mxu0 0.0
      %1404 = vmatprep.subr.mxu0 0.0
      %1405 = vmatpush1.msra.mxu0 0.0
      %1406 = vmatprep.subr.mxu0 0.0
      %1407 = vmatpush1.msra.mxu0 0.0
      %1408 = vmatprep.subr.mxu0 0.0
      %1409 = vmatpush1.msra.mxu0 0.0
      %1410 = vmatprep.subr.mxu0 0.0
      %1411 = vmatpush1.msra.mxu0 0.0
      %1412 = vmatprep.subr.mxu0 0.0
      %1413 = vmatpush1.msra.mxu0 0.0
      %1414 = vmatprep.subr.mxu0 0.0
      %1415 = vmatpush1.msra.mxu0 0.0
      %1416 = vmatprep.subr.mxu0 0.0
      %1417 = vmatpush1.msra.mxu0 0.0
      %1418 = vmatprep.subr.mxu0 0.0
      %1419 = vmatpush1.msra.mxu0 0.0
      %1420 = vmatprep.subr.mxu0 0.0
      %1421 = vmatpush1.msra.mxu0 0.0
      %1422 = vmatprep.subr.mxu0 0.0
      %1423 = vmatpush1.msra.mxu0 0.0
      %1424 = vmatprep.subr.mxu0 0.0
      %1425 = vmatpush1.msra.mxu0 0.0
      %1426 = vmatprep.subr.mxu0 0.0
      %1427 = vmatpush1.msra.mxu0 0.0
      %1428 = vmatprep.subr.mxu0 0.0
      %1429 = vmatpush1.msra.mxu0 0.0
      %1430 = vmatprep.subr.mxu0 0.0
      %1431 = vmatpush1.msra.mxu0 0.0
      %1432 = vmatprep.subr.mxu0 0.0
      %1433 = vmatpush1.msra.mxu0 0.0
      %1434 = vmatprep.subr.mxu0 0.0
      %1435 = vmatpush1.msra.mxu0 0.0
      %1436 = vmatprep.subr.mxu0 0.0
      %1437 = vmatpush1.msra.mxu0 0.0
      %1438 = vmatprep.subr.mxu0 0.0
      %1439 = vmatpush1.msra.mxu0 0.0
      %1440 = vmatprep.subr.mxu0 0.0
      %1441 = vmatpush1.msra.mxu0 0.0
      %1442 = vmatprep.subr.mxu0 0.0
      %1443 = vmatpush1.msra.mxu0 0.0
      %1444 = vmatprep.subr.mxu0 0.0
      %1445 = vmatpush1.msra.mxu0 0.0
      %1446 = vmatprep.subr.mxu0 0.0
      %1447 = vmatpush1.msra.mxu0 0.0
      %1448 = vmatprep.subr.mxu0 0.0
      %1449 = vmatpush1.msra.mxu0 0.0
      %1450 = vmatprep.subr.mxu0 0.0
      %1451 = vmatpush1.msra.mxu0 0.0
      %1452 = vmatprep.subr.mxu0 0.0
      %1453 = vmatpush1.msra.mxu0 0.0
      %1454 = vmatprep.subr.mxu0 0.0
      %1455 = vmatpush1.msra.mxu0 0.0
      %1456 = vmatprep.subr.mxu0 0.0
      %1457 = vmatpush1.msra.mxu0 0.0
      %1458 = vmatprep.mubr.f32.mxu0 0.0
      %1459 = vmatmul.mubr.f32.gmra.mrb[0].mxu0 %v1392
      %v1460 = vpop.f32.mrb[0].mxu0
      %v1461 = vadd.f32 %v1389, %v1460
      %v1462 = vpop.f32.mrb[0].mxu0
      %1463 = vdwg.mxu0
      %v1464 = vmax.f32 %v1461, 0.0
      %v1466 = vlaneseq
      %v1467 = vshrl.u32 %v1466, 7
      %v1468 = vsub.s32 0, %v1467
      %v1469 = vrot.slane %v1384, %v1468
      %vm1471 = vcmask 523264
      %v1473 = vsel %vm1471, %v1464, 0
      %1475 = vmatprep.subr.mxu0 0.0
      %1476 = vmatpush1.msra.mxu0 %v1376
      %1477 = vmatprep.subr.mxu0 0.0
      %1478 = vmatpush1.msra.mxu0 %v1377
      %1479 = vmatprep.subr.mxu0 0.0
      %1480 = vmatpush1.msra.mxu0 %v1378
      %1481 = vmatprep.subr.mxu0 0.0
      %1482 = vmatpush1.msra.mxu0 %v1379
      %1483 = vmatprep.subr.mxu0 0.0
      %1484 = vmatpush1.msra.mxu0 %v1380
      %1485 = vmatprep.subr.mxu0 0.0
      %1486 = vmatpush1.msra.mxu0 %v1381
      %1487 = vmatprep.subr.mxu0 0.0
      %1488 = vmatpush1.msra.mxu0 %v1382
      %1489 = vmatprep.subr.mxu0 0.0
      %1490 = vmatpush1.msra.mxu0 %v1383
      %1491 = vmatprep.subr.mxu0 0.0
      %1492 = vmatpush1.msra.mxu0 0.0
      %1493 = vmatprep.subr.mxu0 0.0
      %1494 = vmatpush1.msra.mxu0 0.0
      %1495 = vmatprep.subr.mxu0 0.0
      %1496 = vmatpush1.msra.mxu0 0.0
      %1497 = vmatprep.subr.mxu0 0.0
      %1498 = vmatpush1.msra.mxu0 0.0
      %1499 = vmatprep.subr.mxu0 0.0
      %1500 = vmatpush1.msra.mxu0 0.0
      %1501 = vmatprep.subr.mxu0 0.0
      %1502 = vmatpush1.msra.mxu0 0.0
      %1503 = vmatprep.subr.mxu0 0.0
      %1504 = vmatpush1.msra.mxu0 0.0
      %1505 = vmatprep.subr.mxu0 0.0
      %1506 = vmatpush1.msra.mxu0 0.0
      %1507 = vmatprep.subr.mxu0 0.0
      %1508 = vmatpush1.msra.mxu0 0.0
      %1509 = vmatprep.subr.mxu0 0.0
      %1510 = vmatpush1.msra.mxu0 0.0
      %1511 = vmatprep.subr.mxu0 0.0
      %1512 = vmatpush1.msra.mxu0 0.0
      %1513 = vmatprep.subr.mxu0 0.0
      %1514 = vmatpush1.msra.mxu0 0.0
      %1515 = vmatprep.subr.mxu0 0.0
      %1516 = vmatpush1.msra.mxu0 0.0
      %1517 = vmatprep.subr.mxu0 0.0
      %1518 = vmatpush1.msra.mxu0 0.0
      %1519 = vmatprep.subr.mxu0 0.0
      %1520 = vmatpush1.msra.mxu0 0.0
      %1521 = vmatprep.subr.mxu0 0.0
      %1522 = vmatpush1.msra.mxu0 0.0
      %1523 = vmatprep.subr.mxu0 0.0
      %1524 = vmatpush1.msra.mxu0 0.0
      %1525 = vmatprep.subr.mxu0 0.0
      %1526 = vmatpush1.msra.mxu0 0.0
      %1527 = vmatprep.subr.mxu0 0.0
      %1528 = vmatpush1.msra.mxu0 0.0
      %1529 = vmatprep.subr.mxu0 0.0
      %1530 = vmatpush1.msra.mxu0 0.0
      %1531 = vmatprep.subr.mxu0 0.0
      %1532 = vmatpush1.msra.mxu0 0.0
      %1533 = vmatprep.subr.mxu0 0.0
      %1534 = vmatpush1.msra.mxu0 0.0
      %1535 = vmatprep.subr.mxu0 0.0
      %1536 = vmatpush1.msra.mxu0 0.0
      %1537 = vmatprep.subr.mxu0 0.0
      %1538 = vmatpush1.msra.mxu0 0.0
      %1539 = vmatprep.mubr.f32.mxu0 0.0
      %1540 = vmatmul.mubr.f32.gmra.mrb[0].mxu0 %v1473
      %v1541 = vpop.f32.mrb[0].mxu0
      %v1542 = vadd.f32 %v1469, %v1541
      %v1543 = vpop.f32.mrb[0].mxu0
      %1544 = vdwg.mxu0
      %v1545 = vadd.f32 %v1370, %v1542
      %v1546 = vld [vmem:[%s12] sm:$0x1]
      %v1547 = vld [vmem:[%s13] sm:$0x1]
      %v1548 = vsel %vm495, %v1545, 0.0
      %1549 = vadd.xlane.f32.xlu0 %v1548
      %v1550 = vpop.xlane.xlu0 %1549
      %v1551 = vmul.f32 %v1550, %v1346
      %v1552 = vsub.f32 %v1545, %v1551
      %v1553 = vmul.f32 %v1552, %v1552
      %v1554 = vsel %vm495, %v1553, 0.0
      %1555 = vadd.xlane.f32.xlu0 %v1554
      %v1556 = vpop.xlane.xlu0 %1555
      %v1557 = vmul.f32 %v1556, %v1346
      %v1558 = vadd.f32 %v1557, 1e-05
      %v1559 = vrsqrt.pop %v1558
      %v1560 = vmul.f32 %v1552, %v1559
      %v1562 = vlaneseq
      %v1563 = vshrl.u32 %v1562, 7
      %v1564 = vsub.s32 0, %v1563
      %v1565 = vrot.slane %v1546, %v1564
      %v1567 = vmul.f32 %v1560, %v1565
      %v1569 = vlaneseq
      %v1570 = vshrl.u32 %v1569, 7
      %v1571 = vsub.s32 0, %v1570
      %v1572 = vrot.slane %v1547, %v1571
      %v1574 = vadd.f32 %v1567, %v1572
      %1575 = vst.msk [vmem:[%s476] sm:$0xff] %vm495, %v1574
      %p1576 = scmp.lt.s32.totalorder %s25, 1
      %s1577 = scalar_select %p1576, %s25, 1
      %s1578 = smul.addr %s1577, 8
      %s1579 = scalar_lea.vmem %s14, %s1578
      // Predicated region
      $region77: #{seq2seq_forward.4} parent=75 // pred_check
        %p1580 = pneg %p347
      $region78: #{seq2seq_forward.4} parent=75 // pred_check_branch
        %1582 = sbr.rel (%p1580) target = $region80
      $region79: #{seq2seq_forward.4} parent=75 // pred_region
        _
      $region80: #{seq2seq_forward.4} parent=75 // pred_fallthru
        _
    $region76: #{seq2seq_forward.4} parent=5 // pred_fallthru
      _
    %p1583 = scmp.le.s32.totalorder 2, %s20
    // Predicated region
    $region81: #{seq2seq_forward.4} parent=5 // pred_check
      %p1584 = pneg %p1583
    $region82: #{seq2seq_forward.4} parent=5 // pred_check_branch
      %1586 = sbr.rel (%p1584) target = $region84
    $region83: #{seq2seq_forward.4} parent=5 // pred_region
      %s1587 = ssub.s32 %s20, 2
      // Predicated region
      $region85: #{seq2seq_forward.4} parent=83 // pred_check
        %p1588 = pneg %p353
      $region86: #{seq2seq_forward.4} parent=83 // pred_check_branch
        %1590 = sbr.rel (%p1588) target = $region88
      $region87: #{seq2seq_forward.4} parent=83 // pred_region
        %p1591 = scmp.lt.s32.totalorder %s26, 1
        %s1592 = scalar_select %p1591, %s26, 1
        %s1593 = smul.addr %s1592, 8
        %s1594 = scalar_lea.vmem %s14, %s1593
      $region88: #{seq2seq_forward.4} parent=83 // pred_fallthru
        _
    $region84: #{seq2seq_forward.4} parent=5 // pred_fallthru
      _
  $region6: #{seq2seq_forward.4} parent=0 // loop_footer
    %s24 = sadd.s32 1, %s20
  $region7: #{seq2seq_forward.4} parent=0 // loop_footer_branch
    %19 = sbr.rel target = $region3
  $region8: #{seq2seq_forward.4} parent=0 // loop_exit
    _

// kernel: seq2seq_forward.6
$region0: #{seq2seq_forward.6}
  #allocation0 [shape = 'u32[]', space=smem, size = 0x4, offset = 0x4, fixed_abs, tag = 'smem constant byte address 0x4 - core index']
  #allocation1 [shape = 'u32[144,128]{1,0:T(1,128)}', space=vmem, size = 0x12000, scoped, tag = 'internal scratch']
  %s0 = inlined_call_operand.vmem [shape: f32[2,6,32], index: 0, kind: input, shape index: {}]
  %s1 = inlined_call_operand.vmem [shape: f32[2,8,32], index: 1, kind: input, shape index: {}]
  %s2 = inlined_call_operand.vmem [shape: s32[2,6,6], index: 2, kind: input, shape index: {}]
  %s3 = inlined_call_operand.vmem [shape: s32[2,1,8], index: 3, kind: input, shape index: {}]
  %s4 = inlined_call_operand.vmem [shape: f32[32,96], index: 4, kind: input, shape index: {}]
  %s5 = inlined_call_operand.vmem [shape: f32[1,96], index: 5, kind: input, shape index: {}]
  %s6 = inlined_call_operand.vmem [shape: f32[32,32], index: 6, kind: input, shape index: {}]
  %s7 = inlined_call_operand.vmem [shape: f32[1,32], index: 7, kind: input, shape index: {}]
  %s8 = inlined_call_operand.vmem [shape: f32[1,32], index: 8, kind: input, shape index: {}]
  %s9 = inlined_call_operand.vmem [shape: f32[1,32], index: 9, kind: input, shape index: {}]
  %s10 = inlined_call_operand.vmem [shape: f32[32,96], index: 10, kind: input, shape index: {}]
  %s11 = inlined_call_operand.vmem [shape: f32[1,96], index: 11, kind: input, shape index: {}]
  %s12 = inlined_call_operand.vmem [shape: f32[32,32], index: 12, kind: input, shape index: {}]
  %s13 = inlined_call_operand.vmem [shape: f32[1,32], index: 13, kind: input, shape index: {}]
  %s14 = inlined_call_operand.vmem [shape: f32[1,32], index: 14, kind: input, shape index: {}]
  %s15 = inlined_call_operand.vmem [shape: f32[1,32], index: 15, kind: input, shape index: {}]
  %s16 = inlined_call_operand.vmem [shape: f32[32,64], index: 16, kind: input, shape index: {}]
  %s17 = inlined_call_operand.vmem [shape: f32[1,64], index: 17, kind: input, shape index: {}]
  %s18 = inlined_call_operand.vmem [shape: f32[64,32], index: 18, kind: input, shape index: {}]
  %s19 = inlined_call_operand.vmem [shape: f32[1,32], index: 19, kind: input, shape index: {}]
  %s20 = inlined_call_operand.vmem [shape: f32[1,32], index: 20, kind: input, shape index: {}]
  %s21 = inlined_call_operand.vmem [shape: f32[1,32], index: 21, kind: input, shape index: {}]
  %s22 = inlined_call_operand.vmem [shape: f32[2,6,32], index: 22, kind: output, shape index: {}]
  %s23 = sld [smem:[#allocation0]]
  $region121: #{seq2seq_forward.6} parent=0
    _
  %s25 = ssub.s32 1, %s23
  %s26 = scalar_select 0, %s25, %s23
  loop: start=0, step=1, limit=4
  $region2: #{seq2seq_forward.6} parent=0 // loop_pre_header
    _
  $region3: #{seq2seq_forward.6} parent=0 // loop_header
    %s28 = sphi 0, %s32
    %p29 = scmp.ge.s32.totalorder %s28, 4
    %s38 = sphi 0, %s40
    %s41 = sphi 0, %s38
    %s42 = sphi 0, %s41
    %s58 = sphi 0, %s42
    %s64 = sphi 0, %s66
    %s67 = sphi 0, %s64
    %s68 = sphi 0, %s67
    %s84 = sphi 0, %s68
    %s90 = sphi 0, %s92
    %s93 = sphi 0, %s90
    %s94 = sphi 0, %s93
    %s110 = sphi 0, %s94
    %s116 = sphi 0, %s118
    %s119 = sphi 0, %s116
    %s120 = sphi 0, %s119
    %s136 = sphi 0, %s120
    %s140 = sphi 0, %s140
    %s142 = sphi 0, %s140
    %s143 = sphi 0, %s142
    %s157 = sphi 0, %s143
    %s161 = sphi 0, %s161
    %s163 = sphi 0, %s161
    %s164 = sphi 0, %s163
    %s178 = sphi 0, %s164
    %s182 = sphi 0, %s182
    %s184 = sphi 0, %s182
    %s185 = sphi 0, %s184
    %s199 = sphi 0, %s185
    %s203 = sphi 0, %s203
    %s205 = sphi 0, %s203
    %s206 = sphi 0, %s205
    %s220 = sphi 0, %s206
    %s224 = sphi 0, %s224
    %s226 = sphi 0, %s224
    %s227 = sphi 0, %s226
    %s241 = sphi 0, %s227
    %s245 = sphi 0, %s245
    %s247 = sphi 0, %s245
    %s248 = sphi 0, %s247
    %s262 = sphi 0, %s248
    %s266 = sphi 0, %s266
    %s268 = sphi 0, %s266
    %s269 = sphi 0, %s268
    %s283 = sphi 0, %s269
    %s287 = sphi 0, %s287
    %s289 = sphi 0, %s287
    %s290 = sphi 0, %s289
    %s304 = sphi 0, %s290
    %s308 = sphi 0, %s308
    %s310 = sphi 0, %s308
    %s311 = sphi 0, %s310
    %s325 = sphi 0, %s311
    %s329 = sphi 0, %s329
    %s331 = sphi 0, %s329
    %s332 = sphi 0, %s331
    %s346 = sphi 0, %s332
    %s350 = sphi 0, %s350
    %s352 = sphi 0, %s350
    %s353 = sphi 0, %s352
    %s367 = sphi 0, %s353
    %s371 = sphi 0, %s371
    %s373 = sphi 0, %s371
    %s374 = sphi 0, %s373
    %s388 = sphi 0, %s374
    %s392 = sphi 0, %s392
    %s394 = sphi 0, %s392
    %s395 = sphi 0, %s394
    %s409 = sphi 0, %s395
    %s413 = sphi 0, %s413
    %s415 = sphi 0, %s413
    %s416 = sphi 0, %s415
    %s430 = sphi 0, %s416
    %s434 = sphi 0, %s434
    %s436 = sphi 0, %s434
    %s437 = sphi 0, %s436
    %s451 = sphi 0, %s437
    %s455 = sphi 0, %s455
    %s457 = sphi 0, %s455
    %s458 = sphi 0, %s457
    %s472 = sphi 0, %s458
    %s476 = sphi 0, %s476
    %s478 = sphi 0, %s476
    %s479 = sphi 0, %s478
    %s493 = sphi 0, %s479
    %s497 = sphi 0, %s497
    %s499 = sphi 0, %s497
    %s500 = sphi 0, %s499
    %s514 = sphi 0, %s500
    %s520 = sphi 0, %s522
    %s523 = sphi 0, %s520
    %s524 = sphi 0, %s523
    %s540 = sphi 0, %s524
  $region4: #{seq2seq_forward.6} parent=0 // loop_header_branch
    %31 = sbr.rel (%p29) target = $region8
  $region5: #{seq2seq_forward.6} parent=0 // loop_body
    %s33 = ssub.s32 %s28, 1
    %s34 = ssub.s32 %s28, 2
    %s35 = sadd.s32 %s28, 1
    %s36 = ssub.s32 %s28, %s35
    %p37 = scmp.eq.s32.totalorder %s36, 0
    %s39 = sadd.s32 %s38, 1
    %s40 = scalar_select %p37, %s38, %s39
    %p43 = pneg %p37
    %p44 = scmp.eq.s32.totalorder %s28, 1
    %p45 = por %p43, %p44
    %p46 = scmp.ne.s32.totalorder %s38, %s41
    %p47 = scmp.eq.s32.totalorder %s28, 0
    %p48 = por %p46, %p47
    %p49 = scmp.ne.s32.totalorder %s38, %s41
    %p50 = scmp.eq.s32.totalorder %s33, 1
    %p51 = por %p49, %p50
    %p52 = scmp.ne.s32.totalorder %s41, %s42
    %p53 = scmp.eq.s32.totalorder %s33, 0
    %p54 = por %p52, %p53
    %p55 = scmp.ne.s32.totalorder %s41, %s42
    %p56 = scmp.eq.s32.totalorder %s34, 1
    %p57 = por %p55, %p56
    %p59 = scmp.ne.s32.totalorder %s42, %s58
    %p60 = scmp.eq.s32.totalorder %s34, 0
    %p61 = por %p59, %p60
    %s62 = ssub.s32 %s28, %s35
    %p63 = scmp.eq.s32.totalorder %s62, 0
    %s65 = sadd.s32 %s64, 1
    %s66 = scalar_select %p63, %s64, %s65
    %p69 = pneg %p63
    %p70 = scmp.eq.s32.totalorder %s28, 1
    %p71 = por %p69, %p70
    %p72 = scmp.ne.s32.totalorder %s64, %s67
    %p73 = scmp.eq.s32.totalorder %s28, 0
    %p74 = por %p72, %p73
    %p75 = scmp.ne.s32.totalorder %s64, %s67
    %p76 = scmp.eq.s32.totalorder %s33, 1
    %p77 = por %p75, %p76
    %p78 = scmp.ne.s32.totalorder %s67, %s68
    %p79 = scmp.eq.s32.totalorder %s33, 0
    %p80 = por %p78, %p79
    %p81 = scmp.ne.s32.totalorder %s67, %s68
    %p82 = scmp.eq.s32.totalorder %s34, 1
    %p83 = por %p81, %p82
    %p85 = scmp.ne.s32.totalorder %s68, %s84
    %p86 = scmp.eq.s32.totalorder %s34, 0
    %p87 = por %p85, %p86
    %s88 = ssub.s32 %s28, %s35
    %p89 = scmp.eq.s32.totalorder %s88, 0
    %s91 = sadd.s32 %s90, 1
    %s92 = scalar_select %p89, %s90, %s91
    %p95 = pneg %p89
    %p96 = scmp.eq.s32.totalorder %s28, 1
    %p97 = por %p95, %p96
    %p98 = scmp.ne.s32.totalorder %s90, %s93
    %p99 = scmp.eq.s32.totalorder %s28, 0
    %p100 = por %p98, %p99
    %p101 = scmp.ne.s32.totalorder %s90, %s93
    %p102 = scmp.eq.s32.totalorder %s33, 1
    %p103 = por %p101, %p102
    %p104 = scmp.ne.s32.totalorder %s93, %s94
    %p105 = scmp.eq.s32.totalorder %s33, 0
    %p106 = por %p104, %p105
    %p107 = scmp.ne.s32.totalorder %s93, %s94
    %p108 = scmp.eq.s32.totalorder %s34, 1
    %p109 = por %p107, %p108
    %p111 = scmp.ne.s32.totalorder %s94, %s110
    %p112 = scmp.eq.s32.totalorder %s34, 0
    %p113 = por %p111, %p112
    %s114 = ssub.s32 %s28, %s35
    %p115 = scmp.eq.s32.totalorder %s114, 0
    %s117 = sadd.s32 %s116, 1
    %s118 = scalar_select %p115, %s116, %s117
    %p121 = pneg %p115
    %p122 = scmp.eq.s32.totalorder %s28, 1
    %p123 = por %p121, %p122
    %p124 = scmp.ne.s32.totalorder %s116, %s119
    %p125 = scmp.eq.s32.totalorder %s28, 0
    %p126 = por %p124, %p125
    %p127 = scmp.ne.s32.totalorder %s116, %s119
    %p128 = scmp.eq.s32.totalorder %s33, 1
    %p129 = por %p127, %p128
    %p130 = scmp.ne.s32.totalorder %s119, %s120
    %p131 = scmp.eq.s32.totalorder %s33, 0
    %p132 = por %p130, %p131
    %p133 = scmp.ne.s32.totalorder %s119, %s120
    %p134 = scmp.eq.s32.totalorder %s34, 1
    %p135 = por %p133, %p134
    %p137 = scmp.ne.s32.totalorder %s120, %s136
    %p138 = scmp.eq.s32.totalorder %s34, 0
    %p139 = por %p137, %p138
    %s141 = sadd.s32 %s140, 1
    %p144 = scmp.eq.s32.totalorder %s28, 1
    %p145 = scmp.ne.s32.totalorder %s140, %s142
    %p146 = scmp.eq.s32.totalorder %s28, 0
    %p147 = por %p145, %p146
    %p148 = scmp.ne.s32.totalorder %s140, %s142
    %p149 = scmp.eq.s32.totalorder %s33, 1
    %p150 = por %p148, %p149
    %p151 = scmp.ne.s32.totalorder %s142, %s143
    %p152 = scmp.eq.s32.totalorder %s33, 0
    %p153 = por %p151, %p152
    %p154 = scmp.ne.s32.totalorder %s142, %s143
    %p155 = scmp.eq.s32.totalorder %s34, 1
    %p156 = por %p154, %p155
    %p158 = scmp.ne.s32.totalorder %s143, %s157
    %p159 = scmp.eq.s32.totalorder %s34, 0
    %p160 = por %p158, %p159
    %s162 = sadd.s32 %s161, 1
    %p165 = scmp.eq.s32.totalorder %s28, 1
    %p166 = scmp.ne.s32.totalorder %s161, %s163
    %p167 = scmp.eq.s32.totalorder %s28, 0
    %p168 = por %p166, %p167
    %p169 = scmp.ne.s32.totalorder %s161, %s163
    %p170 = scmp.eq.s32.totalorder %s33, 1
    %p171 = por %p169, %p170
    %p172 = scmp.ne.s32.totalorder %s163, %s164
    %p173 = scmp.eq.s32.totalorder %s33, 0
    %p174 = por %p172, %p173
    %p175 = scmp.ne.s32.totalorder %s163, %s164
    %p176 = scmp.eq.s32.totalorder %s34, 1
    %p177 = por %p175, %p176
    %p179 = scmp.ne.s32.totalorder %s164, %s178
    %p180 = scmp.eq.s32.totalorder %s34, 0
    %p181 = por %p179, %p180
    %s183 = sadd.s32 %s182, 1
    %p186 = scmp.eq.s32.totalorder %s28, 1
    %p187 = scmp.ne.s32.totalorder %s182, %s184
    %p188 = scmp.eq.s32.totalorder %s28, 0
    %p189 = por %p187, %p188
    %p190 = scmp.ne.s32.totalorder %s182, %s184
    %p191 = scmp.eq.s32.totalorder %s33, 1
    %p192 = por %p190, %p191
    %p193 = scmp.ne.s32.totalorder %s184, %s185
    %p194 = scmp.eq.s32.totalorder %s33, 0
    %p195 = por %p193, %p194
    %p196 = scmp.ne.s32.totalorder %s184, %s185
    %p197 = scmp.eq.s32.totalorder %s34, 1
    %p198 = por %p196, %p197
    %p200 = scmp.ne.s32.totalorder %s185, %s199
    %p201 = scmp.eq.s32.totalorder %s34, 0
    %p202 = por %p200, %p201
    %s204 = sadd.s32 %s203, 1
    %p207 = scmp.eq.s32.totalorder %s28, 1
    %p208 = scmp.ne.s32.totalorder %s203, %s205
    %p209 = scmp.eq.s32.totalorder %s28, 0
    %p210 = por %p208, %p209
    %p211 = scmp.ne.s32.totalorder %s203, %s205
    %p212 = scmp.eq.s32.totalorder %s33, 1
    %p213 = por %p211, %p212
    %p214 = scmp.ne.s32.totalorder %s205, %s206
    %p215 = scmp.eq.s32.totalorder %s33, 0
    %p216 = por %p214, %p215
    %p217 = scmp.ne.s32.totalorder %s205, %s206
    %p218 = scmp.eq.s32.totalorder %s34, 1
    %p219 = por %p217, %p218
    %p221 = scmp.ne.s32.totalorder %s206, %s220
    %p222 = scmp.eq.s32.totalorder %s34, 0
    %p223 = por %p221, %p222
    %s225 = sadd.s32 %s224, 1
    %p228 = scmp.eq.s32.totalorder %s28, 1
    %p229 = scmp.ne.s32.totalorder %s224, %s226
    %p230 = scmp.eq.s32.totalorder %s28, 0
    %p231 = por %p229, %p230
    %p232 = scmp.ne.s32.totalorder %s224, %s226
    %p233 = scmp.eq.s32.totalorder %s33, 1
    %p234 = por %p232, %p233
    %p235 = scmp.ne.s32.totalorder %s226, %s227
    %p236 = scmp.eq.s32.totalorder %s33, 0
    %p237 = por %p235, %p236
    %p238 = scmp.ne.s32.totalorder %s226, %s227
    %p239 = scmp.eq.s32.totalorder %s34, 1
    %p240 = por %p238, %p239
    %p242 = scmp.ne.s32.totalorder %s227, %s241
    %p243 = scmp.eq.s32.totalorder %s34, 0
    %p244 = por %p242, %p243
    %s246 = sadd.s32 %s245, 1
    %p249 = scmp.eq.s32.totalorder %s28, 1
    %p250 = scmp.ne.s32.totalorder %s245, %s247
    %p251 = scmp.eq.s32.totalorder %s28, 0
    %p252 = por %p250, %p251
    %p253 = scmp.ne.s32.totalorder %s245, %s247
    %p254 = scmp.eq.s32.totalorder %s33, 1
    %p255 = por %p253, %p254
    %p256 = scmp.ne.s32.totalorder %s247, %s248
    %p257 = scmp.eq.s32.totalorder %s33, 0
    %p258 = por %p256, %p257
    %p259 = scmp.ne.s32.totalorder %s247, %s248
    %p260 = scmp.eq.s32.totalorder %s34, 1
    %p261 = por %p259, %p260
    %p263 = scmp.ne.s32.totalorder %s248, %s262
    %p264 = scmp.eq.s32.totalorder %s34, 0
    %p265 = por %p263, %p264
    %s267 = sadd.s32 %s266, 1
    %p270 = scmp.eq.s32.totalorder %s28, 1
    %p271 = scmp.ne.s32.totalorder %s266, %s268
    %p272 = scmp.eq.s32.totalorder %s28, 0
    %p273 = por %p271, %p272
    %p274 = scmp.ne.s32.totalorder %s266, %s268
    %p275 = scmp.eq.s32.totalorder %s33, 1
    %p276 = por %p274, %p275
    %p277 = scmp.ne.s32.totalorder %s268, %s269
    %p278 = scmp.eq.s32.totalorder %s33, 0
    %p279 = por %p277, %p278
    %p280 = scmp.ne.s32.totalorder %s268, %s269
    %p281 = scmp.eq.s32.totalorder %s34, 1
    %p282 = por %p280, %p281
    %p284 = scmp.ne.s32.totalorder %s269, %s283
    %p285 = scmp.eq.s32.totalorder %s34, 0
    %p286 = por %p284, %p285
    %s288 = sadd.s32 %s287, 1
    %p291 = scmp.eq.s32.totalorder %s28, 1
    %p292 = scmp.ne.s32.totalorder %s287, %s289
    %p293 = scmp.eq.s32.totalorder %s28, 0
    %p294 = por %p292, %p293
    %p295 = scmp.ne.s32.totalorder %s287, %s289
    %p296 = scmp.eq.s32.totalorder %s33, 1
    %p297 = por %p295, %p296
    %p298 = scmp.ne.s32.totalorder %s289, %s290
    %p299 = scmp.eq.s32.totalorder %s33, 0
    %p300 = por %p298, %p299
    %p301 = scmp.ne.s32.totalorder %s289, %s290
    %p302 = scmp.eq.s32.totalorder %s34, 1
    %p303 = por %p301, %p302
    %p305 = scmp.ne.s32.totalorder %s290, %s304
    %p306 = scmp.eq.s32.totalorder %s34, 0
    %p307 = por %p305, %p306
    %s309 = sadd.s32 %s308, 1
    %p312 = scmp.eq.s32.totalorder %s28, 1
    %p313 = scmp.ne.s32.totalorder %s308, %s310
    %p314 = scmp.eq.s32.totalorder %s28, 0
    %p315 = por %p313, %p314
    %p316 = scmp.ne.s32.totalorder %s308, %s310
    %p317 = scmp.eq.s32.totalorder %s33, 1
    %p318 = por %p316, %p317
    %p319 = scmp.ne.s32.totalorder %s310, %s311
    %p320 = scmp.eq.s32.totalorder %s33, 0
    %p321 = por %p319, %p320
    %p322 = scmp.ne.s32.totalorder %s310, %s311
    %p323 = scmp.eq.s32.totalorder %s34, 1
    %p324 = por %p322, %p323
    %p326 = scmp.ne.s32.totalorder %s311, %s325
    %p327 = scmp.eq.s32.totalorder %s34, 0
    %p328 = por %p326, %p327
    %s330 = sadd.s32 %s329, 1
    %p333 = scmp.eq.s32.totalorder %s28, 1
    %p334 = scmp.ne.s32.totalorder %s329, %s331
    %p335 = scmp.eq.s32.totalorder %s28, 0
    %p336 = por %p334, %p335
    %p337 = scmp.ne.s32.totalorder %s329, %s331
    %p338 = scmp.eq.s32.totalorder %s33, 1
    %p339 = por %p337, %p338
    %p340 = scmp.ne.s32.totalorder %s331, %s332
    %p341 = scmp.eq.s32.totalorder %s33, 0
    %p342 = por %p340, %p341
    %p343 = scmp.ne.s32.totalorder %s331, %s332
    %p344 = scmp.eq.s32.totalorder %s34, 1
    %p345 = por %p343, %p344
    %p347 = scmp.ne.s32.totalorder %s332, %s346
    %p348 = scmp.eq.s32.totalorder %s34, 0
    %p349 = por %p347, %p348
    %s351 = sadd.s32 %s350, 1
    %p354 = scmp.eq.s32.totalorder %s28, 1
    %p355 = scmp.ne.s32.totalorder %s350, %s352
    %p356 = scmp.eq.s32.totalorder %s28, 0
    %p357 = por %p355, %p356
    %p358 = scmp.ne.s32.totalorder %s350, %s352
    %p359 = scmp.eq.s32.totalorder %s33, 1
    %p360 = por %p358, %p359
    %p361 = scmp.ne.s32.totalorder %s352, %s353
    %p362 = scmp.eq.s32.totalorder %s33, 0
    %p363 = por %p361, %p362
    %p364 = scmp.ne.s32.totalorder %s352, %s353
    %p365 = scmp.eq.s32.totalorder %s34, 1
    %p366 = por %p364, %p365
    %p368 = scmp.ne.s32.totalorder %s353, %s367
    %p369 = scmp.eq.s32.totalorder %s34, 0
    %p370 = por %p368, %p369
    %s372 = sadd.s32 %s371, 1
    %p375 = scmp.eq.s32.totalorder %s28, 1
    %p376 = scmp.ne.s32.totalorder %s371, %s373
    %p377 = scmp.eq.s32.totalorder %s28, 0
    %p378 = por %p376, %p377
    %p379 = scmp.ne.s32.totalorder %s371, %s373
    %p380 = scmp.eq.s32.totalorder %s33, 1
    %p381 = por %p379, %p380
    %p382 = scmp.ne.s32.totalorder %s373, %s374
    %p383 = scmp.eq.s32.totalorder %s33, 0
    %p384 = por %p382, %p383
    %p385 = scmp.ne.s32.totalorder %s373, %s374
    %p386 = scmp.eq.s32.totalorder %s34, 1
    %p387 = por %p385, %p386
    %p389 = scmp.ne.s32.totalorder %s374, %s388
    %p390 = scmp.eq.s32.totalorder %s34, 0
    %p391 = por %p389, %p390
    %s393 = sadd.s32 %s392, 1
    %p396 = scmp.eq.s32.totalorder %s28, 1
    %p397 = scmp.ne.s32.totalorder %s392, %s394
    %p398 = scmp.eq.s32.totalorder %s28, 0
    %p399 = por %p397, %p398
    %p400 = scmp.ne.s32.totalorder %s392, %s394
    %p401 = scmp.eq.s32.totalorder %s33, 1
    %p402 = por %p400, %p401
    %p403 = scmp.ne.s32.totalorder %s394, %s395
    %p404 = scmp.eq.s32.totalorder %s33, 0
    %p405 = por %p403, %p404
    %p406 = scmp.ne.s32.totalorder %s394, %s395
    %p407 = scmp.eq.s32.totalorder %s34, 1
    %p408 = por %p406, %p407
    %p410 = scmp.ne.s32.totalorder %s395, %s409
    %p411 = scmp.eq.s32.totalorder %s34, 0
    %p412 = por %p410, %p411
    %s414 = sadd.s32 %s413, 1
    %p417 = scmp.eq.s32.totalorder %s28, 1
    %p418 = scmp.ne.s32.totalorder %s413, %s415
    %p419 = scmp.eq.s32.totalorder %s28, 0
    %p420 = por %p418, %p419
    %p421 = scmp.ne.s32.totalorder %s413, %s415
    %p422 = scmp.eq.s32.totalorder %s33, 1
    %p423 = por %p421, %p422
    %p424 = scmp.ne.s32.totalorder %s415, %s416
    %p425 = scmp.eq.s32.totalorder %s33, 0
    %p426 = por %p424, %p425
    %p427 = scmp.ne.s32.totalorder %s415, %s416
    %p428 = scmp.eq.s32.totalorder %s34, 1
    %p429 = por %p427, %p428
    %p431 = scmp.ne.s32.totalorder %s416, %s430
    %p432 = scmp.eq.s32.totalorder %s34, 0
    %p433 = por %p431, %p432
    %s435 = sadd.s32 %s434, 1
    %p438 = scmp.eq.s32.totalorder %s28, 1
    %p439 = scmp.ne.s32.totalorder %s434, %s436
    %p440 = scmp.eq.s32.totalorder %s28, 0
    %p441 = por %p439, %p440
    %p442 = scmp.ne.s32.totalorder %s434, %s436
    %p443 = scmp.eq.s32.totalorder %s33, 1
    %p444 = por %p442, %p443
    %p445 = scmp.ne.s32.totalorder %s436, %s437
    %p446 = scmp.eq.s32.totalorder %s33, 0
    %p447 = por %p445, %p446
    %p448 = scmp.ne.s32.totalorder %s436, %s437
    %p449 = scmp.eq.s32.totalorder %s34, 1
    %p450 = por %p448, %p449
    %p452 = scmp.ne.s32.totalorder %s437, %s451
    %p453 = scmp.eq.s32.totalorder %s34, 0
    %p454 = por %p452, %p453
    %s456 = sadd.s32 %s455, 1
    %p459 = scmp.eq.s32.totalorder %s28, 1
    %p460 = scmp.ne.s32.totalorder %s455, %s457
    %p461 = scmp.eq.s32.totalorder %s28, 0
    %p462 = por %p460, %p461
    %p463 = scmp.ne.s32.totalorder %s455, %s457
    %p464 = scmp.eq.s32.totalorder %s33, 1
    %p465 = por %p463, %p464
    %p466 = scmp.ne.s32.totalorder %s457, %s458
    %p467 = scmp.eq.s32.totalorder %s33, 0
    %p468 = por %p466, %p467
    %p469 = scmp.ne.s32.totalorder %s457, %s458
    %p470 = scmp.eq.s32.totalorder %s34, 1
    %p471 = por %p469, %p470
    %p473 = scmp.ne.s32.totalorder %s458, %s472
    %p474 = scmp.eq.s32.totalorder %s34, 0
    %p475 = por %p473, %p474
    %s477 = sadd.s32 %s476, 1
    %p480 = scmp.eq.s32.totalorder %s28, 1
    %p481 = scmp.ne.s32.totalorder %s476, %s478
    %p482 = scmp.eq.s32.totalorder %s28, 0
    %p483 = por %p481, %p482
    %p484 = scmp.ne.s32.totalorder %s476, %s478
    %p485 = scmp.eq.s32.totalorder %s33, 1
    %p486 = por %p484, %p485
    %p487 = scmp.ne.s32.totalorder %s478, %s479
    %p488 = scmp.eq.s32.totalorder %s33, 0
    %p489 = por %p487, %p488
    %p490 = scmp.ne.s32.totalorder %s478, %s479
    %p491 = scmp.eq.s32.totalorder %s34, 1
    %p492 = por %p490, %p491
    %p494 = scmp.ne.s32.totalorder %s479, %s493
    %p495 = scmp.eq.s32.totalorder %s34, 0
    %p496 = por %p494, %p495
    %s498 = sadd.s32 %s497, 1
    %p501 = scmp.eq.s32.totalorder %s28, 1
    %p502 = scmp.ne.s32.totalorder %s497, %s499
    %p503 = scmp.eq.s32.totalorder %s28, 0
    %p504 = por %p502, %p503
    %p505 = scmp.ne.s32.totalorder %s497, %s499
    %p506 = scmp.eq.s32.totalorder %s33, 1
    %p507 = por %p505, %p506
    %p508 = scmp.ne.s32.totalorder %s499, %s500
    %p509 = scmp.eq.s32.totalorder %s33, 0
    %p510 = por %p508, %p509
    %p511 = scmp.ne.s32.totalorder %s499, %s500
    %p512 = scmp.eq.s32.totalorder %s34, 1
    %p513 = por %p511, %p512
    %p515 = scmp.ne.s32.totalorder %s500, %s514
    %p516 = scmp.eq.s32.totalorder %s34, 0
    %p517 = por %p515, %p516
    %s518 = ssub.s32 %s28, %s35
    %p519 = scmp.eq.s32.totalorder %s518, 0
    %s521 = sadd.s32 %s520, 1
    %s522 = scalar_select %p519, %s520, %s521
    %p525 = pneg %p519
    %p526 = scmp.eq.s32.totalorder %s28, 1
    %p527 = por %p525, %p526
    %p528 = scmp.ne.s32.totalorder %s520, %s523
    %p529 = scmp.eq.s32.totalorder %s28, 0
    %p530 = por %p528, %p529
    %p531 = scmp.ne.s32.totalorder %s520, %s523
    %p532 = scmp.eq.s32.totalorder %s33, 1
    %p533 = por %p531, %p532
    %p534 = scmp.ne.s32.totalorder %s523, %s524
    %p535 = scmp.eq.s32.totalorder %s33, 0
    %p536 = por %p534, %p535
    %p537 = scmp.ne.s32.totalorder %s523, %s524
    %p538 = scmp.eq.s32.totalorder %s34, 1
    %p539 = por %p537, %p538
    %p541 = scmp.ne.s32.totalorder %s524, %s540
    %p542 = scmp.eq.s32.totalorder %s34, 0
    %p543 = por %p541, %p542
    %p544 = scmp.le.s32.totalorder 1, %s28
    %p545 = scmp.lt.s32.totalorder %s28, 3
    %p546 = pnand %p544, %p545
    %p547 = pneg %p546
    // Predicated region
    $region9: #{seq2seq_forward.6} parent=5 // pred_check
      _
    $region10: #{seq2seq_forward.6} parent=5 // pred_check_branch
      %549 = sbr.rel (%p546) target = $region12
    $region11: #{seq2seq_forward.6} parent=5 // pred_region
      %s550 = ssub.s32 %s28, 1
      // Predicated region
      $region13: #{seq2seq_forward.6} parent=11 // pred_check
        %p551 = pneg %p153
      $region14: #{seq2seq_forward.6} parent=11 // pred_check_branch
        %553 = sbr.rel (%p551) target = $region16
      $region15: #{seq2seq_forward.6} parent=11 // pred_region
        _
      $region16: #{seq2seq_forward.6} parent=11 // pred_fallthru
        _
      // Predicated region
      $region17: #{seq2seq_forward.6} parent=11 // pred_check
        %p554 = pneg %p174
      $region18: #{seq2seq_forward.6} parent=11 // pred_check_branch
        %556 = sbr.rel (%p554) target = $region20
      $region19: #{seq2seq_forward.6} parent=11 // pred_region
        _
      $region20: #{seq2seq_forward.6} parent=11 // pred_fallthru
        _
      // Predicated region
      $region21: #{seq2seq_forward.6} parent=11 // pred_check
        %p557 = pneg %p195
      $region22: #{seq2seq_forward.6} parent=11 // pred_check_branch
        %559 = sbr.rel (%p557) target = $region24
      $region23: #{seq2seq_forward.6} parent=11 // pred_region
        _
      $region24: #{seq2seq_forward.6} parent=11 // pred_fallthru
        _
      // Predicated region
      $region25: #{seq2seq_forward.6} parent=11 // pred_check
        %p560 = pneg %p216
      $region26: #{seq2seq_forward.6} parent=11 // pred_check_branch
        %562 = sbr.rel (%p560) target = $region28
      $region27: #{seq2seq_forward.6} parent=11 // pred_region
        _
      $region28: #{seq2seq_forward.6} parent=11 // pred_fallthru
        _
      // Predicated region
      $region29: #{seq2seq_forward.6} parent=11 // pred_check
        %p563 = pneg %p237
      $region30: #{seq2seq_forward.6} parent=11 // pred_check_branch
        %565 = sbr.rel (%p563) target = $region32
      $region31: #{seq2seq_forward.6} parent=11 // pred_region
        _
      $region32: #{seq2seq_forward.6} parent=11 // pred_fallthru
        _
      // Predicated region
      $region33: #{seq2seq_forward.6} parent=11 // pred_check
        %p566 = pneg %p258
      $region34: #{seq2seq_forward.6} parent=11 // pred_check_branch
        %568 = sbr.rel (%p566) target = $region36
      $region35: #{seq2seq_forward.6} parent=11 // pred_region
        _
      $region36: #{seq2seq_forward.6} parent=11 // pred_fallthru
        _
      // Predicated region
      $region37: #{seq2seq_forward.6} parent=11 // pred_check
        %p569 = pneg %p279
      $region38: #{seq2seq_forward.6} parent=11 // pred_check_branch
        %571 = sbr.rel (%p569) target = $region40
      $region39: #{seq2seq_forward.6} parent=11 // pred_region
        _
      $region40: #{seq2seq_forward.6} parent=11 // pred_fallthru
        _
      // Predicated region
      $region41: #{seq2seq_forward.6} parent=11 // pred_check
        %p572 = pneg %p300
      $region42: #{seq2seq_forward.6} parent=11 // pred_check_branch
        %574 = sbr.rel (%p572) target = $region44
      $region43: #{seq2seq_forward.6} parent=11 // pred_region
        _
      $region44: #{seq2seq_forward.6} parent=11 // pred_fallthru
        _
      // Predicated region
      $region45: #{seq2seq_forward.6} parent=11 // pred_check
        %p575 = pneg %p321
      $region46: #{seq2seq_forward.6} parent=11 // pred_check_branch
        %577 = sbr.rel (%p575) target = $region48
      $region47: #{seq2seq_forward.6} parent=11 // pred_region
        _
      $region48: #{seq2seq_forward.6} parent=11 // pred_fallthru
        _
      // Predicated region
      $region49: #{seq2seq_forward.6} parent=11 // pred_check
        %p578 = pneg %p342
      $region50: #{seq2seq_forward.6} parent=11 // pred_check_branch
        %580 = sbr.rel (%p578) target = $region52
      $region51: #{seq2seq_forward.6} parent=11 // pred_region
        _
      $region52: #{seq2seq_forward.6} parent=11 // pred_fallthru
        _
      // Predicated region
      $region53: #{seq2seq_forward.6} parent=11 // pred_check
        %p581 = pneg %p363
      $region54: #{seq2seq_forward.6} parent=11 // pred_check_branch
        %583 = sbr.rel (%p581) target = $region56
      $region55: #{seq2seq_forward.6} parent=11 // pred_region
        _
      $region56: #{seq2seq_forward.6} parent=11 // pred_fallthru
        _
      // Predicated region
      $region57: #{seq2seq_forward.6} parent=11 // pred_check
        %p584 = pneg %p384
      $region58: #{seq2seq_forward.6} parent=11 // pred_check_branch
        %586 = sbr.rel (%p584) target = $region60
      $region59: #{seq2seq_forward.6} parent=11 // pred_region
        _
      $region60: #{seq2seq_forward.6} parent=11 // pred_fallthru
        _
      // Predicated region
      $region61: #{seq2seq_forward.6} parent=11 // pred_check
        %p587 = pneg %p405
      $region62: #{seq2seq_forward.6} parent=11 // pred_check_branch
        %589 = sbr.rel (%p587) target = $region64
      $region63: #{seq2seq_forward.6} parent=11 // pred_region
        _
      $region64: #{seq2seq_forward.6} parent=11 // pred_fallthru
        _
      // Predicated region
      $region65: #{seq2seq_forward.6} parent=11 // pred_check
        %p590 = pneg %p426
      $region66: #{seq2seq_forward.6} parent=11 // pred_check_branch
        %592 = sbr.rel (%p590) target = $region68
      $region67: #{seq2seq_forward.6} parent=11 // pred_region
        _
      $region68: #{seq2seq_forward.6} parent=11 // pred_fallthru
        _
      // Predicated region
      $region69: #{seq2seq_forward.6} parent=11 // pred_check
        %p593 = pneg %p447
      $region70: #{seq2seq_forward.6} parent=11 // pred_check_branch
        %595 = sbr.rel (%p593) target = $region72
      $region71: #{seq2seq_forward.6} parent=11 // pred_region
        _
      $region72: #{seq2seq_forward.6} parent=11 // pred_fallthru
        _
      // Predicated region
      $region73: #{seq2seq_forward.6} parent=11 // pred_check
        %p596 = pneg %p468
      $region74: #{seq2seq_forward.6} parent=11 // pred_check_branch
        %598 = sbr.rel (%p596) target = $region76
      $region75: #{seq2seq_forward.6} parent=11 // pred_region
        _
      $region76: #{seq2seq_forward.6} parent=11 // pred_fallthru
        _
      // Predicated region
      $region77: #{seq2seq_forward.6} parent=11 // pred_check
        %p599 = pneg %p489
      $region78: #{seq2seq_forward.6} parent=11 // pred_check_branch
        %601 = sbr.rel (%p599) target = $region80
      $region79: #{seq2seq_forward.6} parent=11 // pred_region
        _
      $region80: #{seq2seq_forward.6} parent=11 // pred_fallthru
        _
      // Predicated region
      $region81: #{seq2seq_forward.6} parent=11 // pred_check
        %p602 = pneg %p510
      $region82: #{seq2seq_forward.6} parent=11 // pred_check_branch
        %604 = sbr.rel (%p602) target = $region84
      $region83: #{seq2seq_forward.6} parent=11 // pred_region
        _
      $region84: #{seq2seq_forward.6} parent=11 // pred_fallthru
        _
    $region12: #{seq2seq_forward.6} parent=5 // pred_fallthru
      _
    %p605 = scmp.lt.s32.totalorder %s28, 2
    // Predicated region
    $region85: #{seq2seq_forward.6} parent=5 // pred_check
      %p606 = pneg %p605
    $region86: #{seq2seq_forward.6} parent=5 // pred_check_branch
      %608 = sbr.rel (%p606) target = $region88
    $region87: #{seq2seq_forward.6} parent=5 // pred_region
      // Predicated region
      $region89: #{seq2seq_forward.6} parent=87 // pred_check
        %p609 = pneg %p48
      $region90: #{seq2seq_forward.6} parent=87 // pred_check_branch
        %611 = sbr.rel (%p609) target = $region92
      $region91: #{seq2seq_forward.6} parent=87 // pred_region
        %p612 = scmp.lt.s32.totalorder %s28, 1
        %s613 = scalar_select %p612, %s28, 1
        %s614 = smul.addr %s613, 8
        %s615 = scalar_lea.vmem %s0, %s614
      $region92: #{seq2seq_forward.6} parent=87 // pred_fallthru
        _
      // Predicated region
      $region93: #{seq2seq_forward.6} parent=87 // pred_check
        %p616 = pneg %p74
      $region94: #{seq2seq_forward.6} parent=87 // pred_check_branch
        %618 = sbr.rel (%p616) target = $region96
      $region95: #{seq2seq_forward.6} parent=87 // pred_region
        %p619 = scmp.lt.s32.totalorder %s28, 1
        %s620 = scalar_select %p619, %s28, 1
        %s621 = smul.addr %s620, 8
        %s622 = scalar_lea.vmem %s1, %s621
      $region96: #{seq2seq_forward.6} parent=87 // pred_fallthru
        _
      // Predicated region
      $region97: #{seq2seq_forward.6} parent=87 // pred_check
        %p623 = pneg %p100
      $region98: #{seq2seq_forward.6} parent=87 // pred_check_branch
        %625 = sbr.rel (%p623) target = $region100
      $region99: #{seq2seq_forward.6} parent=87 // pred_region
        %p626 = scmp.lt.s32.totalorder %s28, 1
        %s627 = scalar_select %p626, %s28, 1
        %s628 = smul.addr %s627, 8
        %s629 = scalar_lea.vmem %s2, %s628
      $region100: #{seq2seq_forward.6} parent=87 // pred_fallthru
        _
      // Predicated region
      $region101: #{seq2seq_forward.6} parent=87 // pred_check
        %p630 = pneg %p126
      $region102: #{seq2seq_forward.6} parent=87 // pred_check_branch
        %632 = sbr.rel (%p630) target = $region104
      $region103: #{seq2seq_forward.6} parent=87 // pred_region
        %p633 = scmp.lt.s32.totalorder %s28, 1
        %s634 = scalar_select %p633, %s28, 1
        %s635 = scalar_lea.vmem %s3, %s634
      $region104: #{seq2seq_forward.6} parent=87 // pred_fallthru
        _
    $region88: #{seq2seq_forward.6} parent=5 // pred_fallthru
      _
    %p636 = scmp.le.s32.totalorder 1, %s28
    %p637 = scmp.lt.s32.totalorder %s28, 3
    %p638 = pnand %p636, %p637
    %p639 = pneg %p638
    // Predicated region
    $region105: #{seq2seq_forward.6} parent=5 // pred_check
      _
    $region106: #{seq2seq_forward.6} parent=5 // pred_check_branch
      %641 = sbr.rel (%p638) target = $region108
    $region107: #{seq2seq_forward.6} parent=5 // pred_region
      %s642 = ssub.s32 %s28, 1
      %p643 = scmp.lt.s32.totalorder %s33, 1
      %s644 = scalar_select %p643, %s33, 1
      %s645 = smul.addr %s644, 8
      %s646 = scalar_lea.vmem %s0, %s645
      %p647 = pneg %p54
      %p648 = pneg %p51
      %p649 = scmp.lt.s32.totalorder %s33, 1
      %s650 = scalar_select %p649, %s33, 1
      %s651 = smul.addr %s650, 8
      %s652 = scalar_lea.vmem %s1, %s651
      %p653 = pneg %p80
      %p654 = pneg %p77
      %p655 = scmp.lt.s32.totalorder %s33, 1
      %s656 = scalar_select %p655, %s33, 1
      %s657 = smul.addr %s656, 8
      %s658 = scalar_lea.vmem %s2, %s657
      %p659 = pneg %p106
      %p660 = pneg %p103
      %p661 = scmp.lt.s32.totalorder %s33, 1
      %s662 = scalar_select %p661, %s33, 1
      %s663 = scalar_lea.vmem %s3, %s662
      %p664 = pneg %p132
      %p665 = pneg %p129
      %p666 = pneg %p153
      %p667 = pneg %p150
      %p668 = pneg %p174
      %p669 = pneg %p171
      %p670 = pneg %p195
      %p671 = pneg %p192
      %p672 = pneg %p216
      %p673 = pneg %p213
      %p674 = pneg %p237
      %p675 = pneg %p234
      %p676 = pneg %p258
      %p677 = pneg %p255
      %p678 = pneg %p279
      %p679 = pneg %p276
      %p680 = pneg %p300
      %p681 = pneg %p297
      %p682 = pneg %p321
      %p683 = pneg %p318
      %p684 = pneg %p342
      %p685 = pneg %p339
      %p686 = pneg %p363
      %p687 = pneg %p360
      %p688 = pneg %p384
      %p689 = pneg %p381
      %p690 = pneg %p405
      %p691 = pneg %p402
      %p692 = pneg %p426
      %p693 = pneg %p423
      %p694 = pneg %p447
      %p695 = pneg %p444
      %p696 = pneg %p468
      %p697 = pneg %p465
      %p698 = pneg %p489
      %p699 = pneg %p486
      %p700 = pneg %p510
      %p701 = pneg %p507
      %p702 = pneg %p536
      %p703 = pneg %p533
      %p704 = scmp.lt.s32.totalorder %s33, 1
      %s705 = scalar_select %p704, %s33, 1
      %s706 = smul.addr %s705, 8
      %s707 = scalar_lea.vmem %s22, %s706
      %p708 = scmp.lt.s32.totalorder %s33, 1
      %s709 = scalar_select %p708, %s33, 1
      %s710 = smul.addr %s709, 8
      %s711 = scalar_lea.vmem %s0, %s710
      %p712 = scmp.lt.s32.totalorder %s33, 1
      %s713 = scalar_select %p712, %s33, 1
      %s714 = smul.addr %s713, 8
      %s715 = scalar_lea.vmem %s1, %s714
      %p716 = scmp.lt.s32.totalorder %s33, 1
      %s717 = scalar_select %p716, %s33, 1
      %s718 = smul.addr %s717, 8
      %s719 = scalar_lea.vmem %s2, %s718
      %p720 = scmp.lt.s32.totalorder %s33, 1
      %s721 = scalar_select %p720, %s33, 1
      %s722 = scalar_lea.vmem %s3, %s721
      %p723 = scmp.lt.s32.totalorder %s33, 1
      %s724 = scalar_select %p723, %s33, 1
      %s725 = smul.addr %s724, 8
      %s726 = scalar_lea.vmem %s22, %s725
      %v727 = vld [vmem:[%s711] sm:$0x3f]
      %v728 = vld [vmem:[%s715] sm:$0xff]
      %v729 = vld [vmem:[%s719] sm:$0x3f]
      %v730 = vld [vmem:[%s722] sm:$0x1]
      %v731 = vld [vmem:[%s4] sm:$0xff]
      %v732 = vld [vmem:[%s4 + $0x8] sm:$0xff]
      %v733 = vld [vmem:[%s4 + $0x10] sm:$0xff]
      %v734 = vld [vmem:[%s4 + $0x18] sm:$0xff]
      %v735 = vld [vmem:[%s5] sm:$0x1]
      %v736 = vld [vmem:[%s6] sm:$0xff]
      %v737 = vld [vmem:[%s6 + $0x8] sm:$0xff]
      %v738 = vld [vmem:[%s6 + $0x10] sm:$0xff]
      %v739 = vld [vmem:[%s6 + $0x18] sm:$0xff]
      %v740 = vld [vmem:[%s7] sm:$0x1]
      %v741 = vld [vmem:[%s8] sm:$0x1]
      %v742 = vld [vmem:[%s9] sm:$0x1]
      %v743 = vld [vmem:[%s10] sm:$0xff]
      %v744 = vld [vmem:[%s10 + $0x8] sm:$0xff]
      %v745 = vld [vmem:[%s10 + $0x10] sm:$0xff]
      %v746 = vld [vmem:[%s10 + $0x18] sm:$0xff]
      %v747 = vld [vmem:[%s11] sm:$0x1]
      %v748 = vld [vmem:[%s12] sm:$0xff]
      %v749 = vld [vmem:[%s12 + $0x8] sm:$0xff]
      %v750 = vld [vmem:[%s12 + $0x10] sm:$0xff]
      %v751 = vld [vmem:[%s12 + $0x18] sm:$0xff]
      %v752 = vld [vmem:[%s13] sm:$0x1]
      %v753 = vld [vmem:[%s14] sm:$0x1]
      %v754 = vld [vmem:[%s15] sm:$0x1]
      %v755 = vld [vmem:[%s16] sm:$0xff]
      %v756 = vld [vmem:[%s16 + $0x8] sm:$0xff]
      %v757 = vld [vmem:[%s16 + $0x10] sm:$0xff]
      %v758 = vld [vmem:[%s16 + $0x18] sm:$0xff]
      %v759 = vld [vmem:[%s17] sm:$0x1]
      %v760 = vld [vmem:[%s18] sm:$0xff]
      %v761 = vld [vmem:[%s18 + $0x8] sm:$0xff]
      %v762 = vld [vmem:[%s18 + $0x10] sm:$0xff]
      %v763 = vld [vmem:[%s18 + $0x18] sm:$0xff]
      %v764 = vld [vmem:[%s18 + $0x20] sm:$0xff]
      %v765 = vld [vmem:[%s18 + $0x28] sm:$0xff]
      %v766 = vld [vmem:[%s18 + $0x30] sm:$0xff]
      %v767 = vld [vmem:[%s18 + $0x38] sm:$0xff]
      %v768 = vld [vmem:[%s19] sm:$0x1]
      %v769 = vld [vmem:[%s20] sm:$0x1]
      %v770 = vld [vmem:[%s21] sm:$0x1]
      %v772 = vlaneseq
      %v773 = vshrl.u32 %v772, 7
      %v774 = vsub.s32 0, %v773
      %v775 = vrot.slane %v735, %v774
      %vm777 = vcmask 261120
      %v779 = vsel %vm777, %v727, 0
      %781 = vmatprep.subr.mxu0 0.0
      %782 = vmatpush1.msra.mxu0 %v731
      %783 = vmatprep.subr.mxu0 0.0
      %784 = vmatpush1.msra.mxu0 %v732
      %785 = vmatprep.subr.mxu0 0.0
      %786 = vmatpush1.msra.mxu0 %v733
      %787 = vmatprep.subr.mxu0 0.0
      %788 = vmatpush1.msra.mxu0 %v734
      %789 = vmatprep.subr.mxu0 0.0
      %790 = vmatpush1.msra.mxu0 0.0
      %791 = vmatprep.subr.mxu0 0.0
      %792 = vmatpush1.msra.mxu0 0.0
      %793 = vmatprep.subr.mxu0 0.0
      %794 = vmatpush1.msra.mxu0 0.0
      %795 = vmatprep.subr.mxu0 0.0
      %796 = vmatpush1.msra.mxu0 0.0
      %797 = vmatprep.subr.mxu0 0.0
      %798 = vmatpush1.msra.mxu0 0.0
      %799 = vmatprep.subr.mxu0 0.0
      %800 = vmatpush1.msra.mxu0 0.0
      %801 = vmatprep.subr.mxu0 0.0
      %802 = vmatpush1.msra.mxu0 0.0
      %803 = vmatprep.subr.mxu0 0.0
      %804 = vmatpush1.msra.mxu0 0.0
      %805 = vmatprep.subr.mxu0 0.0
      %806 = vmatpush1.msra.mxu0 0.0
      %807 = vmatprep.subr.mxu0 0.0
      %808 = vmatpush1.msra.mxu0 0.0
      %809 = vmatprep.subr.mxu0 0.0
      %810 = vmatpush1.msra.mxu0 0.0
      %811 = vmatprep.subr.mxu0 0.0
      %812 = vmatpush1.msra.mxu0 0.0
      %813 = vmatprep.subr.mxu0 0.0
      %814 = vmatpush1.msra.mxu0 0.0
      %815 = vmatprep.subr.mxu0 0.0
      %816 = vmatpush1.msra.mxu0 0.0
      %817 = vmatprep.subr.mxu0 0.0
      %818 = vmatpush1.msra.mxu0 0.0
      %819 = vmatprep.subr.mxu0 0.0
      %820 = vmatpush1.msra.mxu0 0.0
      %821 = vmatprep.subr.mxu0 0.0
      %822 = vmatpush1.msra.mxu0 0.0
      %823 = vmatprep.subr.mxu0 0.0
      %824 = vmatpush1.msra.mxu0 0.0
      %825 = vmatprep.subr.mxu0 0.0
      %826 = vmatpush1.msra.mxu0 0.0
      %827 = vmatprep.subr.mxu0 0.0
      %828 = vmatpush1.msra.mxu0 0.0
      %829 = vmatprep.subr.mxu0 0.0
      %830 = vmatpush1.msra.mxu0 0.0
      %831 = vmatprep.subr.mxu0 0.0
      %832 = vmatpush1.msra.mxu0 0.0
      %833 = vmatprep.subr.mxu0 0.0
      %834 = vmatpush1.msra.mxu0 0.0
      %835 = vmatprep.subr.mxu0 0.0
      %836 = vmatpush1.msra.mxu0 0.0
      %837 = vmatprep.subr.mxu0 0.0
      %838 = vmatpush1.msra.mxu0 0.0
      %839 = vmatprep.subr.mxu0 0.0
      %840 = vmatpush1.msra.mxu0 0.0
      %841 = vmatprep.subr.mxu0 0.0
      %842 = vmatpush1.msra.mxu0 0.0
      %843 = vmatprep.subr.mxu0 0.0
      %844 = vmatpush1.msra.mxu0 0.0
      %845 = vmatprep.mubr.f32.mxu0 0.0
      %846 = vmatmul.mubr.f32.gmra.mrb[0].mxu0 %v779
      %v847 = vpop.f32.mrb[0].mxu0
      %v848 = vadd.f32 %v775, %v847
      %v849 = vpop.f32.mrb[0].mxu0
      %850 = vdwg.mxu0
      %852 = vrot.lane.b32.xlu0 %v848, 96
      %v853 = vpop.permute.xlu0 %852
      %vm854 = vcmask 64512
      %v855 = vsel %vm854, %v848, 0
      %v857 = vsel %vm854, %v853, 0
      %859 = vmatprep.subr.mxu0 0.0
      %860 = vmatpush1.xpose.msra.mxu0 %v857
      %861 = vmatprep.subr.mxu0 0.0
      %862 = vmatpush1.xpose.msra.mxu0 0.0
      %863 = vmatprep.subr.mxu0 0.0
      %864 = vmatpush1.xpose.msra.mxu0 0.0
      %865 = vmatprep.subr.mxu0 0.0
      %866 = vmatpush1.xpose.msra.mxu0 0.0
      %867 = vmatprep.subr.mxu0 0.0
      %868 = vmatpush1.xpose.msra.mxu0 0.0
      %869 = vmatprep.subr.mxu0 0.0
      %870 = vmatpush1.xpose.msra.mxu0 0.0
      %871 = vmatprep.subr.mxu0 0.0
      %872 = vmatpush1.xpose.msra.mxu0 0.0
      %873 = vmatprep.subr.mxu0 0.0
      %874 = vmatpush1.xpose.msra.mxu0 0.0
      %875 = vmatprep.subr.mxu0 0.0
      %876 = vmatpush1.xpose.msra.mxu0 0.0
      %877 = vmatprep.subr.mxu0 0.0
      %878 = vmatpush1.xpose.msra.mxu0 0.0
      %879 = vmatprep.subr.mxu0 0.0
      %880 = vmatpush1.xpose.msra.mxu0 0.0
      %881 = vmatprep.subr.mxu0 0.0
      %882 = vmatpush1.xpose.msra.mxu0 0.0
      %883 = vmatprep.subr.mxu0 0.0
      %884 = vmatpush1.xpose.msra.mxu0 0.0
      %885 = vmatprep.subr.mxu0 0.0
      %886 = vmatpush1.xpose.msra.mxu0 0.0
      %887 = vmatprep.subr.mxu0 0.0
      %888 = vmatpush1.xpose.msra.mxu0 0.0
      %889 = vmatprep.subr.mxu0 0.0
      %890 = vmatpush1.xpose.msra.mxu0 0.0
      %891 = vmatprep.subr.mxu0 0.0
      %892 = vmatpush1.xpose.msra.mxu0 0.0
      %893 = vmatprep.subr.mxu0 0.0
      %894 = vmatpush1.xpose.msra.mxu0 0.0
      %895 = vmatprep.subr.mxu0 0.0
      %896 = vmatpush1.xpose.msra.mxu0 0.0
      %897 = vmatprep.subr.mxu0 0.0
      %898 = vmatpush1.xpose.msra.mxu0 0.0
      %899 = vmatprep.subr.mxu0 0.0
      %900 = vmatpush1.xpose.msra.mxu0 0.0
      %901 = vmatprep.subr.mxu0 0.0
      %902 = vmatpush1.xpose.msra.mxu0 0.0
      %903 = vmatprep.subr.mxu0 0.0
      %904 = vmatpush1.xpose.msra.mxu0 0.0
      %905 = vmatprep.subr.mxu0 0.0
      %906 = vmatpush1.xpose.msra.mxu0 0.0
      %907 = vmatprep.subr.mxu0 0.0
      %908 = vmatpush1.xpose.msra.mxu0 0.0
      %909 = vmatprep.subr.mxu0 0.0
      %910 = vmatpush1.xpose.msra.mxu0 0.0
      %911 = vmatprep.subr.mxu0 0.0
      %912 = vmatpush1.xpose.msra.mxu0 0.0
      %913 = vmatprep.subr.mxu0 0.0
      %914 = vmatpush1.xpose.msra.mxu0 0.0
      %915 = vmatprep.subr.mxu0 0.0
      %916 = vmatpush1.xpose.msra.mxu0 0.0
      %917 = vmatprep.subr.mxu0 0.0
      %918 = vmatpush1.xpose.msra.mxu0 0.0
      %919 = vmatprep.subr.mxu0 0.0
      %920 = vmatpush1.xpose.msra.mxu0 0.0
      %921 = vmatprep.subr.mxu0 0.0
      %922 = vmatpush1.xpose.msra.mxu0 0.0
      %923 = vmatprep.mubr.f32.mxu0 0.0
      %924 = vmatmul.mubr.f32.gmra.mrb[0].mxu0 %v855
      %v925 = vpop.f32.mrb[0].mxu0
      %v926 = vadd.f32 0.0, %v925
      %v927 = vpop.f32.mrb[0].mxu0
      %928 = vdwg.mxu0
      %v929 = vmul.f32 %v926, 0.35355338
      %vm930 = vcmp.gt.s32.totalorder %v729, 0
      %v931 = vsel %vm930, %v929, -1e+10
      %vm932 = vcmask 46080
      %v933 = vsel %vm932, %v931, -inf
      %934 = vmax.xlane.f32.xlu0 %v933
      %v935 = vpop.xlane.xlu0 %934
      %v936 = vsub.f32 %v931, %v935
      %v937 = vmul.f32 %v936, 1.442695
      %v938 = vpow.pop %v937
      %v939 = vsel %vm932, %v938, 0.0
      %940 = vadd.xlane.f32.xlu0 %v939
      %v941 = vpop.xlane.xlu0 %940
      %v942 = vrcp.pop %v941
      %v943 = vmul.f32 %v938, %v942
      %944 = vrot.lane.b32.xlu0 %v848, 64
      %v945 = vpop.permute.xlu0 %944
      %vm946 = vcmask 48128
      %v948 = vsel %vm946, %v943, 0
      %vm950 = vcmask 1045504
      %v951 = vsel %vm950, %v945, 0
      %953 = vmatprep.subr.mxu0 0.0
      %954 = vmatpush1.msra.mxu0 %v951
      %955 = vmatprep.subr.mxu0 0.0
      %956 = vmatpush1.msra.mxu0 0.0
      %957 = vmatprep.subr.mxu0 0.0
      %958 = vmatpush1.msra.mxu0 0.0
      %959 = vmatprep.subr.mxu0 0.0
      %960 = vmatpush1.msra.mxu0 0.0
      %961 = vmatprep.subr.mxu0 0.0
      %962 = vmatpush1.msra.mxu0 0.0
      %963 = vmatprep.subr.mxu0 0.0
      %964 = vmatpush1.msra.mxu0 0.0
      %965 = vmatprep.subr.mxu0 0.0
      %966 = vmatpush1.msra.mxu0 0.0
      %967 = vmatprep.subr.mxu0 0.0
      %968 = vmatpush1.msra.mxu0 0.0
      %969 = vmatprep.subr.mxu0 0.0
      %970 = vmatpush1.msra.mxu0 0.0
      %971 = vmatprep.subr.mxu0 0.0
      %972 = vmatpush1.msra.mxu0 0.0
      %973 = vmatprep.subr.mxu0 0.0
      %974 = vmatpush1.msra.mxu0 0.0
      %975 = vmatprep.subr.mxu0 0.0
      %976 = vmatpush1.msra.mxu0 0.0
      %977 = vmatprep.subr.mxu0 0.0
      %978 = vmatpush1.msra.mxu0 0.0
      %979 = vmatprep.subr.mxu0 0.0
      %980 = vmatpush1.msra.mxu0 0.0
      %981 = vmatprep.subr.mxu0 0.0
      %982 = vmatpush1.msra.mxu0 0.0
      %983 = vmatprep.subr.mxu0 0.0
      %984 = vmatpush1.msra.mxu0 0.0
      %985 = vmatprep.subr.mxu0 0.0
      %986 = vmatpush1.msra.mxu0 0.0
      %987 = vmatprep.subr.mxu0 0.0
      %988 = vmatpush1.msra.mxu0 0.0
      %989 = vmatprep.subr.mxu0 0.0
      %990 = vmatpush1.msra.mxu0 0.0
      %991 = vmatprep.subr.mxu0 0.0
      %992 = vmatpush1.msra.mxu0 0.0
      %993 = vmatprep.subr.mxu0 0.0
      %994 = vmatpush1.msra.mxu0 0.0
      %995 = vmatprep.subr.mxu0 0.0
      %996 = vmatpush1.msra.mxu0 0.0
      %997 = vmatprep.subr.mxu0 0.0
      %998 = vmatpush1.msra.mxu0 0.0
      %999 = vmatprep.subr.mxu0 0.0
      %1000 = vmatpush1.msra.mxu0 0.0
      %1001 = vmatprep.subr.mxu0 0.0
      %1002 = vmatpush1.msra.mxu0 0.0
      %1003 = vmatprep.subr.mxu0 0.0
      %1004 = vmatpush1.msra.mxu0 0.0
      %1005 = vmatprep.subr.mxu0 0.0
      %1006 = vmatpush1.msra.mxu0 0.0
      %1007 = vmatprep.subr.mxu0 0.0
      %1008 = vmatpush1.msra.mxu0 0.0
      %1009 = vmatprep.subr.mxu0 0.0
      %1010 = vmatpush1.msra.mxu0 0.0
      %1011 = vmatprep.subr.mxu0 0.0
      %1012 = vmatpush1.msra.mxu0 0.0
      %1013 = vmatprep.subr.mxu0 0.0
      %1014 = vmatpush1.msra.mxu0 0.0
      %1015 = vmatprep.subr.mxu0 0.0
      %1016 = vmatpush1.msra.mxu0 0.0
      %1017 = vmatprep.mubr.f32.mxu0 0.0
      %1018 = vmatmul.mubr.f32.gmra.mrb[0].mxu0 %v948
      %v1019 = vpop.f32.mrb[0].mxu0
      %v1020 = vadd.f32 0.0, %v1019
      %v1021 = vpop.f32.mrb[0].mxu0
      %1022 = vdwg.mxu0
      %1023 = vrot.lane.b32.xlu0 %v848, 120
      %v1024 = vpop.permute.xlu0 %1023
      %1025 = vrot.lane.b32.xlu0 %v848, 88
      %v1026 = vpop.permute.xlu0 %1025
      %v1027 = vsel %vm854, %v1024, 0
      %v1029 = vsel %vm854, %v1026, 0
      %1031 = vmatprep.subr.mxu0 0.0
      %1032 = vmatpush1.xpose.msra.mxu0 %v1029
      %1033 = vmatprep.subr.mxu0 0.0
      %1034 = vmatpush1.xpose.msra.mxu0 0.0
      %1035 = vmatprep.subr.mxu0 0.0
      %1036 = vmatpush1.xpose.msra.mxu0 0.0
      %1037 = vmatprep.subr.mxu0 0.0
      %1038 = vmatpush1.xpose.msra.mxu0 0.0
      %1039 = vmatprep.subr.mxu0 0.0
      %1040 = vmatpush1.xpose.msra.mxu0 0.0
      %1041 = vmatprep.subr.mxu0 0.0
      %1042 = vmatpush1.xpose.msra.mxu0 0.0
      %1043 = vmatprep.subr.mxu0 0.0
      %1044 = vmatpush1.xpose.msra.mxu0 0.0
      %1045 = vmatprep.subr.mxu0 0.0
      %1046 = vmatpush1.xpose.msra.mxu0 0.0
      %1047 = vmatprep.subr.mxu0 0.0
      %1048 = vmatpush1.xpose.msra.mxu0 0.0
      %1049 = vmatprep.subr.mxu0 0.0
      %1050 = vmatpush1.xpose.msra.mxu0 0.0
      %1051 = vmatprep.subr.mxu0 0.0
      %1052 = vmatpush1.xpose.msra.mxu0 0.0
      %1053 = vmatprep.subr.mxu0 0.0
      %1054 = vmatpush1.xpose.msra.mxu0 0.0
      %1055 = vmatprep.subr.mxu0 0.0
      %1056 = vmatpush1.xpose.msra.mxu0 0.0
      %1057 = vmatprep.subr.mxu0 0.0
      %1058 = vmatpush1.xpose.msra.mxu0 0.0
      %1059 = vmatprep.subr.mxu0 0.0
      %1060 = vmatpush1.xpose.msra.mxu0 0.0
      %1061 = vmatprep.subr.mxu0 0.0
      %1062 = vmatpush1.xpose.msra.mxu0 0.0
      %1063 = vmatprep.subr.mxu0 0.0
      %1064 = vmatpush1.xpose.msra.mxu0 0.0
      %1065 = vmatprep.subr.mxu0 0.0
      %1066 = vmatpush1.xpose.msra.mxu0 0.0
      %1067 = vmatprep.subr.mxu0 0.0
      %1068 = vmatpush1.xpose.msra.mxu0 0.0
      %1069 = vmatprep.subr.mxu0 0.0
      %1070 = vmatpush1.xpose.msra.mxu0 0.0
      %1071 = vmatprep.subr.mxu0 0.0
      %1072 = vmatpush1.xpose.msra.mxu0 0.0
      %1073 = vmatprep.subr.mxu0 0.0
      %1074 = vmatpush1.xpose.msra.mxu0 0.0
      %1075 = vmatprep.subr.mxu0 0.0
      %1076 = vmatpush1.xpose.msra.mxu0 0.0
      %1077 = vmatprep.subr.mxu0 0.0
      %1078 = vmatpush1.xpose.msra.mxu0 0.0
      %1079 = vmatprep.subr.mxu0 0.0
      %1080 = vmatpush1.xpose.msra.mxu0 0.0
      %1081 = vmatprep.subr.mxu0 0.0
      %1082 = vmatpush1.xpose.msra.mxu0 0.0
      %1083 = vmatprep.subr.mxu0 0.0
      %1084 = vmatpush1.xpose.msra.mxu0 0.0
      %1085 = vmatprep.subr.mxu0 0.0
      %1086 = vmatpush1.xpose.msra.mxu0 0.0
      %1087 = vmatprep.subr.mxu0 0.0
      %1088 = vmatpush1.xpose.msra.mxu0 0.0
      %1089 = vmatprep.subr.mxu0 0.0
      %1090 = vmatpush1.xpose.msra.mxu0 0.0
      %1091 = vmatprep.subr.mxu0 0.0
      %1092 = vmatpush1.xpose.msra.mxu0 0.0
      %1093 = vmatprep.subr.mxu0 0.0
      %1094 = vmatpush1.xpose.msra.mxu0 0.0
      %1095 = vmatprep.mubr.f32.mxu0 0.0
      %1096 = vmatmul.mubr.f32.gmra.mrb[0].mxu0 %v1027
      %v1097 = vpop.f32.mrb[0].mxu0
      %v1098 = vadd.f32 0.0, %v1097
      %v1099 = vpop.f32.mrb[0].mxu0
      %1100 = vdwg.mxu0
      %v1101 = vmul.f32 %v1098, 0.35355338
      %v1102 = vsel %vm930, %v1101, -1e+10
      %v1103 = vsel %vm932, %v1102, -inf
      %1104 = vmax.xlane.f32.xlu0 %v1103
      %v1105 = vpop.xlane.xlu0 %1104
      %v1106 = vsub.f32 %v1102, %v1105
      %v1107 = vmul.f32 %v1106, 1.442695
      %v1108 = vpow.pop %v1107
      %v1109 = vsel %vm932, %v1108, 0.0
      %1110 = vadd.xlane.f32.xlu0 %v1109
      %v1111 = vpop.xlane.xlu0 %1110
      %v1112 = vrcp.pop %v1111
      %v1113 = vmul.f32 %v1108, %v1112
      %1114 = vrot.lane.b32.xlu0 %v848, 56
      %v1115 = vpop.permute.xlu0 %1114
      %v1117 = vsel %vm946, %v1113, 0
      %v1119 = vsel %vm950, %v1115, 0
      %1121 = vmatprep.subr.mxu0 0.0
      %1122 = vmatpush1.msra.mxu0 %v1119
      %1123 = vmatprep.subr.mxu0 0.0
      %1124 = vmatpush1.msra.mxu0 0.0
      %1125 = vmatprep.subr.mxu0 0.0
      %1126 = vmatpush1.msra.mxu0 0.0
      %1127 = vmatprep.subr.mxu0 0.0
      %1128 = vmatpush1.msra.mxu0 0.0
      %1129 = vmatprep.subr.mxu0 0.0
      %1130 = vmatpush1.msra.mxu0 0.0
      %1131 = vmatprep.subr.mxu0 0.0
      %1132 = vmatpush1.msra.mxu0 0.0
      %1133 = vmatprep.subr.mxu0 0.0
      %1134 = vmatpush1.msra.mxu0 0.0
      %1135 = vmatprep.subr.mxu0 0.0
      %1136 = vmatpush1.msra.mxu0 0.0
      %1137 = vmatprep.subr.mxu0 0.0
      %1138 = vmatpush1.msra.mxu0 0.0
      %1139 = vmatprep.subr.mxu0 0.0
      %1140 = vmatpush1.msra.mxu0 0.0
      %1141 = vmatprep.subr.mxu0 0.0
      %1142 = vmatpush1.msra.mxu0 0.0
      %1143 = vmatprep.subr.mxu0 0.0
      %1144 = vmatpush1.msra.mxu0 0.0
      %1145 = vmatprep.subr.mxu0 0.0
      %1146 = vmatpush1.msra.mxu0 0.0
      %1147 = vmatprep.subr.mxu0 0.0
      %1148 = vmatpush1.msra.mxu0 0.0
      %1149 = vmatprep.subr.mxu0 0.0
      %1150 = vmatpush1.msra.mxu0 0.0
      %1151 = vmatprep.subr.mxu0 0.0
      %1152 = vmatpush1.msra.mxu0 0.0
      %1153 = vmatprep.subr.mxu0 0.0
      %1154 = vmatpush1.msra.mxu0 0.0
      %1155 = vmatprep.subr.mxu0 0.0
      %1156 = vmatpush1.msra.mxu0 0.0
      %1157 = vmatprep.subr.mxu0 0.0
      %1158 = vmatpush1.msra.mxu0 0.0
      %1159 = vmatprep.subr.mxu0 0.0
      %1160 = vmatpush1.msra.mxu0 0.0
      %1161 = vmatprep.subr.mxu0 0.0
      %1162 = vmatpush1.msra.mxu0 0.0
      %1163 = vmatprep.subr.mxu0 0.0
      %1164 = vmatpush1.msra.mxu0 0.0
      %1165 = vmatprep.subr.mxu0 0.0
      %1166 = vmatpush1.msra.mxu0 0.0
      %1167 = vmatprep.subr.mxu0 0.0
      %1168 = vmatpush1.msra.mxu0 0.0
      %1169 = vmatprep.subr.mxu0 0.0
      %1170 = vmatpush1.msra.mxu0 0.0
      %1171 = vmatprep.subr.mxu0 0.0
      %1172 = vmatpush1.msra.mxu0 0.0
      %1173 = vmatprep.subr.mxu0 0.0
      %1174 = vmatpush1.msra.mxu0 0.0
      %1175 = vmatprep.subr.mxu0 0.0
      %1176 = vmatpush1.msra.mxu0 0.0
      %1177 = vmatprep.subr.mxu0 0.0
      %1178 = vmatpush1.msra.mxu0 0.0
      %1179 = vmatprep.subr.mxu0 0.0
      %1180 = vmatpush1.msra.mxu0 0.0
      %1181 = vmatprep.subr.mxu0 0.0
      %1182 = vmatpush1.msra.mxu0 0.0
      %1183 = vmatprep.subr.mxu0 0.0
      %1184 = vmatpush1.msra.mxu0 0.0
      %1185 = vmatprep.mubr.f32.mxu0 0.0
      %1186 = vmatmul.mubr.f32.gmra.mrb[0].mxu0 %v1117
      %v1187 = vpop.f32.mrb[0].mxu0
      %v1188 = vadd.f32 0.0, %v1187
      %v1189 = vpop.f32.mrb[0].mxu0
      %1190 = vdwg.mxu0
      %1191 = vrot.lane.b32.xlu0 %v848, 112
      %v1192 = vpop.permute.xlu0 %1191
      %1193 = vrot.lane.b32.xlu0 %v848, 80
      %v1194 = vpop.permute.xlu0 %1193
      %v1195 = vsel %vm854, %v1192, 0
      %v1197 = vsel %vm854, %v1194, 0
      %1199 = vmatprep.subr.mxu0 0.0
      %1200 = vmatpush1.xpose.msra.mxu0 %v1197
      %1201 = vmatprep.subr.mxu0 0.0
      %1202 = vmatpush1.xpose.msra.mxu0 0.0
      %1203 = vmatprep.subr.mxu0 0.0
      %1204 = vmatpush1.xpose.msra.mxu0 0.0
      %1205 = vmatprep.subr.mxu0 0.0
      %1206 = vmatpush1.xpose.msra.mxu0 0.0
      %1207 = vmatprep.subr.mxu0 0.0
      %1208 = vmatpush1.xpose.msra.mxu0 0.0
      %1209 = vmatprep.subr.mxu0 0.0
      %1210 = vmatpush1.xpose.msra.mxu0 0.0
      %1211 = vmatprep.subr.mxu0 0.0
      %1212 = vmatpush1.xpose.msra.mxu0 0.0
      %1213 = vmatprep.subr.mxu0 0.0
      %1214 = vmatpush1.xpose.msra.mxu0 0.0
      %1215 = vmatprep.subr.mxu0 0.0
      %1216 = vmatpush1.xpose.msra.mxu0 0.0
      %1217 = vmatprep.subr.mxu0 0.0
      %1218 = vmatpush1.xpose.msra.mxu0 0.0
      %1219 = vmatprep.subr.mxu0 0.0
      %1220 = vmatpush1.xpose.msra.mxu0 0.0
      %1221 = vmatprep.subr.mxu0 0.0
      %1222 = vmatpush1.xpose.msra.mxu0 0.0
      %1223 = vmatprep.subr.mxu0 0.0
      %1224 = vmatpush1.xpose.msra.mxu0 0.0
      %1225 = vmatprep.subr.mxu0 0.0
      %1226 = vmatpush1.xpose.msra.mxu0 0.0
      %1227 = vmatprep.subr.mxu0 0.0
      %1228 = vmatpush1.xpose.msra.mxu0 0.0
      %1229 = vmatprep.subr.mxu0 0.0
      %1230 = vmatpush1.xpose.msra.mxu0 0.0
      %1231 = vmatprep.subr.mxu0 0.0
      %1232 = vmatpush1.xpose.msra.mxu0 0.0
      %1233 = vmatprep.subr.mxu0 0.0
      %1234 = vmatpush1.xpose.msra.mxu0 0.0
      %1235 = vmatprep.subr.mxu0 0.0
      %1236 = vmatpush1.xpose.msra.mxu0 0.0
      %1237 = vmatprep.subr.mxu0 0.0
      %1238 = vmatpush1.xpose.msra.mxu0 0.0
      %1239 = vmatprep.subr.mxu0 0.0
      %1240 = vmatpush1.xpose.msra.mxu0 0.0
      %1241 = vmatprep.subr.mxu0 0.0
      %1242 = vmatpush1.xpose.msra.mxu0 0.0
      %1243 = vmatprep.subr.mxu0 0.0
      %1244 = vmatpush1.xpose.msra.mxu0 0.0
      %1245 = vmatprep.subr.mxu0 0.0
      %1246 = vmatpush1.xpose.msra.mxu0 0.0
      %1247 = vmatprep.subr.mxu0 0.0
      %1248 = vmatpush1.xpose.msra.mxu0 0.0
      %1249 = vmatprep.subr.mxu0 0.0
      %1250 = vmatpush1.xpose.msra.mxu0 0.0
      %1251 = vmatprep.subr.mxu0 0.0
      %1252 = vmatpush1.xpose.msra.mxu0 0.0
      %1253 = vmatprep.subr.mxu0 0.0
      %1254 = vmatpush1.xpose.msra.mxu0 0.0
      %1255 = vmatprep.subr.mxu0 0.0
      %1256 = vmatpush1.xpose.msra.mxu0 0.0
      %1257 = vmatprep.subr.mxu0 0.0
      %1258 = vmatpush1.xpose.msra.mxu0 0.0
      %1259 = vmatprep.subr.mxu0 0.0
      %1260 = vmatpush1.xpose.msra.mxu0 0.0
      %1261 = vmatprep.subr.mxu0 0.0
      %1262 = vmatpush1.xpose.msra.mxu0 0.0
      %1263 = vmatprep.mubr.f32.mxu0 0.0
      %1264 = vmatmul.mubr.f32.gmra.mrb[0].mxu0 %v1195
      %v1265 = vpop.f32.mrb[0].mxu0
      %v1266 = vadd.f32 0.0, %v1265
      %v1267 = vpop.f32.mrb[0].mxu0
      %1268 = vdwg.mxu0
      %v1269 = vmul.f32 %v1266, 0.35355338
      %v1270 = vsel %vm930, %v1269, -1e+10
      %v1271 = vsel %vm932, %v1270, -inf
      %1272 = vmax.xlane.f32.xlu0 %v1271
      %v1273 = vpop.xlane.xlu0 %1272
      %v1274 = vsub.f32 %v1270, %v1273
      %v1275 = vmul.f32 %v1274, 1.442695
      %v1276 = vpow.pop %v1275
      %v1277 = vsel %vm932, %v1276, 0.0
      %1278 = vadd.xlane.f32.xlu0 %v1277
      %v1279 = vpop.xlane.xlu0 %1278
      %v1280 = vrcp.pop %v1279
      %v1281 = vmul.f32 %v1276, %v1280
      %1282 = vrot.lane.b32.xlu0 %v848, 48
      %v1283 = vpop.permute.xlu0 %1282
      %v1285 = vsel %vm946, %v1281, 0
      %v1287 = vsel %vm950, %v1283, 0
      %1289 = vmatprep.subr.mxu0 0.0
      %1290 = vmatpush1.msra.mxu0 %v1287
      %1291 = vmatprep.subr.mxu0 0.0
      %1292 = vmatpush1.msra.mxu0 0.0
      %1293 = vmatprep.subr.mxu0 0.0
      %1294 = vmatpush1.msra.mxu0 0.0
      %1295 = vmatprep.subr.mxu0 0.0
      %1296 = vmatpush1.msra.mxu0 0.0
      %1297 = vmatprep.subr.mxu0 0.0
      %1298 = vmatpush1.msra.mxu0 0.0
      %1299 = vmatprep.subr.mxu0 0.0
      %1300 = vmatpush1.msra.mxu0 0.0
      %1301 = vmatprep.subr.mxu0 0.0
      %1302 = vmatpush1.msra.mxu0 0.0
      %1303 = vmatprep.subr.mxu0 0.0
      %1304 = vmatpush1.msra.mxu0 0.0
      %1305 = vmatprep.subr.mxu0 0.0
      %1306 = vmatpush1.msra.mxu0 0.0
      %1307 = vmatprep.subr.mxu0 0.0
      %1308 = vmatpush1.msra.mxu0 0.0
      %1309 = vmatprep.subr.mxu0 0.0
      %1310 = vmatpush1.msra.mxu0 0.0
      %1311 = vmatprep.subr.mxu0 0.0
      %1312 = vmatpush1.msra.mxu0 0.0
      %1313 = vmatprep.subr.mxu0 0.0
      %1314 = vmatpush1.msra.mxu0 0.0
      %1315 = vmatprep.subr.mxu0 0.0
      %1316 = vmatpush1.msra.mxu0 0.0
      %1317 = vmatprep.subr.mxu0 0.0
      %1318 = vmatpush1.msra.mxu0 0.0
      %1319 = vmatprep.subr.mxu0 0.0
      %1320 = vmatpush1.msra.mxu0 0.0
      %1321 = vmatprep.subr.mxu0 0.0
      %1322 = vmatpush1.msra.mxu0 0.0
      %1323 = vmatprep.subr.mxu0 0.0
      %1324 = vmatpush1.msra.mxu0 0.0
      %1325 = vmatprep.subr.mxu0 0.0
      %1326 = vmatpush1.msra.mxu0 0.0
      %1327 = vmatprep.subr.mxu0 0.0
      %1328 = vmatpush1.msra.mxu0 0.0
      %1329 = vmatprep.subr.mxu0 0.0
      %1330 = vmatpush1.msra.mxu0 0.0
      %1331 = vmatprep.subr.mxu0 0.0
      %1332 = vmatpush1.msra.mxu0 0.0
      %1333 = vmatprep.subr.mxu0 0.0
      %1334 = vmatpush1.msra.mxu0 0.0
      %1335 = vmatprep.subr.mxu0 0.0
      %1336 = vmatpush1.msra.mxu0 0.0
      %1337 = vmatprep.subr.mxu0 0.0
      %1338 = vmatpush1.msra.mxu0 0.0
      %1339 = vmatprep.subr.mxu0 0.0
      %1340 = vmatpush1.msra.mxu0 0.0
      %1341 = vmatprep.subr.mxu0 0.0
      %1342 = vmatpush1.msra.mxu0 0.0
      %1343 = vmatprep.subr.mxu0 0.0
      %1344 = vmatpush1.msra.mxu0 0.0
      %1345 = vmatprep.subr.mxu0 0.0
      %1346 = vmatpush1.msra.mxu0 0.0
      %1347 = vmatprep.subr.mxu0 0.0
      %1348 = vmatpush1.msra.mxu0 0.0
      %1349 = vmatprep.subr.mxu0 0.0
      %1350 = vmatpush1.msra.mxu0 0.0
      %1351 = vmatprep.subr.mxu0 0.0
      %1352 = vmatpush1.msra.mxu0 0.0
      %1353 = vmatprep.mubr.f32.mxu0 0.0
      %1354 = vmatmul.mubr.f32.gmra.mrb[0].mxu0 %v1285
      %v1355 = vpop.f32.mrb[0].mxu0
      %v1356 = vadd.f32 0.0, %v1355
      %v1357 = vpop.f32.mrb[0].mxu0
      %1358 = vdwg.mxu0
      %1359 = vrot.lane.b32.xlu0 %v848, 104
      %v1360 = vpop.permute.xlu0 %1359
      %1361 = vrot.lane.b32.xlu0 %v848, 72
      %v1362 = vpop.permute.xlu0 %1361
      %v1363 = vsel %vm854, %v1360, 0
      %v1365 = vsel %vm854, %v1362, 0
      %1367 = vmatprep.subr.mxu0 0.0
      %1368 = vmatpush1.xpose.msra.mxu0 %v1365
      %1369 = vmatprep.subr.mxu0 0.0
      %1370 = vmatpush1.xpose.msra.mxu0 0.0
      %1371 = vmatprep.subr.mxu0 0.0
      %1372 = vmatpush1.xpose.msra.mxu0 0.0
      %1373 = vmatprep.subr.mxu0 0.0
      %1374 = vmatpush1.xpose.msra.mxu0 0.0
      %1375 = vmatprep.subr.mxu0 0.0
      %1376 = vmatpush1.xpose.msra.mxu0 0.0
      %1377 = vmatprep.subr.mxu0 0.0
      %1378 = vmatpush1.xpose.msra.mxu0 0.0
      %1379 = vmatprep.subr.mxu0 0.0
      %1380 = vmatpush1.xpose.msra.mxu0 0.0
      %1381 = vmatprep.subr.mxu0 0.0
      %1382 = vmatpush1.xpose.msra.mxu0 0.0
      %1383 = vmatprep.subr.mxu0 0.0
      %1384 = vmatpush1.xpose.msra.mxu0 0.0
      %1385 = vmatprep.subr.mxu0 0.0
      %1386 = vmatpush1.xpose.msra.mxu0 0.0
      %1387 = vmatprep.subr.mxu0 0.0
      %1388 = vmatpush1.xpose.msra.mxu0 0.0
      %1389 = vmatprep.subr.mxu0 0.0
      %1390 = vmatpush1.xpose.msra.mxu0 0.0
      %1391 = vmatprep.subr.mxu0 0.0
      %1392 = vmatpush1.xpose.msra.mxu0 0.0
      %1393 = vmatprep.subr.mxu0 0.0
      %1394 = vmatpush1.xpose.msra.mxu0 0.0
      %1395 = vmatprep.subr.mxu0 0.0
      %1396 = vmatpush1.xpose.msra.mxu0 0.0
      %1397 = vmatprep.subr.mxu0 0.0
      %1398 = vmatpush1.xpose.msra.mxu0 0.0
      %1399 = vmatprep.subr.mxu0 0.0
      %1400 = vmatpush1.xpose.msra.mxu0 0.0
      %1401 = vmatprep.subr.mxu0 0.0
      %1402 = vmatpush1.xpose.msra.mxu0 0.0
      %1403 = vmatprep.subr.mxu0 0.0
      %1404 = vmatpush1.xpose.msra.mxu0 0.0
      %1405 = vmatprep.subr.mxu0 0.0
      %1406 = vmatpush1.xpose.msra.mxu0 0.0
      %1407 = vmatprep.subr.mxu0 0.0
      %1408 = vmatpush1.xpose.msra.mxu0 0.0
      %1409 = vmatprep.subr.mxu0 0.0
      %1410 = vmatpush1.xpose.msra.mxu0 0.0
      %1411 = vmatprep.subr.mxu0 0.0
      %1412 = vmatpush1.xpose.msra.mxu0 0.0
      %1413 = vmatprep.subr.mxu0 0.0
      %1414 = vmatpush1.xpose.msra.mxu0 0.0
      %1415 = vmatprep.subr.mxu0 0.0
      %1416 = vmatpush1.xpose.msra.mxu0 0.0
      %1417 = vmatprep.subr.mxu0 0.0
      %1418 = vmatpush1.xpose.msra.mxu0 0.0
      %1419 = vmatprep.subr.mxu0 0.0
      %1420 = vmatpush1.xpose.msra.mxu0 0.0
      %1421 = vmatprep.subr.mxu0 0.0
      %1422 = vmatpush1.xpose.msra.mxu0 0.0
      %1423 = vmatprep.subr.mxu0 0.0
      %1424 = vmatpush1.xpose.msra.mxu0 0.0
      %1425 = vmatprep.subr.mxu0 0.0
      %1426 = vmatpush1.xpose.msra.mxu0 0.0
      %1427 = vmatprep.subr.mxu0 0.0
      %1428 = vmatpush1.xpose.msra.mxu0 0.0
      %1429 = vmatprep.subr.mxu0 0.0
      %1430 = vmatpush1.xpose.msra.mxu0 0.0
      %1431 = vmatprep.mubr.f32.mxu0 0.0
      %1432 = vmatmul.mubr.f32.gmra.mrb[0].mxu0 %v1363
      %v1433 = vpop.f32.mrb[0].mxu0
      %v1434 = vadd.f32 0.0, %v1433
      %v1435 = vpop.f32.mrb[0].mxu0
      %1436 = vdwg.mxu0
      %v1437 = vmul.f32 %v1434, 0.35355338
      %v1438 = vsel %vm930, %v1437, -1e+10
      %v1439 = vsel %vm932, %v1438, -inf
      %1440 = vmax.xlane.f32.xlu0 %v1439
      %v1441 = vpop.xlane.xlu0 %1440
      %v1442 = vsub.f32 %v1438, %v1441
      %v1443 = vmul.f32 %v1442, 1.442695
      %v1444 = vpow.pop %v1443
      %v1445 = vsel %vm932, %v1444, 0.0
      %1446 = vadd.xlane.f32.xlu0 %v1445
      %v1447 = vpop.xlane.xlu0 %1446
      %v1448 = vrcp.pop %v1447
      %v1449 = vmul.f32 %v1444, %v1448
      %1450 = vrot.lane.b32.xlu0 %v848, 40
      %v1451 = vpop.permute.xlu0 %1450
      %v1453 = vsel %vm946, %v1449, 0
      %v1455 = vsel %vm950, %v1451, 0
      %1457 = vmatprep.subr.mxu0 0.0
      %1458 = vmatpush1.msra.mxu0 %v1455
      %1459 = vmatprep.subr.mxu0 0.0
      %1460 = vmatpush1.msra.mxu0 0.0
      %1461 = vmatprep.subr.mxu0 0.0
      %1462 = vmatpush1.msra.mxu0 0.0
      %1463 = vmatprep.subr.mxu0 0.0
      %1464 = vmatpush1.msra.mxu0 0.0
      %1465 = vmatprep.subr.mxu0 0.0
      %1466 = vmatpush1.msra.mxu0 0.0
      %1467 = vmatprep.subr.mxu0 0.0
      %1468 = vmatpush1.msra.mxu0 0.0
      %1469 = vmatprep.subr.mxu0 0.0
      %1470 = vmatpush1.msra.mxu0 0.0
      %1471 = vmatprep.subr.mxu0 0.0
      %1472 = vmatpush1.msra.mxu0 0.0
      %1473 = vmatprep.subr.mxu0 0.0
      %1474 = vmatpush1.msra.mxu0 0.0
      %1475 = vmatprep.subr.mxu0 0.0
      %1476 = vmatpush1.msra.mxu0 0.0
      %1477 = vmatprep.subr.mxu0 0.0
      %1478 = vmatpush1.msra.mxu0 0.0
      %1479 = vmatprep.subr.mxu0 0.0
      %1480 = vmatpush1.msra.mxu0 0.0
      %1481 = vmatprep.subr.mxu0 0.0
      %1482 = vmatpush1.msra.mxu0 0.0
      %1483 = vmatprep.subr.mxu0 0.0
      %1484 = vmatpush1.msra.mxu0 0.0
      %1485 = vmatprep.subr.mxu0 0.0
      %1486 = vmatpush1.msra.mxu0 0.0
      %1487 = vmatprep.subr.mxu0 0.0
      %1488 = vmatpush1.msra.mxu0 0.0
      %1489 = vmatprep.subr.mxu0 0.0
      %1490 = vmatpush1.msra.mxu0 0.0
      %1491 = vmatprep.subr.mxu0 0.0
      %1492 = vmatpush1.msra.mxu0 0.0
      %1493 = vmatprep.subr.mxu0 0.0
      %1494 = vmatpush1.msra.mxu0 0.0
      %1495 = vmatprep.subr.mxu0 0.0
      %1496 = vmatpush1.msra.mxu0 0.0
      %1497 = vmatprep.subr.mxu0 0.0
      %1498 = vmatpush1.msra.mxu0 0.0
      %1499 = vmatprep.subr.mxu0 0.0
      %1500 = vmatpush1.msra.mxu0 0.0
      %1501 = vmatprep.subr.mxu0 0.0
      %1502 = vmatpush1.msra.mxu0 0.0
      %1503 = vmatprep.subr.mxu0 0.0
      %1504 = vmatpush1.msra.mxu0 0.0
      %1505 = vmatprep.subr.mxu0 0.0
      %1506 = vmatpush1.msra.mxu0 0.0
      %1507 = vmatprep.subr.mxu0 0.0
      %1508 = vmatpush1.msra.mxu0 0.0
      %1509 = vmatprep.subr.mxu0 0.0
      %1510 = vmatpush1.msra.mxu0 0.0
      %1511 = vmatprep.subr.mxu0 0.0
      %1512 = vmatpush1.msra.mxu0 0.0
      %1513 = vmatprep.subr.mxu0 0.0
      %1514 = vmatpush1.msra.mxu0 0.0
      %1515 = vmatprep.subr.mxu0 0.0
      %1516 = vmatpush1.msra.mxu0 0.0
      %1517 = vmatprep.subr.mxu0 0.0
      %1518 = vmatpush1.msra.mxu0 0.0
      %1519 = vmatprep.subr.mxu0 0.0
      %1520 = vmatpush1.msra.mxu0 0.0
      %1521 = vmatprep.mubr.f32.mxu0 0.0
      %1522 = vmatmul.mubr.f32.gmra.mrb[0].mxu0 %v1453
      %v1523 = vpop.f32.mrb[0].mxu0
      %v1524 = vadd.f32 0.0, %v1523
      %v1525 = vpop.f32.mrb[0].mxu0
      %1526 = vdwg.mxu0
      %1528 = vrot.lane.b32.xlu0 %v1188, 8
      %v1529 = vpop.permute.xlu0 %1528
      %1532 = vrot.lane.b32.xlu0 %v1356, 16
      %v1533 = vpop.permute.xlu0 %1532
      %1536 = vrot.lane.b32.xlu0 %v1524, 24
      %v1537 = vpop.permute.xlu0 %1536
      %v1539 = vsel %vm854, %v1020, %v1529
      %vm1540 = vcmask 130048
      %v1541 = vsel %vm1540, %v1539, %v1533
      %vm1542 = vcmask 195584
      %v1543 = vsel %vm1542, %v1541, %v1537
      %v1545 = vlaneseq
      %v1546 = vshrl.u32 %v1545, 7
      %v1547 = vsub.s32 0, %v1546
      %v1548 = vrot.slane %v740, %v1547
      %v1551 = vsel %vm777, %v1543, 0
      %1553 = vmatprep.subr.mxu0 0.0
      %1554 = vmatpush1.msra.mxu0 %v736
      %1555 = vmatprep.subr.mxu0 0.0
      %1556 = vmatpush1.msra.mxu0 %v737
      %1557 = vmatprep.subr.mxu0 0.0
      %1558 = vmatpush1.msra.mxu0 %v738
      %1559 = vmatprep.subr.mxu0 0.0
      %1560 = vmatpush1.msra.mxu0 %v739
      %1561 = vmatprep.subr.mxu0 0.0
      %1562 = vmatpush1.msra.mxu0 0.0
      %1563 = vmatprep.subr.mxu0 0.0
      %1564 = vmatpush1.msra.mxu0 0.0
      %1565 = vmatprep.subr.mxu0 0.0
      %1566 = vmatpush1.msra.mxu0 0.0
      %1567 = vmatprep.subr.mxu0 0.0
      %1568 = vmatpush1.msra.mxu0 0.0
      %1569 = vmatprep.subr.mxu0 0.0
      %1570 = vmatpush1.msra.mxu0 0.0
      %1571 = vmatprep.subr.mxu0 0.0
      %1572 = vmatpush1.msra.mxu0 0.0
      %1573 = vmatprep.subr.mxu0 0.0
      %1574 = vmatpush1.msra.mxu0 0.0
      %1575 = vmatprep.subr.mxu0 0.0
      %1576 = vmatpush1.msra.mxu0 0.0
      %1577 = vmatprep.subr.mxu0 0.0
      %1578 = vmatpush1.msra.mxu0 0.0
      %1579 = vmatprep.subr.mxu0 0.0
      %1580 = vmatpush1.msra.mxu0 0.0
      %1581 = vmatprep.subr.mxu0 0.0
      %1582 = vmatpush1.msra.mxu0 0.0
      %1583 = vmatprep.subr.mxu0 0.0
      %1584 = vmatpush1.msra.mxu0 0.0
      %1585 = vmatprep.subr.mxu0 0.0
      %1586 = vmatpush1.msra.mxu0 0.0
      %1587 = vmatprep.subr.mxu0 0.0
      %1588 = vmatpush1.msra.mxu0 0.0
      %1589 = vmatprep.subr.mxu0 0.0
      %1590 = vmatpush1.msra.mxu0 0.0
      %1591 = vmatprep.subr.mxu0 0.0
      %1592 = vmatpush1.msra.mxu0 0.0
      %1593 = vmatprep.subr.mxu0 0.0
      %1594 = vmatpush1.msra.mxu0 0.0
      %1595 = vmatprep.subr.mxu0 0.0
      %1596 = vmatpush1.msra.mxu0 0.0
      %1597 = vmatprep.subr.mxu0 0.0
      %1598 = vmatpush1.msra.mxu0 0.0
      %1599 = vmatprep.subr.mxu0 0.0
      %1600 = vmatpush1.msra.mxu0 0.0
      %1601 = vmatprep.subr.mxu0 0.0
      %1602 = vmatpush1.msra.mxu0 0.0
      %1603 = vmatprep.subr.mxu0 0.0
      %1604 = vmatpush1.msra.mxu0 0.0
      %1605 = vmatprep.subr.mxu0 0.0
      %1606 = vmatpush1.msra.mxu0 0.0
      %1607 = vmatprep.subr.mxu0 0.0
      %1608 = vmatpush1.msra.mxu0 0.0
      %1609 = vmatprep.subr.mxu0 0.0
      %1610 = vmatpush1.msra.mxu0 0.0
      %1611 = vmatprep.subr.mxu0 0.0
      %1612 = vmatpush1.msra.mxu0 0.0
      %1613 = vmatprep.subr.mxu0 0.0
      %1614 = vmatpush1.msra.mxu0 0.0
      %1615 = vmatprep.subr.mxu0 0.0
      %1616 = vmatpush1.msra.mxu0 0.0
      %1617 = vmatprep.mubr.f32.mxu0 0.0
      %1618 = vmatmul.mubr.f32.gmra.mrb[0].mxu0 %v1551
      %v1619 = vpop.f32.mrb[0].mxu0
      %v1620 = vadd.f32 %v1548, %v1619
      %v1621 = vpop.f32.mrb[0].mxu0
      %1622 = vdwg.mxu0
      %v1623 = vadd.f32 %v727, %v1620
      %vm1624 = vcmask 259072
      %v1625 = vsel %vm1624, %v1623, 0.0
      %1626 = vadd.xlane.f32.xlu0 %v1625
      %v1627 = vpop.xlane.xlu0 %1626
      %v1628 = vrcp.pop 32.0
      %v1629 = vmul.f32 %v1627, %v1628
      %v1630 = vsub.f32 %v1623, %v1629
      %v1631 = vmul.f32 %v1630, %v1630
      %v1632 = vsel %vm1624, %v1631, 0.0
      %1633 = vadd.xlane.f32.xlu0 %v1632
      %v1634 = vpop.xlane.xlu0 %1633
      %v1635 = vmul.f32 %v1634, %v1628
      %v1636 = vadd.f32 %v1635, 1e-05
      %v1637 = vrsqrt.pop %v1636
      %v1638 = vmul.f32 %v1630, %v1637
      %v1640 = vlaneseq
      %v1641 = vshrl.u32 %v1640, 7
      %v1642 = vsub.s32 0, %v1641
      %v1643 = vrot.slane %v741, %v1642
      %v1645 = vmul.f32 %v1638, %v1643
      %v1647 = vlaneseq
      %v1648 = vshrl.u32 %v1647, 7
      %v1649 = vsub.s32 0, %v1648
      %v1650 = vrot.slane %v742, %v1649
      %v1652 = vadd.f32 %v1645, %v1650
      %v1654 = vlaneseq
      %v1655 = vshrl.u32 %v1654, 7
      %v1656 = vsub.s32 0, %v1655
      %v1657 = vrot.slane %v747, %v1656
      %v1660 = vsel %vm777, %v1652, 0
      %1662 = vmatprep.subr.mxu0 0.0
      %1663 = vmatpush1.msra.mxu0 %v743
      %1664 = vmatprep.subr.mxu0 0.0
      %1665 = vmatpush1.msra.mxu0 %v744
      %1666 = vmatprep.subr.mxu0 0.0
      %1667 = vmatpush1.msra.mxu0 %v745
      %1668 = vmatprep.subr.mxu0 0.0
      %1669 = vmatpush1.msra.mxu0 %v746
      %1670 = vmatprep.subr.mxu0 0.0
      %1671 = vmatpush1.msra.mxu0 0.0
      %1672 = vmatprep.subr.mxu0 0.0
      %1673 = vmatpush1.msra.mxu0 0.0
      %1674 = vmatprep.subr.mxu0 0.0
      %1675 = vmatpush1.msra.mxu0 0.0
      %1676 = vmatprep.subr.mxu0 0.0
      %1677 = vmatpush1.msra.mxu0 0.0
      %1678 = vmatprep.subr.mxu0 0.0
      %1679 = vmatpush1.msra.mxu0 0.0
      %1680 = vmatprep.subr.mxu0 0.0
      %1681 = vmatpush1.msra.mxu0 0.0
      %1682 = vmatprep.subr.mxu0 0.0
      %1683 = vmatpush1.msra.mxu0 0.0
      %1684 = vmatprep.subr.mxu0 0.0
      %1685 = vmatpush1.msra.mxu0 0.0
      %1686 = vmatprep.subr.mxu0 0.0
      %1687 = vmatpush1.msra.mxu0 0.0
      %1688 = vmatprep.subr.mxu0 0.0
      %1689 = vmatpush1.msra.mxu0 0.0
      %1690 = vmatprep.subr.mxu0 0.0
      %1691 = vmatpush1.msra.mxu0 0.0
      %1692 = vmatprep.subr.mxu0 0.0
      %1693 = vmatpush1.msra.mxu0 0.0
      %1694 = vmatprep.subr.mxu0 0.0
      %1695 = vmatpush1.msra.mxu0 0.0
      %1696 = vmatprep.subr.mxu0 0.0
      %1697 = vmatpush1.msra.mxu0 0.0
      %1698 = vmatprep.subr.mxu0 0.0
      %1699 = vmatpush1.msra.mxu0 0.0
      %1700 = vmatprep.subr.mxu0 0.0
      %1701 = vmatpush1.msra.mxu0 0.0
      %1702 = vmatprep.subr.mxu0 0.0
      %1703 = vmatpush1.msra.mxu0 0.0
      %1704 = vmatprep.subr.mxu0 0.0
      %1705 = vmatpush1.msra.mxu0 0.0
      %1706 = vmatprep.subr.mxu0 0.0
      %1707 = vmatpush1.msra.mxu0 0.0
      %1708 = vmatprep.subr.mxu0 0.0
      %1709 = vmatpush1.msra.mxu0 0.0
      %1710 = vmatprep.subr.mxu0 0.0
      %1711 = vmatpush1.msra.mxu0 0.0
      %1712 = vmatprep.subr.mxu0 0.0
      %1713 = vmatpush1.msra.mxu0 0.0
      %1714 = vmatprep.subr.mxu0 0.0
      %1715 = vmatpush1.msra.mxu0 0.0
      %1716 = vmatprep.subr.mxu0 0.0
      %1717 = vmatpush1.msra.mxu0 0.0
      %1718 = vmatprep.subr.mxu0 0.0
      %1719 = vmatpush1.msra.mxu0 0.0
      %1720 = vmatprep.subr.mxu0 0.0
      %1721 = vmatpush1.msra.mxu0 0.0
      %1722 = vmatprep.subr.mxu0 0.0
      %1723 = vmatpush1.msra.mxu0 0.0
      %1724 = vmatprep.subr.mxu0 0.0
      %1725 = vmatpush1.msra.mxu0 0.0
      %1726 = vmatprep.mubr.f32.mxu0 0.0
      %1727 = vmatmul.mubr.f32.gmra.mrb[0].mxu0 %v1660
      %v1728 = vpop.f32.mrb[0].mxu0
      %v1729 = vadd.f32 %v1657, %v1728
      %v1730 = vpop.f32.mrb[0].mxu0
      %1731 = vdwg.mxu0
      %1736 = vrot.lane.b32.xlu0 %v743, 96
      %v1737 = vpop.permute.xlu0 %1736
      %1738 = vrot.lane.b32.xlu0 %v744, 96
      %v1739 = vpop.permute.xlu0 %1738
      %1740 = vrot.lane.b32.xlu0 %v745, 96
      %v1741 = vpop.permute.xlu0 %1740
      %1742 = vrot.lane.b32.xlu0 %v746, 96
      %v1743 = vpop.permute.xlu0 %1742
      %1748 = vrot.lane.b32.xlu0 %v1657, 96
      %v1749 = vpop.permute.xlu0 %1748
      %v1752 = vsel %vm777, %v728, 0
      %1754 = vmatprep.subr.mxu0 0.0
      %1755 = vmatpush1.msra.mxu0 %v1737
      %1756 = vmatprep.subr.mxu0 0.0
      %1757 = vmatpush1.msra.mxu0 %v1739
      %1758 = vmatprep.subr.mxu0 0.0
      %1759 = vmatpush1.msra.mxu0 %v1741
      %1760 = vmatprep.subr.mxu0 0.0
      %1761 = vmatpush1.msra.mxu0 %v1743
      %1762 = vmatprep.subr.mxu0 0.0
      %1763 = vmatpush1.msra.mxu0 0.0
      %1764 = vmatprep.subr.mxu0 0.0
      %1765 = vmatpush1.msra.mxu0 0.0
      %1766 = vmatprep.subr.mxu0 0.0
      %1767 = vmatpush1.msra.mxu0 0.0
      %1768 = vmatprep.subr.mxu0 0.0
      %1769 = vmatpush1.msra.mxu0 0.0
      %1770 = vmatprep.subr.mxu0 0.0
      %1771 = vmatpush1.msra.mxu0 0.0
      %1772 = vmatprep.subr.mxu0 0.0
      %1773 = vmatpush1.msra.mxu0 0.0
      %1774 = vmatprep.subr.mxu0 0.0
      %1775 = vmatpush1.msra.mxu0 0.0
      %1776 = vmatprep.subr.mxu0 0.0
      %1777 = vmatpush1.msra.mxu0 0.0
      %1778 = vmatprep.subr.mxu0 0.0
      %1779 = vmatpush1.msra.mxu0 0.0
      %1780 = vmatprep.subr.mxu0 0.0
      %1781 = vmatpush1.msra.mxu0 0.0
      %1782 = vmatprep.subr.mxu0 0.0
      %1783 = vmatpush1.msra.mxu0 0.0
      %1784 = vmatprep.subr.mxu0 0.0
      %1785 = vmatpush1.msra.mxu0 0.0
      %1786 = vmatprep.subr.mxu0 0.0
      %1787 = vmatpush1.msra.mxu0 0.0
      %1788 = vmatprep.subr.mxu0 0.0
      %1789 = vmatpush1.msra.mxu0 0.0
      %1790 = vmatprep.subr.mxu0 0.0
      %1791 = vmatpush1.msra.mxu0 0.0
      %1792 = vmatprep.subr.mxu0 0.0
      %1793 = vmatpush1.msra.mxu0 0.0
      %1794 = vmatprep.subr.mxu0 0.0
      %1795 = vmatpush1.msra.mxu0 0.0
      %1796 = vmatprep.subr.mxu0 0.0
      %1797 = vmatpush1.msra.mxu0 0.0
      %1798 = vmatprep.subr.mxu0 0.0
      %1799 = vmatpush1.msra.mxu0 0.0
      %1800 = vmatprep.subr.mxu0 0.0
      %1801 = vmatpush1.msra.mxu0 0.0
      %1802 = vmatprep.subr.mxu0 0.0
      %1803 = vmatpush1.msra.mxu0 0.0
      %1804 = vmatprep.subr.mxu0 0.0
      %1805 = vmatpush1.msra.mxu0 0.0
      %1806 = vmatprep.subr.mxu0 0.0
      %1807 = vmatpush1.msra.mxu0 0.0
      %1808 = vmatprep.subr.mxu0 0.0
      %1809 = vmatpush1.msra.mxu0 0.0
      %1810 = vmatprep.subr.mxu0 0.0
      %1811 = vmatpush1.msra.mxu0 0.0
      %1812 = vmatprep.subr.mxu0 0.0
      %1813 = vmatpush1.msra.mxu0 0.0
      %1814 = vmatprep.subr.mxu0 0.0
      %1815 = vmatpush1.msra.mxu0 0.0
      %1816 = vmatprep.subr.mxu0 0.0
      %1817 = vmatpush1.msra.mxu0 0.0
      %1818 = vmatprep.mubr.f32.mxu0 0.0
      %1819 = vmatmul.mubr.f32.gmra.mrb[0].mxu0 %v1752
      %v1820 = vpop.f32.mrb[0].mxu0
      %v1821 = vadd.f32 %v1749, %v1820
      %v1822 = vpop.f32.mrb[0].mxu0
      %1823 = vdwg.mxu0
      %v1825 = vsel %vm854, %v1729, 0
      %v1828 = vsel %vm854, %v1821, 0
      %1830 = vmatprep.subr.mxu0 0.0
      %1831 = vmatpush1.xpose.msra.mxu0 %v1828
      %1832 = vmatprep.subr.mxu0 0.0
      %1833 = vmatpush1.xpose.msra.mxu0 0.0
      %1834 = vmatprep.subr.mxu0 0.0
      %1835 = vmatpush1.xpose.msra.mxu0 0.0
      %1836 = vmatprep.subr.mxu0 0.0
      %1837 = vmatpush1.xpose.msra.mxu0 0.0
      %1838 = vmatprep.subr.mxu0 0.0
      %1839 = vmatpush1.xpose.msra.mxu0 0.0
      %1840 = vmatprep.subr.mxu0 0.0
      %1841 = vmatpush1.xpose.msra.mxu0 0.0
      %1842 = vmatprep.subr.mxu0 0.0
      %1843 = vmatpush1.xpose.msra.mxu0 0.0
      %1844 = vmatprep.subr.mxu0 0.0
      %1845 = vmatpush1.xpose.msra.mxu0 0.0
      %1846 = vmatprep.subr.mxu0 0.0
      %1847 = vmatpush1.xpose.msra.mxu0 0.0
      %1848 = vmatprep.subr.mxu0 0.0
      %1849 = vmatpush1.xpose.msra.mxu0 0.0
      %1850 = vmatprep.subr.mxu0 0.0
      %1851 = vmatpush1.xpose.msra.mxu0 0.0
      %1852 = vmatprep.subr.mxu0 0.0
      %1853 = vmatpush1.xpose.msra.mxu0 0.0
      %1854 = vmatprep.subr.mxu0 0.0
      %1855 = vmatpush1.xpose.msra.mxu0 0.0
      %1856 = vmatprep.subr.mxu0 0.0
      %1857 = vmatpush1.xpose.msra.mxu0 0.0
      %1858 = vmatprep.subr.mxu0 0.0
      %1859 = vmatpush1.xpose.msra.mxu0 0.0
      %1860 = vmatprep.subr.mxu0 0.0
      %1861 = vmatpush1.xpose.msra.mxu0 0.0
      %1862 = vmatprep.subr.mxu0 0.0
      %1863 = vmatpush1.xpose.msra.mxu0 0.0
      %1864 = vmatprep.subr.mxu0 0.0
      %1865 = vmatpush1.xpose.msra.mxu0 0.0
      %1866 = vmatprep.subr.mxu0 0.0
      %1867 = vmatpush1.xpose.msra.mxu0 0.0
      %1868 = vmatprep.subr.mxu0 0.0
      %1869 = vmatpush1.xpose.msra.mxu0 0.0
      %1870 = vmatprep.subr.mxu0 0.0
      %1871 = vmatpush1.xpose.msra.mxu0 0.0
      %1872 = vmatprep.subr.mxu0 0.0
      %1873 = vmatpush1.xpose.msra.mxu0 0.0
      %1874 = vmatprep.subr.mxu0 0.0
      %1875 = vmatpush1.xpose.msra.mxu0 0.0
      %1876 = vmatprep.subr.mxu0 0.0
      %1877 = vmatpush1.xpose.msra.mxu0 0.0
      %1878 = vmatprep.subr.mxu0 0.0
      %1879 = vmatpush1.xpose.msra.mxu0 0.0
      %1880 = vmatprep.subr.mxu0 0.0
      %1881 = vmatpush1.xpose.msra.mxu0 0.0
      %1882 = vmatprep.subr.mxu0 0.0
      %1883 = vmatpush1.xpose.msra.mxu0 0.0
      %1884 = vmatprep.subr.mxu0 0.0
      %1885 = vmatpush1.xpose.msra.mxu0 0.0
      %1886 = vmatprep.subr.mxu0 0.0
      %1887 = vmatpush1.xpose.msra.mxu0 0.0
      %1888 = vmatprep.subr.mxu0 0.0
      %1889 = vmatpush1.xpose.msra.mxu0 0.0
      %1890 = vmatprep.subr.mxu0 0.0
      %1891 = vmatpush1.xpose.msra.mxu0 0.0
      %1892 = vmatprep.subr.mxu0 0.0
      %1893 = vmatpush1.xpose.msra.mxu0 0.0
      %1894 = vmatprep.mubr.f32.mxu0 0.0
      %1895 = vmatmul.mubr.f32.gmra.mrb[0].mxu0 %v1825
      %v1896 = vpop.f32.mrb[0].mxu0
      %v1897 = vadd.f32 0.0, %v1896
      %v1898 = vpop.f32.mrb[0].mxu0
      %1899 = vdwg.mxu0
      %v1900 = vmul.f32 %v1897, 0.35355338
      %vm1901 = vcmp.gt.s32.totalorder %v730, 0
      %v1902 = vsel %vm1901, 1, 0
      %v1903 = vlaneseq
      %v1904 = vshrl.u32 %v1903, 7
      %v1905 = vsub.s32 0, %v1904
      %v1906 = vrot.slane %v1902, %v1905
      %vm1907 = vcmp.eq.s32.totalorder %v1906, 1
      %v1908 = vsel %vm1907, %v1900, -1e+10
      %vm1909 = vcmask 62464
      %v1910 = vsel %vm1909, %v1908, -inf
      %1911 = vmax.xlane.f32.xlu0 %v1910
      %v1912 = vpop.xlane.xlu0 %1911
      %v1913 = vsub.f32 %v1908, %v1912
      %v1914 = vmul.f32 %v1913, 1.442695
      %v1915 = vpow.pop %v1914
      %v1916 = vsel %vm1909, %v1915, 0.0
      %1917 = vadd.xlane.f32.xlu0 %v1916
      %v1918 = vpop.xlane.xlu0 %1917
      %v1919 = vrcp.pop %v1918
      %v1920 = vmul.f32 %v1915, %v1919
      %1921 = vrot.lane.b32.xlu0 %v1821, 96
      %v1922 = vpop.permute.xlu0 %1921
      %v1925 = vsel %vm854, %v1920, 0
      %1927 = vmatprep.subr.mxu0 0.0
      %1928 = vmatpush1.msra.mxu0 %v1922
      %1929 = vmatprep.subr.mxu0 0.0
      %1930 = vmatpush1.msra.mxu0 0.0
      %1931 = vmatprep.subr.mxu0 0.0
      %1932 = vmatpush1.msra.mxu0 0.0
      %1933 = vmatprep.subr.mxu0 0.0
      %1934 = vmatpush1.msra.mxu0 0.0
      %1935 = vmatprep.subr.mxu0 0.0
      %1936 = vmatpush1.msra.mxu0 0.0
      %1937 = vmatprep.subr.mxu0 0.0
      %1938 = vmatpush1.msra.mxu0 0.0
      %1939 = vmatprep.subr.mxu0 0.0
      %1940 = vmatpush1.msra.mxu0 0.0
      %1941 = vmatprep.subr.mxu0 0.0
      %1942 = vmatpush1.msra.mxu0 0.0
      %1943 = vmatprep.subr.mxu0 0.0
      %1944 = vmatpush1.msra.mxu0 0.0
      %1945 = vmatprep.subr.mxu0 0.0
      %1946 = vmatpush1.msra.mxu0 0.0
      %1947 = vmatprep.subr.mxu0 0.0
      %1948 = vmatpush1.msra.mxu0 0.0
      %1949 = vmatprep.subr.mxu0 0.0
      %1950 = vmatpush1.msra.mxu0 0.0
      %1951 = vmatprep.subr.mxu0 0.0
      %1952 = vmatpush1.msra.mxu0 0.0
      %1953 = vmatprep.subr.mxu0 0.0
      %1954 = vmatpush1.msra.mxu0 0.0
      %1955 = vmatprep.subr.mxu0 0.0
      %1956 = vmatpush1.msra.mxu0 0.0
      %1957 = vmatprep.subr.mxu0 0.0
      %1958 = vmatpush1.msra.mxu0 0.0
      %1959 = vmatprep.subr.mxu0 0.0
      %1960 = vmatpush1.msra.mxu0 0.0
      %1961 = vmatprep.subr.mxu0 0.0
      %1962 = vmatpush1.msra.mxu0 0.0
      %1963 = vmatprep.subr.mxu0 0.0
      %1964 = vmatpush1.msra.mxu0 0.0
      %1965 = vmatprep.subr.mxu0 0.0
      %1966 = vmatpush1.msra.mxu0 0.0
      %1967 = vmatprep.subr.mxu0 0.0
      %1968 = vmatpush1.msra.mxu0 0.0
      %1969 = vmatprep.subr.mxu0 0.0
      %1970 = vmatpush1.msra.mxu0 0.0
      %1971 = vmatprep.subr.mxu0 0.0
      %1972 = vmatpush1.msra.mxu0 0.0
      %1973 = vmatprep.subr.mxu0 0.0
      %1974 = vmatpush1.msra.mxu0 0.0
      %1975 = vmatprep.subr.mxu0 0.0
      %1976 = vmatpush1.msra.mxu0 0.0
      %1977 = vmatprep.subr.mxu0 0.0
      %1978 = vmatpush1.msra.mxu0 0.0
      %1979 = vmatprep.subr.mxu0 0.0
      %1980 = vmatpush1.msra.mxu0 0.0
      %1981 = vmatprep.subr.mxu0 0.0
      %1982 = vmatpush1.msra.mxu0 0.0
      %1983 = vmatprep.subr.mxu0 0.0
      %1984 = vmatpush1.msra.mxu0 0.0
      %1985 = vmatprep.subr.mxu0 0.0
      %1986 = vmatpush1.msra.mxu0 0.0
      %1987 = vmatprep.subr.mxu0 0.0
      %1988 = vmatpush1.msra.mxu0 0.0
      %1989 = vmatprep.subr.mxu0 0.0
      %1990 = vmatpush1.msra.mxu0 0.0
      %1991 = vmatprep.mubr.f32.mxu0 0.0
      %1992 = vmatmul.mubr.f32.gmra.mrb[0].mxu0 %v1925
      %v1993 = vpop.f32.mrb[0].mxu0
      %v1994 = vadd.f32 0.0, %v1993
      %v1995 = vpop.f32.mrb[0].mxu0
      %1996 = vdwg.mxu0
      %1997 = vrot.lane.b32.xlu0 %v1729, 120
      %v1998 = vpop.permute.xlu0 %1997
      %1999 = vrot.lane.b32.xlu0 %v1821, 120
      %v2000 = vpop.permute.xlu0 %1999
      %v2001 = vsel %vm854, %v1998, 0
      %v2003 = vsel %vm854, %v2000, 0
      %2005 = vmatprep.subr.mxu0 0.0
      %2006 = vmatpush1.xpose.msra.mxu0 %v2003
      %2007 = vmatprep.subr.mxu0 0.0
      %2008 = vmatpush1.xpose.msra.mxu0 0.0
      %2009 = vmatprep.subr.mxu0 0.0
      %2010 = vmatpush1.xpose.msra.mxu0 0.0
      %2011 = vmatprep.subr.mxu0 0.0
      %2012 = vmatpush1.xpose.msra.mxu0 0.0
      %2013 = vmatprep.subr.mxu0 0.0
      %2014 = vmatpush1.xpose.msra.mxu0 0.0
      %2015 = vmatprep.subr.mxu0 0.0
      %2016 = vmatpush1.xpose.msra.mxu0 0.0
      %2017 = vmatprep.subr.mxu0 0.0
      %2018 = vmatpush1.xpose.msra.mxu0 0.0
      %2019 = vmatprep.subr.mxu0 0.0
      %2020 = vmatpush1.xpose.msra.mxu0 0.0
      %2021 = vmatprep.subr.mxu0 0.0
      %2022 = vmatpush1.xpose.msra.mxu0 0.0
      %2023 = vmatprep.subr.mxu0 0.0
      %2024 = vmatpush1.xpose.msra.mxu0 0.0
      %2025 = vmatprep.subr.mxu0 0.0
      %2026 = vmatpush1.xpose.msra.mxu0 0.0
      %2027 = vmatprep.subr.mxu0 0.0
      %2028 = vmatpush1.xpose.msra.mxu0 0.0
      %2029 = vmatprep.subr.mxu0 0.0
      %2030 = vmatpush1.xpose.msra.mxu0 0.0
      %2031 = vmatprep.subr.mxu0 0.0
      %2032 = vmatpush1.xpose.msra.mxu0 0.0
      %2033 = vmatprep.subr.mxu0 0.0
      %2034 = vmatpush1.xpose.msra.mxu0 0.0
      %2035 = vmatprep.subr.mxu0 0.0
      %2036 = vmatpush1.xpose.msra.mxu0 0.0
      %2037 = vmatprep.subr.mxu0 0.0
      %2038 = vmatpush1.xpose.msra.mxu0 0.0
      %2039 = vmatprep.subr.mxu0 0.0
      %2040 = vmatpush1.xpose.msra.mxu0 0.0
      %2041 = vmatprep.subr.mxu0 0.0
      %2042 = vmatpush1.xpose.msra.mxu0 0.0
      %2043 = vmatprep.subr.mxu0 0.0
      %2044 = vmatpush1.xpose.msra.mxu0 0.0
      %2045 = vmatprep.subr.mxu0 0.0
      %2046 = vmatpush1.xpose.msra.mxu0 0.0
      %2047 = vmatprep.subr.mxu0 0.0
      %2048 = vmatpush1.xpose.msra.mxu0 0.0
      %2049 = vmatprep.subr.mxu0 0.0
      %2050 = vmatpush1.xpose.msra.mxu0 0.0
      %2051 = vmatprep.subr.mxu0 0.0
      %2052 = vmatpush1.xpose.msra.mxu0 0.0
      %2053 = vmatprep.subr.mxu0 0.0
      %2054 = vmatpush1.xpose.msra.mxu0 0.0
      %2055 = vmatprep.subr.mxu0 0.0
      %2056 = vmatpush1.xpose.msra.mxu0 0.0
      %2057 = vmatprep.subr.mxu0 0.0
      %2058 = vmatpush1.xpose.msra.mxu0 0.0
      %2059 = vmatprep.subr.mxu0 0.0
      %2060 = vmatpush1.xpose.msra.mxu0 0.0
      %2061 = vmatprep.subr.mxu0 0.0
      %2062 = vmatpush1.xpose.msra.mxu0 0.0
      %2063 = vmatprep.subr.mxu0 0.0
      %2064 = vmatpush1.xpose.msra.mxu0 0.0
      %2065 = vmatprep.subr.mxu0 0.0
      %2066 = vmatpush1.xpose.msra.mxu0 0.0
      %2067 = vmatprep.subr.mxu0 0.0
      %2068 = vmatpush1.xpose.msra.mxu0 0.0
      %2069 = vmatprep.mubr.f32.mxu0 0.0
      %2070 = vmatmul.mubr.f32.gmra.mrb[0].mxu0 %v2001
      %v2071 = vpop.f32.mrb[0].mxu0
      %v2072 = vadd.f32 0.0, %v2071
      %v2073 = vpop.f32.mrb[0].mxu0
      %2074 = vdwg.mxu0
      %v2075 = vmul.f32 %v2072, 0.35355338
      %v2076 = vsel %vm1907, %v2075, -1e+10
      %v2077 = vsel %vm1909, %v2076, -inf
      %2078 = vmax.xlane.f32.xlu0 %v2077
      %v2079 = vpop.xlane.xlu0 %2078
      %v2080 = vsub.f32 %v2076, %v2079
      %v2081 = vmul.f32 %v2080, 1.442695
      %v2082 = vpow.pop %v2081
      %v2083 = vsel %vm1909, %v2082, 0.0
      %2084 = vadd.xlane.f32.xlu0 %v2083
      %v2085 = vpop.xlane.xlu0 %2084
      %v2086 = vrcp.pop %v2085
      %v2087 = vmul.f32 %v2082, %v2086
      %2088 = vrot.lane.b32.xlu0 %v1821, 88
      %v2089 = vpop.permute.xlu0 %2088
      %v2092 = vsel %vm854, %v2087, 0
      %2094 = vmatprep.subr.mxu0 0.0
      %2095 = vmatpush1.msra.mxu0 %v2089
      %2096 = vmatprep.subr.mxu0 0.0
      %2097 = vmatpush1.msra.mxu0 0.0
      %2098 = vmatprep.subr.mxu0 0.0
      %2099 = vmatpush1.msra.mxu0 0.0
      %2100 = vmatprep.subr.mxu0 0.0
      %2101 = vmatpush1.msra.mxu0 0.0
      %2102 = vmatprep.subr.mxu0 0.0
      %2103 = vmatpush1.msra.mxu0 0.0
      %2104 = vmatprep.subr.mxu0 0.0
      %2105 = vmatpush1.msra.mxu0 0.0
      %2106 = vmatprep.subr.mxu0 0.0
      %2107 = vmatpush1.msra.mxu0 0.0
      %2108 = vmatprep.subr.mxu0 0.0
      %2109 = vmatpush1.msra.mxu0 0.0
      %2110 = vmatprep.subr.mxu0 0.0
      %2111 = vmatpush1.msra.mxu0 0.0
      %2112 = vmatprep.subr.mxu0 0.0
      %2113 = vmatpush1.msra.mxu0 0.0
      %2114 = vmatprep.subr.mxu0 0.0
      %2115 = vmatpush1.msra.mxu0 0.0
      %2116 = vmatprep.subr.mxu0 0.0
      %2117 = vmatpush1.msra.mxu0 0.0
      %2118 = vmatprep.subr.mxu0 0.0
      %2119 = vmatpush1.msra.mxu0 0.0
      %2120 = vmatprep.subr.mxu0 0.0
      %2121 = vmatpush1.msra.mxu0 0.0
      %2122 = vmatprep.subr.mxu0 0.0
      %2123 = vmatpush1.msra.mxu0 0.0
      %2124 = vmatprep.subr.mxu0 0.0
      %2125 = vmatpush1.msra.mxu0 0.0
      %2126 = vmatprep.subr.mxu0 0.0
      %2127 = vmatpush1.msra.mxu0 0.0
      %2128 = vmatprep.subr.mxu0 0.0
      %2129 = vmatpush1.msra.mxu0 0.0
      %2130 = vmatprep.subr.mxu0 0.0
      %2131 = vmatpush1.msra.mxu0 0.0
      %2132 = vmatprep.subr.mxu0 0.0
      %2133 = vmatpush1.msra.mxu0 0.0
      %2134 = vmatprep.subr.mxu0 0.0
      %2135 = vmatpush1.msra.mxu0 0.0
      %2136 = vmatprep.subr.mxu0 0.0
      %2137 = vmatpush1.msra.mxu0 0.0
      %2138 = vmatprep.subr.mxu0 0.0
      %2139 = vmatpush1.msra.mxu0 0.0
      %2140 = vmatprep.subr.mxu0 0.0
      %2141 = vmatpush1.msra.mxu0 0.0
      %2142 = vmatprep.subr.mxu0 0.0
      %2143 = vmatpush1.msra.mxu0 0.0
      %2144 = vmatprep.subr.mxu0 0.0
      %2145 = vmatpush1.msra.mxu0 0.0
      %2146 = vmatprep.subr.mxu0 0.0
      %2147 = vmatpush1.msra.mxu0 0.0
      %2148 = vmatprep.subr.mxu0 0.0
      %2149 = vmatpush1.msra.mxu0 0.0
      %2150 = vmatprep.subr.mxu0 0.0
      %2151 = vmatpush1.msra.mxu0 0.0
      %2152 = vmatprep.subr.mxu0 0.0
      %2153 = vmatpush1.msra.mxu0 0.0
      %2154 = vmatprep.subr.mxu0 0.0
      %2155 = vmatpush1.msra.mxu0 0.0
      %2156 = vmatprep.subr.mxu0 0.0
      %2157 = vmatpush1.msra.mxu0 0.0
      %2158 = vmatprep.mubr.f32.mxu0 0.0
      %2159 = vmatmul.mubr.f32.gmra.mrb[0].mxu0 %v2092
      %v2160 = vpop.f32.mrb[0].mxu0
      %v2161 = vadd.f32 0.0, %v2160
      %v2162 = vpop.f32.mrb[0].mxu0
      %2163 = vdwg.mxu0
      %2164 = vrot.lane.b32.xlu0 %v1729, 112
      %v2165 = vpop.permute.xlu0 %2164
      %2166 = vrot.lane.b32.xlu0 %v1821, 112
      %v2167 = vpop.permute.xlu0 %2166
      %v2168 = vsel %vm854, %v2165, 0
      %v2170 = vsel %vm854, %v2167, 0
      %2172 = vmatprep.subr.mxu0 0.0
      %2173 = vmatpush1.xpose.msra.mxu0 %v2170
      %2174 = vmatprep.subr.mxu0 0.0
      %2175 = vmatpush1.xpose.msra.mxu0 0.0
      %2176 = vmatprep.subr.mxu0 0.0
      %2177 = vmatpush1.xpose.msra.mxu0 0.0
      %2178 = vmatprep.subr.mxu0 0.0
      %2179 = vmatpush1.xpose.msra.mxu0 0.0
      %2180 = vmatprep.subr.mxu0 0.0
      %2181 = vmatpush1.xpose.msra.mxu0 0.0
      %2182 = vmatprep.subr.mxu0 0.0
      %2183 = vmatpush1.xpose.msra.mxu0 0.0
      %2184 = vmatprep.subr.mxu0 0.0
      %2185 = vmatpush1.xpose.msra.mxu0 0.0
      %2186 = vmatprep.subr.mxu0 0.0
      %2187 = vmatpush1.xpose.msra.mxu0 0.0
      %2188 = vmatprep.subr.mxu0 0.0
      %2189 = vmatpush1.xpose.msra.mxu0 0.0
      %2190 = vmatprep.subr.mxu0 0.0
      %2191 = vmatpush1.xpose.msra.mxu0 0.0
      %2192 = vmatprep.subr.mxu0 0.0
      %2193 = vmatpush1.xpose.msra.mxu0 0.0
      %2194 = vmatprep.subr.mxu0 0.0
      %2195 = vmatpush1.xpose.msra.mxu0 0.0
      %2196 = vmatprep.subr.mxu0 0.0
      %2197 = vmatpush1.xpose.msra.mxu0 0.0
      %2198 = vmatprep.subr.mxu0 0.0
      %2199 = vmatpush1.xpose.msra.mxu0 0.0
      %2200 = vmatprep.subr.mxu0 0.0
      %2201 = vmatpush1.xpose.msra.mxu0 0.0
      %2202 = vmatprep.subr.mxu0 0.0
      %2203 = vmatpush1.xpose.msra.mxu0 0.0
      %2204 = vmatprep.subr.mxu0 0.0
      %2205 = vmatpush1.xpose.msra.mxu0 0.0
      %2206 = vmatprep.subr.mxu0 0.0
      %2207 = vmatpush1.xpose.msra.mxu0 0.0
      %2208 = vmatprep.subr.mxu0 0.0
      %2209 = vmatpush1.xpose.msra.mxu0 0.0
      %2210 = vmatprep.subr.mxu0 0.0
      %2211 = vmatpush1.xpose.msra.mxu0 0.0
      %2212 = vmatprep.subr.mxu0 0.0
      %2213 = vmatpush1.xpose.msra.mxu0 0.0
      %2214 = vmatprep.subr.mxu0 0.0
      %2215 = vmatpush1.xpose.msra.mxu0 0.0
      %2216 = vmatprep.subr.mxu0 0.0
      %2217 = vmatpush1.xpose.msra.mxu0 0.0
      %2218 = vmatprep.subr.mxu0 0.0
      %2219 = vmatpush1.xpose.msra.mxu0 0.0
      %2220 = vmatprep.subr.mxu0 0.0
      %2221 = vmatpush1.xpose.msra.mxu0 0.0
      %2222 = vmatprep.subr.mxu0 0.0
      %2223 = vmatpush1.xpose.msra.mxu0 0.0
      %2224 = vmatprep.subr.mxu0 0.0
      %2225 = vmatpush1.xpose.msra.mxu0 0.0
      %2226 = vmatprep.subr.mxu0 0.0
      %2227 = vmatpush1.xpose.msra.mxu0 0.0
      %2228 = vmatprep.subr.mxu0 0.0
      %2229 = vmatpush1.xpose.msra.mxu0 0.0
      %2230 = vmatprep.subr.mxu0 0.0
      %2231 = vmatpush1.xpose.msra.mxu0 0.0
      %2232 = vmatprep.subr.mxu0 0.0
      %2233 = vmatpush1.xpose.msra.mxu0 0.0
      %2234 = vmatprep.subr.mxu0 0.0
      %2235 = vmatpush1.xpose.msra.mxu0 0.0
      %2236 = vmatprep.mubr.f32.mxu0 0.0
      %2237 = vmatmul.mubr.f32.gmra.mrb[0].mxu0 %v2168
      %v2238 = vpop.f32.mrb[0].mxu0
      %v2239 = vadd.f32 0.0, %v2238
      %v2240 = vpop.f32.mrb[0].mxu0
      %2241 = vdwg.mxu0
      %v2242 = vmul.f32 %v2239, 0.35355338
      %v2243 = vsel %vm1907, %v2242, -1e+10
      %v2244 = vsel %vm1909, %v2243, -inf
      %2245 = vmax.xlane.f32.xlu0 %v2244
      %v2246 = vpop.xlane.xlu0 %2245
      %v2247 = vsub.f32 %v2243, %v2246
      %v2248 = vmul.f32 %v2247, 1.442695
      %v2249 = vpow.pop %v2248
      %v2250 = vsel %vm1909, %v2249, 0.0
      %2251 = vadd.xlane.f32.xlu0 %v2250
      %v2252 = vpop.xlane.xlu0 %2251
      %v2253 = vrcp.pop %v2252
      %v2254 = vmul.f32 %v2249, %v2253
      %2255 = vrot.lane.b32.xlu0 %v1821, 80
      %v2256 = vpop.permute.xlu0 %2255
      %v2259 = vsel %vm854, %v2254, 0
      %2261 = vmatprep.subr.mxu0 0.0
      %2262 = vmatpush1.msra.mxu0 %v2256
      %2263 = vmatprep.subr.mxu0 0.0
      %2264 = vmatpush1.msra.mxu0 0.0
      %2265 = vmatprep.subr.mxu0 0.0
      %2266 = vmatpush1.msra.mxu0 0.0
      %2267 = vmatprep.subr.mxu0 0.0
      %2268 = vmatpush1.msra.mxu0 0.0
      %2269 = vmatprep.subr.mxu0 0.0
      %2270 = vmatpush1.msra.mxu0 0.0
      %2271 = vmatprep.subr.mxu0 0.0
      %2272 = vmatpush1.msra.mxu0 0.0
      %2273 = vmatprep.subr.mxu0 0.0
      %2274 = vmatpush1.msra.mxu0 0.0
      %2275 = vmatprep.subr.mxu0 0.0
      %2276 = vmatpush1.msra.mxu0 0.0
      %2277 = vmatprep.subr.mxu0 0.0
      %2278 = vmatpush1.msra.mxu0 0.0
      %2279 = vmatprep.subr.mxu0 0.0
      %2280 = vmatpush1.msra.mxu0 0.0
      %2281 = vmatprep.subr.mxu0 0.0
      %2282 = vmatpush1.msra.mxu0 0.0
      %2283 = vmatprep.subr.mxu0 0.0
      %2284 = vmatpush1.msra.mxu0 0.0
      %2285 = vmatprep.subr.mxu0 0.0
      %2286 = vmatpush1.msra.mxu0 0.0
      %2287 = vmatprep.subr.mxu0 0.0
      %2288 = vmatpush1.msra.mxu0 0.0
      %2289 = vmatprep.subr.mxu0 0.0
      %2290 = vmatpush1.msra.mxu0 0.0
      %2291 = vmatprep.subr.mxu0 0.0
      %2292 = vmatpush1.msra.mxu0 0.0
      %2293 = vmatprep.subr.mxu0 0.0
      %2294 = vmatpush1.msra.mxu0 0.0
      %2295 = vmatprep.subr.mxu0 0.0
      %2296 = vmatpush1.msra.mxu0 0.0
      %2297 = vmatprep.subr.mxu0 0.0
      %2298 = vmatpush1.msra.mxu0 0.0
      %2299 = vmatprep.subr.mxu0 0.0
      %2300 = vmatpush1.msra.mxu0 0.0
      %2301 = vmatprep.subr.mxu0 0.0
      %2302 = vmatpush1.msra.mxu0 0.0
      %2303 = vmatprep.subr.mxu0 0.0
      %2304 = vmatpush1.msra.mxu0 0.0
      %2305 = vmatprep.subr.mxu0 0.0
      %2306 = vmatpush1.msra.mxu0 0.0
      %2307 = vmatprep.subr.mxu0 0.0
      %2308 = vmatpush1.msra.mxu0 0.0
      %2309 = vmatprep.subr.mxu0 0.0
      %2310 = vmatpush1.msra.mxu0 0.0
      %2311 = vmatprep.subr.mxu0 0.0
      %2312 = vmatpush1.msra.mxu0 0.0
      %2313 = vmatprep.subr.mxu0 0.0
      %2314 = vmatpush1.msra.mxu0 0.0
      %2315 = vmatprep.subr.mxu0 0.0
      %2316 = vmatpush1.msra.mxu0 0.0
      %2317 = vmatprep.subr.mxu0 0.0
      %2318 = vmatpush1.msra.mxu0 0.0
      %2319 = vmatprep.subr.mxu0 0.0
      %2320 = vmatpush1.msra.mxu0 0.0
      %2321 = vmatprep.subr.mxu0 0.0
      %2322 = vmatpush1.msra.mxu0 0.0
      %2323 = vmatprep.subr.mxu0 0.0
      %2324 = vmatpush1.msra.mxu0 0.0
      %2325 = vmatprep.mubr.f32.mxu0 0.0
      %2326 = vmatmul.mubr.f32.gmra.mrb[0].mxu0 %v2259
      %v2327 = vpop.f32.mrb[0].mxu0
      %v2328 = vadd.f32 0.0, %v2327
      %v2329 = vpop.f32.mrb[0].mxu0
      %2330 = vdwg.mxu0
      %2331 = vrot.lane.b32.xlu0 %v1729, 104
      %v2332 = vpop.permute.xlu0 %2331
      %2333 = vrot.lane.b32.xlu0 %v1821, 104
      %v2334 = vpop.permute.xlu0 %2333
      %v2335 = vsel %vm854, %v2332, 0
      %v2337 = vsel %vm854, %v2334, 0
      %2339 = vmatprep.subr.mxu0 0.0
      %2340 = vmatpush1.xpose.msra.mxu0 %v2337
      %2341 = vmatprep.subr.mxu0 0.0
      %2342 = vmatpush1.xpose.msra.mxu0 0.0
      %2343 = vmatprep.subr.mxu0 0.0
      %2344 = vmatpush1.xpose.msra.mxu0 0.0
      %2345 = vmatprep.subr.mxu0 0.0
      %2346 = vmatpush1.xpose.msra.mxu0 0.0
      %2347 = vmatprep.subr.mxu0 0.0
      %2348 = vmatpush1.xpose.msra.mxu0 0.0
      %2349 = vmatprep.subr.mxu0 0.0
      %2350 = vmatpush1.xpose.msra.mxu0 0.0
      %2351 = vmatprep.subr.mxu0 0.0
      %2352 = vmatpush1.xpose.msra.mxu0 0.0
      %2353 = vmatprep.subr.mxu0 0.0
      %2354 = vmatpush1.xpose.msra.mxu0 0.0
      %2355 = vmatprep.subr.mxu0 0.0
      %2356 = vmatpush1.xpose.msra.mxu0 0.0
      %2357 = vmatprep.subr.mxu0 0.0
      %2358 = vmatpush1.xpose.msra.mxu0 0.0
      %2359 = vmatprep.subr.mxu0 0.0
      %2360 = vmatpush1.xpose.msra.mxu0 0.0
      %2361 = vmatprep.subr.mxu0 0.0
      %2362 = vmatpush1.xpose.msra.mxu0 0.0
      %2363 = vmatprep.subr.mxu0 0.0
      %2364 = vmatpush1.xpose.msra.mxu0 0.0
      %2365 = vmatprep.subr.mxu0 0.0
      %2366 = vmatpush1.xpose.msra.mxu0 0.0
      %2367 = vmatprep.subr.mxu0 0.0
      %2368 = vmatpush1.xpose.msra.mxu0 0.0
      %2369 = vmatprep.subr.mxu0 0.0
      %2370 = vmatpush1.xpose.msra.mxu0 0.0
      %2371 = vmatprep.subr.mxu0 0.0
      %2372 = vmatpush1.xpose.msra.mxu0 0.0
      %2373 = vmatprep.subr.mxu0 0.0
      %2374 = vmatpush1.xpose.msra.mxu0 0.0
      %2375 = vmatprep.subr.mxu0 0.0
      %2376 = vmatpush1.xpose.msra.mxu0 0.0
      %2377 = vmatprep.subr.mxu0 0.0
      %2378 = vmatpush1.xpose.msra.mxu0 0.0
      %2379 = vmatprep.subr.mxu0 0.0
      %2380 = vmatpush1.xpose.msra.mxu0 0.0
      %2381 = vmatprep.subr.mxu0 0.0
      %2382 = vmatpush1.xpose.msra.mxu0 0.0
      %2383 = vmatprep.subr.mxu0 0.0
      %2384 = vmatpush1.xpose.msra.mxu0 0.0
      %2385 = vmatprep.subr.mxu0 0.0
      %2386 = vmatpush1.xpose.msra.mxu0 0.0
      %2387 = vmatprep.subr.mxu0 0.0
      %2388 = vmatpush1.xpose.msra.mxu0 0.0
      %2389 = vmatprep.subr.mxu0 0.0
      %2390 = vmatpush1.xpose.msra.mxu0 0.0
      %2391 = vmatprep.subr.mxu0 0.0
      %2392 = vmatpush1.xpose.msra.mxu0 0.0
      %2393 = vmatprep.subr.mxu0 0.0
      %2394 = vmatpush1.xpose.msra.mxu0 0.0
      %2395 = vmatprep.subr.mxu0 0.0
      %2396 = vmatpush1.xpose.msra.mxu0 0.0
      %2397 = vmatprep.subr.mxu0 0.0
      %2398 = vmatpush1.xpose.msra.mxu0 0.0
      %2399 = vmatprep.subr.mxu0 0.0
      %2400 = vmatpush1.xpose.msra.mxu0 0.0
      %2401 = vmatprep.subr.mxu0 0.0
      %2402 = vmatpush1.xpose.msra.mxu0 0.0
      %2403 = vmatprep.mubr.f32.mxu0 0.0
      %2404 = vmatmul.mubr.f32.gmra.mrb[0].mxu0 %v2335
      %v2405 = vpop.f32.mrb[0].mxu0
      %v2406 = vadd.f32 0.0, %v2405
      %v2407 = vpop.f32.mrb[0].mxu0
      %2408 = vdwg.mxu0
      %v2409 = vmul.f32 %v2406, 0.35355338
      %v2410 = vsel %vm1907, %v2409, -1e+10
      %v2411 = vsel %vm1909, %v2410, -inf
      %2412 = vmax.xlane.f32.xlu0 %v2411
      %v2413 = vpop.xlane.xlu0 %2412
      %v2414 = vsub.f32 %v2410, %v2413
      %v2415 = vmul.f32 %v2414, 1.442695
      %v2416 = vpow.pop %v2415
      %v2417 = vsel %vm1909, %v2416, 0.0
      %2418 = vadd.xlane.f32.xlu0 %v2417
      %v2419 = vpop.xlane.xlu0 %2418
      %v2420 = vrcp.pop %v2419
      %v2421 = vmul.f32 %v2416, %v2420
      %2422 = vrot.lane.b32.xlu0 %v1821, 72
      %v2423 = vpop.permute.xlu0 %2422
      %v2426 = vsel %vm854, %v2421, 0
      %2428 = vmatprep.subr.mxu0 0.0
      %2429 = vmatpush1.msra.mxu0 %v2423
      %2430 = vmatprep.subr.mxu0 0.0
      %2431 = vmatpush1.msra.mxu0 0.0
      %2432 = vmatprep.subr.mxu0 0.0
      %2433 = vmatpush1.msra.mxu0 0.0
      %2434 = vmatprep.subr.mxu0 0.0
      %2435 = vmatpush1.msra.mxu0 0.0
      %2436 = vmatprep.subr.mxu0 0.0
      %2437 = vmatpush1.msra.mxu0 0.0
      %2438 = vmatprep.subr.mxu0 0.0
      %2439 = vmatpush1.msra.mxu0 0.0
      %2440 = vmatprep.subr.mxu0 0.0
      %2441 = vmatpush1.msra.mxu0 0.0
      %2442 = vmatprep.subr.mxu0 0.0
      %2443 = vmatpush1.msra.mxu0 0.0
      %2444 = vmatprep.subr.mxu0 0.0
      %2445 = vmatpush1.msra.mxu0 0.0
      %2446 = vmatprep.subr.mxu0 0.0
      %2447 = vmatpush1.msra.mxu0 0.0
      %2448 = vmatprep.subr.mxu0 0.0
      %2449 = vmatpush1.msra.mxu0 0.0
      %2450 = vmatprep.subr.mxu0 0.0
      %2451 = vmatpush1.msra.mxu0 0.0
      %2452 = vmatprep.subr.mxu0 0.0
      %2453 = vmatpush1.msra.mxu0 0.0
      %2454 = vmatprep.subr.mxu0 0.0
      %2455 = vmatpush1.msra.mxu0 0.0
      %2456 = vmatprep.subr.mxu0 0.0
      %2457 = vmatpush1.msra.mxu0 0.0
      %2458 = vmatprep.subr.mxu0 0.0
      %2459 = vmatpush1.msra.mxu0 0.0
      %2460 = vmatprep.subr.mxu0 0.0
      %2461 = vmatpush1.msra.mxu0 0.0
      %2462 = vmatprep.subr.mxu0 0.0
      %2463 = vmatpush1.msra.mxu0 0.0
      %2464 = vmatprep.subr.mxu0 0.0
      %2465 = vmatpush1.msra.mxu0 0.0
      %2466 = vmatprep.subr.mxu0 0.0
      %2467 = vmatpush1.msra.mxu0 0.0
      %2468 = vmatprep.subr.mxu0 0.0
      %2469 = vmatpush1.msra.mxu0 0.0
      %2470 = vmatprep.subr.mxu0 0.0
      %2471 = vmatpush1.msra.mxu0 0.0
      %2472 = vmatprep.subr.mxu0 0.0
      %2473 = vmatpush1.msra.mxu0 0.0
      %2474 = vmatprep.subr.mxu0 0.0
      %2475 = vmatpush1.msra.mxu0 0.0
      %2476 = vmatprep.subr.mxu0 0.0
      %2477 = vmatpush1.msra.mxu0 0.0
      %2478 = vmatprep.subr.mxu0 0.0
      %2479 = vmatpush1.msra.mxu0 0.0
      %2480 = vmatprep.subr.mxu0 0.0
      %2481 = vmatpush1.msra.mxu0 0.0
      %2482 = vmatprep.subr.mxu0 0.0
      %2483 = vmatpush1.msra.mxu0 0.0
      %2484 = vmatprep.subr.mxu0 0.0
      %2485 = vmatpush1.msra.mxu0 0.0
      %2486 = vmatprep.subr.mxu0 0.0
      %2487 = vmatpush1.msra.mxu0 0.0
      %2488 = vmatprep.subr.mxu0 0.0
      %2489 = vmatpush1.msra.mxu0 0.0
      %2490 = vmatprep.subr.mxu0 0.0
      %2491 = vmatpush1.msra.mxu0 0.0
      %2492 = vmatprep.mubr.f32.mxu0 0.0
      %2493 = vmatmul.mubr.f32.gmra.mrb[0].mxu0 %v2426
      %v2494 = vpop.f32.mrb[0].mxu0
      %v2495 = vadd.f32 0.0, %v2494
      %v2496 = vpop.f32.mrb[0].mxu0
      %2497 = vdwg.mxu0
      %2499 = vrot.lane.b32.xlu0 %v2161, 8
      %v2500 = vpop.permute.xlu0 %2499
      %2503 = vrot.lane.b32.xlu0 %v2328, 16
      %v2504 = vpop.permute.xlu0 %2503
      %2507 = vrot.lane.b32.xlu0 %v2495, 24
      %v2508 = vpop.permute.xlu0 %2507
      %v2510 = vsel %vm854, %v1994, %v2500
      %v2511 = vsel %vm1540, %v2510, %v2504
      %v2512 = vsel %vm1542, %v2511, %v2508
      %v2514 = vlaneseq
      %v2515 = vshrl.u32 %v2514, 7
      %v2516 = vsub.s32 0, %v2515
      %v2517 = vrot.slane %v752, %v2516
      %v2520 = vsel %vm777, %v2512, 0
      %2522 = vmatprep.subr.mxu0 0.0
      %2523 = vmatpush1.msra.mxu0 %v748
      %2524 = vmatprep.subr.mxu0 0.0
      %2525 = vmatpush1.msra.mxu0 %v749
      %2526 = vmatprep.subr.mxu0 0.0
      %2527 = vmatpush1.msra.mxu0 %v750
      %2528 = vmatprep.subr.mxu0 0.0
      %2529 = vmatpush1.msra.mxu0 %v751
      %2530 = vmatprep.subr.mxu0 0.0
      %2531 = vmatpush1.msra.mxu0 0.0
      %2532 = vmatprep.subr.mxu0 0.0
      %2533 = vmatpush1.msra.mxu0 0.0
      %2534 = vmatprep.subr.mxu0 0.0
      %2535 = vmatpush1.msra.mxu0 0.0
      %2536 = vmatprep.subr.mxu0 0.0
      %2537 = vmatpush1.msra.mxu0 0.0
      %2538 = vmatprep.subr.mxu0 0.0
      %2539 = vmatpush1.msra.mxu0 0.0
      %2540 = vmatprep.subr.mxu0 0.0
      %2541 = vmatpush1.msra.mxu0 0.0
      %2542 = vmatprep.subr.mxu0 0.0
      %2543 = vmatpush1.msra.mxu0 0.0
      %2544 = vmatprep.subr.mxu0 0.0
      %2545 = vmatpush1.msra.mxu0 0.0
      %2546 = vmatprep.subr.mxu0 0.0
      %2547 = vmatpush1.msra.mxu0 0.0
      %2548 = vmatprep.subr.mxu0 0.0
      %2549 = vmatpush1.msra.mxu0 0.0
      %2550 = vmatprep.subr.mxu0 0.0
      %2551 = vmatpush1.msra.mxu0 0.0
      %2552 = vmatprep.subr.mxu0 0.0
      %2553 = vmatpush1.msra.mxu0 0.0
      %2554 = vmatprep.subr.mxu0 0.0
      %2555 = vmatpush1.msra.mxu0 0.0
      %2556 = vmatprep.subr.mxu0 0.0
      %2557 = vmatpush1.msra.mxu0 0.0
      %2558 = vmatprep.subr.mxu0 0.0
      %2559 = vmatpush1.msra.mxu0 0.0
      %2560 = vmatprep.subr.mxu0 0.0
      %2561 = vmatpush1.msra.mxu0 0.0
      %2562 = vmatprep.subr.mxu0 0.0
      %2563 = vmatpush1.msra.mxu0 0.0
      %2564 = vmatprep.subr.mxu0 0.0
      %2565 = vmatpush1.msra.mxu0 0.0
      %2566 = vmatprep.subr.mxu0 0.0
      %2567 = vmatpush1.msra.mxu0 0.0
      %2568 = vmatprep.subr.mxu0 0.0
      %2569 = vmatpush1.msra.mxu0 0.0
      %2570 = vmatprep.subr.mxu0 0.0
      %2571 = vmatpush1.msra.mxu0 0.0
      %2572 = vmatprep.subr.mxu0 0.0
      %2573 = vmatpush1.msra.mxu0 0.0
      %2574 = vmatprep.subr.mxu0 0.0
      %2575 = vmatpush1.msra.mxu0 0.0
      %2576 = vmatprep.subr.mxu0 0.0
      %2577 = vmatpush1.msra.mxu0 0.0
      %2578 = vmatprep.subr.mxu0 0.0
      %2579 = vmatpush1.msra.mxu0 0.0
      %2580 = vmatprep.subr.mxu0 0.0
      %2581 = vmatpush1.msra.mxu0 0.0
      %2582 = vmatprep.subr.mxu0 0.0
      %2583 = vmatpush1.msra.mxu0 0.0
      %2584 = vmatprep.subr.mxu0 0.0
      %2585 = vmatpush1.msra.mxu0 0.0
      %2586 = vmatprep.mubr.f32.mxu0 0.0
      %2587 = vmatmul.mubr.f32.gmra.mrb[0].mxu0 %v2520
      %v2588 = vpop.f32.mrb[0].mxu0
      %v2589 = vadd.f32 %v2517, %v2588
      %v2590 = vpop.f32.mrb[0].mxu0
      %2591 = vdwg.mxu0
      %v2592 = vadd.f32 %v1652, %v2589
      %v2593 = vsel %vm1624, %v2592, 0.0
      %2594 = vadd.xlane.f32.xlu0 %v2593
      %v2595 = vpop.xlane.xlu0 %2594
      %v2596 = vmul.f32 %v2595, %v1628
      %v2597 = vsub.f32 %v2592, %v2596
      %v2598 = vmul.f32 %v2597, %v2597
      %v2599 = vsel %vm1624, %v2598, 0.0
      %2600 = vadd.xlane.f32.xlu0 %v2599
      %v2601 = vpop.xlane.xlu0 %2600
      %v2602 = vmul.f32 %v2601, %v1628
      %v2603 = vadd.f32 %v2602, 1e-05
      %v2604 = vrsqrt.pop %v2603
      %v2605 = vmul.f32 %v2597, %v2604
      %v2607 = vlaneseq
      %v2608 = vshrl.u32 %v2607, 7
      %v2609 = vsub.s32 0, %v2608
      %v2610 = vrot.slane %v753, %v2609
      %v2612 = vmul.f32 %v2605, %v2610
      %v2614 = vlaneseq
      %v2615 = vshrl.u32 %v2614, 7
      %v2616 = vsub.s32 0, %v2615
      %v2617 = vrot.slane %v754, %v2616
      %v2619 = vadd.f32 %v2612, %v2617
      %v2621 = vlaneseq
      %v2622 = vshrl.u32 %v2621, 7
      %v2623 = vsub.s32 0, %v2622
      %v2624 = vrot.slane %v759, %v2623
      %v2627 = vsel %vm777, %v2619, 0
      %2629 = vmatprep.subr.mxu0 0.0
      %2630 = vmatpush1.msra.mxu0 %v755
      %2631 = vmatprep.subr.mxu0 0.0
      %2632 = vmatpush1.msra.mxu0 %v756
      %2633 = vmatprep.subr.mxu0 0.0
      %2634 = vmatpush1.msra.mxu0 %v757
      %2635 = vmatprep.subr.mxu0 0.0
      %2636 = vmatpush1.msra.mxu0 %v758
      %2637 = vmatprep.subr.mxu0 0.0
      %2638 = vmatpush1.msra.mxu0 0.0
      %2639 = vmatprep.subr.mxu0 0.0
      %2640 = vmatpush1.msra.mxu0 0.0
      %2641 = vmatprep.subr.mxu0 0.0
      %2642 = vmatpush1.msra.mxu0 0.0
      %2643 = vmatprep.subr.mxu0 0.0
      %2644 = vmatpush1.msra.mxu0 0.0
      %2645 = vmatprep.subr.mxu0 0.0
      %2646 = vmatpush1.msra.mxu0 0.0
      %2647 = vmatprep.subr.mxu0 0.0
      %2648 = vmatpush1.msra.mxu0 0.0
      %2649 = vmatprep.subr.mxu0 0.0
      %2650 = vmatpush1.msra.mxu0 0.0
      %2651 = vmatprep.subr.mxu0 0.0
      %2652 = vmatpush1.msra.mxu0 0.0
      %2653 = vmatprep.subr.mxu0 0.0
      %2654 = vmatpush1.msra.mxu0 0.0
      %2655 = vmatprep.subr.mxu0 0.0
      %2656 = vmatpush1.msra.mxu0 0.0
      %2657 = vmatprep.subr.mxu0 0.0
      %2658 = vmatpush1.msra.mxu0 0.0
      %2659 = vmatprep.subr.mxu0 0.0
      %2660 = vmatpush1.msra.mxu0 0.0
      %2661 = vmatprep.subr.mxu0 0.0
      %2662 = vmatpush1.msra.mxu0 0.0
      %2663 = vmatprep.subr.mxu0 0.0
      %2664 = vmatpush1.msra.mxu0 0.0
      %2665 = vmatprep.subr.mxu0 0.0
      %2666 = vmatpush1.msra.mxu0 0.0
      %2667 = vmatprep.subr.mxu0 0.0
      %2668 = vmatpush1.msra.mxu0 0.0
      %2669 = vmatprep.subr.mxu0 0.0
      %2670 = vmatpush1.msra.mxu0 0.0
      %2671 = vmatprep.subr.mxu0 0.0
      %2672 = vmatpush1.msra.mxu0 0.0
      %2673 = vmatprep.subr.mxu0 0.0
      %2674 = vmatpush1.msra.mxu0 0.0
      %2675 = vmatprep.subr.mxu0 0.0
      %2676 = vmatpush1.msra.mxu0 0.0
      %2677 = vmatprep.subr.mxu0 0.0
      %2678 = vmatpush1.msra.mxu0 0.0
      %2679 = vmatprep.subr.mxu0 0.0
      %2680 = vmatpush1.msra.mxu0 0.0
      %2681 = vmatprep.subr.mxu0 0.0
      %2682 = vmatpush1.msra.mxu0 0.0
      %2683 = vmatprep.subr.mxu0 0.0
      %2684 = vmatpush1.msra.mxu0 0.0
      %2685 = vmatprep.subr.mxu0 0.0
      %2686 = vmatpush1.msra.mxu0 0.0
      %2687 = vmatprep.subr.mxu0 0.0
      %2688 = vmatpush1.msra.mxu0 0.0
      %2689 = vmatprep.subr.mxu0 0.0
      %2690 = vmatpush1.msra.mxu0 0.0
      %2691 = vmatprep.subr.mxu0 0.0
      %2692 = vmatpush1.msra.mxu0 0.0
      %2693 = vmatprep.mubr.f32.mxu0 0.0
      %2694 = vmatmul.mubr.f32.gmra.mrb[0].mxu0 %v2627
      %v2695 = vpop.f32.mrb[0].mxu0
      %v2696 = vadd.f32 %v2624, %v2695
      %v2697 = vpop.f32.mrb[0].mxu0
      %2698 = vdwg.mxu0
      %v2699 = vmax.f32 %v2696, 0.0
      %v2701 = vlaneseq
      %v2702 = vshrl.u32 %v2701, 7
      %v2703 = vsub.s32 0, %v2702
      %v2704 = vrot.slane %v768, %v2703
      %vm2706 = vcmask 523264
      %v2708 = vsel %vm2706, %v2699, 0
      %2710 = vmatprep.subr.mxu0 0.0
      %2711 = vmatpush1.msra.mxu0 %v760
      %2712 = vmatprep.subr.mxu0 0.0
      %2713 = vmatpush1.msra.mxu0 %v761
      %2714 = vmatprep.subr.mxu0 0.0
      %2715 = vmatpush1.msra.mxu0 %v762
      %2716 = vmatprep.subr.mxu0 0.0
      %2717 = vmatpush1.msra.mxu0 %v763
      %2718 = vmatprep.subr.mxu0 0.0
      %2719 = vmatpush1.msra.mxu0 %v764
      %2720 = vmatprep.subr.mxu0 0.0
      %2721 = vmatpush1.msra.mxu0 %v765
      %2722 = vmatprep.subr.mxu0 0.0
      %2723 = vmatpush1.msra.mxu0 %v766
      %2724 = vmatprep.subr.mxu0 0.0
      %2725 = vmatpush1.msra.mxu0 %v767
      %2726 = vmatprep.subr.mxu0 0.0
      %2727 = vmatpush1.msra.mxu0 0.0
      %2728 = vmatprep.subr.mxu0 0.0
      %2729 = vmatpush1.msra.mxu0 0.0
      %2730 = vmatprep.subr.mxu0 0.0
      %2731 = vmatpush1.msra.mxu0 0.0
      %2732 = vmatprep.subr.mxu0 0.0
      %2733 = vmatpush1.msra.mxu0 0.0
      %2734 = vmatprep.subr.mxu0 0.0
      %2735 = vmatpush1.msra.mxu0 0.0
      %2736 = vmatprep.subr.mxu0 0.0
      %2737 = vmatpush1.msra.mxu0 0.0
      %2738 = vmatprep.subr.mxu0 0.0
      %2739 = vmatpush1.msra.mxu0 0.0
      %2740 = vmatprep.subr.mxu0 0.0
      %2741 = vmatpush1.msra.mxu0 0.0
      %2742 = vmatprep.subr.mxu0 0.0
      %2743 = vmatpush1.msra.mxu0 0.0
      %2744 = vmatprep.subr.mxu0 0.0
      %2745 = vmatpush1.msra.mxu0 0.0
      %2746 = vmatprep.subr.mxu0 0.0
      %2747 = vmatpush1.msra.mxu0 0.0
      %2748 = vmatprep.subr.mxu0 0.0
      %2749 = vmatpush1.msra.mxu0 0.0
      %2750 = vmatprep.subr.mxu0 0.0
      %2751 = vmatpush1.msra.mxu0 0.0
      %2752 = vmatprep.subr.mxu0 0.0
      %2753 = vmatpush1.msra.mxu0 0.0
      %2754 = vmatprep.subr.mxu0 0.0
      %2755 = vmatpush1.msra.mxu0 0.0
      %2756 = vmatprep.subr.mxu0 0.0
      %2757 = vmatpush1.msra.mxu0 0.0
      %2758 = vmatprep.subr.mxu0 0.0
      %2759 = vmatpush1.msra.mxu0 0.0
      %2760 = vmatprep.subr.mxu0 0.0
      %2761 = vmatpush1.msra.mxu0 0.0
      %2762 = vmatprep.subr.mxu0 0.0
      %2763 = vmatpush1.msra.mxu0 0.0
      %2764 = vmatprep.subr.mxu0 0.0
      %2765 = vmatpush1.msra.mxu0 0.0
      %2766 = vmatprep.subr.mxu0 0.0
      %2767 = vmatpush1.msra.mxu0 0.0
      %2768 = vmatprep.subr.mxu0 0.0
      %2769 = vmatpush1.msra.mxu0 0.0
      %2770 = vmatprep.subr.mxu0 0.0
      %2771 = vmatpush1.msra.mxu0 0.0
      %2772 = vmatprep.subr.mxu0 0.0
      %2773 = vmatpush1.msra.mxu0 0.0
      %2774 = vmatprep.mubr.f32.mxu0 0.0
      %2775 = vmatmul.mubr.f32.gmra.mrb[0].mxu0 %v2708
      %v2776 = vpop.f32.mrb[0].mxu0
      %v2777 = vadd.f32 %v2704, %v2776
      %v2778 = vpop.f32.mrb[0].mxu0
      %2779 = vdwg.mxu0
      %v2780 = vadd.f32 %v2619, %v2777
      %v2781 = vsel %vm1624, %v2780, 0.0
      %2782 = vadd.xlane.f32.xlu0 %v2781
      %v2783 = vpop.xlane.xlu0 %2782
      %v2784 = vmul.f32 %v2783, %v1628
      %v2785 = vsub.f32 %v2780, %v2784
      %v2786 = vmul.f32 %v2785, %v2785
      %v2787 = vsel %vm1624, %v2786, 0.0
      %2788 = vadd.xlane.f32.xlu0 %v2787
      %v2789 = vpop.xlane.xlu0 %2788
      %v2790 = vmul.f32 %v2789, %v1628
      %v2791 = vadd.f32 %v2790, 1e-05
      %v2792 = vrsqrt.pop %v2791
      %v2793 = vmul.f32 %v2785, %v2792
      %v2795 = vlaneseq
      %v2796 = vshrl.u32 %v2795, 7
      %v2797 = vsub.s32 0, %v2796
      %v2798 = vrot.slane %v769, %v2797
      %v2800 = vmul.f32 %v2793, %v2798
      %v2802 = vlaneseq
      %v2803 = vshrl.u32 %v2802, 7
      %v2804 = vsub.s32 0, %v2803
      %v2805 = vrot.slane %v770, %v2804
      %v2807 = vadd.f32 %v2800, %v2805
      %2808 = vst.msk [vmem:[%s726] sm:$0x3f] %vm1624, %v2807
      %p2809 = scmp.lt.s32.totalorder %s33, 1
      %s2810 = scalar_select %p2809, %s33, 1
      %s2811 = smul.addr %s2810, 8
      %s2812 = scalar_lea.vmem %s22, %s2811
      // Predicated region
      $region109: #{seq2seq_forward.6} parent=107 // pred_check
        %p2813 = pneg %p533
      $region110: #{seq2seq_forward.6} parent=107 // pred_check_branch
        %2815 = sbr.rel (%p2813) target = $region112
      $region111: #{seq2seq_forward.6} parent=107 // pred_region
        _
      $region112: #{seq2seq_forward.6} parent=107 // pred_fallthru
        _
    $region108: #{seq2seq_forward.6} parent=5 // pred_fallthru
      _
    %p2816 = scmp.le.s32.totalorder 2, %s28
    // Predicated region
    $region113: #{seq2seq_forward.6} parent=5 // pred_check
      %p2817 = pneg %p2816
    $region114: #{seq2seq_forward.6} parent=5 // pred_check_branch
      %2819 = sbr.rel (%p2817) target = $region116
    $region115: #{seq2seq_forward.6} parent=5 // pred_region
      %s2820 = ssub.s32 %s28, 2
      // Predicated region
      $region117: #{seq2seq_forward.6} parent=115 // pred_check
        %p2821 = pneg %p539
      $region118: #{seq2seq_forward.6} parent=115 // pred_check_branch
        %2823 = sbr.rel (%p2821) target = $region120
      $region119: #{seq2seq_forward.6} parent=115 // pred_region
        %p2824 = scmp.lt.s32.totalorder %s34, 1
        %s2825 = scalar_select %p2824, %s34, 1
        %s2826 = smul.addr %s2825, 8
        %s2827 = scalar_lea.vmem %s22, %s2826
      $region120: #{seq2seq_forward.6} parent=115 // pred_fallthru
        _
    $region116: #{seq2seq_forward.6} parent=5 // pred_fallthru
      _
  $region6: #{seq2seq_forward.6} parent=0 // loop_footer
    %s32 = sadd.s32 1, %s28
  $region7: #{seq2seq_forward.6} parent=0 // loop_footer_branch
    %27 = sbr.rel target = $region3
  $region8: #{seq2seq_forward.6} parent=0 // loop_exit
    _

// kernel: seq2seq_forward.7
$region0: #{seq2seq_forward.7}
  #allocation0 [shape = 'u32[]', space=smem, size = 0x4, offset = 0x4, fixed_abs, tag = 'smem constant byte address 0x4 - core index']
  #allocation1 [shape = 'u32[144,128]{1,0:T(1,128)}', space=vmem, size = 0x12000, scoped, tag = 'internal scratch']
  %s0 = inlined_call_operand.vmem [shape: f32[2,6,32], index: 0, kind: input, shape index: {}]
  %s1 = inlined_call_operand.vmem [shape: f32[2,8,32], index: 1, kind: input, shape index: {}]
  %s2 = inlined_call_operand.vmem [shape: s32[2,6,6], index: 2, kind: input, shape index: {}]
  %s3 = inlined_call_operand.vmem [shape: s32[2,1,8], index: 3, kind: input, shape index: {}]
  %s4 = inlined_call_operand.vmem [shape: f32[32,96], index: 4, kind: input, shape index: {}]
  %s5 = inlined_call_operand.vmem [shape: f32[1,96], index: 5, kind: input, shape index: {}]
  %s6 = inlined_call_operand.vmem [shape: f32[32,32], index: 6, kind: input, shape index: {}]
  %s7 = inlined_call_operand.vmem [shape: f32[1,32], index: 7, kind: input, shape index: {}]
  %s8 = inlined_call_operand.vmem [shape: f32[1,32], index: 8, kind: input, shape index: {}]
  %s9 = inlined_call_operand.vmem [shape: f32[1,32], index: 9, kind: input, shape index: {}]
  %s10 = inlined_call_operand.vmem [shape: f32[32,96], index: 10, kind: input, shape index: {}]
  %s11 = inlined_call_operand.vmem [shape: f32[1,96], index: 11, kind: input, shape index: {}]
  %s12 = inlined_call_operand.vmem [shape: f32[32,32], index: 12, kind: input, shape index: {}]
  %s13 = inlined_call_operand.vmem [shape: f32[1,32], index: 13, kind: input, shape index: {}]
  %s14 = inlined_call_operand.vmem [shape: f32[1,32], index: 14, kind: input, shape index: {}]
  %s15 = inlined_call_operand.vmem [shape: f32[1,32], index: 15, kind: input, shape index: {}]
  %s16 = inlined_call_operand.vmem [shape: f32[32,64], index: 16, kind: input, shape index: {}]
  %s17 = inlined_call_operand.vmem [shape: f32[1,64], index: 17, kind: input, shape index: {}]
  %s18 = inlined_call_operand.vmem [shape: f32[64,32], index: 18, kind: input, shape index: {}]
  %s19 = inlined_call_operand.vmem [shape: f32[1,32], index: 19, kind: input, shape index: {}]
  %s20 = inlined_call_operand.vmem [shape: f32[1,32], index: 20, kind: input, shape index: {}]
  %s21 = inlined_call_operand.vmem [shape: f32[1,32], index: 21, kind: input, shape index: {}]
  %s22 = inlined_call_operand.vmem [shape: f32[32,24], index: 22, kind: input, shape index: {}]
  %s23 = inlined_call_operand.vmem [shape: f32[1,24], index: 23, kind: input, shape index: {}]
  %s24 = inlined_call_operand.vmem [shape: f32[2,6,24], index: 24, kind: output, shape index: {0}]
  %s25 = inlined_call_operand.vmem [shape: f32[2,4,6,8], index: 25, kind: output, shape index: {1}]
  %26 = xla_tuple %s24, %s25
  %s27 = sld [smem:[#allocation0]]
  $region137: #{seq2seq_forward.7} parent=0
    _
  %s29 = ssub.s32 1, %s27
  %s30 = scalar_select 0, %s29, %s27
  loop: start=0, step=1, limit=4
  $region2: #{seq2seq_forward.7} parent=0 // loop_pre_header
    _
  $region3: #{seq2seq_forward.7} parent=0 // loop_header
    %s32 = sphi 0, %s36
    %p33 = scmp.ge.s32.totalorder %s32, 4
    %s42 = sphi 0, %s44
    %s45 = sphi 0, %s42
    %s46 = sphi 0, %s45
    %s62 = sphi 0, %s46
    %s68 = sphi 0, %s70
    %s71 = sphi 0, %s68
    %s72 = sphi 0, %s71
    %s88 = sphi 0, %s72
    %s94 = sphi 0, %s96
    %s97 = sphi 0, %s94
    %s98 = sphi 0, %s97
    %s114 = sphi 0, %s98
    %s120 = sphi 0, %s122
    %s123 = sphi 0, %s120
    %s124 = sphi 0, %s123
    %s140 = sphi 0, %s124
    %s144 = sphi 0, %s144
    %s146 = sphi 0, %s144
    %s147 = sphi 0, %s146
    %s161 = sphi 0, %s147
    %s165 = sphi 0, %s165
    %s167 = sphi 0, %s165
    %s168 = sphi 0, %s167
    %s182 = sphi 0, %s168
    %s186 = sphi 0, %s186
    %s188 = sphi 0, %s186
    %s189 = sphi 0, %s188
    %s203 = sphi 0, %s189
    %s207 = sphi 0, %s207
    %s209 = sphi 0, %s207
    %s210 = sphi 0, %s209
    %s224 = sphi 0, %s210
    %s228 = sphi 0, %s228
    %s230 = sphi 0, %s228
    %s231 = sphi 0, %s230
    %s245 = sphi 0, %s231
    %s249 = sphi 0, %s249
    %s251 = sphi 0, %s249
    %s252 = sphi 0, %s251
    %s266 = sphi 0, %s252
    %s270 = sphi 0, %s270
    %s272 = sphi 0, %s270
    %s273 = sphi 0, %s272
    %s287 = sphi 0, %s273
    %s291 = sphi 0, %s291
    %s293 = sphi 0, %s291
    %s294 = sphi 0, %s293
    %s308 = sphi 0, %s294
    %s312 = sphi 0, %s312
    %s314 = sphi 0, %s312
    %s315 = sphi 0, %s314
    %s329 = sphi 0, %s315
    %s333 = sphi 0, %s333
    %s335 = sphi 0, %s333
    %s336 = sphi 0, %s335
    %s350 = sphi 0, %s336
    %s354 = sphi 0, %s354
    %s356 = sphi 0, %s354
    %s357 = sphi 0, %s356
    %s371 = sphi 0, %s357
    %s375 = sphi 0, %s375
    %s377 = sphi 0, %s375
    %s378 = sphi 0, %s377
    %s392 = sphi 0, %s378
    %s396 = sphi 0, %s396
    %s398 = sphi 0, %s396
    %s399 = sphi 0, %s398
    %s413 = sphi 0, %s399
    %s417 = sphi 0, %s417
    %s419 = sphi 0, %s417
    %s420 = sphi 0, %s419
    %s434 = sphi 0, %s420
    %s438 = sphi 0, %s438
    %s440 = sphi 0, %s438
    %s441 = sphi 0, %s440
    %s455 = sphi 0, %s441
    %s459 = sphi 0, %s459
    %s461 = sphi 0, %s459
    %s462 = sphi 0, %s461
    %s476 = sphi 0, %s462
    %s480 = sphi 0, %s480
    %s482 = sphi 0, %s480
    %s483 = sphi 0, %s482
    %s497 = sphi 0, %s483
    %s501 = sphi 0, %s501
    %s503 = sphi 0, %s501
    %s504 = sphi 0, %s503
    %s518 = sphi 0, %s504
    %s522 = sphi 0, %s522
    %s524 = sphi 0, %s522
    %s525 = sphi 0, %s524
    %s539 = sphi 0, %s525
    %s543 = sphi 0, %s543
    %s545 = sphi 0, %s543
    %s546 = sphi 0, %s545
    %s560 = sphi 0, %s546
    %s566 = sphi 0, %s568
    %s569 = sphi 0, %s566
    %s570 = sphi 0, %s569
    %s586 = sphi 0, %s570
    %s592 = sphi 0, %s594
    %s595 = sphi 0, %s592
    %s596 = sphi 0, %s595
    %s612 = sphi 0, %s596
  $region4: #{seq2seq_forward.7} parent=0 // loop_header_branch
    %35 = sbr.rel (%p33) target = $region8
  $region5: #{seq2seq_forward.7} parent=0 // loop_body
    %s37 = ssub.s32 %s32, 1
    %s38 = ssub.s32 %s32, 2
    %s39 = sadd.s32 %s32, 1
    %s40 = ssub.s32 %s32, %s39
    %p41 = scmp.eq.s32.totalorder %s40, 0
    %s43 = sadd.s32 %s42, 1
    %s44 = scalar_select %p41, %s42, %s43
    %p47 = pneg %p41
    %p48 = scmp.eq.s32.totalorder %s32, 1
    %p49 = por %p47, %p48
    %p50 = scmp.ne.s32.totalorder %s42, %s45
    %p51 = scmp.eq.s32.totalorder %s32, 0
    %p52 = por %p50, %p51
    %p53 = scmp.ne.s32.totalorder %s42, %s45
    %p54 = scmp.eq.s32.totalorder %s37, 1
    %p55 = por %p53, %p54
    %p56 = scmp.ne.s32.totalorder %s45, %s46
    %p57 = scmp.eq.s32.totalorder %s37, 0
    %p58 = por %p56, %p57
    %p59 = scmp.ne.s32.totalorder %s45, %s46
    %p60 = scmp.eq.s32.totalorder %s38, 1
    %p61 = por %p59, %p60
    %p63 = scmp.ne.s32.totalorder %s46, %s62
    %p64 = scmp.eq.s32.totalorder %s38, 0
    %p65 = por %p63, %p64
    %s66 = ssub.s32 %s32, %s39
    %p67 = scmp.eq.s32.totalorder %s66, 0
    %s69 = sadd.s32 %s68, 1
    %s70 = scalar_select %p67, %s68, %s69
    %p73 = pneg %p67
    %p74 = scmp.eq.s32.totalorder %s32, 1
    %p75 = por %p73, %p74
    %p76 = scmp.ne.s32.totalorder %s68, %s71
    %p77 = scmp.eq.s32.totalorder %s32, 0
    %p78 = por %p76, %p77
    %p79 = scmp.ne.s32.totalorder %s68, %s71
    %p80 = scmp.eq.s32.totalorder %s37, 1
    %p81 = por %p79, %p80
    %p82 = scmp.ne.s32.totalorder %s71, %s72
    %p83 = scmp.eq.s32.totalorder %s37, 0
    %p84 = por %p82, %p83
    %p85 = scmp.ne.s32.totalorder %s71, %s72
    %p86 = scmp.eq.s32.totalorder %s38, 1
    %p87 = por %p85, %p86
    %p89 = scmp.ne.s32.totalorder %s72, %s88
    %p90 = scmp.eq.s32.totalorder %s38, 0
    %p91 = por %p89, %p90
    %s92 = ssub.s32 %s32, %s39
    %p93 = scmp.eq.s32.totalorder %s92, 0
    %s95 = sadd.s32 %s94, 1
    %s96 = scalar_select %p93, %s94, %s95
    %p99 = pneg %p93
    %p100 = scmp.eq.s32.totalorder %s32, 1
    %p101 = por %p99, %p100
    %p102 = scmp.ne.s32.totalorder %s94, %s97
    %p103 = scmp.eq.s32.totalorder %s32, 0
    %p104 = por %p102, %p103
    %p105 = scmp.ne.s32.totalorder %s94, %s97
    %p106 = scmp.eq.s32.totalorder %s37, 1
    %p107 = por %p105, %p106
    %p108 = scmp.ne.s32.totalorder %s97, %s98
    %p109 = scmp.eq.s32.totalorder %s37, 0
    %p110 = por %p108, %p109
    %p111 = scmp.ne.s32.totalorder %s97, %s98
    %p112 = scmp.eq.s32.totalorder %s38, 1
    %p113 = por %p111, %p112
    %p115 = scmp.ne.s32.totalorder %s98, %s114
    %p116 = scmp.eq.s32.totalorder %s38, 0
    %p117 = por %p115, %p116
    %s118 = ssub.s32 %s32, %s39
    %p119 = scmp.eq.s32.totalorder %s118, 0
    %s121 = sadd.s32 %s120, 1
    %s122 = scalar_select %p119, %s120, %s121
    %p125 = pneg %p119
    %p126 = scmp.eq.s32.totalorder %s32, 1
    %p127 = por %p125, %p126
    %p128 = scmp.ne.s32.totalorder %s120, %s123
    %p129 = scmp.eq.s32.totalorder %s32, 0
    %p130 = por %p128, %p129
    %p131 = scmp.ne.s32.totalorder %s120, %s123
    %p132 = scmp.eq.s32.totalorder %s37, 1
    %p133 = por %p131, %p132
    %p134 = scmp.ne.s32.totalorder %s123, %s124
    %p135 = scmp.eq.s32.totalorder %s37, 0
    %p136 = por %p134, %p135
    %p137 = scmp.ne.s32.totalorder %s123, %s124
    %p138 = scmp.eq.s32.totalorder %s38, 1
    %p139 = por %p137, %p138
    %p141 = scmp.ne.s32.totalorder %s124, %s140
    %p142 = scmp.eq.s32.totalorder %s38, 0
    %p143 = por %p141, %p142
    %s145 = sadd.s32 %s144, 1
    %p148 = scmp.eq.s32.totalorder %s32, 1
    %p149 = scmp.ne.s32.totalorder %s144, %s146
    %p150 = scmp.eq.s32.totalorder %s32, 0
    %p151 = por %p149, %p150
    %p152 = scmp.ne.s32.totalorder %s144, %s146
    %p153 = scmp.eq.s32.totalorder %s37, 1
    %p154 = por %p152, %p153
    %p155 = scmp.ne.s32.totalorder %s146, %s147
    %p156 = scmp.eq.s32.totalorder %s37, 0
    %p157 = por %p155, %p156
    %p158 = scmp.ne.s32.totalorder %s146, %s147
    %p159 = scmp.eq.s32.totalorder %s38, 1
    %p160 = por %p158, %p159
    %p162 = scmp.ne.s32.totalorder %s147, %s161
    %p163 = scmp.eq.s32.totalorder %s38, 0
    %p164 = por %p162, %p163
    %s166 = sadd.s32 %s165, 1
    %p169 = scmp.eq.s32.totalorder %s32, 1
    %p170 = scmp.ne.s32.totalorder %s165, %s167
    %p171 = scmp.eq.s32.totalorder %s32, 0
    %p172 = por %p170, %p171
    %p173 = scmp.ne.s32.totalorder %s165, %s167
    %p174 = scmp.eq.s32.totalorder %s37, 1
    %p175 = por %p173, %p174
    %p176 = scmp.ne.s32.totalorder %s167, %s168
    %p177 = scmp.eq.s32.totalorder %s37, 0
    %p178 = por %p176, %p177
    %p179 = scmp.ne.s32.totalorder %s167, %s168
    %p180 = scmp.eq.s32.totalorder %s38, 1
    %p181 = por %p179, %p180
    %p183 = scmp.ne.s32.totalorder %s168, %s182
    %p184 = scmp.eq.s32.totalorder %s38, 0
    %p185 = por %p183, %p184
    %s187 = sadd.s32 %s186, 1
    %p190 = scmp.eq.s32.totalorder %s32, 1
    %p191 = scmp.ne.s32.totalorder %s186, %s188
    %p192 = scmp.eq.s32.totalorder %s32, 0
    %p193 = por %p191, %p192
    %p194 = scmp.ne.s32.totalorder %s186, %s188
    %p195 = scmp.eq.s32.totalorder %s37, 1
    %p196 = por %p194, %p195
    %p197 = scmp.ne.s32.totalorder %s188, %s189
    %p198 = scmp.eq.s32.totalorder %s37, 0
    %p199 = por %p197, %p198
    %p200 = scmp.ne.s32.totalorder %s188, %s189
    %p201 = scmp.eq.s32.totalorder %s38, 1
    %p202 = por %p200, %p201
    %p204 = scmp.ne.s32.totalorder %s189, %s203
    %p205 = scmp.eq.s32.totalorder %s38, 0
    %p206 = por %p204, %p205
    %s208 = sadd.s32 %s207, 1
    %p211 = scmp.eq.s32.totalorder %s32, 1
    %p212 = scmp.ne.s32.totalorder %s207, %s209
    %p213 = scmp.eq.s32.totalorder %s32, 0
    %p214 = por %p212, %p213
    %p215 = scmp.ne.s32.totalorder %s207, %s209
    %p216 = scmp.eq.s32.totalorder %s37, 1
    %p217 = por %p215, %p216
    %p218 = scmp.ne.s32.totalorder %s209, %s210
    %p219 = scmp.eq.s32.totalorder %s37, 0
    %p220 = por %p218, %p219
    %p221 = scmp.ne.s32.totalorder %s209, %s210
    %p222 = scmp.eq.s32.totalorder %s38, 1
    %p223 = por %p221, %p222
    %p225 = scmp.ne.s32.totalorder %s210, %s224
    %p226 = scmp.eq.s32.totalorder %s38, 0
    %p227 = por %p225, %p226
    %s229 = sadd.s32 %s228, 1
    %p232 = scmp.eq.s32.totalorder %s32, 1
    %p233 = scmp.ne.s32.totalorder %s228, %s230
    %p234 = scmp.eq.s32.totalorder %s32, 0
    %p235 = por %p233, %p234
    %p236 = scmp.ne.s32.totalorder %s228, %s230
    %p237 = scmp.eq.s32.totalorder %s37, 1
    %p238 = por %p236, %p237
    %p239 = scmp.ne.s32.totalorder %s230, %s231
    %p240 = scmp.eq.s32.totalorder %s37, 0
    %p241 = por %p239, %p240
    %p242 = scmp.ne.s32.totalorder %s230, %s231
    %p243 = scmp.eq.s32.totalorder %s38, 1
    %p244 = por %p242, %p243
    %p246 = scmp.ne.s32.totalorder %s231, %s245
    %p247 = scmp.eq.s32.totalorder %s38, 0
    %p248 = por %p246, %p247
    %s250 = sadd.s32 %s249, 1
    %p253 = scmp.eq.s32.totalorder %s32, 1
    %p254 = scmp.ne.s32.totalorder %s249, %s251
    %p255 = scmp.eq.s32.totalorder %s32, 0
    %p256 = por %p254, %p255
    %p257 = scmp.ne.s32.totalorder %s249, %s251
    %p258 = scmp.eq.s32.totalorder %s37, 1
    %p259 = por %p257, %p258
    %p260 = scmp.ne.s32.totalorder %s251, %s252
    %p261 = scmp.eq.s32.totalorder %s37, 0
    %p262 = por %p260, %p261
    %p263 = scmp.ne.s32.totalorder %s251, %s252
    %p264 = scmp.eq.s32.totalorder %s38, 1
    %p265 = por %p263, %p264
    %p267 = scmp.ne.s32.totalorder %s252, %s266
    %p268 = scmp.eq.s32.totalorder %s38, 0
    %p269 = por %p267, %p268
    %s271 = sadd.s32 %s270, 1
    %p274 = scmp.eq.s32.totalorder %s32, 1
    %p275 = scmp.ne.s32.totalorder %s270, %s272
    %p276 = scmp.eq.s32.totalorder %s32, 0
    %p277 = por %p275, %p276
    %p278 = scmp.ne.s32.totalorder %s270, %s272
    %p279 = scmp.eq.s32.totalorder %s37, 1
    %p280 = por %p278, %p279
    %p281 = scmp.ne.s32.totalorder %s272, %s273
    %p282 = scmp.eq.s32.totalorder %s37, 0
    %p283 = por %p281, %p282
    %p284 = scmp.ne.s32.totalorder %s272, %s273
    %p285 = scmp.eq.s32.totalorder %s38, 1
    %p286 = por %p284, %p285
    %p288 = scmp.ne.s32.totalorder %s273, %s287
    %p289 = scmp.eq.s32.totalorder %s38, 0
    %p290 = por %p288, %p289
    %s292 = sadd.s32 %s291, 1
    %p295 = scmp.eq.s32.totalorder %s32, 1
    %p296 = scmp.ne.s32.totalorder %s291, %s293
    %p297 = scmp.eq.s32.totalorder %s32, 0
    %p298 = por %p296, %p297
    %p299 = scmp.ne.s32.totalorder %s291, %s293
    %p300 = scmp.eq.s32.totalorder %s37, 1
    %p301 = por %p299, %p300
    %p302 = scmp.ne.s32.totalorder %s293, %s294
    %p303 = scmp.eq.s32.totalorder %s37, 0
    %p304 = por %p302, %p303
    %p305 = scmp.ne.s32.totalorder %s293, %s294
    %p306 = scmp.eq.s32.totalorder %s38, 1
    %p307 = por %p305, %p306
    %p309 = scmp.ne.s32.totalorder %s294, %s308
    %p310 = scmp.eq.s32.totalorder %s38, 0
    %p311 = por %p309, %p310
    %s313 = sadd.s32 %s312, 1
    %p316 = scmp.eq.s32.totalorder %s32, 1
    %p317 = scmp.ne.s32.totalorder %s312, %s314
    %p318 = scmp.eq.s32.totalorder %s32, 0
    %p319 = por %p317, %p318
    %p320 = scmp.ne.s32.totalorder %s312, %s314
    %p321 = scmp.eq.s32.totalorder %s37, 1
    %p322 = por %p320, %p321
    %p323 = scmp.ne.s32.totalorder %s314, %s315
    %p324 = scmp.eq.s32.totalorder %s37, 0
    %p325 = por %p323, %p324
    %p326 = scmp.ne.s32.totalorder %s314, %s315
    %p327 = scmp.eq.s32.totalorder %s38, 1
    %p328 = por %p326, %p327
    %p330 = scmp.ne.s32.totalorder %s315, %s329
    %p331 = scmp.eq.s32.totalorder %s38, 0
    %p332 = por %p330, %p331
    %s334 = sadd.s32 %s333, 1
    %p337 = scmp.eq.s32.totalorder %s32, 1
    %p338 = scmp.ne.s32.totalorder %s333, %s335
    %p339 = scmp.eq.s32.totalorder %s32, 0
    %p340 = por %p338, %p339
    %p341 = scmp.ne.s32.totalorder %s333, %s335
    %p342 = scmp.eq.s32.totalorder %s37, 1
    %p343 = por %p341, %p342
    %p344 = scmp.ne.s32.totalorder %s335, %s336
    %p345 = scmp.eq.s32.totalorder %s37, 0
    %p346 = por %p344, %p345
    %p347 = scmp.ne.s32.totalorder %s335, %s336
    %p348 = scmp.eq.s32.totalorder %s38, 1
    %p349 = por %p347, %p348
    %p351 = scmp.ne.s32.totalorder %s336, %s350
    %p352 = scmp.eq.s32.totalorder %s38, 0
    %p353 = por %p351, %p352
    %s355 = sadd.s32 %s354, 1
    %p358 = scmp.eq.s32.totalorder %s32, 1
    %p359 = scmp.ne.s32.totalorder %s354, %s356
    %p360 = scmp.eq.s32.totalorder %s32, 0
    %p361 = por %p359, %p360
    %p362 = scmp.ne.s32.totalorder %s354, %s356
    %p363 = scmp.eq.s32.totalorder %s37, 1
    %p364 = por %p362, %p363
    %p365 = scmp.ne.s32.totalorder %s356, %s357
    %p366 = scmp.eq.s32.totalorder %s37, 0
    %p367 = por %p365, %p366
    %p368 = scmp.ne.s32.totalorder %s356, %s357
    %p369 = scmp.eq.s32.totalorder %s38, 1
    %p370 = por %p368, %p369
    %p372 = scmp.ne.s32.totalorder %s357, %s371
    %p373 = scmp.eq.s32.totalorder %s38, 0
    %p374 = por %p372, %p373
    %s376 = sadd.s32 %s375, 1
    %p379 = scmp.eq.s32.totalorder %s32, 1
    %p380 = scmp.ne.s32.totalorder %s375, %s377
    %p381 = scmp.eq.s32.totalorder %s32, 0
    %p382 = por %p380, %p381
    %p383 = scmp.ne.s32.totalorder %s375, %s377
    %p384 = scmp.eq.s32.totalorder %s37, 1
    %p385 = por %p383, %p384
    %p386 = scmp.ne.s32.totalorder %s377, %s378
    %p387 = scmp.eq.s32.totalorder %s37, 0
    %p388 = por %p386, %p387
    %p389 = scmp.ne.s32.totalorder %s377, %s378
    %p390 = scmp.eq.s32.totalorder %s38, 1
    %p391 = por %p389, %p390
    %p393 = scmp.ne.s32.totalorder %s378, %s392
    %p394 = scmp.eq.s32.totalorder %s38, 0
    %p395 = por %p393, %p394
    %s397 = sadd.s32 %s396, 1
    %p400 = scmp.eq.s32.totalorder %s32, 1
    %p401 = scmp.ne.s32.totalorder %s396, %s398
    %p402 = scmp.eq.s32.totalorder %s32, 0
    %p403 = por %p401, %p402
    %p404 = scmp.ne.s32.totalorder %s396, %s398
    %p405 = scmp.eq.s32.totalorder %s37, 1
    %p406 = por %p404, %p405
    %p407 = scmp.ne.s32.totalorder %s398, %s399
    %p408 = scmp.eq.s32.totalorder %s37, 0
    %p409 = por %p407, %p408
    %p410 = scmp.ne.s32.totalorder %s398, %s399
    %p411 = scmp.eq.s32.totalorder %s38, 1
    %p412 = por %p410, %p411
    %p414 = scmp.ne.s32.totalorder %s399, %s413
    %p415 = scmp.eq.s32.totalorder %s38, 0
    %p416 = por %p414, %p415
    %s418 = sadd.s32 %s417, 1
    %p421 = scmp.eq.s32.totalorder %s32, 1
    %p422 = scmp.ne.s32.totalorder %s417, %s419
    %p423 = scmp.eq.s32.totalorder %s32, 0
    %p424 = por %p422, %p423
    %p425 = scmp.ne.s32.totalorder %s417, %s419
    %p426 = scmp.eq.s32.totalorder %s37, 1
    %p427 = por %p425, %p426
    %p428 = scmp.ne.s32.totalorder %s419, %s420
    %p429 = scmp.eq.s32.totalorder %s37, 0
    %p430 = por %p428, %p429
    %p431 = scmp.ne.s32.totalorder %s419, %s420
    %p432 = scmp.eq.s32.totalorder %s38, 1
    %p433 = por %p431, %p432
    %p435 = scmp.ne.s32.totalorder %s420, %s434
    %p436 = scmp.eq.s32.totalorder %s38, 0
    %p437 = por %p435, %p436
    %s439 = sadd.s32 %s438, 1
    %p442 = scmp.eq.s32.totalorder %s32, 1
    %p443 = scmp.ne.s32.totalorder %s438, %s440
    %p444 = scmp.eq.s32.totalorder %s32, 0
    %p445 = por %p443, %p444
    %p446 = scmp.ne.s32.totalorder %s438, %s440
    %p447 = scmp.eq.s32.totalorder %s37, 1
    %p448 = por %p446, %p447
    %p449 = scmp.ne.s32.totalorder %s440, %s441
    %p450 = scmp.eq.s32.totalorder %s37, 0
    %p451 = por %p449, %p450
    %p452 = scmp.ne.s32.totalorder %s440, %s441
    %p453 = scmp.eq.s32.totalorder %s38, 1
    %p454 = por %p452, %p453
    %p456 = scmp.ne.s32.totalorder %s441, %s455
    %p457 = scmp.eq.s32.totalorder %s38, 0
    %p458 = por %p456, %p457
    %s460 = sadd.s32 %s459, 1
    %p463 = scmp.eq.s32.totalorder %s32, 1
    %p464 = scmp.ne.s32.totalorder %s459, %s461
    %p465 = scmp.eq.s32.totalorder %s32, 0
    %p466 = por %p464, %p465
    %p467 = scmp.ne.s32.totalorder %s459, %s461
    %p468 = scmp.eq.s32.totalorder %s37, 1
    %p469 = por %p467, %p468
    %p470 = scmp.ne.s32.totalorder %s461, %s462
    %p471 = scmp.eq.s32.totalorder %s37, 0
    %p472 = por %p470, %p471
    %p473 = scmp.ne.s32.totalorder %s461, %s462
    %p474 = scmp.eq.s32.totalorder %s38, 1
    %p475 = por %p473, %p474
    %p477 = scmp.ne.s32.totalorder %s462, %s476
    %p478 = scmp.eq.s32.totalorder %s38, 0
    %p479 = por %p477, %p478
    %s481 = sadd.s32 %s480, 1
    %p484 = scmp.eq.s32.totalorder %s32, 1
    %p485 = scmp.ne.s32.totalorder %s480, %s482
    %p486 = scmp.eq.s32.totalorder %s32, 0
    %p487 = por %p485, %p486
    %p488 = scmp.ne.s32.totalorder %s480, %s482
    %p489 = scmp.eq.s32.totalorder %s37, 1
    %p490 = por %p488, %p489
    %p491 = scmp.ne.s32.totalorder %s482, %s483
    %p492 = scmp.eq.s32.totalorder %s37, 0
    %p493 = por %p491, %p492
    %p494 = scmp.ne.s32.totalorder %s482, %s483
    %p495 = scmp.eq.s32.totalorder %s38, 1
    %p496 = por %p494, %p495
    %p498 = scmp.ne.s32.totalorder %s483, %s497
    %p499 = scmp.eq.s32.totalorder %s38, 0
    %p500 = por %p498, %p499
    %s502 = sadd.s32 %s501, 1
    %p505 = scmp.eq.s32.totalorder %s32, 1
    %p506 = scmp.ne.s32.totalorder %s501, %s503
    %p507 = scmp.eq.s32.totalorder %s32, 0
    %p508 = por %p506, %p507
    %p509 = scmp.ne.s32.totalorder %s501, %s503
    %p510 = scmp.eq.s32.totalorder %s37, 1
    %p511 = por %p509, %p510
    %p512 = scmp.ne.s32.totalorder %s503, %s504
    %p513 = scmp.eq.s32.totalorder %s37, 0
    %p514 = por %p512, %p513
    %p515 = scmp.ne.s32.totalorder %s503, %s504
    %p516 = scmp.eq.s32.totalorder %s38, 1
    %p517 = por %p515, %p516
    %p519 = scmp.ne.s32.totalorder %s504, %s518
    %p520 = scmp.eq.s32.totalorder %s38, 0
    %p521 = por %p519, %p520
    %s523 = sadd.s32 %s522, 1
    %p526 = scmp.eq.s32.totalorder %s32, 1
    %p527 = scmp.ne.s32.totalorder %s522, %s524
    %p528 = scmp.eq.s32.totalorder %s32, 0
    %p529 = por %p527, %p528
    %p530 = scmp.ne.s32.totalorder %s522, %s524
    %p531 = scmp.eq.s32.totalorder %s37, 1
    %p532 = por %p530, %p531
    %p533 = scmp.ne.s32.totalorder %s524, %s525
    %p534 = scmp.eq.s32.totalorder %s37, 0
    %p535 = por %p533, %p534
    %p536 = scmp.ne.s32.totalorder %s524, %s525
    %p537 = scmp.eq.s32.totalorder %s38, 1
    %p538 = por %p536, %p537
    %p540 = scmp.ne.s32.totalorder %s525, %s539
    %p541 = scmp.eq.s32.totalorder %s38, 0
    %p542 = por %p540, %p541
    %s544 = sadd.s32 %s543, 1
    %p547 = scmp.eq.s32.totalorder %s32, 1
    %p548 = scmp.ne.s32.totalorder %s543, %s545
    %p549 = scmp.eq.s32.totalorder %s32, 0
    %p550 = por %p548, %p549
    %p551 = scmp.ne.s32.totalorder %s543, %s545
    %p552 = scmp.eq.s32.totalorder %s37, 1
    %p553 = por %p551, %p552
    %p554 = scmp.ne.s32.totalorder %s545, %s546
    %p555 = scmp.eq.s32.totalorder %s37, 0
    %p556 = por %p554, %p555
    %p557 = scmp.ne.s32.totalorder %s545, %s546
    %p558 = scmp.eq.s32.totalorder %s38, 1
    %p559 = por %p557, %p558
    %p561 = scmp.ne.s32.totalorder %s546, %s560
    %p562 = scmp.eq.s32.totalorder %s38, 0
    %p563 = por %p561, %p562
    %s564 = ssub.s32 %s32, %s39
    %p565 = scmp.eq.s32.totalorder %s564, 0
    %s567 = sadd.s32 %s566, 1
    %s568 = scalar_select %p565, %s566, %s567
    %p571 = pneg %p565
    %p572 = scmp.eq.s32.totalorder %s32, 1
    %p573 = por %p571, %p572
    %p574 = scmp.ne.s32.totalorder %s566, %s569
    %p575 = scmp.eq.s32.totalorder %s32, 0
    %p576 = por %p574, %p575
    %p577 = scmp.ne.s32.totalorder %s566, %s569
    %p578 = scmp.eq.s32.totalorder %s37, 1
    %p579 = por %p577, %p578
    %p580 = scmp.ne.s32.totalorder %s569, %s570
    %p581 = scmp.eq.s32.totalorder %s37, 0
    %p582 = por %p580, %p581
    %p583 = scmp.ne.s32.totalorder %s569, %s570
    %p584 = scmp.eq.s32.totalorder %s38, 1
    %p585 = por %p583, %p584
    %p587 = scmp.ne.s32.totalorder %s570, %s586
    %p588 = scmp.eq.s32.totalorder %s38, 0
    %p589 = por %p587, %p588
    %s590 = ssub.s32 %s32, %s39
    %p591 = scmp.eq.s32.totalorder %s590, 0
    %s593 = sadd.s32 %s592, 1
    %s594 = scalar_select %p591, %s592, %s593
    %p597 = pneg %p591
    %p598 = scmp.eq.s32.totalorder %s32, 1
    %p599 = por %p597, %p598
    %p600 = scmp.ne.s32.totalorder %s592, %s595
    %p601 = scmp.eq.s32.totalorder %s32, 0
    %p602 = por %p600, %p601
    %p603 = scmp.ne.s32.totalorder %s592, %s595
    %p604 = scmp.eq.s32.totalorder %s37, 1
    %p605 = por %p603, %p604
    %p606 = scmp.ne.s32.totalorder %s595, %s596
    %p607 = scmp.eq.s32.totalorder %s37, 0
    %p608 = por %p606, %p607
    %p609 = scmp.ne.s32.totalorder %s595, %s596
    %p610 = scmp.eq.s32.totalorder %s38, 1
    %p611 = por %p609, %p610
    %p613 = scmp.ne.s32.totalorder %s596, %s612
    %p614 = scmp.eq.s32.totalorder %s38, 0
    %p615 = por %p613, %p614
    %p616 = scmp.le.s32.totalorder 1, %s32
    %p617 = scmp.lt.s32.totalorder %s32, 3
    %p618 = pnand %p616, %p617
    %p619 = pneg %p618
    // Predicated region
    $region9: #{seq2seq_forward.7} parent=5 // pred_check
      _
    $region10: #{seq2seq_forward.7} parent=5 // pred_check_branch
      %621 = sbr.rel (%p618) target = $region12
    $region11: #{seq2seq_forward.7} parent=5 // pred_region
      %s622 = ssub.s32 %s32, 1
      // Predicated region
      $region13: #{seq2seq_forward.7} parent=11 // pred_check
        %p623 = pneg %p157
      $region14: #{seq2seq_forward.7} parent=11 // pred_check_branch
        %625 = sbr.rel (%p623) target = $region16
      $region15: #{seq2seq_forward.7} parent=11 // pred_region
        _
      $region16: #{seq2seq_forward.7} parent=11 // pred_fallthru
        _
      // Predicated region
      $region17: #{seq2seq_forward.7} parent=11 // pred_check
        %p626 = pneg %p178
      $region18: #{seq2seq_forward.7} parent=11 // pred_check_branch
        %628 = sbr.rel (%p626) target = $region20
      $region19: #{seq2seq_forward.7} parent=11 // pred_region
        _
      $region20: #{seq2seq_forward.7} parent=11 // pred_fallthru
        _
      // Predicated region
      $region21: #{seq2seq_forward.7} parent=11 // pred_check
        %p629 = pneg %p199
      $region22: #{seq2seq_forward.7} parent=11 // pred_check_branch
        %631 = sbr.rel (%p629) target = $region24
      $region23: #{seq2seq_forward.7} parent=11 // pred_region
        _
      $region24: #{seq2seq_forward.7} parent=11 // pred_fallthru
        _
      // Predicated region
      $region25: #{seq2seq_forward.7} parent=11 // pred_check
        %p632 = pneg %p220
      $region26: #{seq2seq_forward.7} parent=11 // pred_check_branch
        %634 = sbr.rel (%p632) target = $region28
      $region27: #{seq2seq_forward.7} parent=11 // pred_region
        _
      $region28: #{seq2seq_forward.7} parent=11 // pred_fallthru
        _
      // Predicated region
      $region29: #{seq2seq_forward.7} parent=11 // pred_check
        %p635 = pneg %p241
      $region30: #{seq2seq_forward.7} parent=11 // pred_check_branch
        %637 = sbr.rel (%p635) target = $region32
      $region31: #{seq2seq_forward.7} parent=11 // pred_region
        _
      $region32: #{seq2seq_forward.7} parent=11 // pred_fallthru
        _
      // Predicated region
      $region33: #{seq2seq_forward.7} parent=11 // pred_check
        %p638 = pneg %p262
      $region34: #{seq2seq_forward.7} parent=11 // pred_check_branch
        %640 = sbr.rel (%p638) target = $region36
      $region35: #{seq2seq_forward.7} parent=11 // pred_region
        _
      $region36: #{seq2seq_forward.7} parent=11 // pred_fallthru
        _
      // Predicated region
      $region37: #{seq2seq_forward.7} parent=11 // pred_check
        %p641 = pneg %p283
      $region38: #{seq2seq_forward.7} parent=11 // pred_check_branch
        %643 = sbr.rel (%p641) target = $region40
      $region39: #{seq2seq_forward.7} parent=11 // pred_region
        _
      $region40: #{seq2seq_forward.7} parent=11 // pred_fallthru
        _
      // Predicated region
      $region41: #{seq2seq_forward.7} parent=11 // pred_check
        %p644 = pneg %p304
      $region42: #{seq2seq_forward.7} parent=11 // pred_check_branch
        %646 = sbr.rel (%p644) target = $region44
      $region43: #{seq2seq_forward.7} parent=11 // pred_region
        _
      $region44: #{seq2seq_forward.7} parent=11 // pred_fallthru
        _
      // Predicated region
      $region45: #{seq2seq_forward.7} parent=11 // pred_check
        %p647 = pneg %p325
      $region46: #{seq2seq_forward.7} parent=11 // pred_check_branch
        %649 = sbr.rel (%p647) target = $region48
      $region47: #{seq2seq_forward.7} parent=11 // pred_region
        _
      $region48: #{seq2seq_forward.7} parent=11 // pred_fallthru
        _
      // Predicated region
      $region49: #{seq2seq_forward.7} parent=11 // pred_check
        %p650 = pneg %p346
      $region50: #{seq2seq_forward.7} parent=11 // pred_check_branch
        %652 = sbr.rel (%p650) target = $region52
      $region51: #{seq2seq_forward.7} parent=11 // pred_region
        _
      $region52: #{seq2seq_forward.7} parent=11 // pred_fallthru
        _
      // Predicated region
      $region53: #{seq2seq_forward.7} parent=11 // pred_check
        %p653 = pneg %p367
      $region54: #{seq2seq_forward.7} parent=11 // pred_check_branch
        %655 = sbr.rel (%p653) target = $region56
      $region55: #{seq2seq_forward.7} parent=11 // pred_region
        _
      $region56: #{seq2seq_forward.7} parent=11 // pred_fallthru
        _
      // Predicated region
      $region57: #{seq2seq_forward.7} parent=11 // pred_check
        %p656 = pneg %p388
      $region58: #{seq2seq_forward.7} parent=11 // pred_check_branch
        %658 = sbr.rel (%p656) target = $region60
      $region59: #{seq2seq_forward.7} parent=11 // pred_region
        _
      $region60: #{seq2seq_forward.7} parent=11 // pred_fallthru
        _
      // Predicated region
      $region61: #{seq2seq_forward.7} parent=11 // pred_check
        %p659 = pneg %p409
      $region62: #{seq2seq_forward.7} parent=11 // pred_check_branch
        %661 = sbr.rel (%p659) target = $region64
      $region63: #{seq2seq_forward.7} parent=11 // pred_region
        _
      $region64: #{seq2seq_forward.7} parent=11 // pred_fallthru
        _
      // Predicated region
      $region65: #{seq2seq_forward.7} parent=11 // pred_check
        %p662 = pneg %p430
      $region66: #{seq2seq_forward.7} parent=11 // pred_check_branch
        %664 = sbr.rel (%p662) target = $region68
      $region67: #{seq2seq_forward.7} parent=11 // pred_region
        _
      $region68: #{seq2seq_forward.7} parent=11 // pred_fallthru
        _
      // Predicated region
      $region69: #{seq2seq_forward.7} parent=11 // pred_check
        %p665 = pneg %p451
      $region70: #{seq2seq_forward.7} parent=11 // pred_check_branch
        %667 = sbr.rel (%p665) target = $region72
      $region71: #{seq2seq_forward.7} parent=11 // pred_region
        _
      $region72: #{seq2seq_forward.7} parent=11 // pred_fallthru
        _
      // Predicated region
      $region73: #{seq2seq_forward.7} parent=11 // pred_check
        %p668 = pneg %p472
      $region74: #{seq2seq_forward.7} parent=11 // pred_check_branch
        %670 = sbr.rel (%p668) target = $region76
      $region75: #{seq2seq_forward.7} parent=11 // pred_region
        _
      $region76: #{seq2seq_forward.7} parent=11 // pred_fallthru
        _
      // Predicated region
      $region77: #{seq2seq_forward.7} parent=11 // pred_check
        %p671 = pneg %p493
      $region78: #{seq2seq_forward.7} parent=11 // pred_check_branch
        %673 = sbr.rel (%p671) target = $region80
      $region79: #{seq2seq_forward.7} parent=11 // pred_region
        _
      $region80: #{seq2seq_forward.7} parent=11 // pred_fallthru
        _
      // Predicated region
      $region81: #{seq2seq_forward.7} parent=11 // pred_check
        %p674 = pneg %p514
      $region82: #{seq2seq_forward.7} parent=11 // pred_check_branch
        %676 = sbr.rel (%p674) target = $region84
      $region83: #{seq2seq_forward.7} parent=11 // pred_region
        _
      $region84: #{seq2seq_forward.7} parent=11 // pred_fallthru
        _
      // Predicated region
      $region85: #{seq2seq_forward.7} parent=11 // pred_check
        %p677 = pneg %p535
      $region86: #{seq2seq_forward.7} parent=11 // pred_check_branch
        %679 = sbr.rel (%p677) target = $region88
      $region87: #{seq2seq_forward.7} parent=11 // pred_region
        _
      $region88: #{seq2seq_forward.7} parent=11 // pred_fallthru
        _
      // Predicated region
      $region89: #{seq2seq_forward.7} parent=11 // pred_check
        %p680 = pneg %p556
      $region90: #{seq2seq_forward.7} parent=11 // pred_check_branch
        %682 = sbr.rel (%p680) target = $region92
      $region91: #{seq2seq_forward.7} parent=11 // pred_region
        _
      $region92: #{seq2seq_forward.7} parent=11 // pred_fallthru
        _
    $region12: #{seq2seq_forward.7} parent=5 // pred_fallthru
      _
    %p683 = scmp.lt.s32.totalorder %s32, 2
    // Predicated region
    $region93: #{seq2seq_forward.7} parent=5 // pred_check
      %p684 = pneg %p683
    $region94: #{seq2seq_forward.7} parent=5 // pred_check_branch
      %686 = sbr.rel (%p684) target = $region96
    $region95: #{seq2seq_forward.7} parent=5 // pred_region
      // Predicated region
      $region97: #{seq2seq_forward.7} parent=95 // pred_check
        %p687 = pneg %p52
      $region98: #{seq2seq_forward.7} parent=95 // pred_check_branch
        %689 = sbr.rel (%p687) target = $region100
      $region99: #{seq2seq_forward.7} parent=95 // pred_region
        %p690 = scmp.lt.s32.totalorder %s32, 1
        %s691 = scalar_select %p690, %s32, 1
        %s692 = smul.addr %s691, 8
        %s693 = scalar_lea.vmem %s0, %s692
      $region100: #{seq2seq_forward.7} parent=95 // pred_fallthru
        _
      // Predicated region
      $region101: #{seq2seq_forward.7} parent=95 // pred_check
        %p694 = pneg %p78
      $region102: #{seq2seq_forward.7} parent=95 // pred_check_branch
        %696 = sbr.rel (%p694) target = $region104
      $region103: #{seq2seq_forward.7} parent=95 // pred_region
        %p697 = scmp.lt.s32.totalorder %s32, 1
        %s698 = scalar_select %p697, %s32, 1
        %s699 = smul.addr %s698, 8
        %s700 = scalar_lea.vmem %s1, %s699
      $region104: #{seq2seq_forward.7} parent=95 // pred_fallthru
        _
      // Predicated region
      $region105: #{seq2seq_forward.7} parent=95 // pred_check
        %p701 = pneg %p104
      $region106: #{seq2seq_forward.7} parent=95 // pred_check_branch
        %703 = sbr.rel (%p701) target = $region108
      $region107: #{seq2seq_forward.7} parent=95 // pred_region
        %p704 = scmp.lt.s32.totalorder %s32, 1
        %s705 = scalar_select %p704, %s32, 1
        %s706 = smul.addr %s705, 8
        %s707 = scalar_lea.vmem %s2, %s706
      $region108: #{seq2seq_forward.7} parent=95 // pred_fallthru
        _
      // Predicated region
      $region109: #{seq2seq_forward.7} parent=95 // pred_check
        %p708 = pneg %p130
      $region110: #{seq2seq_forward.7} parent=95 // pred_check_branch
        %710 = sbr.rel (%p708) target = $region112
      $region111: #{seq2seq_forward.7} parent=95 // pred_region
        %p711 = scmp.lt.s32.totalorder %s32, 1
        %s712 = scalar_select %p711, %s32, 1
        %s713 = scalar_lea.vmem %s3, %s712
      $region112: #{seq2seq_forward.7} parent=95 // pred_fallthru
        _
    $region96: #{seq2seq_forward.7} parent=5 // pred_fallthru
      _
    %p714 = scmp.le.s32.totalorder 1, %s32
    %p715 = scmp.lt.s32.totalorder %s32, 3
    %p716 = pnand %p714, %p715
    %p717 = pneg %p716
    // Predicated region
    $region113: #{seq2seq_forward.7} parent=5 // pred_check
      _
    $region114: #{seq2seq_forward.7} parent=5 // pred_check_branch
      %719 = sbr.rel (%p716) target = $region116
    $region115: #{seq2seq_forward.7} parent=5 // pred_region
      %s720 = ssub.s32 %s32, 1
      %p721 = scmp.lt.s32.totalorder %s37, 1
      %s722 = scalar_select %p721, %s37, 1
      %s723 = smul.addr %s722, 8
      %s724 = scalar_lea.vmem %s0, %s723
      %p725 = pneg %p58
      %p726 = pneg %p55
      %p727 = scmp.lt.s32.totalorder %s37, 1
      %s728 = scalar_select %p727, %s37, 1
      %s729 = smul.addr %s728, 8
      %s730 = scalar_lea.vmem %s1, %s729
      %p731 = pneg %p84
      %p732 = pneg %p81
      %p733 = scmp.lt.s32.totalorder %s37, 1
      %s734 = scalar_select %p733, %s37, 1
      %s735 = smul.addr %s734, 8
      %s736 = scalar_lea.vmem %s2, %s735
      %p737 = pneg %p110
      %p738 = pneg %p107
      %p739 = scmp.lt.s32.totalorder %s37, 1
      %s740 = scalar_select %p739, %s37, 1
      %s741 = scalar_lea.vmem %s3, %s740
      %p742 = pneg %p136
      %p743 = pneg %p133
      %p744 = pneg %p157
      %p745 = pneg %p154
      %p746 = pneg %p178
      %p747 = pneg %p175
      %p748 = pneg %p199
      %p749 = pneg %p196
      %p750 = pneg %p220
      %p751 = pneg %p217
      %p752 = pneg %p241
      %p753 = pneg %p238
      %p754 = pneg %p262
      %p755 = pneg %p259
      %p756 = pneg %p283
      %p757 = pneg %p280
      %p758 = pneg %p304
      %p759 = pneg %p301
      %p760 = pneg %p325
      %p761 = pneg %p322
      %p762 = pneg %p346
      %p763 = pneg %p343
      %p764 = pneg %p367
      %p765 = pneg %p364
      %p766 = pneg %p388
      %p767 = pneg %p385
      %p768 = pneg %p409
      %p769 = pneg %p406
      %p770 = pneg %p430
      %p771 = pneg %p427
      %p772 = pneg %p451
      %p773 = pneg %p448
      %p774 = pneg %p472
      %p775 = pneg %p469
      %p776 = pneg %p493
      %p777 = pneg %p490
      %p778 = pneg %p514
      %p779 = pneg %p511
      %p780 = pneg %p535
      %p781 = pneg %p532
      %p782 = pneg %p556
      %p783 = pneg %p553
      %p784 = pneg %p582
      %p785 = pneg %p579
      %p786 = scmp.lt.s32.totalorder %s37, 1
      %s787 = scalar_select %p786, %s37, 1
      %s788 = smul.addr %s787, 8
      %s789 = scalar_lea.vmem %s24, %s788
      %p790 = pneg %p608
      %p791 = pneg %p605
      %p792 = scmp.lt.s32.totalorder %s37, 1
      %s793 = scalar_select %p792, %s37, 1
      %s794 = smul.addr %s793, 4
      %s795 = smul.addr %s794, 8
      %s796 = scalar_lea.vmem %s25, %s795
      %p797 = scmp.lt.s32.totalorder %s37, 1
      %s798 = scalar_select %p797, %s37, 1
      %s799 = smul.addr %s798, 8
      %s800 = scalar_lea.vmem %s0, %s799
      %p801 = scmp.lt.s32.totalorder %s37, 1
      %s802 = scalar_select %p801, %s37, 1
      %s803 = smul.addr %s802, 8
      %s804 = scalar_lea.vmem %s1, %s803
      %p805 = scmp.lt.s32.totalorder %s37, 1
      %s806 = scalar_select %p805, %s37, 1
      %s807 = smul.addr %s806, 8
      %s808 = scalar_lea.vmem %s2, %s807
      %p809 = scmp.lt.s32.totalorder %s37, 1
      %s810 = scalar_select %p809, %s37, 1
      %s811 = scalar_lea.vmem %s3, %s810
      %p812 = scmp.lt.s32.totalorder %s37, 1
      %s813 = scalar_select %p812, %s37, 1
      %s814 = smul.addr %s813, 8
      %s815 = scalar_lea.vmem %s24, %s814
      %p816 = scmp.lt.s32.totalorder %s37, 1
      %s817 = scalar_select %p816, %s37, 1
      %s818 = smul.addr %s817, 4
      %s819 = smul.addr %s818, 8
      %s820 = scalar_lea.vmem %s25, %s819
      %v821 = vld [vmem:[%s800] sm:$0x3f]
      %v822 = vld [vmem:[%s804] sm:$0xff]
      %v823 = vld [vmem:[%s808] sm:$0x3f]
      %v824 = vld [vmem:[%s811] sm:$0x1]
      %v825 = vld [vmem:[%s4] sm:$0xff]
      %v826 = vld [vmem:[%s4 + $0x8] sm:$0xff]
      %v827 = vld [vmem:[%s4 + $0x10] sm:$0xff]
      %v828 = vld [vmem:[%s4 + $0x18] sm:$0xff]
      %v829 = vld [vmem:[%s5] sm:$0x1]
      %v830 = vld [vmem:[%s6] sm:$0xff]
      %v831 = vld [vmem:[%s6 + $0x8] sm:$0xff]
      %v832 = vld [vmem:[%s6 + $0x10] sm:$0xff]
      %v833 = vld [vmem:[%s6 + $0x18] sm:$0xff]
      %v834 = vld [vmem:[%s7] sm:$0x1]
      %v835 = vld [vmem:[%s8] sm:$0x1]
      %v836 = vld [vmem:[%s9] sm:$0x1]
      %v837 = vld [vmem:[%s10] sm:$0xff]
      %v838 = vld [vmem:[%s10 + $0x8] sm:$0xff]
      %v839 = vld [vmem:[%s10 + $0x10] sm:$0xff]
      %v840 = vld [vmem:[%s10 + $0x18] sm:$0xff]
      %v841 = vld [vmem:[%s11] sm:$0x1]
      %v842 = vld [vmem:[%s12] sm:$0xff]
      %v843 = vld [vmem:[%s12 + $0x8] sm:$0xff]
      %v844 = vld [vmem:[%s12 + $0x10] sm:$0xff]
      %v845 = vld [vmem:[%s12 + $0x18] sm:$0xff]
      %v846 = vld [vmem:[%s13] sm:$0x1]
      %v847 = vld [vmem:[%s14] sm:$0x1]
      %v848 = vld [vmem:[%s15] sm:$0x1]
      %v849 = vld [vmem:[%s16] sm:$0xff]
      %v850 = vld [vmem:[%s16 + $0x8] sm:$0xff]
      %v851 = vld [vmem:[%s16 + $0x10] sm:$0xff]
      %v852 = vld [vmem:[%s16 + $0x18] sm:$0xff]
      %v853 = vld [vmem:[%s17] sm:$0x1]
      %v854 = vld [vmem:[%s18] sm:$0xff]
      %v855 = vld [vmem:[%s18 + $0x8] sm:$0xff]
      %v856 = vld [vmem:[%s18 + $0x10] sm:$0xff]
      %v857 = vld [vmem:[%s18 + $0x18] sm:$0xff]
      %v858 = vld [vmem:[%s18 + $0x20] sm:$0xff]
      %v859 = vld [vmem:[%s18 + $0x28] sm:$0xff]
      %v860 = vld [vmem:[%s18 + $0x30] sm:$0xff]
      %v861 = vld [vmem:[%s18 + $0x38] sm:$0xff]
      %v862 = vld [vmem:[%s19] sm:$0x1]
      %v863 = vld [vmem:[%s20] sm:$0x1]
      %v864 = vld [vmem:[%s21] sm:$0x1]
      %v866 = vlaneseq
      %v867 = vshrl.u32 %v866, 7
      %v868 = vsub.s32 0, %v867
      %v869 = vrot.slane %v829, %v868
      %vm871 = vcmask 261120
      %v873 = vsel %vm871, %v821, 0
      %875 = vmatprep.subr.mxu0 0.0
      %876 = vmatpush1.msra.mxu0 %v825
      %877 = vmatprep.subr.mxu0 0.0
      %878 = vmatpush1.msra.mxu0 %v826
      %879 = vmatprep.subr.mxu0 0.0
      %880 = vmatpush1.msra.mxu0 %v827
      %881 = vmatprep.subr.mxu0 0.0
      %882 = vmatpush1.msra.mxu0 %v828
      %883 = vmatprep.subr.mxu0 0.0
      %884 = vmatpush1.msra.mxu0 0.0
      %885 = vmatprep.subr.mxu0 0.0
      %886 = vmatpush1.msra.mxu0 0.0
      %887 = vmatprep.subr.mxu0 0.0
      %888 = vmatpush1.msra.mxu0 0.0
      %889 = vmatprep.subr.mxu0 0.0
      %890 = vmatpush1.msra.mxu0 0.0
      %891 = vmatprep.subr.mxu0 0.0
      %892 = vmatpush1.msra.mxu0 0.0
      %893 = vmatprep.subr.mxu0 0.0
      %894 = vmatpush1.msra.mxu0 0.0
      %895 = vmatprep.subr.mxu0 0.0
      %896 = vmatpush1.msra.mxu0 0.0
      %897 = vmatprep.subr.mxu0 0.0
      %898 = vmatpush1.msra.mxu0 0.0
      %899 = vmatprep.subr.mxu0 0.0
      %900 = vmatpush1.msra.mxu0 0.0
      %901 = vmatprep.subr.mxu0 0.0
      %902 = vmatpush1.msra.mxu0 0.0
      %903 = vmatprep.subr.mxu0 0.0
      %904 = vmatpush1.msra.mxu0 0.0
      %905 = vmatprep.subr.mxu0 0.0
      %906 = vmatpush1.msra.mxu0 0.0
      %907 = vmatprep.subr.mxu0 0.0
      %908 = vmatpush1.msra.mxu0 0.0
      %909 = vmatprep.subr.mxu0 0.0
      %910 = vmatpush1.msra.mxu0 0.0
      %911 = vmatprep.subr.mxu0 0.0
      %912 = vmatpush1.msra.mxu0 0.0
      %913 = vmatprep.subr.mxu0 0.0
      %914 = vmatpush1.msra.mxu0 0.0
      %915 = vmatprep.subr.mxu0 0.0
      %916 = vmatpush1.msra.mxu0 0.0
      %917 = vmatprep.subr.mxu0 0.0
      %918 = vmatpush1.msra.mxu0 0.0
      %919 = vmatprep.subr.mxu0 0.0
      %920 = vmatpush1.msra.mxu0 0.0
      %921 = vmatprep.subr.mxu0 0.0
      %922 = vmatpush1.msra.mxu0 0.0
      %923 = vmatprep.subr.mxu0 0.0
      %924 = vmatpush1.msra.mxu0 0.0
      %925 = vmatprep.subr.mxu0 0.0
      %926 = vmatpush1.msra.mxu0 0.0
      %927 = vmatprep.subr.mxu0 0.0
      %928 = vmatpush1.msra.mxu0 0.0
      %929 = vmatprep.subr.mxu0 0.0
      %930 = vmatpush1.msra.mxu0 0.0
      %931 = vmatprep.subr.mxu0 0.0
      %932 = vmatpush1.msra.mxu0 0.0
      %933 = vmatprep.subr.mxu0 0.0
      %934 = vmatpush1.msra.mxu0 0.0
      %935 = vmatprep.subr.mxu0 0.0
      %936 = vmatpush1.msra.mxu0 0.0
      %937 = vmatprep.subr.mxu0 0.0
      %938 = vmatpush1.msra.mxu0 0.0
      %939 = vmatprep.mubr.f32.mxu0 0.0
      %940 = vmatmul.mubr.f32.gmra.mrb[0].mxu0 %v873
      %v941 = vpop.f32.mrb[0].mxu0
      %v942 = vadd.f32 %v869, %v941
      %v943 = vpop.f32.mrb[0].mxu0
      %944 = vdwg.mxu0
      %946 = vrot.lane.b32.xlu0 %v942, 96
      %v947 = vpop.permute.xlu0 %946
      %vm948 = vcmask 64512
      %v949 = vsel %vm948, %v942, 0
      %v951 = vsel %vm948, %v947, 0
      %953 = vmatprep.subr.mxu0 0.0
      %954 = vmatpush1.xpose.msra.mxu0 %v951
      %955 = vmatprep.subr.mxu0 0.0
      %956 = vmatpush1.xpose.msra.mxu0 0.0
      %957 = vmatprep.subr.mxu0 0.0
      %958 = vmatpush1.xpose.msra.mxu0 0.0
      %959 = vmatprep.subr.mxu0 0.0
      %960 = vmatpush1.xpose.msra.mxu0 0.0
      %961 = vmatprep.subr.mxu0 0.0
      %962 = vmatpush1.xpose.msra.mxu0 0.0
      %963 = vmatprep.subr.mxu0 0.0
      %964 = vmatpush1.xpose.msra.mxu0 0.0
      %965 = vmatprep.subr.mxu0 0.0
      %966 = vmatpush1.xpose.msra.mxu0 0.0
      %967 = vmatprep.subr.mxu0 0.0
      %968 = vmatpush1.xpose.msra.mxu0 0.0
      %969 = vmatprep.subr.mxu0 0.0
      %970 = vmatpush1.xpose.msra.mxu0 0.0
      %971 = vmatprep.subr.mxu0 0.0
      %972 = vmatpush1.xpose.msra.mxu0 0.0
      %973 = vmatprep.subr.mxu0 0.0
      %974 = vmatpush1.xpose.msra.mxu0 0.0
      %975 = vmatprep.subr.mxu0 0.0
      %976 = vmatpush1.xpose.msra.mxu0 0.0
      %977 = vmatprep.subr.mxu0 0.0
      %978 = vmatpush1.xpose.msra.mxu0 0.0
      %979 = vmatprep.subr.mxu0 0.0
      %980 = vmatpush1.xpose.msra.mxu0 0.0
      %981 = vmatprep.subr.mxu0 0.0
      %982 = vmatpush1.xpose.msra.mxu0 0.0
      %983 = vmatprep.subr.mxu0 0.0
      %984 = vmatpush1.xpose.msra.mxu0 0.0
      %985 = vmatprep.subr.mxu0 0.0
      %986 = vmatpush1.xpose.msra.mxu0 0.0
      %987 = vmatprep.subr.mxu0 0.0
      %988 = vmatpush1.xpose.msra.mxu0 0.0
      %989 = vmatprep.subr.mxu0 0.0
      %990 = vmatpush1.xpose.msra.mxu0 0.0
      %991 = vmatprep.subr.mxu0 0.0
      %992 = vmatpush1.xpose.msra.mxu0 0.0
      %993 = vmatprep.subr.mxu0 0.0
      %994 = vmatpush1.xpose.msra.mxu0 0.0
      %995 = vmatprep.subr.mxu0 0.0
      %996 = vmatpush1.xpose.msra.mxu0 0.0
      %997 = vmatprep.subr.mxu0 0.0
      %998 = vmatpush1.xpose.msra.mxu0 0.0
      %999 = vmatprep.subr.mxu0 0.0
      %1000 = vmatpush1.xpose.msra.mxu0 0.0
      %1001 = vmatprep.subr.mxu0 0.0
      %1002 = vmatpush1.xpose.msra.mxu0 0.0
      %1003 = vmatprep.subr.mxu0 0.0
      %1004 = vmatpush1.xpose.msra.mxu0 0.0
      %1005 = vmatprep.subr.mxu0 0.0
      %1006 = vmatpush1.xpose.msra.mxu0 0.0
      %1007 = vmatprep.subr.mxu0 0.0
      %1008 = vmatpush1.xpose.msra.mxu0 0.0
      %1009 = vmatprep.subr.mxu0 0.0
      %1010 = vmatpush1.xpose.msra.mxu0 0.0
      %1011 = vmatprep.subr.mxu0 0.0
      %1012 = vmatpush1.xpose.msra.mxu0 0.0
      %1013 = vmatprep.subr.mxu0 0.0
      %1014 = vmatpush1.xpose.msra.mxu0 0.0
      %1015 = vmatprep.subr.mxu0 0.0
      %1016 = vmatpush1.xpose.msra.mxu0 0.0
      %1017 = vmatprep.mubr.f32.mxu0 0.0
      %1018 = vmatmul.mubr.f32.gmra.mrb[0].mxu0 %v949
      %v1019 = vpop.f32.mrb[0].mxu0
      %v1020 = vadd.f32 0.0, %v1019
      %v1021 = vpop.f32.mrb[0].mxu0
      %1022 = vdwg.mxu0
      %v1023 = vmul.f32 %v1020, 0.35355338
      %vm1024 = vcmp.gt.s32.totalorder %v823, 0
      %v1025 = vsel %vm1024, %v1023, -1e+10
      %vm1026 = vcmask 46080
      %v1027 = vsel %vm1026, %v1025, -inf
      %1028 = vmax.xlane.f32.xlu0 %v1027
      %v1029 = vpop.xlane.xlu0 %1028
      %v1030 = vsub.f32 %v1025, %v1029
      %v1031 = vmul.f32 %v1030, 1.442695
      %v1032 = vpow.pop %v1031
      %v1033 = vsel %vm1026, %v1032, 0.0
      %1034 = vadd.xlane.f32.xlu0 %v1033
      %v1035 = vpop.xlane.xlu0 %1034
      %v1036 = vrcp.pop %v1035
      %v1037 = vmul.f32 %v1032, %v1036
      %1038 = vrot.lane.b32.xlu0 %v942, 64
      %v1039 = vpop.permute.xlu0 %1038
      %vm1040 = vcmask 48128
      %v1042 = vsel %vm1040, %v1037, 0
      %vm1044 = vcmask 1045504
      %v1045 = vsel %vm1044, %v1039, 0
      %1047 = vmatprep.subr.mxu0 0.0
      %1048 = vmatpush1.msra.mxu0 %v1045
      %1049 = vmatprep.subr.mxu0 0.0
      %1050 = vmatpush1.msra.mxu0 0.0
      %1051 = vmatprep.subr.mxu0 0.0
      %1052 = vmatpush1.msra.mxu0 0.0
      %1053 = vmatprep.subr.mxu0 0.0
      %1054 = vmatpush1.msra.mxu0 0.0
      %1055 = vmatprep.subr.mxu0 0.0
      %1056 = vmatpush1.msra.mxu0 0.0
      %1057 = vmatprep.subr.mxu0 0.0
      %1058 = vmatpush1.msra.mxu0 0.0
      %1059 = vmatprep.subr.mxu0 0.0
      %1060 = vmatpush1.msra.mxu0 0.0
      %1061 = vmatprep.subr.mxu0 0.0
      %1062 = vmatpush1.msra.mxu0 0.0
      %1063 = vmatprep.subr.mxu0 0.0
      %1064 = vmatpush1.msra.mxu0 0.0
      %1065 = vmatprep.subr.mxu0 0.0
      %1066 = vmatpush1.msra.mxu0 0.0
      %1067 = vmatprep.subr.mxu0 0.0
      %1068 = vmatpush1.msra.mxu0 0.0
      %1069 = vmatprep.subr.mxu0 0.0
      %1070 = vmatpush1.msra.mxu0 0.0
      %1071 = vmatprep.subr.mxu0 0.0
      %1072 = vmatpush1.msra.mxu0 0.0
      %1073 = vmatprep.subr.mxu0 0.0
      %1074 = vmatpush1.msra.mxu0 0.0
      %1075 = vmatprep.subr.mxu0 0.0
      %1076 = vmatpush1.msra.mxu0 0.0
      %1077 = vmatprep.subr.mxu0 0.0
      %1078 = vmatpush1.msra.mxu0 0.0
      %1079 = vmatprep.subr.mxu0 0.0
      %1080 = vmatpush1.msra.mxu0 0.0
      %1081 = vmatprep.subr.mxu0 0.0
      %1082 = vmatpush1.msra.mxu0 0.0
      %1083 = vmatprep.subr.mxu0 0.0
      %1084 = vmatpush1.msra.mxu0 0.0
      %1085 = vmatprep.subr.mxu0 0.0
      %1086 = vmatpush1.msra.mxu0 0.0
      %1087 = vmatprep.subr.mxu0 0.0
      %1088 = vmatpush1.msra.mxu0 0.0
      %1089 = vmatprep.subr.mxu0 0.0
      %1090 = vmatpush1.msra.mxu0 0.0
      %1091 = vmatprep.subr.mxu0 0.0
      %1092 = vmatpush1.msra.mxu0 0.0
      %1093 = vmatprep.subr.mxu0 0.0
      %1094 = vmatpush1.msra.mxu0 0.0
      %1095 = vmatprep.subr.mxu0 0.0
      %1096 = vmatpush1.msra.mxu0 0.0
      %1097 = vmatprep.subr.mxu0 0.0
      %1098 = vmatpush1.msra.mxu0 0.0
      %1099 = vmatprep.subr.mxu0 0.0
      %1100 = vmatpush1.msra.mxu0 0.0
      %1101 = vmatprep.subr.mxu0 0.0
      %1102 = vmatpush1.msra.mxu0 0.0
      %1103 = vmatprep.subr.mxu0 0.0
      %1104 = vmatpush1.msra.mxu0 0.0
      %1105 = vmatprep.subr.mxu0 0.0
      %1106 = vmatpush1.msra.mxu0 0.0
      %1107 = vmatprep.subr.mxu0 0.0
      %1108 = vmatpush1.msra.mxu0 0.0
      %1109 = vmatprep.subr.mxu0 0.0
      %1110 = vmatpush1.msra.mxu0 0.0
      %1111 = vmatprep.mubr.f32.mxu0 0.0
      %1112 = vmatmul.mubr.f32.gmra.mrb[0].mxu0 %v1042
      %v1113 = vpop.f32.mrb[0].mxu0
      %v1114 = vadd.f32 0.0, %v1113
      %v1115 = vpop.f32.mrb[0].mxu0
      %1116 = vdwg.mxu0
      %1117 = vrot.lane.b32.xlu0 %v942, 120
      %v1118 = vpop.permute.xlu0 %1117
      %1119 = vrot.lane.b32.xlu0 %v942, 88
      %v1120 = vpop.permute.xlu0 %1119
      %v1121 = vsel %vm948, %v1118, 0
      %v1123 = vsel %vm948, %v1120, 0
      %1125 = vmatprep.subr.mxu0 0.0
      %1126 = vmatpush1.xpose.msra.mxu0 %v1123
      %1127 = vmatprep.subr.mxu0 0.0
      %1128 = vmatpush1.xpose.msra.mxu0 0.0
      %1129 = vmatprep.subr.mxu0 0.0
      %1130 = vmatpush1.xpose.msra.mxu0 0.0
      %1131 = vmatprep.subr.mxu0 0.0
      %1132 = vmatpush1.xpose.msra.mxu0 0.0
      %1133 = vmatprep.subr.mxu0 0.0
      %1134 = vmatpush1.xpose.msra.mxu0 0.0
      %1135 = vmatprep.subr.mxu0 0.0
      %1136 = vmatpush1.xpose.msra.mxu0 0.0
      %1137 = vmatprep.subr.mxu0 0.0
      %1138 = vmatpush1.xpose.msra.mxu0 0.0
      %1139 = vmatprep.subr.mxu0 0.0
      %1140 = vmatpush1.xpose.msra.mxu0 0.0
      %1141 = vmatprep.subr.mxu0 0.0
      %1142 = vmatpush1.xpose.msra.mxu0 0.0
      %1143 = vmatprep.subr.mxu0 0.0
      %1144 = vmatpush1.xpose.msra.mxu0 0.0
      %1145 = vmatprep.subr.mxu0 0.0
      %1146 = vmatpush1.xpose.msra.mxu0 0.0
      %1147 = vmatprep.subr.mxu0 0.0
      %1148 = vmatpush1.xpose.msra.mxu0 0.0
      %1149 = vmatprep.subr.mxu0 0.0
      %1150 = vmatpush1.xpose.msra.mxu0 0.0
      %1151 = vmatprep.subr.mxu0 0.0
      %1152 = vmatpush1.xpose.msra.mxu0 0.0
      %1153 = vmatprep.subr.mxu0 0.0
      %1154 = vmatpush1.xpose.msra.mxu0 0.0
      %1155 = vmatprep.subr.mxu0 0.0
      %1156 = vmatpush1.xpose.msra.mxu0 0.0
      %1157 = vmatprep.subr.mxu0 0.0
      %1158 = vmatpush1.xpose.msra.mxu0 0.0
      %1159 = vmatprep.subr.mxu0 0.0
      %1160 = vmatpush1.xpose.msra.mxu0 0.0
      %1161 = vmatprep.subr.mxu0 0.0
      %1162 = vmatpush1.xpose.msra.mxu0 0.0
      %1163 = vmatprep.subr.mxu0 0.0
      %1164 = vmatpush1.xpose.msra.mxu0 0.0
      %1165 = vmatprep.subr.mxu0 0.0
      %1166 = vmatpush1.xpose.msra.mxu0 0.0
      %1167 = vmatprep.subr.mxu0 0.0
      %1168 = vmatpush1.xpose.msra.mxu0 0.0
      %1169 = vmatprep.subr.mxu0 0.0
      %1170 = vmatpush1.xpose.msra.mxu0 0.0
      %1171 = vmatprep.subr.mxu0 0.0
      %1172 = vmatpush1.xpose.msra.mxu0 0.0
      %1173 = vmatprep.subr.mxu0 0.0
      %1174 = vmatpush1.xpose.msra.mxu0 0.0
      %1175 = vmatprep.subr.mxu0 0.0
      %1176 = vmatpush1.xpose.msra.mxu0 0.0
      %1177 = vmatprep.subr.mxu0 0.0
      %1178 = vmatpush1.xpose.msra.mxu0 0.0
      %1179 = vmatprep.subr.mxu0 0.0
      %1180 = vmatpush1.xpose.msra.mxu0 0.0
      %1181 = vmatprep.subr.mxu0 0.0
      %1182 = vmatpush1.xpose.msra.mxu0 0.0
      %1183 = vmatprep.subr.mxu0 0.0
      %1184 = vmatpush1.xpose.msra.mxu0 0.0
      %1185 = vmatprep.subr.mxu0 0.0
      %1186 = vmatpush1.xpose.msra.mxu0 0.0
      %1187 = vmatprep.subr.mxu0 0.0
      %1188 = vmatpush1.xpose.msra.mxu0 0.0
      %1189 = vmatprep.mubr.f32.mxu0 0.0
      %1190 = vmatmul.mubr.f32.gmra.mrb[0].mxu0 %v1121
      %v1191 = vpop.f32.mrb[0].mxu0
      %v1192 = vadd.f32 0.0, %v1191
      %v1193 = vpop.f32.mrb[0].mxu0
      %1194 = vdwg.mxu0
      %v1195 = vmul.f32 %v1192, 0.35355338
      %v1196 = vsel %vm1024, %v1195, -1e+10
      %v1197 = vsel %vm1026, %v1196, -inf
      %1198 = vmax.xlane.f32.xlu0 %v1197
      %v1199 = vpop.xlane.xlu0 %1198
      %v1200 = vsub.f32 %v1196, %v1199
      %v1201 = vmul.f32 %v1200, 1.442695
      %v1202 = vpow.pop %v1201
      %v1203 = vsel %vm1026, %v1202, 0.0
      %1204 = vadd.xlane.f32.xlu0 %v1203
      %v1205 = vpop.xlane.xlu0 %1204
      %v1206 = vrcp.pop %v1205
      %v1207 = vmul.f32 %v1202, %v1206
      %1208 = vrot.lane.b32.xlu0 %v942, 56
      %v1209 = vpop.permute.xlu0 %1208
      %v1211 = vsel %vm1040, %v1207, 0
      %v1213 = vsel %vm1044, %v1209, 0
      %1215 = vmatprep.subr.mxu0 0.0
      %1216 = vmatpush1.msra.mxu0 %v1213
      %1217 = vmatprep.subr.mxu0 0.0
      %1218 = vmatpush1.msra.mxu0 0.0
      %1219 = vmatprep.subr.mxu0 0.0
      %1220 = vmatpush1.msra.mxu0 0.0
      %1221 = vmatprep.subr.mxu0 0.0
      %1222 = vmatpush1.msra.mxu0 0.0
      %1223 = vmatprep.subr.mxu0 0.0
      %1224 = vmatpush1.msra.mxu0 0.0
      %1225 = vmatprep.subr.mxu0 0.0
      %1226 = vmatpush1.msra.mxu0 0.0
      %1227 = vmatprep.subr.mxu0 0.0
      %1228 = vmatpush1.msra.mxu0 0.0
      %1229 = vmatprep.subr.mxu0 0.0
      %1230 = vmatpush1.msra.mxu0 0.0
      %1231 = vmatprep.subr.mxu0 0.0
      %1232 = vmatpush1.msra.mxu0 0.0
      %1233 = vmatprep.subr.mxu0 0.0
      %1234 = vmatpush1.msra.mxu0 0.0
      %1235 = vmatprep.subr.mxu0 0.0
      %1236 = vmatpush1.msra.mxu0 0.0
      %1237 = vmatprep.subr.mxu0 0.0
      %1238 = vmatpush1.msra.mxu0 0.0
      %1239 = vmatprep.subr.mxu0 0.0
      %1240 = vmatpush1.msra.mxu0 0.0
      %1241 = vmatprep.subr.mxu0 0.0
      %1242 = vmatpush1.msra.mxu0 0.0
      %1243 = vmatprep.subr.mxu0 0.0
      %1244 = vmatpush1.msra.mxu0 0.0
      %1245 = vmatprep.subr.mxu0 0.0
      %1246 = vmatpush1.msra.mxu0 0.0
      %1247 = vmatprep.subr.mxu0 0.0
      %1248 = vmatpush1.msra.mxu0 0.0
      %1249 = vmatprep.subr.mxu0 0.0
      %1250 = vmatpush1.msra.mxu0 0.0
      %1251 = vmatprep.subr.mxu0 0.0
      %1252 = vmatpush1.msra.mxu0 0.0
      %1253 = vmatprep.subr.mxu0 0.0
      %1254 = vmatpush1.msra.mxu0 0.0
      %1255 = vmatprep.subr.mxu0 0.0
      %1256 = vmatpush1.msra.mxu0 0.0
      %1257 = vmatprep.subr.mxu0 0.0
      %1258 = vmatpush1.msra.mxu0 0.0
      %1259 = vmatprep.subr.mxu0 0.0
      %1260 = vmatpush1.msra.mxu0 0.0
      %1261 = vmatprep.subr.mxu0 0.0
      %1262 = vmatpush1.msra.mxu0 0.0
      %1263 = vmatprep.subr.mxu0 0.0
      %1264 = vmatpush1.msra.mxu0 0.0
      %1265 = vmatprep.subr.mxu0 0.0
      %1266 = vmatpush1.msra.mxu0 0.0
      %1267 = vmatprep.subr.mxu0 0.0
      %1268 = vmatpush1.msra.mxu0 0.0
      %1269 = vmatprep.subr.mxu0 0.0
      %1270 = vmatpush1.msra.mxu0 0.0
      %1271 = vmatprep.subr.mxu0 0.0
      %1272 = vmatpush1.msra.mxu0 0.0
      %1273 = vmatprep.subr.mxu0 0.0
      %1274 = vmatpush1.msra.mxu0 0.0
      %1275 = vmatprep.subr.mxu0 0.0
      %1276 = vmatpush1.msra.mxu0 0.0
      %1277 = vmatprep.subr.mxu0 0.0
      %1278 = vmatpush1.msra.mxu0 0.0
      %1279 = vmatprep.mubr.f32.mxu0 0.0
      %1280 = vmatmul.mubr.f32.gmra.mrb[0].mxu0 %v1211
      %v1281 = vpop.f32.mrb[0].mxu0
      %v1282 = vadd.f32 0.0, %v1281
      %v1283 = vpop.f32.mrb[0].mxu0
      %1284 = vdwg.mxu0
      %1285 = vrot.lane.b32.xlu0 %v942, 112
      %v1286 = vpop.permute.xlu0 %1285
      %1287 = vrot.lane.b32.xlu0 %v942, 80
      %v1288 = vpop.permute.xlu0 %1287
      %v1289 = vsel %vm948, %v1286, 0
      %v1291 = vsel %vm948, %v1288, 0
      %1293 = vmatprep.subr.mxu0 0.0
      %1294 = vmatpush1.xpose.msra.mxu0 %v1291
      %1295 = vmatprep.subr.mxu0 0.0
      %1296 = vmatpush1.xpose.msra.mxu0 0.0
      %1297 = vmatprep.subr.mxu0 0.0
      %1298 = vmatpush1.xpose.msra.mxu0 0.0
      %1299 = vmatprep.subr.mxu0 0.0
      %1300 = vmatpush1.xpose.msra.mxu0 0.0
      %1301 = vmatprep.subr.mxu0 0.0
      %1302 = vmatpush1.xpose.msra.mxu0 0.0
      %1303 = vmatprep.subr.mxu0 0.0
      %1304 = vmatpush1.xpose.msra.mxu0 0.0
      %1305 = vmatprep.subr.mxu0 0.0
      %1306 = vmatpush1.xpose.msra.mxu0 0.0
      %1307 = vmatprep.subr.mxu0 0.0
      %1308 = vmatpush1.xpose.msra.mxu0 0.0
      %1309 = vmatprep.subr.mxu0 0.0
      %1310 = vmatpush1.xpose.msra.mxu0 0.0
      %1311 = vmatprep.subr.mxu0 0.0
      %1312 = vmatpush1.xpose.msra.mxu0 0.0
      %1313 = vmatprep.subr.mxu0 0.0
      %1314 = vmatpush1.xpose.msra.mxu0 0.0
      %1315 = vmatprep.subr.mxu0 0.0
      %1316 = vmatpush1.xpose.msra.mxu0 0.0
      %1317 = vmatprep.subr.mxu0 0.0
      %1318 = vmatpush1.xpose.msra.mxu0 0.0
      %1319 = vmatprep.subr.mxu0 0.0
      %1320 = vmatpush1.xpose.msra.mxu0 0.0
      %1321 = vmatprep.subr.mxu0 0.0
      %1322 = vmatpush1.xpose.msra.mxu0 0.0
      %1323 = vmatprep.subr.mxu0 0.0
      %1324 = vmatpush1.xpose.msra.mxu0 0.0
      %1325 = vmatprep.subr.mxu0 0.0
      %1326 = vmatpush1.xpose.msra.mxu0 0.0
      %1327 = vmatprep.subr.mxu0 0.0
      %1328 = vmatpush1.xpose.msra.mxu0 0.0
      %1329 = vmatprep.subr.mxu0 0.0
      %1330 = vmatpush1.xpose.msra.mxu0 0.0
      %1331 = vmatprep.subr.mxu0 0.0
      %1332 = vmatpush1.xpose.msra.mxu0 0.0
      %1333 = vmatprep.subr.mxu0 0.0
      %1334 = vmatpush1.xpose.msra.mxu0 0.0
      %1335 = vmatprep.subr.mxu0 0.0
      %1336 = vmatpush1.xpose.msra.mxu0 0.0
      %1337 = vmatprep.subr.mxu0 0.0
      %1338 = vmatpush1.xpose.msra.mxu0 0.0
      %1339 = vmatprep.subr.mxu0 0.0
      %1340 = vmatpush1.xpose.msra.mxu0 0.0
      %1341 = vmatprep.subr.mxu0 0.0
      %1342 = vmatpush1.xpose.msra.mxu0 0.0
      %1343 = vmatprep.subr.mxu0 0.0
      %1344 = vmatpush1.xpose.msra.mxu0 0.0
      %1345 = vmatprep.subr.mxu0 0.0
      %1346 = vmatpush1.xpose.msra.mxu0 0.0
      %1347 = vmatprep.subr.mxu0 0.0
      %1348 = vmatpush1.xpose.msra.mxu0 0.0
      %1349 = vmatprep.subr.mxu0 0.0
      %1350 = vmatpush1.xpose.msra.mxu0 0.0
      %1351 = vmatprep.subr.mxu0 0.0
      %1352 = vmatpush1.xpose.msra.mxu0 0.0
      %1353 = vmatprep.subr.mxu0 0.0
      %1354 = vmatpush1.xpose.msra.mxu0 0.0
      %1355 = vmatprep.subr.mxu0 0.0
      %1356 = vmatpush1.xpose.msra.mxu0 0.0
      %1357 = vmatprep.mubr.f32.mxu0 0.0
      %1358 = vmatmul.mubr.f32.gmra.mrb[0].mxu0 %v1289
      %v1359 = vpop.f32.mrb[0].mxu0
      %v1360 = vadd.f32 0.0, %v1359
      %v1361 = vpop.f32.mrb[0].mxu0
      %1362 = vdwg.mxu0
      %v1363 = vmul.f32 %v1360, 0.35355338
      %v1364 = vsel %vm1024, %v1363, -1e+10
      %v1365 = vsel %vm1026, %v1364, -inf
      %1366 = vmax.xlane.f32.xlu0 %v1365
      %v1367 = vpop.xlane.xlu0 %1366
      %v1368 = vsub.f32 %v1364, %v1367
      %v1369 = vmul.f32 %v1368, 1.442695
      %v1370 = vpow.pop %v1369
      %v1371 = vsel %vm1026, %v1370, 0.0
      %1372 = vadd.xlane.f32.xlu0 %v1371
      %v1373 = vpop.xlane.xlu0 %1372
      %v1374 = vrcp.pop %v1373
      %v1375 = vmul.f32 %v1370, %v1374
      %1376 = vrot.lane.b32.xlu0 %v942, 48
      %v1377 = vpop.permute.xlu0 %1376
      %v1379 = vsel %vm1040, %v1375, 0
      %v1381 = vsel %vm1044, %v1377, 0
      %1383 = vmatprep.subr.mxu0 0.0
      %1384 = vmatpush1.msra.mxu0 %v1381
      %1385 = vmatprep.subr.mxu0 0.0
      %1386 = vmatpush1.msra.mxu0 0.0
      %1387 = vmatprep.subr.mxu0 0.0
      %1388 = vmatpush1.msra.mxu0 0.0
      %1389 = vmatprep.subr.mxu0 0.0
      %1390 = vmatpush1.msra.mxu0 0.0
      %1391 = vmatprep.subr.mxu0 0.0
      %1392 = vmatpush1.msra.mxu0 0.0
      %1393 = vmatprep.subr.mxu0 0.0
      %1394 = vmatpush1.msra.mxu0 0.0
      %1395 = vmatprep.subr.mxu0 0.0
      %1396 = vmatpush1.msra.mxu0 0.0
      %1397 = vmatprep.subr.mxu0 0.0
      %1398 = vmatpush1.msra.mxu0 0.0
      %1399 = vmatprep.subr.mxu0 0.0
      %1400 = vmatpush1.msra.mxu0 0.0
      %1401 = vmatprep.subr.mxu0 0.0
      %1402 = vmatpush1.msra.mxu0 0.0
      %1403 = vmatprep.subr.mxu0 0.0
      %1404 = vmatpush1.msra.mxu0 0.0
      %1405 = vmatprep.subr.mxu0 0.0
      %1406 = vmatpush1.msra.mxu0 0.0
      %1407 = vmatprep.subr.mxu0 0.0
      %1408 = vmatpush1.msra.mxu0 0.0
      %1409 = vmatprep.subr.mxu0 0.0
      %1410 = vmatpush1.msra.mxu0 0.0
      %1411 = vmatprep.subr.mxu0 0.0
      %1412 = vmatpush1.msra.mxu0 0.0
      %1413 = vmatprep.subr.mxu0 0.0
      %1414 = vmatpush1.msra.mxu0 0.0
      %1415 = vmatprep.subr.mxu0 0.0
      %1416 = vmatpush1.msra.mxu0 0.0
      %1417 = vmatprep.subr.mxu0 0.0
      %1418 = vmatpush1.msra.mxu0 0.0
      %1419 = vmatprep.subr.mxu0 0.0
      %1420 = vmatpush1.msra.mxu0 0.0
      %1421 = vmatprep.subr.mxu0 0.0
      %1422 = vmatpush1.msra.mxu0 0.0
      %1423 = vmatprep.subr.mxu0 0.0
      %1424 = vmatpush1.msra.mxu0 0.0
      %1425 = vmatprep.subr.mxu0 0.0
      %1426 = vmatpush1.msra.mxu0 0.0
      %1427 = vmatprep.subr.mxu0 0.0
      %1428 = vmatpush1.msra.mxu0 0.0
      %1429 = vmatprep.subr.mxu0 0.0
      %1430 = vmatpush1.msra.mxu0 0.0
      %1431 = vmatprep.subr.mxu0 0.0
      %1432 = vmatpush1.msra.mxu0 0.0
      %1433 = vmatprep.subr.mxu0 0.0
      %1434 = vmatpush1.msra.mxu0 0.0
      %1435 = vmatprep.subr.mxu0 0.0
      %1436 = vmatpush1.msra.mxu0 0.0
      %1437 = vmatprep.subr.mxu0 0.0
      %1438 = vmatpush1.msra.mxu0 0.0
      %1439 = vmatprep.subr.mxu0 0.0
      %1440 = vmatpush1.msra.mxu0 0.0
      %1441 = vmatprep.subr.mxu0 0.0
      %1442 = vmatpush1.msra.mxu0 0.0
      %1443 = vmatprep.subr.mxu0 0.0
      %1444 = vmatpush1.msra.mxu0 0.0
      %1445 = vmatprep.subr.mxu0 0.0
      %1446 = vmatpush1.msra.mxu0 0.0
      %1447 = vmatprep.mubr.f32.mxu0 0.0
      %1448 = vmatmul.mubr.f32.gmra.mrb[0].mxu0 %v1379
      %v1449 = vpop.f32.mrb[0].mxu0
      %v1450 = vadd.f32 0.0, %v1449
      %v1451 = vpop.f32.mrb[0].mxu0
      %1452 = vdwg.mxu0
      %1453 = vrot.lane.b32.xlu0 %v942, 104
      %v1454 = vpop.permute.xlu0 %1453
      %1455 = vrot.lane.b32.xlu0 %v942, 72
      %v1456 = vpop.permute.xlu0 %1455
      %v1457 = vsel %vm948, %v1454, 0
      %v1459 = vsel %vm948, %v1456, 0
      %1461 = vmatprep.subr.mxu0 0.0
      %1462 = vmatpush1.xpose.msra.mxu0 %v1459
      %1463 = vmatprep.subr.mxu0 0.0
      %1464 = vmatpush1.xpose.msra.mxu0 0.0
      %1465 = vmatprep.subr.mxu0 0.0
      %1466 = vmatpush1.xpose.msra.mxu0 0.0
      %1467 = vmatprep.subr.mxu0 0.0
      %1468 = vmatpush1.xpose.msra.mxu0 0.0
      %1469 = vmatprep.subr.mxu0 0.0
      %1470 = vmatpush1.xpose.msra.mxu0 0.0
      %1471 = vmatprep.subr.mxu0 0.0
      %1472 = vmatpush1.xpose.msra.mxu0 0.0
      %1473 = vmatprep.subr.mxu0 0.0
      %1474 = vmatpush1.xpose.msra.mxu0 0.0
      %1475 = vmatprep.subr.mxu0 0.0
      %1476 = vmatpush1.xpose.msra.mxu0 0.0
      %1477 = vmatprep.subr.mxu0 0.0
      %1478 = vmatpush1.xpose.msra.mxu0 0.0
      %1479 = vmatprep.subr.mxu0 0.0
      %1480 = vmatpush1.xpose.msra.mxu0 0.0
      %1481 = vmatprep.subr.mxu0 0.0
      %1482 = vmatpush1.xpose.msra.mxu0 0.0
      %1483 = vmatprep.subr.mxu0 0.0
      %1484 = vmatpush1.xpose.msra.mxu0 0.0
      %1485 = vmatprep.subr.mxu0 0.0
      %1486 = vmatpush1.xpose.msra.mxu0 0.0
      %1487 = vmatprep.subr.mxu0 0.0
      %1488 = vmatpush1.xpose.msra.mxu0 0.0
      %1489 = vmatprep.subr.mxu0 0.0
      %1490 = vmatpush1.xpose.msra.mxu0 0.0
      %1491 = vmatprep.subr.mxu0 0.0
      %1492 = vmatpush1.xpose.msra.mxu0 0.0
      %1493 = vmatprep.subr.mxu0 0.0
      %1494 = vmatpush1.xpose.msra.mxu0 0.0
      %1495 = vmatprep.subr.mxu0 0.0
      %1496 = vmatpush1.xpose.msra.mxu0 0.0
      %1497 = vmatprep.subr.mxu0 0.0
      %1498 = vmatpush1.xpose.msra.mxu0 0.0
      %1499 = vmatprep.subr.mxu0 0.0
      %1500 = vmatpush1.xpose.msra.mxu0 0.0
      %1501 = vmatprep.subr.mxu0 0.0
      %1502 = vmatpush1.xpose.msra.mxu0 0.0
      %1503 = vmatprep.subr.mxu0 0.0
      %1504 = vmatpush1.xpose.msra.mxu0 0.0
      %1505 = vmatprep.subr.mxu0 0.0
      %1506 = vmatpush1.xpose.msra.mxu0 0.0
      %1507 = vmatprep.subr.mxu0 0.0
      %1508 = vmatpush1.xpose.msra.mxu0 0.0
      %1509 = vmatprep.subr.mxu0 0.0
      %1510 = vmatpush1.xpose.msra.mxu0 0.0
      %1511 = vmatprep.subr.mxu0 0.0
      %1512 = vmatpush1.xpose.msra.mxu0 0.0
      %1513 = vmatprep.subr.mxu0 0.0
      %1514 = vmatpush1.xpose.msra.mxu0 0.0
      %1515 = vmatprep.subr.mxu0 0.0
      %1516 = vmatpush1.xpose.msra.mxu0 0.0
      %1517 = vmatprep.subr.mxu0 0.0
      %1518 = vmatpush1.xpose.msra.mxu0 0.0
      %1519 = vmatprep.subr.mxu0 0.0
      %1520 = vmatpush1.xpose.msra.mxu0 0.0
      %1521 = vmatprep.subr.mxu0 0.0
      %1522 = vmatpush1.xpose.msra.mxu0 0.0
      %1523 = vmatprep.subr.mxu0 0.0
      %1524 = vmatpush1.xpose.msra.mxu0 0.0
      %1525 = vmatprep.mubr.f32.mxu0 0.0
      %1526 = vmatmul.mubr.f32.gmra.mrb[0].mxu0 %v1457
      %v1527 = vpop.f32.mrb[0].mxu0
      %v1528 = vadd.f32 0.0, %v1527
      %v1529 = vpop.f32.mrb[0].mxu0
      %1530 = vdwg.mxu0
      %v1531 = vmul.f32 %v1528, 0.35355338
      %v1532 = vsel %vm1024, %v1531, -1e+10
      %v1533 = vsel %vm1026, %v1532, -inf
      %1534 = vmax.xlane.f32.xlu0 %v1533
      %v1535 = vpop.xlane.xlu0 %1534
      %v1536 = vsub.f32 %v1532, %v1535
      %v1537 = vmul.f32 %v1536, 1.442695
      %v1538 = vpow.pop %v1537
      %v1539 = vsel %vm1026, %v1538, 0.0
      %1540 = vadd.xlane.f32.xlu0 %v1539
      %v1541 = vpop.xlane.xlu0 %1540
      %v1542 = vrcp.pop %v1541
      %v1543 = vmul.f32 %v1538, %v1542
      %1544 = vrot.lane.b32.xlu0 %v942, 40
      %v1545 = vpop.permute.xlu0 %1544
      %v1547 = vsel %vm1040, %v1543, 0
      %v1549 = vsel %vm1044, %v1545, 0
      %1551 = vmatprep.subr.mxu0 0.0
      %1552 = vmatpush1.msra.mxu0 %v1549
      %1553 = vmatprep.subr.mxu0 0.0
      %1554 = vmatpush1.msra.mxu0 0.0
      %1555 = vmatprep.subr.mxu0 0.0
      %1556 = vmatpush1.msra.mxu0 0.0
      %1557 = vmatprep.subr.mxu0 0.0
      %1558 = vmatpush1.msra.mxu0 0.0
      %1559 = vmatprep.subr.mxu0 0.0
      %1560 = vmatpush1.msra.mxu0 0.0
      %1561 = vmatprep.subr.mxu0 0.0
      %1562 = vmatpush1.msra.mxu0 0.0
      %1563 = vmatprep.subr.mxu0 0.0
      %1564 = vmatpush1.msra.mxu0 0.0
      %1565 = vmatprep.subr.mxu0 0.0
      %1566 = vmatpush1.msra.mxu0 0.0
      %1567 = vmatprep.subr.mxu0 0.0
      %1568 = vmatpush1.msra.mxu0 0.0
      %1569 = vmatprep.subr.mxu0 0.0
      %1570 = vmatpush1.msra.mxu0 0.0
      %1571 = vmatprep.subr.mxu0 0.0
      %1572 = vmatpush1.msra.mxu0 0.0
      %1573 = vmatprep.subr.mxu0 0.0
      %1574 = vmatpush1.msra.mxu0 0.0
      %1575 = vmatprep.subr.mxu0 0.0
      %1576 = vmatpush1.msra.mxu0 0.0
      %1577 = vmatprep.subr.mxu0 0.0
      %1578 = vmatpush1.msra.mxu0 0.0
      %1579 = vmatprep.subr.mxu0 0.0
      %1580 = vmatpush1.msra.mxu0 0.0
      %1581 = vmatprep.subr.mxu0 0.0
      %1582 = vmatpush1.msra.mxu0 0.0
      %1583 = vmatprep.subr.mxu0 0.0
      %1584 = vmatpush1.msra.mxu0 0.0
      %1585 = vmatprep.subr.mxu0 0.0
      %1586 = vmatpush1.msra.mxu0 0.0
      %1587 = vmatprep.subr.mxu0 0.0
      %1588 = vmatpush1.msra.mxu0 0.0
      %1589 = vmatprep.subr.mxu0 0.0
      %1590 = vmatpush1.msra.mxu0 0.0
      %1591 = vmatprep.subr.mxu0 0.0
      %1592 = vmatpush1.msra.mxu0 0.0
      %1593 = vmatprep.subr.mxu0 0.0
      %1594 = vmatpush1.msra.mxu0 0.0
      %1595 = vmatprep.subr.mxu0 0.0
      %1596 = vmatpush1.msra.mxu0 0.0
      %1597 = vmatprep.subr.mxu0 0.0
      %1598 = vmatpush1.msra.mxu0 0.0
      %1599 = vmatprep.subr.mxu0 0.0
      %1600 = vmatpush1.msra.mxu0 0.0
      %1601 = vmatprep.subr.mxu0 0.0
      %1602 = vmatpush1.msra.mxu0 0.0
      %1603 = vmatprep.subr.mxu0 0.0
      %1604 = vmatpush1.msra.mxu0 0.0
      %1605 = vmatprep.subr.mxu0 0.0
      %1606 = vmatpush1.msra.mxu0 0.0
      %1607 = vmatprep.subr.mxu0 0.0
      %1608 = vmatpush1.msra.mxu0 0.0
      %1609 = vmatprep.subr.mxu0 0.0
      %1610 = vmatpush1.msra.mxu0 0.0
      %1611 = vmatprep.subr.mxu0 0.0
      %1612 = vmatpush1.msra.mxu0 0.0
      %1613 = vmatprep.subr.mxu0 0.0
      %1614 = vmatpush1.msra.mxu0 0.0
      %1615 = vmatprep.mubr.f32.mxu0 0.0
      %1616 = vmatmul.mubr.f32.gmra.mrb[0].mxu0 %v1547
      %v1617 = vpop.f32.mrb[0].mxu0
      %v1618 = vadd.f32 0.0, %v1617
      %v1619 = vpop.f32.mrb[0].mxu0
      %1620 = vdwg.mxu0
      %1622 = vrot.lane.b32.xlu0 %v1282, 8
      %v1623 = vpop.permute.xlu0 %1622
      %1626 = vrot.lane.b32.xlu0 %v1450, 16
      %v1627 = vpop.permute.xlu0 %1626
      %1630 = vrot.lane.b32.xlu0 %v1618, 24
      %v1631 = vpop.permute.xlu0 %1630
      %v1633 = vsel %vm948, %v1114, %v1623
      %vm1634 = vcmask 130048
      %v1635 = vsel %vm1634, %v1633, %v1627
      %vm1636 = vcmask 195584
      %v1637 = vsel %vm1636, %v1635, %v1631
      %v1639 = vlaneseq
      %v1640 = vshrl.u32 %v1639, 7
      %v1641 = vsub.s32 0, %v1640
      %v1642 = vrot.slane %v834, %v1641
      %v1645 = vsel %vm871, %v1637, 0
      %1647 = vmatprep.subr.mxu0 0.0
      %1648 = vmatpush1.msra.mxu0 %v830
      %1649 = vmatprep.subr.mxu0 0.0
      %1650 = vmatpush1.msra.mxu0 %v831
      %1651 = vmatprep.subr.mxu0 0.0
      %1652 = vmatpush1.msra.mxu0 %v832
      %1653 = vmatprep.subr.mxu0 0.0
      %1654 = vmatpush1.msra.mxu0 %v833
      %1655 = vmatprep.subr.mxu0 0.0
      %1656 = vmatpush1.msra.mxu0 0.0
      %1657 = vmatprep.subr.mxu0 0.0
      %1658 = vmatpush1.msra.mxu0 0.0
      %1659 = vmatprep.subr.mxu0 0.0
      %1660 = vmatpush1.msra.mxu0 0.0
      %1661 = vmatprep.subr.mxu0 0.0
      %1662 = vmatpush1.msra.mxu0 0.0
      %1663 = vmatprep.subr.mxu0 0.0
      %1664 = vmatpush1.msra.mxu0 0.0
      %1665 = vmatprep.subr.mxu0 0.0
      %1666 = vmatpush1.msra.mxu0 0.0
      %1667 = vmatprep.subr.mxu0 0.0
      %1668 = vmatpush1.msra.mxu0 0.0
      %1669 = vmatprep.subr.mxu0 0.0
      %1670 = vmatpush1.msra.mxu0 0.0
      %1671 = vmatprep.subr.mxu0 0.0
      %1672 = vmatpush1.msra.mxu0 0.0
      %1673 = vmatprep.subr.mxu0 0.0
      %1674 = vmatpush1.msra.mxu0 0.0
      %1675 = vmatprep.subr.mxu0 0.0
      %1676 = vmatpush1.msra.mxu0 0.0
      %1677 = vmatprep.subr.mxu0 0.0
      %1678 = vmatpush1.msra.mxu0 0.0
      %1679 = vmatprep.subr.mxu0 0.0
      %1680 = vmatpush1.msra.mxu0 0.0
      %1681 = vmatprep.subr.mxu0 0.0
      %1682 = vmatpush1.msra.mxu0 0.0
      %1683 = vmatprep.subr.mxu0 0.0
      %1684 = vmatpush1.msra.mxu0 0.0
      %1685 = vmatprep.subr.mxu0 0.0
      %1686 = vmatpush1.msra.mxu0 0.0
      %1687 = vmatprep.subr.mxu0 0.0
      %1688 = vmatpush1.msra.mxu0 0.0
      %1689 = vmatprep.subr.mxu0 0.0
      %1690 = vmatpush1.msra.mxu0 0.0
      %1691 = vmatprep.subr.mxu0 0.0
      %1692 = vmatpush1.msra.mxu0 0.0
      %1693 = vmatprep.subr.mxu0 0.0
      %1694 = vmatpush1.msra.mxu0 0.0
      %1695 = vmatprep.subr.mxu0 0.0
      %1696 = vmatpush1.msra.mxu0 0.0
      %1697 = vmatprep.subr.mxu0 0.0
      %1698 = vmatpush1.msra.mxu0 0.0
      %1699 = vmatprep.subr.mxu0 0.0
      %1700 = vmatpush1.msra.mxu0 0.0
      %1701 = vmatprep.subr.mxu0 0.0
      %1702 = vmatpush1.msra.mxu0 0.0
      %1703 = vmatprep.subr.mxu0 0.0
      %1704 = vmatpush1.msra.mxu0 0.0
      %1705 = vmatprep.subr.mxu0 0.0
      %1706 = vmatpush1.msra.mxu0 0.0
      %1707 = vmatprep.subr.mxu0 0.0
      %1708 = vmatpush1.msra.mxu0 0.0
      %1709 = vmatprep.subr.mxu0 0.0
      %1710 = vmatpush1.msra.mxu0 0.0
      %1711 = vmatprep.mubr.f32.mxu0 0.0
      %1712 = vmatmul.mubr.f32.gmra.mrb[0].mxu0 %v1645
      %v1713 = vpop.f32.mrb[0].mxu0
      %v1714 = vadd.f32 %v1642, %v1713
      %v1715 = vpop.f32.mrb[0].mxu0
      %1716 = vdwg.mxu0
      %v1717 = vadd.f32 %v821, %v1714
      %vm1718 = vcmask 259072
      %v1719 = vsel %vm1718, %v1717, 0.0
      %1720 = vadd.xlane.f32.xlu0 %v1719
      %v1721 = vpop.xlane.xlu0 %1720
      %v1722 = vrcp.pop 32.0
      %v1723 = vmul.f32 %v1721, %v1722
      %v1724 = vsub.f32 %v1717, %v1723
      %v1725 = vmul.f32 %v1724, %v1724
      %v1726 = vsel %vm1718, %v1725, 0.0
      %1727 = vadd.xlane.f32.xlu0 %v1726
      %v1728 = vpop.xlane.xlu0 %1727
      %v1729 = vmul.f32 %v1728, %v1722
      %v1730 = vadd.f32 %v1729, 1e-05
      %v1731 = vrsqrt.pop %v1730
      %v1732 = vmul.f32 %v1724, %v1731
      %v1734 = vlaneseq
      %v1735 = vshrl.u32 %v1734, 7
      %v1736 = vsub.s32 0, %v1735
      %v1737 = vrot.slane %v835, %v1736
      %v1739 = vmul.f32 %v1732, %v1737
      %v1741 = vlaneseq
      %v1742 = vshrl.u32 %v1741, 7
      %v1743 = vsub.s32 0, %v1742
      %v1744 = vrot.slane %v836, %v1743
      %v1746 = vadd.f32 %v1739, %v1744
      %v1748 = vlaneseq
      %v1749 = vshrl.u32 %v1748, 7
      %v1750 = vsub.s32 0, %v1749
      %v1751 = vrot.slane %v841, %v1750
      %v1754 = vsel %vm871, %v1746, 0
      %1756 = vmatprep.subr.mxu0 0.0
      %1757 = vmatpush1.msra.mxu0 %v837
      %1758 = vmatprep.subr.mxu0 0.0
      %1759 = vmatpush1.msra.mxu0 %v838
      %1760 = vmatprep.subr.mxu0 0.0
      %1761 = vmatpush1.msra.mxu0 %v839
      %1762 = vmatprep.subr.mxu0 0.0
      %1763 = vmatpush1.msra.mxu0 %v840
      %1764 = vmatprep.subr.mxu0 0.0
      %1765 = vmatpush1.msra.mxu0 0.0
      %1766 = vmatprep.subr.mxu0 0.0
      %1767 = vmatpush1.msra.mxu0 0.0
      %1768 = vmatprep.subr.mxu0 0.0
      %1769 = vmatpush1.msra.mxu0 0.0
      %1770 = vmatprep.subr.mxu0 0.0
      %1771 = vmatpush1.msra.mxu0 0.0
      %1772 = vmatprep.subr.mxu0 0.0
      %1773 = vmatpush1.msra.mxu0 0.0
      %1774 = vmatprep.subr.mxu0 0.0
      %1775 = vmatpush1.msra.mxu0 0.0
      %1776 = vmatprep.subr.mxu0 0.0
      %1777 = vmatpush1.msra.mxu0 0.0
      %1778 = vmatprep.subr.mxu0 0.0
      %1779 = vmatpush1.msra.mxu0 0.0
      %1780 = vmatprep.subr.mxu0 0.0
      %1781 = vmatpush1.msra.mxu0 0.0
      %1782 = vmatprep.subr.mxu0 0.0
      %1783 = vmatpush1.msra.mxu0 0.0
      %1784 = vmatprep.subr.mxu0 0.0
      %1785 = vmatpush1.msra.mxu0 0.0
      %1786 = vmatprep.subr.mxu0 0.0
      %1787 = vmatpush1.msra.mxu0 0.0
      %1788 = vmatprep.subr.mxu0 0.0
      %1789 = vmatpush1.msra.mxu0 0.0
      %1790 = vmatprep.subr.mxu0 0.0
      %1791 = vmatpush1.msra.mxu0 0.0
      %1792 = vmatprep.subr.mxu0 0.0
      %1793 = vmatpush1.msra.mxu0 0.0
      %1794 = vmatprep.subr.mxu0 0.0
      %1795 = vmatpush1.msra.mxu0 0.0
      %1796 = vmatprep.subr.mxu0 0.0
      %1797 = vmatpush1.msra.mxu0 0.0
      %1798 = vmatprep.subr.mxu0 0.0
      %1799 = vmatpush1.msra.mxu0 0.0
      %1800 = vmatprep.subr.mxu0 0.0
      %1801 = vmatpush1.msra.mxu0 0.0
      %1802 = vmatprep.subr.mxu0 0.0
      %1803 = vmatpush1.msra.mxu0 0.0
      %1804 = vmatprep.subr.mxu0 0.0
      %1805 = vmatpush1.msra.mxu0 0.0
      %1806 = vmatprep.subr.mxu0 0.0
      %1807 = vmatpush1.msra.mxu0 0.0
      %1808 = vmatprep.subr.mxu0 0.0
      %1809 = vmatpush1.msra.mxu0 0.0
      %1810 = vmatprep.subr.mxu0 0.0
      %1811 = vmatpush1.msra.mxu0 0.0
      %1812 = vmatprep.subr.mxu0 0.0
      %1813 = vmatpush1.msra.mxu0 0.0
      %1814 = vmatprep.subr.mxu0 0.0
      %1815 = vmatpush1.msra.mxu0 0.0
      %1816 = vmatprep.subr.mxu0 0.0
      %1817 = vmatpush1.msra.mxu0 0.0
      %1818 = vmatprep.subr.mxu0 0.0
      %1819 = vmatpush1.msra.mxu0 0.0
      %1820 = vmatprep.mubr.f32.mxu0 0.0
      %1821 = vmatmul.mubr.f32.gmra.mrb[0].mxu0 %v1754
      %v1822 = vpop.f32.mrb[0].mxu0
      %v1823 = vadd.f32 %v1751, %v1822
      %v1824 = vpop.f32.mrb[0].mxu0
      %1825 = vdwg.mxu0
      %1830 = vrot.lane.b32.xlu0 %v837, 96
      %v1831 = vpop.permute.xlu0 %1830
      %1832 = vrot.lane.b32.xlu0 %v838, 96
      %v1833 = vpop.permute.xlu0 %1832
      %1834 = vrot.lane.b32.xlu0 %v839, 96
      %v1835 = vpop.permute.xlu0 %1834
      %1836 = vrot.lane.b32.xlu0 %v840, 96
      %v1837 = vpop.permute.xlu0 %1836
      %1842 = vrot.lane.b32.xlu0 %v1751, 96
      %v1843 = vpop.permute.xlu0 %1842
      %v1846 = vsel %vm871, %v822, 0
      %1848 = vmatprep.subr.mxu0 0.0
      %1849 = vmatpush1.msra.mxu0 %v1831
      %1850 = vmatprep.subr.mxu0 0.0
      %1851 = vmatpush1.msra.mxu0 %v1833
      %1852 = vmatprep.subr.mxu0 0.0
      %1853 = vmatpush1.msra.mxu0 %v1835
      %1854 = vmatprep.subr.mxu0 0.0
      %1855 = vmatpush1.msra.mxu0 %v1837
      %1856 = vmatprep.subr.mxu0 0.0
      %1857 = vmatpush1.msra.mxu0 0.0
      %1858 = vmatprep.subr.mxu0 0.0
      %1859 = vmatpush1.msra.mxu0 0.0
      %1860 = vmatprep.subr.mxu0 0.0
      %1861 = vmatpush1.msra.mxu0 0.0
      %1862 = vmatprep.subr.mxu0 0.0
      %1863 = vmatpush1.msra.mxu0 0.0
      %1864 = vmatprep.subr.mxu0 0.0
      %1865 = vmatpush1.msra.mxu0 0.0
      %1866 = vmatprep.subr.mxu0 0.0
      %1867 = vmatpush1.msra.mxu0 0.0
      %1868 = vmatprep.subr.mxu0 0.0
      %1869 = vmatpush1.msra.mxu0 0.0
      %1870 = vmatprep.subr.mxu0 0.0
      %1871 = vmatpush1.msra.mxu0 0.0
      %1872 = vmatprep.subr.mxu0 0.0
      %1873 = vmatpush1.msra.mxu0 0.0
      %1874 = vmatprep.subr.mxu0 0.0
      %1875 = vmatpush1.msra.mxu0 0.0
      %1876 = vmatprep.subr.mxu0 0.0
      %1877 = vmatpush1.msra.mxu0 0.0
      %1878 = vmatprep.subr.mxu0 0.0
      %1879 = vmatpush1.msra.mxu0 0.0
      %1880 = vmatprep.subr.mxu0 0.0
      %1881 = vmatpush1.msra.mxu0 0.0
      %1882 = vmatprep.subr.mxu0 0.0
      %1883 = vmatpush1.msra.mxu0 0.0
      %1884 = vmatprep.subr.mxu0 0.0
      %1885 = vmatpush1.msra.mxu0 0.0
      %1886 = vmatprep.subr.mxu0 0.0
      %1887 = vmatpush1.msra.mxu0 0.0
      %1888 = vmatprep.subr.mxu0 0.0
      %1889 = vmatpush1.msra.mxu0 0.0
      %1890 = vmatprep.subr.mxu0 0.0
      %1891 = vmatpush1.msra.mxu0 0.0
      %1892 = vmatprep.subr.mxu0 0.0
      %1893 = vmatpush1.msra.mxu0 0.0
      %1894 = vmatprep.subr.mxu0 0.0
      %1895 = vmatpush1.msra.mxu0 0.0
      %1896 = vmatprep.subr.mxu0 0.0
      %1897 = vmatpush1.msra.mxu0 0.0
      %1898 = vmatprep.subr.mxu0 0.0
      %1899 = vmatpush1.msra.mxu0 0.0
      %1900 = vmatprep.subr.mxu0 0.0
      %1901 = vmatpush1.msra.mxu0 0.0
      %1902 = vmatprep.subr.mxu0 0.0
      %1903 = vmatpush1.msra.mxu0 0.0
      %1904 = vmatprep.subr.mxu0 0.0
      %1905 = vmatpush1.msra.mxu0 0.0
      %1906 = vmatprep.subr.mxu0 0.0
      %1907 = vmatpush1.msra.mxu0 0.0
      %1908 = vmatprep.subr.mxu0 0.0
      %1909 = vmatpush1.msra.mxu0 0.0
      %1910 = vmatprep.subr.mxu0 0.0
      %1911 = vmatpush1.msra.mxu0 0.0
      %1912 = vmatprep.mubr.f32.mxu0 0.0
      %1913 = vmatmul.mubr.f32.gmra.mrb[0].mxu0 %v1846
      %v1914 = vpop.f32.mrb[0].mxu0
      %v1915 = vadd.f32 %v1843, %v1914
      %v1916 = vpop.f32.mrb[0].mxu0
      %1917 = vdwg.mxu0
      %v1919 = vsel %vm948, %v1823, 0
      %v1922 = vsel %vm948, %v1915, 0
      %1924 = vmatprep.subr.mxu0 0.0
      %1925 = vmatpush1.xpose.msra.mxu0 %v1922
      %1926 = vmatprep.subr.mxu0 0.0
      %1927 = vmatpush1.xpose.msra.mxu0 0.0
      %1928 = vmatprep.subr.mxu0 0.0
      %1929 = vmatpush1.xpose.msra.mxu0 0.0
      %1930 = vmatprep.subr.mxu0 0.0
      %1931 = vmatpush1.xpose.msra.mxu0 0.0
      %1932 = vmatprep.subr.mxu0 0.0
      %1933 = vmatpush1.xpose.msra.mxu0 0.0
      %1934 = vmatprep.subr.mxu0 0.0
      %1935 = vmatpush1.xpose.msra.mxu0 0.0
      %1936 = vmatprep.subr.mxu0 0.0
      %1937 = vmatpush1.xpose.msra.mxu0 0.0
      %1938 = vmatprep.subr.mxu0 0.0
      %1939 = vmatpush1.xpose.msra.mxu0 0.0
      %1940 = vmatprep.subr.mxu0 0.0
      %1941 = vmatpush1.xpose.msra.mxu0 0.0
      %1942 = vmatprep.subr.mxu0 0.0
      %1943 = vmatpush1.xpose.msra.mxu0 0.0
      %1944 = vmatprep.subr.mxu0 0.0
      %1945 = vmatpush1.xpose.msra.mxu0 0.0
      %1946 = vmatprep.subr.mxu0 0.0
      %1947 = vmatpush1.xpose.msra.mxu0 0.0
      %1948 = vmatprep.subr.mxu0 0.0
      %1949 = vmatpush1.xpose.msra.mxu0 0.0
      %1950 = vmatprep.subr.mxu0 0.0
      %1951 = vmatpush1.xpose.msra.mxu0 0.0
      %1952 = vmatprep.subr.mxu0 0.0
      %1953 = vmatpush1.xpose.msra.mxu0 0.0
      %1954 = vmatprep.subr.mxu0 0.0
      %1955 = vmatpush1.xpose.msra.mxu0 0.0
      %1956 = vmatprep.subr.mxu0 0.0
      %1957 = vmatpush1.xpose.msra.mxu0 0.0
      %1958 = vmatprep.subr.mxu0 0.0
      %1959 = vmatpush1.xpose.msra.mxu0 0.0
      %1960 = vmatprep.subr.mxu0 0.0
      %1961 = vmatpush1.xpose.msra.mxu0 0.0
      %1962 = vmatprep.subr.mxu0 0.0
      %1963 = vmatpush1.xpose.msra.mxu0 0.0
      %1964 = vmatprep.subr.mxu0 0.0
      %1965 = vmatpush1.xpose.msra.mxu0 0.0
      %1966 = vmatprep.subr.mxu0 0.0
      %1967 = vmatpush1.xpose.msra.mxu0 0.0
      %1968 = vmatprep.subr.mxu0 0.0
      %1969 = vmatpush1.xpose.msra.mxu0 0.0
      %1970 = vmatprep.subr.mxu0 0.0
      %1971 = vmatpush1.xpose.msra.mxu0 0.0
      %1972 = vmatprep.subr.mxu0 0.0
      %1973 = vmatpush1.xpose.msra.mxu0 0.0
      %1974 = vmatprep.subr.mxu0 0.0
      %1975 = vmatpush1.xpose.msra.mxu0 0.0
      %1976 = vmatprep.subr.mxu0 0.0
      %1977 = vmatpush1.xpose.msra.mxu0 0.0
      %1978 = vmatprep.subr.mxu0 0.0
      %1979 = vmatpush1.xpose.msra.mxu0 0.0
      %1980 = vmatprep.subr.mxu0 0.0
      %1981 = vmatpush1.xpose.msra.mxu0 0.0
      %1982 = vmatprep.subr.mxu0 0.0
      %1983 = vmatpush1.xpose.msra.mxu0 0.0
      %1984 = vmatprep.subr.mxu0 0.0
      %1985 = vmatpush1.xpose.msra.mxu0 0.0
      %1986 = vmatprep.subr.mxu0 0.0
      %1987 = vmatpush1.xpose.msra.mxu0 0.0
      %1988 = vmatprep.mubr.f32.mxu0 0.0
      %1989 = vmatmul.mubr.f32.gmra.mrb[0].mxu0 %v1919
      %v1990 = vpop.f32.mrb[0].mxu0
      %v1991 = vadd.f32 0.0, %v1990
      %v1992 = vpop.f32.mrb[0].mxu0
      %1993 = vdwg.mxu0
      %v1994 = vmul.f32 %v1991, 0.35355338
      %vm1995 = vcmp.gt.s32.totalorder %v824, 0
      %v1996 = vsel %vm1995, 1, 0
      %v1997 = vlaneseq
      %v1998 = vshrl.u32 %v1997, 7
      %v1999 = vsub.s32 0, %v1998
      %v2000 = vrot.slane %v1996, %v1999
      %vm2001 = vcmp.eq.s32.totalorder %v2000, 1
      %v2002 = vsel %vm2001, %v1994, -1e+10
      %vm2003 = vcmask 62464
      %v2004 = vsel %vm2003, %v2002, -inf
      %2005 = vmax.xlane.f32.xlu0 %v2004
      %v2006 = vpop.xlane.xlu0 %2005
      %v2007 = vsub.f32 %v2002, %v2006
      %v2008 = vmul.f32 %v2007, 1.442695
      %v2009 = vpow.pop %v2008
      %v2010 = vsel %vm2003, %v2009, 0.0
      %2011 = vadd.xlane.f32.xlu0 %v2010
      %v2012 = vpop.xlane.xlu0 %2011
      %v2013 = vrcp.pop %v2012
      %v2014 = vmul.f32 %v2009, %v2013
      %2015 = vrot.lane.b32.xlu0 %v1915, 96
      %v2016 = vpop.permute.xlu0 %2015
      %v2019 = vsel %vm948, %v2014, 0
      %2021 = vmatprep.subr.mxu0 0.0
      %2022 = vmatpush1.msra.mxu0 %v2016
      %2023 = vmatprep.subr.mxu0 0.0
      %2024 = vmatpush1.msra.mxu0 0.0
      %2025 = vmatprep.subr.mxu0 0.0
      %2026 = vmatpush1.msra.mxu0 0.0
      %2027 = vmatprep.subr.mxu0 0.0
      %2028 = vmatpush1.msra.mxu0 0.0
      %2029 = vmatprep.subr.mxu0 0.0
      %2030 = vmatpush1.msra.mxu0 0.0
      %2031 = vmatprep.subr.mxu0 0.0
      %2032 = vmatpush1.msra.mxu0 0.0
      %2033 = vmatprep.subr.mxu0 0.0
      %2034 = vmatpush1.msra.mxu0 0.0
      %2035 = vmatprep.subr.mxu0 0.0
      %2036 = vmatpush1.msra.mxu0 0.0
      %2037 = vmatprep.subr.mxu0 0.0
      %2038 = vmatpush1.msra.mxu0 0.0
      %2039 = vmatprep.subr.mxu0 0.0
      %2040 = vmatpush1.msra.mxu0 0.0
      %2041 = vmatprep.subr.mxu0 0.0
      %2042 = vmatpush1.msra.mxu0 0.0
      %2043 = vmatprep.subr.mxu0 0.0
      %2044 = vmatpush1.msra.mxu0 0.0
      %2045 = vmatprep.subr.mxu0 0.0
      %2046 = vmatpush1.msra.mxu0 0.0
      %2047 = vmatprep.subr.mxu0 0.0
      %2048 = vmatpush1.msra.mxu0 0.0
      %2049 = vmatprep.subr.mxu0 0.0
      %2050 = vmatpush1.msra.mxu0 0.0
      %2051 = vmatprep.subr.mxu0 0.0
      %2052 = vmatpush1.msra.mxu0 0.0
      %2053 = vmatprep.subr.mxu0 0.0
      %2054 = vmatpush1.msra.mxu0 0.0
      %2055 = vmatprep.subr.mxu0 0.0
      %2056 = vmatpush1.msra.mxu0 0.0
      %2057 = vmatprep.subr.mxu0 0.0
      %2058 = vmatpush1.msra.mxu0 0.0
      %2059 = vmatprep.subr.mxu0 0.0
      %2060 = vmatpush1.msra.mxu0 0.0
      %2061 = vmatprep.subr.mxu0 0.0
      %2062 = vmatpush1.msra.mxu0 0.0
      %2063 = vmatprep.subr.mxu0 0.0
      %2064 = vmatpush1.msra.mxu0 0.0
      %2065 = vmatprep.subr.mxu0 0.0
      %2066 = vmatpush1.msra.mxu0 0.0
      %2067 = vmatprep.subr.mxu0 0.0
      %2068 = vmatpush1.msra.mxu0 0.0
      %2069 = vmatprep.subr.mxu0 0.0
      %2070 = vmatpush1.msra.mxu0 0.0
      %2071 = vmatprep.subr.mxu0 0.0
      %2072 = vmatpush1.msra.mxu0 0.0
      %2073 = vmatprep.subr.mxu0 0.0
      %2074 = vmatpush1.msra.mxu0 0.0
      %2075 = vmatprep.subr.mxu0 0.0
      %2076 = vmatpush1.msra.mxu0 0.0
      %2077 = vmatprep.subr.mxu0 0.0
      %2078 = vmatpush1.msra.mxu0 0.0
      %2079 = vmatprep.subr.mxu0 0.0
      %2080 = vmatpush1.msra.mxu0 0.0
      %2081 = vmatprep.subr.mxu0 0.0
      %2082 = vmatpush1.msra.mxu0 0.0
      %2083 = vmatprep.subr.mxu0 0.0
      %2084 = vmatpush1.msra.mxu0 0.0
      %2085 = vmatprep.mubr.f32.mxu0 0.0
      %2086 = vmatmul.mubr.f32.gmra.mrb[0].mxu0 %v2019
      %v2087 = vpop.f32.mrb[0].mxu0
      %v2088 = vadd.f32 0.0, %v2087
      %v2089 = vpop.f32.mrb[0].mxu0
      %2090 = vdwg.mxu0
      %2091 = vrot.lane.b32.xlu0 %v1823, 120
      %v2092 = vpop.permute.xlu0 %2091
      %2093 = vrot.lane.b32.xlu0 %v1915, 120
      %v2094 = vpop.permute.xlu0 %2093
      %v2095 = vsel %vm948, %v2092, 0
      %v2097 = vsel %vm948, %v2094, 0
      %2099 = vmatprep.subr.mxu0 0.0
      %2100 = vmatpush1.xpose.msra.mxu0 %v2097
      %2101 = vmatprep.subr.mxu0 0.0
      %2102 = vmatpush1.xpose.msra.mxu0 0.0
      %2103 = vmatprep.subr.mxu0 0.0
      %2104 = vmatpush1.xpose.msra.mxu0 0.0
      %2105 = vmatprep.subr.mxu0 0.0
      %2106 = vmatpush1.xpose.msra.mxu0 0.0
      %2107 = vmatprep.subr.mxu0 0.0
      %2108 = vmatpush1.xpose.msra.mxu0 0.0
      %2109 = vmatprep.subr.mxu0 0.0
      %2110 = vmatpush1.xpose.msra.mxu0 0.0
      %2111 = vmatprep.subr.mxu0 0.0
      %2112 = vmatpush1.xpose.msra.mxu0 0.0
      %2113 = vmatprep.subr.mxu0 0.0
      %2114 = vmatpush1.xpose.msra.mxu0 0.0
      %2115 = vmatprep.subr.mxu0 0.0
      %2116 = vmatpush1.xpose.msra.mxu0 0.0
      %2117 = vmatprep.subr.mxu0 0.0
      %2118 = vmatpush1.xpose.msra.mxu0 0.0
      %2119 = vmatprep.subr.mxu0 0.0
      %2120 = vmatpush1.xpose.msra.mxu0 0.0
      %2121 = vmatprep.subr.mxu0 0.0
      %2122 = vmatpush1.xpose.msra.mxu0 0.0
      %2123 = vmatprep.subr.mxu0 0.0
      %2124 = vmatpush1.xpose.msra.mxu0 0.0
      %2125 = vmatprep.subr.mxu0 0.0
      %2126 = vmatpush1.xpose.msra.mxu0 0.0
      %2127 = vmatprep.subr.mxu0 0.0
      %2128 = vmatpush1.xpose.msra.mxu0 0.0
      %2129 = vmatprep.subr.mxu0 0.0
      %2130 = vmatpush1.xpose.msra.mxu0 0.0
      %2131 = vmatprep.subr.mxu0 0.0
      %2132 = vmatpush1.xpose.msra.mxu0 0.0
      %2133 = vmatprep.subr.mxu0 0.0
      %2134 = vmatpush1.xpose.msra.mxu0 0.0
      %2135 = vmatprep.subr.mxu0 0.0
      %2136 = vmatpush1.xpose.msra.mxu0 0.0
      %2137 = vmatprep.subr.mxu0 0.0
      %2138 = vmatpush1.xpose.msra.mxu0 0.0
      %2139 = vmatprep.subr.mxu0 0.0
      %2140 = vmatpush1.xpose.msra.mxu0 0.0
      %2141 = vmatprep.subr.mxu0 0.0
      %2142 = vmatpush1.xpose.msra.mxu0 0.0
      %2143 = vmatprep.subr.mxu0 0.0
      %2144 = vmatpush1.xpose.msra.mxu0 0.0
      %2145 = vmatprep.subr.mxu0 0.0
      %2146 = vmatpush1.xpose.msra.mxu0 0.0
      %2147 = vmatprep.subr.mxu0 0.0
      %2148 = vmatpush1.xpose.msra.mxu0 0.0
      %2149 = vmatprep.subr.mxu0 0.0
      %2150 = vmatpush1.xpose.msra.mxu0 0.0
      %2151 = vmatprep.subr.mxu0 0.0
      %2152 = vmatpush1.xpose.msra.mxu0 0.0
      %2153 = vmatprep.subr.mxu0 0.0
      %2154 = vmatpush1.xpose.msra.mxu0 0.0
      %2155 = vmatprep.subr.mxu0 0.0
      %2156 = vmatpush1.xpose.msra.mxu0 0.0
      %2157 = vmatprep.subr.mxu0 0.0
      %2158 = vmatpush1.xpose.msra.mxu0 0.0
      %2159 = vmatprep.subr.mxu0 0.0
      %2160 = vmatpush1.xpose.msra.mxu0 0.0
      %2161 = vmatprep.subr.mxu0 0.0
      %2162 = vmatpush1.xpose.msra.mxu0 0.0
      %2163 = vmatprep.mubr.f32.mxu0 0.0
      %2164 = vmatmul.mubr.f32.gmra.mrb[0].mxu0 %v2095
      %v2165 = vpop.f32.mrb[0].mxu0
      %v2166 = vadd.f32 0.0, %v2165
      %v2167 = vpop.f32.mrb[0].mxu0
      %2168 = vdwg.mxu0
      %v2169 = vmul.f32 %v2166, 0.35355338
      %v2170 = vsel %vm2001, %v2169, -1e+10
      %v2171 = vsel %vm2003, %v2170, -inf
      %2172 = vmax.xlane.f32.xlu0 %v2171
      %v2173 = vpop.xlane.xlu0 %2172
      %v2174 = vsub.f32 %v2170, %v2173
      %v2175 = vmul.f32 %v2174, 1.442695
      %v2176 = vpow.pop %v2175
      %v2177 = vsel %vm2003, %v2176, 0.0
      %2178 = vadd.xlane.f32.xlu0 %v2177
      %v2179 = vpop.xlane.xlu0 %2178
      %v2180 = vrcp.pop %v2179
      %v2181 = vmul.f32 %v2176, %v2180
      %2182 = vrot.lane.b32.xlu0 %v1915, 88
      %v2183 = vpop.permute.xlu0 %2182
      %v2186 = vsel %vm948, %v2181, 0
      %2188 = vmatprep.subr.mxu0 0.0
      %2189 = vmatpush1.msra.mxu0 %v2183
      %2190 = vmatprep.subr.mxu0 0.0
      %2191 = vmatpush1.msra.mxu0 0.0
      %2192 = vmatprep.subr.mxu0 0.0
      %2193 = vmatpush1.msra.mxu0 0.0
      %2194 = vmatprep.subr.mxu0 0.0
      %2195 = vmatpush1.msra.mxu0 0.0
      %2196 = vmatprep.subr.mxu0 0.0
      %2197 = vmatpush1.msra.mxu0 0.0
      %2198 = vmatprep.subr.mxu0 0.0
      %2199 = vmatpush1.msra.mxu0 0.0
      %2200 = vmatprep.subr.mxu0 0.0
      %2201 = vmatpush1.msra.mxu0 0.0
      %2202 = vmatprep.subr.mxu0 0.0
      %2203 = vmatpush1.msra.mxu0 0.0
      %2204 = vmatprep.subr.mxu0 0.0
      %2205 = vmatpush1.msra.mxu0 0.0
      %2206 = vmatprep.subr.mxu0 0.0
      %2207 = vmatpush1.msra.mxu0 0.0
      %2208 = vmatprep.subr.mxu0 0.0
      %2209 = vmatpush1.msra.mxu0 0.0
      %2210 = vmatprep.subr.mxu0 0.0
      %2211 = vmatpush1.msra.mxu0 0.0
      %2212 = vmatprep.subr.mxu0 0.0
      %2213 = vmatpush1.msra.mxu0 0.0
      %2214 = vmatprep.subr.mxu0 0.0
      %2215 = vmatpush1.msra.mxu0 0.0
      %2216 = vmatprep.subr.mxu0 0.0
      %2217 = vmatpush1.msra.mxu0 0.0
      %2218 = vmatprep.subr.mxu0 0.0
      %2219 = vmatpush1.msra.mxu0 0.0
      %2220 = vmatprep.subr.mxu0 0.0
      %2221 = vmatpush1.msra.mxu0 0.0
      %2222 = vmatprep.subr.mxu0 0.0
      %2223 = vmatpush1.msra.mxu0 0.0
      %2224 = vmatprep.subr.mxu0 0.0
      %2225 = vmatpush1.msra.mxu0 0.0
      %2226 = vmatprep.subr.mxu0 0.0
      %2227 = vmatpush1.msra.mxu0 0.0
      %2228 = vmatprep.subr.mxu0 0.0
      %2229 = vmatpush1.msra.mxu0 0.0
      %2230 = vmatprep.subr.mxu0 0.0
      %2231 = vmatpush1.msra.mxu0 0.0
      %2232 = vmatprep.subr.mxu0 0.0
      %2233 = vmatpush1.msra.mxu0 0.0
      %2234 = vmatprep.subr.mxu0 0.0
      %2235 = vmatpush1.msra.mxu0 0.0
      %2236 = vmatprep.subr.mxu0 0.0
      %2237 = vmatpush1.msra.mxu0 0.0
      %2238 = vmatprep.subr.mxu0 0.0
      %2239 = vmatpush1.msra.mxu0 0.0
      %2240 = vmatprep.subr.mxu0 0.0
      %2241 = vmatpush1.msra.mxu0 0.0
      %2242 = vmatprep.subr.mxu0 0.0
      %2243 = vmatpush1.msra.mxu0 0.0
      %2244 = vmatprep.subr.mxu0 0.0
      %2245 = vmatpush1.msra.mxu0 0.0
      %2246 = vmatprep.subr.mxu0 0.0
      %2247 = vmatpush1.msra.mxu0 0.0
      %2248 = vmatprep.subr.mxu0 0.0
      %2249 = vmatpush1.msra.mxu0 0.0
      %2250 = vmatprep.subr.mxu0 0.0
      %2251 = vmatpush1.msra.mxu0 0.0
      %2252 = vmatprep.mubr.f32.mxu0 0.0
      %2253 = vmatmul.mubr.f32.gmra.mrb[0].mxu0 %v2186
      %v2254 = vpop.f32.mrb[0].mxu0
      %v2255 = vadd.f32 0.0, %v2254
      %v2256 = vpop.f32.mrb[0].mxu0
      %2257 = vdwg.mxu0
      %2258 = vrot.lane.b32.xlu0 %v1823, 112
      %v2259 = vpop.permute.xlu0 %2258
      %2260 = vrot.lane.b32.xlu0 %v1915, 112
      %v2261 = vpop.permute.xlu0 %2260
      %v2262 = vsel %vm948, %v2259, 0
      %v2264 = vsel %vm948, %v2261, 0
      %2266 = vmatprep.subr.mxu0 0.0
      %2267 = vmatpush1.xpose.msra.mxu0 %v2264
      %2268 = vmatprep.subr.mxu0 0.0
      %2269 = vmatpush1.xpose.msra.mxu0 0.0
      %2270 = vmatprep.subr.mxu0 0.0
      %2271 = vmatpush1.xpose.msra.mxu0 0.0
      %2272 = vmatprep.subr.mxu0 0.0
      %2273 = vmatpush1.xpose.msra.mxu0 0.0
      %2274 = vmatprep.subr.mxu0 0.0
      %2275 = vmatpush1.xpose.msra.mxu0 0.0
      %2276 = vmatprep.subr.mxu0 0.0
      %2277 = vmatpush1.xpose.msra.mxu0 0.0
      %2278 = vmatprep.subr.mxu0 0.0
      %2279 = vmatpush1.xpose.msra.mxu0 0.0
      %2280 = vmatprep.subr.mxu0 0.0
      %2281 = vmatpush1.xpose.msra.mxu0 0.0
      %2282 = vmatprep.subr.mxu0 0.0
      %2283 = vmatpush1.xpose.msra.mxu0 0.0
      %2284 = vmatprep.subr.mxu0 0.0
      %2285 = vmatpush1.xpose.msra.mxu0 0.0
      %2286 = vmatprep.subr.mxu0 0.0
      %2287 = vmatpush1.xpose.msra.mxu0 0.0
      %2288 = vmatprep.subr.mxu0 0.0
      %2289 = vmatpush1.xpose.msra.mxu0 0.0
      %2290 = vmatprep.subr.mxu0 0.0
      %2291 = vmatpush1.xpose.msra.mxu0 0.0
      %2292 = vmatprep.subr.mxu0 0.0
      %2293 = vmatpush1.xpose.msra.mxu0 0.0
      %2294 = vmatprep.subr.mxu0 0.0
      %2295 = vmatpush1.xpose.msra.mxu0 0.0
      %2296 = vmatprep.subr.mxu0 0.0
      %2297 = vmatpush1.xpose.msra.mxu0 0.0
      %2298 = vmatprep.subr.mxu0 0.0
      %2299 = vmatpush1.xpose.msra.mxu0 0.0
      %2300 = vmatprep.subr.mxu0 0.0
      %2301 = vmatpush1.xpose.msra.mxu0 0.0
      %2302 = vmatprep.subr.mxu0 0.0
      %2303 = vmatpush1.xpose.msra.mxu0 0.0
      %2304 = vmatprep.subr.mxu0 0.0
      %2305 = vmatpush1.xpose.msra.mxu0 0.0
      %2306 = vmatprep.subr.mxu0 0.0
      %2307 = vmatpush1.xpose.msra.mxu0 0.0
      %2308 = vmatprep.subr.mxu0 0.0
      %2309 = vmatpush1.xpose.msra.mxu0 0.0
      %2310 = vmatprep.subr.mxu0 0.0
      %2311 = vmatpush1.xpose.msra.mxu0 0.0
      %2312 = vmatprep.subr.mxu0 0.0
      %2313 = vmatpush1.xpose.msra.mxu0 0.0
      %2314 = vmatprep.subr.mxu0 0.0
      %2315 = vmatpush1.xpose.msra.mxu0 0.0
      %2316 = vmatprep.subr.mxu0 0.0
      %2317 = vmatpush1.xpose.msra.mxu0 0.0
      %2318 = vmatprep.subr.mxu0 0.0
      %2319 = vmatpush1.xpose.msra.mxu0 0.0
      %2320 = vmatprep.subr.mxu0 0.0
      %2321 = vmatpush1.xpose.msra.mxu0 0.0
      %2322 = vmatprep.subr.mxu0 0.0
      %2323 = vmatpush1.xpose.msra.mxu0 0.0
      %2324 = vmatprep.subr.mxu0 0.0
      %2325 = vmatpush1.xpose.msra.mxu0 0.0
      %2326 = vmatprep.subr.mxu0 0.0
      %2327 = vmatpush1.xpose.msra.mxu0 0.0
      %2328 = vmatprep.subr.mxu0 0.0
      %2329 = vmatpush1.xpose.msra.mxu0 0.0
      %2330 = vmatprep.mubr.f32.mxu0 0.0
      %2331 = vmatmul.mubr.f32.gmra.mrb[0].mxu0 %v2262
      %v2332 = vpop.f32.mrb[0].mxu0
      %v2333 = vadd.f32 0.0, %v2332
      %v2334 = vpop.f32.mrb[0].mxu0
      %2335 = vdwg.mxu0
      %v2336 = vmul.f32 %v2333, 0.35355338
      %v2337 = vsel %vm2001, %v2336, -1e+10
      %v2338 = vsel %vm2003, %v2337, -inf
      %2339 = vmax.xlane.f32.xlu0 %v2338
      %v2340 = vpop.xlane.xlu0 %2339
      %v2341 = vsub.f32 %v2337, %v2340
      %v2342 = vmul.f32 %v2341, 1.442695
      %v2343 = vpow.pop %v2342
      %v2344 = vsel %vm2003, %v2343, 0.0
      %2345 = vadd.xlane.f32.xlu0 %v2344
      %v2346 = vpop.xlane.xlu0 %2345
      %v2347 = vrcp.pop %v2346
      %v2348 = vmul.f32 %v2343, %v2347
      %2349 = vrot.lane.b32.xlu0 %v1915, 80
      %v2350 = vpop.permute.xlu0 %2349
      %v2353 = vsel %vm948, %v2348, 0
      %2355 = vmatprep.subr.mxu0 0.0
      %2356 = vmatpush1.msra.mxu0 %v2350
      %2357 = vmatprep.subr.mxu0 0.0
      %2358 = vmatpush1.msra.mxu0 0.0
      %2359 = vmatprep.subr.mxu0 0.0
      %2360 = vmatpush1.msra.mxu0 0.0
      %2361 = vmatprep.subr.mxu0 0.0
      %2362 = vmatpush1.msra.mxu0 0.0
      %2363 = vmatprep.subr.mxu0 0.0
      %2364 = vmatpush1.msra.mxu0 0.0
      %2365 = vmatprep.subr.mxu0 0.0
      %2366 = vmatpush1.msra.mxu0 0.0
      %2367 = vmatprep.subr.mxu0 0.0
      %2368 = vmatpush1.msra.mxu0 0.0
      %2369 = vmatprep.subr.mxu0 0.0
      %2370 = vmatpush1.msra.mxu0 0.0
      %2371 = vmatprep.subr.mxu0 0.0
      %2372 = vmatpush1.msra.mxu0 0.0
      %2373 = vmatprep.subr.mxu0 0.0
      %2374 = vmatpush1.msra.mxu0 0.0
      %2375 = vmatprep.subr.mxu0 0.0
      %2376 = vmatpush1.msra.mxu0 0.0
      %2377 = vmatprep.subr.mxu0 0.0
      %2378 = vmatpush1.msra.mxu0 0.0
      %2379 = vmatprep.subr.mxu0 0.0
      %2380 = vmatpush1.msra.mxu0 0.0
      %2381 = vmatprep.subr.mxu0 0.0
      %2382 = vmatpush1.msra.mxu0 0.0
      %2383 = vmatprep.subr.mxu0 0.0
      %2384 = vmatpush1.msra.mxu0 0.0
      %2385 = vmatprep.subr.mxu0 0.0
      %2386 = vmatpush1.msra.mxu0 0.0
      %2387 = vmatprep.subr.mxu0 0.0
      %2388 = vmatpush1.msra.mxu0 0.0
      %2389 = vmatprep.subr.mxu0 0.0
      %2390 = vmatpush1.msra.mxu0 0.0
      %2391 = vmatprep.subr.mxu0 0.0
      %2392 = vmatpush1.msra.mxu0 0.0
      %2393 = vmatprep.subr.mxu0 0.0
      %2394 = vmatpush1.msra.mxu0 0.0
      %2395 = vmatprep.subr.mxu0 0.0
      %2396 = vmatpush1.msra.mxu0 0.0
      %2397 = vmatprep.subr.mxu0 0.0
      %2398 = vmatpush1.msra.mxu0 0.0
      %2399 = vmatprep.subr.mxu0 0.0
      %2400 = vmatpush1.msra.mxu0 0.0
      %2401 = vmatprep.subr.mxu0 0.0
      %2402 = vmatpush1.msra.mxu0 0.0
      %2403 = vmatprep.subr.mxu0 0.0
      %2404 = vmatpush1.msra.mxu0 0.0
      %2405 = vmatprep.subr.mxu0 0.0
      %2406 = vmatpush1.msra.mxu0 0.0
      %2407 = vmatprep.subr.mxu0 0.0
      %2408 = vmatpush1.msra.mxu0 0.0
      %2409 = vmatprep.subr.mxu0 0.0
      %2410 = vmatpush1.msra.mxu0 0.0
      %2411 = vmatprep.subr.mxu0 0.0
      %2412 = vmatpush1.msra.mxu0 0.0
      %2413 = vmatprep.subr.mxu0 0.0
      %2414 = vmatpush1.msra.mxu0 0.0
      %2415 = vmatprep.subr.mxu0 0.0
      %2416 = vmatpush1.msra.mxu0 0.0
      %2417 = vmatprep.subr.mxu0 0.0
      %2418 = vmatpush1.msra.mxu0 0.0
      %2419 = vmatprep.mubr.f32.mxu0 0.0
      %2420 = vmatmul.mubr.f32.gmra.mrb[0].mxu0 %v2353
      %v2421 = vpop.f32.mrb[0].mxu0
      %v2422 = vadd.f32 0.0, %v2421
      %v2423 = vpop.f32.mrb[0].mxu0
      %2424 = vdwg.mxu0
      %2425 = vrot.lane.b32.xlu0 %v1823, 104
      %v2426 = vpop.permute.xlu0 %2425
      %2427 = vrot.lane.b32.xlu0 %v1915, 104
      %v2428 = vpop.permute.xlu0 %2427
      %v2429 = vsel %vm948, %v2426, 0
      %v2431 = vsel %vm948, %v2428, 0
      %2433 = vmatprep.subr.mxu0 0.0
      %2434 = vmatpush1.xpose.msra.mxu0 %v2431
      %2435 = vmatprep.subr.mxu0 0.0
      %2436 = vmatpush1.xpose.msra.mxu0 0.0
      %2437 = vmatprep.subr.mxu0 0.0
      %2438 = vmatpush1.xpose.msra.mxu0 0.0
      %2439 = vmatprep.subr.mxu0 0.0
      %2440 = vmatpush1.xpose.msra.mxu0 0.0
      %2441 = vmatprep.subr.mxu0 0.0
      %2442 = vmatpush1.xpose.msra.mxu0 0.0
      %2443 = vmatprep.subr.mxu0 0.0
      %2444 = vmatpush1.xpose.msra.mxu0 0.0
      %2445 = vmatprep.subr.mxu0 0.0
      %2446 = vmatpush1.xpose.msra.mxu0 0.0
      %2447 = vmatprep.subr.mxu0 0.0
      %2448 = vmatpush1.xpose.msra.mxu0 0.0
      %2449 = vmatprep.subr.mxu0 0.0
      %2450 = vmatpush1.xpose.msra.mxu0 0.0
      %2451 = vmatprep.subr.mxu0 0.0
      %2452 = vmatpush1.xpose.msra.mxu0 0.0
      %2453 = vmatprep.subr.mxu0 0.0
      %2454 = vmatpush1.xpose.msra.mxu0 0.0
      %2455 = vmatprep.subr.mxu0 0.0
      %2456 = vmatpush1.xpose.msra.mxu0 0.0
      %2457 = vmatprep.subr.mxu0 0.0
      %2458 = vmatpush1.xpose.msra.mxu0 0.0
      %2459 = vmatprep.subr.mxu0 0.0
      %2460 = vmatpush1.xpose.msra.mxu0 0.0
      %2461 = vmatprep.subr.mxu0 0.0
      %2462 = vmatpush1.xpose.msra.mxu0 0.0
      %2463 = vmatprep.subr.mxu0 0.0
      %2464 = vmatpush1.xpose.msra.mxu0 0.0
      %2465 = vmatprep.subr.mxu0 0.0
      %2466 = vmatpush1.xpose.msra.mxu0 0.0
      %2467 = vmatprep.subr.mxu0 0.0
      %2468 = vmatpush1.xpose.msra.mxu0 0.0
      %2469 = vmatprep.subr.mxu0 0.0
      %2470 = vmatpush1.xpose.msra.mxu0 0.0
      %2471 = vmatprep.subr.mxu0 0.0
      %2472 = vmatpush1.xpose.msra.mxu0 0.0
      %2473 = vmatprep.subr.mxu0 0.0
      %2474 = vmatpush1.xpose.msra.mxu0 0.0
      %2475 = vmatprep.subr.mxu0 0.0
      %2476 = vmatpush1.xpose.msra.mxu0 0.0
      %2477 = vmatprep.subr.mxu0 0.0
      %2478 = vmatpush1.xpose.msra.mxu0 0.0
      %2479 = vmatprep.subr.mxu0 0.0
      %2480 = vmatpush1.xpose.msra.mxu0 0.0
      %2481 = vmatprep.subr.mxu0 0.0
      %2482 = vmatpush1.xpose.msra.mxu0 0.0
      %2483 = vmatprep.subr.mxu0 0.0
      %2484 = vmatpush1.xpose.msra.mxu0 0.0
      %2485 = vmatprep.subr.mxu0 0.0
      %2486 = vmatpush1.xpose.msra.mxu0 0.0
      %2487 = vmatprep.subr.mxu0 0.0
      %2488 = vmatpush1.xpose.msra.mxu0 0.0
      %2489 = vmatprep.subr.mxu0 0.0
      %2490 = vmatpush1.xpose.msra.mxu0 0.0
      %2491 = vmatprep.subr.mxu0 0.0
      %2492 = vmatpush1.xpose.msra.mxu0 0.0
      %2493 = vmatprep.subr.mxu0 0.0
      %2494 = vmatpush1.xpose.msra.mxu0 0.0
      %2495 = vmatprep.subr.mxu0 0.0
      %2496 = vmatpush1.xpose.msra.mxu0 0.0
      %2497 = vmatprep.mubr.f32.mxu0 0.0
      %2498 = vmatmul.mubr.f32.gmra.mrb[0].mxu0 %v2429
      %v2499 = vpop.f32.mrb[0].mxu0
      %v2500 = vadd.f32 0.0, %v2499
      %v2501 = vpop.f32.mrb[0].mxu0
      %2502 = vdwg.mxu0
      %v2503 = vmul.f32 %v2500, 0.35355338
      %v2504 = vsel %vm2001, %v2503, -1e+10
      %v2505 = vsel %vm2003, %v2504, -inf
      %2506 = vmax.xlane.f32.xlu0 %v2505
      %v2507 = vpop.xlane.xlu0 %2506
      %v2508 = vsub.f32 %v2504, %v2507
      %v2509 = vmul.f32 %v2508, 1.442695
      %v2510 = vpow.pop %v2509
      %v2511 = vsel %vm2003, %v2510, 0.0
      %2512 = vadd.xlane.f32.xlu0 %v2511
      %v2513 = vpop.xlane.xlu0 %2512
      %v2514 = vrcp.pop %v2513
      %v2515 = vmul.f32 %v2510, %v2514
      %2516 = vrot.lane.b32.xlu0 %v1915, 72
      %v2517 = vpop.permute.xlu0 %2516
      %v2520 = vsel %vm948, %v2515, 0
      %2522 = vmatprep.subr.mxu0 0.0
      %2523 = vmatpush1.msra.mxu0 %v2517
      %2524 = vmatprep.subr.mxu0 0.0
      %2525 = vmatpush1.msra.mxu0 0.0
      %2526 = vmatprep.subr.mxu0 0.0
      %2527 = vmatpush1.msra.mxu0 0.0
      %2528 = vmatprep.subr.mxu0 0.0
      %2529 = vmatpush1.msra.mxu0 0.0
      %2530 = vmatprep.subr.mxu0 0.0
      %2531 = vmatpush1.msra.mxu0 0.0
      %2532 = vmatprep.subr.mxu0 0.0
      %2533 = vmatpush1.msra.mxu0 0.0
      %2534 = vmatprep.subr.mxu0 0.0
      %2535 = vmatpush1.msra.mxu0 0.0
      %2536 = vmatprep.subr.mxu0 0.0
      %2537 = vmatpush1.msra.mxu0 0.0
      %2538 = vmatprep.subr.mxu0 0.0
      %2539 = vmatpush1.msra.mxu0 0.0
      %2540 = vmatprep.subr.mxu0 0.0
      %2541 = vmatpush1.msra.mxu0 0.0
      %2542 = vmatprep.subr.mxu0 0.0
      %2543 = vmatpush1.msra.mxu0 0.0
      %2544 = vmatprep.subr.mxu0 0.0
      %2545 = vmatpush1.msra.mxu0 0.0
      %2546 = vmatprep.subr.mxu0 0.0
      %2547 = vmatpush1.msra.mxu0 0.0
      %2548 = vmatprep.subr.mxu0 0.0
      %2549 = vmatpush1.msra.mxu0 0.0
      %2550 = vmatprep.subr.mxu0 0.0
      %2551 = vmatpush1.msra.mxu0 0.0
      %2552 = vmatprep.subr.mxu0 0.0
      %2553 = vmatpush1.msra.mxu0 0.0
      %2554 = vmatprep.subr.mxu0 0.0
      %2555 = vmatpush1.msra.mxu0 0.0
      %2556 = vmatprep.subr.mxu0 0.0
      %2557 = vmatpush1.msra.mxu0 0.0
      %2558 = vmatprep.subr.mxu0 0.0
      %2559 = vmatpush1.msra.mxu0 0.0
      %2560 = vmatprep.subr.mxu0 0.0
      %2561 = vmatpush1.msra.mxu0 0.0
      %2562 = vmatprep.subr.mxu0 0.0
      %2563 = vmatpush1.msra.mxu0 0.0
      %2564 = vmatprep.subr.mxu0 0.0
      %2565 = vmatpush1.msra.mxu0 0.0
      %2566 = vmatprep.subr.mxu0 0.0
      %2567 = vmatpush1.msra.mxu0 0.0
      %2568 = vmatprep.subr.mxu0 0.0
      %2569 = vmatpush1.msra.mxu0 0.0
      %2570 = vmatprep.subr.mxu0 0.0
      %2571 = vmatpush1.msra.mxu0 0.0
      %2572 = vmatprep.subr.mxu0 0.0
      %2573 = vmatpush1.msra.mxu0 0.0
      %2574 = vmatprep.subr.mxu0 0.0
      %2575 = vmatpush1.msra.mxu0 0.0
      %2576 = vmatprep.subr.mxu0 0.0
      %2577 = vmatpush1.msra.mxu0 0.0
      %2578 = vmatprep.subr.mxu0 0.0
      %2579 = vmatpush1.msra.mxu0 0.0
      %2580 = vmatprep.subr.mxu0 0.0
      %2581 = vmatpush1.msra.mxu0 0.0
      %2582 = vmatprep.subr.mxu0 0.0
      %2583 = vmatpush1.msra.mxu0 0.0
      %2584 = vmatprep.subr.mxu0 0.0
      %2585 = vmatpush1.msra.mxu0 0.0
      %2586 = vmatprep.mubr.f32.mxu0 0.0
      %2587 = vmatmul.mubr.f32.gmra.mrb[0].mxu0 %v2520
      %v2588 = vpop.f32.mrb[0].mxu0
      %v2589 = vadd.f32 0.0, %v2588
      %v2590 = vpop.f32.mrb[0].mxu0
      %2591 = vdwg.mxu0
      %2593 = vrot.lane.b32.xlu0 %v2255, 8
      %v2594 = vpop.permute.xlu0 %2593
      %2597 = vrot.lane.b32.xlu0 %v2422, 16
      %v2598 = vpop.permute.xlu0 %2597
      %2601 = vrot.lane.b32.xlu0 %v2589, 24
      %v2602 = vpop.permute.xlu0 %2601
      %v2604 = vsel %vm948, %v2088, %v2594
      %v2605 = vsel %vm1634, %v2604, %v2598
      %v2606 = vsel %vm1636, %v2605, %v2602
      %v2608 = vlaneseq
      %v2609 = vshrl.u32 %v2608, 7
      %v2610 = vsub.s32 0, %v2609
      %v2611 = vrot.slane %v846, %v2610
      %v2614 = vsel %vm871, %v2606, 0
      %2616 = vmatprep.subr.mxu0 0.0
      %2617 = vmatpush1.msra.mxu0 %v842
      %2618 = vmatprep.subr.mxu0 0.0
      %2619 = vmatpush1.msra.mxu0 %v843
      %2620 = vmatprep.subr.mxu0 0.0
      %2621 = vmatpush1.msra.mxu0 %v844
      %2622 = vmatprep.subr.mxu0 0.0
      %2623 = vmatpush1.msra.mxu0 %v845
      %2624 = vmatprep.subr.mxu0 0.0
      %2625 = vmatpush1.msra.mxu0 0.0
      %2626 = vmatprep.subr.mxu0 0.0
      %2627 = vmatpush1.msra.mxu0 0.0
      %2628 = vmatprep.subr.mxu0 0.0
      %2629 = vmatpush1.msra.mxu0 0.0
      %2630 = vmatprep.subr.mxu0 0.0
      %2631 = vmatpush1.msra.mxu0 0.0
      %2632 = vmatprep.subr.mxu0 0.0
      %2633 = vmatpush1.msra.mxu0 0.0
      %2634 = vmatprep.subr.mxu0 0.0
      %2635 = vmatpush1.msra.mxu0 0.0
      %2636 = vmatprep.subr.mxu0 0.0
      %2637 = vmatpush1.msra.mxu0 0.0
      %2638 = vmatprep.subr.mxu0 0.0
      %2639 = vmatpush1.msra.mxu0 0.0
      %2640 = vmatprep.subr.mxu0 0.0
      %2641 = vmatpush1.msra.mxu0 0.0
      %2642 = vmatprep.subr.mxu0 0.0
      %2643 = vmatpush1.msra.mxu0 0.0
      %2644 = vmatprep.subr.mxu0 0.0
      %2645 = vmatpush1.msra.mxu0 0.0
      %2646 = vmatprep.subr.mxu0 0.0
      %2647 = vmatpush1.msra.mxu0 0.0
      %2648 = vmatprep.subr.mxu0 0.0
      %2649 = vmatpush1.msra.mxu0 0.0
      %2650 = vmatprep.subr.mxu0 0.0
      %2651 = vmatpush1.msra.mxu0 0.0
      %2652 = vmatprep.subr.mxu0 0.0
      %2653 = vmatpush1.msra.mxu0 0.0
      %2654 = vmatprep.subr.mxu0 0.0
      %2655 = vmatpush1.msra.mxu0 0.0
      %2656 = vmatprep.subr.mxu0 0.0
      %2657 = vmatpush1.msra.mxu0 0.0
      %2658 = vmatprep.subr.mxu0 0.0
      %2659 = vmatpush1.msra.mxu0 0.0
      %2660 = vmatprep.subr.mxu0 0.0
      %2661 = vmatpush1.msra.mxu0 0.0
      %2662 = vmatprep.subr.mxu0 0.0
      %2663 = vmatpush1.msra.mxu0 0.0
      %2664 = vmatprep.subr.mxu0 0.0
      %2665 = vmatpush1.msra.mxu0 0.0
      %2666 = vmatprep.subr.mxu0 0.0
      %2667 = vmatpush1.msra.mxu0 0.0
      %2668 = vmatprep.subr.mxu0 0.0
      %2669 = vmatpush1.msra.mxu0 0.0
      %2670 = vmatprep.subr.mxu0 0.0
      %2671 = vmatpush1.msra.mxu0 0.0
      %2672 = vmatprep.subr.mxu0 0.0
      %2673 = vmatpush1.msra.mxu0 0.0
      %2674 = vmatprep.subr.mxu0 0.0
      %2675 = vmatpush1.msra.mxu0 0.0
      %2676 = vmatprep.subr.mxu0 0.0
      %2677 = vmatpush1.msra.mxu0 0.0
      %2678 = vmatprep.subr.mxu0 0.0
      %2679 = vmatpush1.msra.mxu0 0.0
      %2680 = vmatprep.mubr.f32.mxu0 0.0
      %2681 = vmatmul.mubr.f32.gmra.mrb[0].mxu0 %v2614
      %v2682 = vpop.f32.mrb[0].mxu0
      %v2683 = vadd.f32 %v2611, %v2682
      %v2684 = vpop.f32.mrb[0].mxu0
      %2685 = vdwg.mxu0
      %v2686 = vadd.f32 %v1746, %v2683
      %v2687 = vsel %vm1718, %v2686, 0.0
      %2688 = vadd.xlane.f32.xlu0 %v2687
      %v2689 = vpop.xlane.xlu0 %2688
      %v2690 = vmul.f32 %v2689, %v1722
      %v2691 = vsub.f32 %v2686, %v2690
      %v2692 = vmul.f32 %v2691, %v2691
      %v2693 = vsel %vm1718, %v2692, 0.0
      %2694 = vadd.xlane.f32.xlu0 %v2693
      %v2695 = vpop.xlane.xlu0 %2694
      %v2696 = vmul.f32 %v2695, %v1722
      %v2697 = vadd.f32 %v2696, 1e-05
      %v2698 = vrsqrt.pop %v2697
      %v2699 = vmul.f32 %v2691, %v2698
      %v2701 = vlaneseq
      %v2702 = vshrl.u32 %v2701, 7
      %v2703 = vsub.s32 0, %v2702
      %v2704 = vrot.slane %v847, %v2703
      %v2706 = vmul.f32 %v2699, %v2704
      %v2708 = vlaneseq
      %v2709 = vshrl.u32 %v2708, 7
      %v2710 = vsub.s32 0, %v2709
      %v2711 = vrot.slane %v848, %v2710
      %v2713 = vadd.f32 %v2706, %v2711
      %v2715 = vlaneseq
      %v2716 = vshrl.u32 %v2715, 7
      %v2717 = vsub.s32 0, %v2716
      %v2718 = vrot.slane %v853, %v2717
      %v2721 = vsel %vm871, %v2713, 0
      %2723 = vmatprep.subr.mxu0 0.0
      %2724 = vmatpush1.msra.mxu0 %v849
      %2725 = vmatprep.subr.mxu0 0.0
      %2726 = vmatpush1.msra.mxu0 %v850
      %2727 = vmatprep.subr.mxu0 0.0
      %2728 = vmatpush1.msra.mxu0 %v851
      %2729 = vmatprep.subr.mxu0 0.0
      %2730 = vmatpush1.msra.mxu0 %v852
      %2731 = vmatprep.subr.mxu0 0.0
      %2732 = vmatpush1.msra.mxu0 0.0
      %2733 = vmatprep.subr.mxu0 0.0
      %2734 = vmatpush1.msra.mxu0 0.0
      %2735 = vmatprep.subr.mxu0 0.0
      %2736 = vmatpush1.msra.mxu0 0.0
      %2737 = vmatprep.subr.mxu0 0.0
      %2738 = vmatpush1.msra.mxu0 0.0
      %2739 = vmatprep.subr.mxu0 0.0
      %2740 = vmatpush1.msra.mxu0 0.0
      %2741 = vmatprep.subr.mxu0 0.0
      %2742 = vmatpush1.msra.mxu0 0.0
      %2743 = vmatprep.subr.mxu0 0.0
      %2744 = vmatpush1.msra.mxu0 0.0
      %2745 = vmatprep.subr.mxu0 0.0
      %2746 = vmatpush1.msra.mxu0 0.0
      %2747 = vmatprep.subr.mxu0 0.0
      %2748 = vmatpush1.msra.mxu0 0.0
      %2749 = vmatprep.subr.mxu0 0.0
      %2750 = vmatpush1.msra.mxu0 0.0
      %2751 = vmatprep.subr.mxu0 0.0
      %2752 = vmatpush1.msra.mxu0 0.0
      %2753 = vmatprep.subr.mxu0 0.0
      %2754 = vmatpush1.msra.mxu0 0.0
      %2755 = vmatprep.subr.mxu0 0.0
      %2756 = vmatpush1.msra.mxu0 0.0
      %2757 = vmatprep.subr.mxu0 0.0
      %2758 = vmatpush1.msra.mxu0 0.0
      %2759 = vmatprep.subr.mxu0 0.0
      %2760 = vmatpush1.msra.mxu0 0.0
      %2761 = vmatprep.subr.mxu0 0.0
      %2762 = vmatpush1.msra.mxu0 0.0
      %2763 = vmatprep.subr.mxu0 0.0
      %2764 = vmatpush1.msra.mxu0 0.0
      %2765 = vmatprep.subr.mxu0 0.0
      %2766 = vmatpush1.msra.mxu0 0.0
      %2767 = vmatprep.subr.mxu0 0.0
      %2768 = vmatpush1.msra.mxu0 0.0
      %2769 = vmatprep.subr.mxu0 0.0
      %2770 = vmatpush1.msra.mxu0 0.0
      %2771 = vmatprep.subr.mxu0 0.0
      %2772 = vmatpush1.msra.mxu0 0.0
      %2773 = vmatprep.subr.mxu0 0.0
      %2774 = vmatpush1.msra.mxu0 0.0
      %2775 = vmatprep.subr.mxu0 0.0
      %2776 = vmatpush1.msra.mxu0 0.0
      %2777 = vmatprep.subr.mxu0 0.0
      %2778 = vmatpush1.msra.mxu0 0.0
      %2779 = vmatprep.subr.mxu0 0.0
      %2780 = vmatpush1.msra.mxu0 0.0
      %2781 = vmatprep.subr.mxu0 0.0
      %2782 = vmatpush1.msra.mxu0 0.0
      %2783 = vmatprep.subr.mxu0 0.0
      %2784 = vmatpush1.msra.mxu0 0.0
      %2785 = vmatprep.subr.mxu0 0.0
      %2786 = vmatpush1.msra.mxu0 0.0
      %2787 = vmatprep.mubr.f32.mxu0 0.0
      %2788 = vmatmul.mubr.f32.gmra.mrb[0].mxu0 %v2721
      %v2789 = vpop.f32.mrb[0].mxu0
      %v2790 = vadd.f32 %v2718, %v2789
      %v2791 = vpop.f32.mrb[0].mxu0
      %2792 = vdwg.mxu0
      %v2793 = vmax.f32 %v2790, 0.0
      %v2795 = vlaneseq
      %v2796 = vshrl.u32 %v2795, 7
      %v2797 = vsub.s32 0, %v2796
      %v2798 = vrot.slane %v862, %v2797
      %vm2800 = vcmask 523264
      %v2802 = vsel %vm2800, %v2793, 0
      %2804 = vmatprep.subr.mxu0 0.0
      %2805 = vmatpush1.msra.mxu0 %v854
      %2806 = vmatprep.subr.mxu0 0.0
      %2807 = vmatpush1.msra.mxu0 %v855
      %2808 = vmatprep.subr.mxu0 0.0
      %2809 = vmatpush1.msra.mxu0 %v856
      %2810 = vmatprep.subr.mxu0 0.0
      %2811 = vmatpush1.msra.mxu0 %v857
      %2812 = vmatprep.subr.mxu0 0.0
      %2813 = vmatpush1.msra.mxu0 %v858
      %2814 = vmatprep.subr.mxu0 0.0
      %2815 = vmatpush1.msra.mxu0 %v859
      %2816 = vmatprep.subr.mxu0 0.0
      %2817 = vmatpush1.msra.mxu0 %v860
      %2818 = vmatprep.subr.mxu0 0.0
      %2819 = vmatpush1.msra.mxu0 %v861
      %2820 = vmatprep.subr.mxu0 0.0
      %2821 = vmatpush1.msra.mxu0 0.0
      %2822 = vmatprep.subr.mxu0 0.0
      %2823 = vmatpush1.msra.mxu0 0.0
      %2824 = vmatprep.subr.mxu0 0.0
      %2825 = vmatpush1.msra.mxu0 0.0
      %2826 = vmatprep.subr.mxu0 0.0
      %2827 = vmatpush1.msra.mxu0 0.0
      %2828 = vmatprep.subr.mxu0 0.0
      %2829 = vmatpush1.msra.mxu0 0.0
      %2830 = vmatprep.subr.mxu0 0.0
      %2831 = vmatpush1.msra.mxu0 0.0
      %2832 = vmatprep.subr.mxu0 0.0
      %2833 = vmatpush1.msra.mxu0 0.0
      %2834 = vmatprep.subr.mxu0 0.0
      %2835 = vmatpush1.msra.mxu0 0.0
      %2836 = vmatprep.subr.mxu0 0.0
      %2837 = vmatpush1.msra.mxu0 0.0
      %2838 = vmatprep.subr.mxu0 0.0
      %2839 = vmatpush1.msra.mxu0 0.0
      %2840 = vmatprep.subr.mxu0 0.0
      %2841 = vmatpush1.msra.mxu0 0.0
      %2842 = vmatprep.subr.mxu0 0.0
      %2843 = vmatpush1.msra.mxu0 0.0
      %2844 = vmatprep.subr.mxu0 0.0
      %2845 = vmatpush1.msra.mxu0 0.0
      %2846 = vmatprep.subr.mxu0 0.0
      %2847 = vmatpush1.msra.mxu0 0.0
      %2848 = vmatprep.subr.mxu0 0.0
      %2849 = vmatpush1.msra.mxu0 0.0
      %2850 = vmatprep.subr.mxu0 0.0
      %2851 = vmatpush1.msra.mxu0 0.0
      %2852 = vmatprep.subr.mxu0 0.0
      %2853 = vmatpush1.msra.mxu0 0.0
      %2854 = vmatprep.subr.mxu0 0.0
      %2855 = vmatpush1.msra.mxu0 0.0
      %2856 = vmatprep.subr.mxu0 0.0
      %2857 = vmatpush1.msra.mxu0 0.0
      %2858 = vmatprep.subr.mxu0 0.0
      %2859 = vmatpush1.msra.mxu0 0.0
      %2860 = vmatprep.subr.mxu0 0.0
      %2861 = vmatpush1.msra.mxu0 0.0
      %2862 = vmatprep.subr.mxu0 0.0
      %2863 = vmatpush1.msra.mxu0 0.0
      %2864 = vmatprep.subr.mxu0 0.0
      %2865 = vmatpush1.msra.mxu0 0.0
      %2866 = vmatprep.subr.mxu0 0.0
      %2867 = vmatpush1.msra.mxu0 0.0
      %2868 = vmatprep.mubr.f32.mxu0 0.0
      %2869 = vmatmul.mubr.f32.gmra.mrb[0].mxu0 %v2802
      %v2870 = vpop.f32.mrb[0].mxu0
      %v2871 = vadd.f32 %v2798, %v2870
      %v2872 = vpop.f32.mrb[0].mxu0
      %2873 = vdwg.mxu0
      %v2874 = vadd.f32 %v2713, %v2871
      %v2875 = vsel %vm1718, %v2874, 0.0
      %2876 = vadd.xlane.f32.xlu0 %v2875
      %v2877 = vpop.xlane.xlu0 %2876
      %v2878 = vmul.f32 %v2877, %v1722
      %v2879 = vsub.f32 %v2874, %v2878
      %v2880 = vmul.f32 %v2879, %v2879
      %v2881 = vsel %vm1718, %v2880, 0.0
      %2882 = vadd.xlane.f32.xlu0 %v2881
      %v2883 = vpop.xlane.xlu0 %2882
      %v2884 = vmul.f32 %v2883, %v1722
      %v2885 = vadd.f32 %v2884, 1e-05
      %v2886 = vrsqrt.pop %v2885
      %v2887 = vmul.f32 %v2879, %v2886
      %v2889 = vlaneseq
      %v2890 = vshrl.u32 %v2889, 7
      %v2891 = vsub.s32 0, %v2890
      %v2892 = vrot.slane %v863, %v2891
      %v2894 = vmul.f32 %v2887, %v2892
      %v2896 = vlaneseq
      %v2897 = vshrl.u32 %v2896, 7
      %v2898 = vsub.s32 0, %v2897
      %v2899 = vrot.slane %v864, %v2898
      %v2901 = vadd.f32 %v2894, %v2899
      %v2902 = vld [vmem:[%s22] sm:$0xff]
      %v2903 = vld [vmem:[%s22 + $0x8] sm:$0xff]
      %v2904 = vld [vmem:[%s22 + $0x10] sm:$0xff]
      %v2905 = vld [vmem:[%s22 + $0x18] sm:$0xff]
      %v2906 = vld [vmem:[%s23] sm:$0x1]
      %v2908 = vlaneseq
      %v2909 = vshrl.u32 %v2908, 7
      %v2910 = vsub.s32 0, %v2909
      %v2911 = vrot.slane %v2906, %v2910
      %v2914 = vsel %vm871, %v2901, 0
      %2916 = vmatprep.subr.mxu0 0.0
      %2917 = vmatpush1.msra.mxu0 %v2902
      %2918 = vmatprep.subr.mxu0 0.0
      %2919 = vmatpush1.msra.mxu0 %v2903
      %2920 = vmatprep.subr.mxu0 0.0
      %2921 = vmatpush1.msra.mxu0 %v2904
      %2922 = vmatprep.subr.mxu0 0.0
      %2923 = vmatpush1.msra.mxu0 %v2905
      %2924 = vmatprep.subr.mxu0 0.0
      %2925 = vmatpush1.msra.mxu0 0.0
      %2926 = vmatprep.subr.mxu0 0.0
      %2927 = vmatpush1.msra.mxu0 0.0
      %2928 = vmatprep.subr.mxu0 0.0
      %2929 = vmatpush1.msra.mxu0 0.0
      %2930 = vmatprep.subr.mxu0 0.0
      %2931 = vmatpush1.msra.mxu0 0.0
      %2932 = vmatprep.subr.mxu0 0.0
      %2933 = vmatpush1.msra.mxu0 0.0
      %2934 = vmatprep.subr.mxu0 0.0
      %2935 = vmatpush1.msra.mxu0 0.0
      %2936 = vmatprep.subr.mxu0 0.0
      %2937 = vmatpush1.msra.mxu0 0.0
      %2938 = vmatprep.subr.mxu0 0.0
      %2939 = vmatpush1.msra.mxu0 0.0
      %2940 = vmatprep.subr.mxu0 0.0
      %2941 = vmatpush1.msra.mxu0 0.0
      %2942 = vmatprep.subr.mxu0 0.0
      %2943 = vmatpush1.msra.mxu0 0.0
      %2944 = vmatprep.subr.mxu0 0.0
      %2945 = vmatpush1.msra.mxu0 0.0
      %2946 = vmatprep.subr.mxu0 0.0
      %2947 = vmatpush1.msra.mxu0 0.0
      %2948 = vmatprep.subr.mxu0 0.0
      %2949 = vmatpush1.msra.mxu0 0.0
      %2950 = vmatprep.subr.mxu0 0.0
      %2951 = vmatpush1.msra.mxu0 0.0
      %2952 = vmatprep.subr.mxu0 0.0
      %2953 = vmatpush1.msra.mxu0 0.0
      %2954 = vmatprep.subr.mxu0 0.0
      %2955 = vmatpush1.msra.mxu0 0.0
      %2956 = vmatprep.subr.mxu0 0.0
      %2957 = vmatpush1.msra.mxu0 0.0
      %2958 = vmatprep.subr.mxu0 0.0
      %2959 = vmatpush1.msra.mxu0 0.0
      %2960 = vmatprep.subr.mxu0 0.0
      %2961 = vmatpush1.msra.mxu0 0.0
      %2962 = vmatprep.subr.mxu0 0.0
      %2963 = vmatpush1.msra.mxu0 0.0
      %2964 = vmatprep.subr.mxu0 0.0
      %2965 = vmatpush1.msra.mxu0 0.0
      %2966 = vmatprep.subr.mxu0 0.0
      %2967 = vmatpush1.msra.mxu0 0.0
      %2968 = vmatprep.subr.mxu0 0.0
      %2969 = vmatpush1.msra.mxu0 0.0
      %2970 = vmatprep.subr.mxu0 0.0
      %2971 = vmatpush1.msra.mxu0 0.0
      %2972 = vmatprep.subr.mxu0 0.0
      %2973 = vmatpush1.msra.mxu0 0.0
      %2974 = vmatprep.subr.mxu0 0.0
      %2975 = vmatpush1.msra.mxu0 0.0
      %2976 = vmatprep.subr.mxu0 0.0
      %2977 = vmatpush1.msra.mxu0 0.0
      %2978 = vmatprep.subr.mxu0 0.0
      %2979 = vmatpush1.msra.mxu0 0.0
      %2980 = vmatprep.mubr.f32.mxu0 0.0
      %2981 = vmatmul.mubr.f32.gmra.mrb[0].mxu0 %v2914
      %v2982 = vpop.f32.mrb[0].mxu0
      %v2983 = vadd.f32 %v2911, %v2982
      %v2984 = vpop.f32.mrb[0].mxu0
      %2985 = vdwg.mxu0
      %vm2986 = vcmask 193536
      %2987 = vst.msk [vmem:[%s815] sm:$0x3f] %vm2986, %v2983
      %2988 = vst.msk [vmem:[%s820] sm:$0x3f] %vm2003, %v2014
      %s2989 = scalar_lea.vmem %s820, 8
      %2990 = vst.msk [vmem:[%s2989] sm:$0x3f] %vm2003, %v2181
      %s2991 = scalar_lea.vmem %s820, 16
      %2992 = vst.msk [vmem:[%s2991] sm:$0x3f] %vm2003, %v2348
      %s2993 = scalar_lea.vmem %s820, 24
      %2994 = vst.msk [vmem:[%s2993] sm:$0x3f] %vm2003, %v2515
      %p2995 = scmp.lt.s32.totalorder %s37, 1
      %s2996 = scalar_select %p2995, %s37, 1
      %s2997 = smul.addr %s2996, 8
      %s2998 = scalar_lea.vmem %s24, %s2997
      %p2999 = scmp.lt.s32.totalorder %s37, 1
      %s3000 = scalar_select %p2999, %s37, 1
      %s3001 = smul.addr %s3000, 4
      %s3002 = smul.addr %s3001, 8
      %s3003 = scalar_lea.vmem %s25, %s3002
      // Predicated region
      $region117: #{seq2seq_forward.7} parent=115 // pred_check
        %p3004 = pneg %p579
      $region118: #{seq2seq_forward.7} parent=115 // pred_check_branch
        %3006 = sbr.rel (%p3004) target = $region120
      $region119: #{seq2seq_forward.7} parent=115 // pred_region
        _
      $region120: #{seq2seq_forward.7} parent=115 // pred_fallthru
        _
      // Predicated region
      $region121: #{seq2seq_forward.7} parent=115 // pred_check
        %p3007 = pneg %p605
      $region122: #{seq2seq_forward.7} parent=115 // pred_check_branch
        %3009 = sbr.rel (%p3007) target = $region124
      $region123: #{seq2seq_forward.7} parent=115 // pred_region
        _
      $region124: #{seq2seq_forward.7} parent=115 // pred_fallthru
        _
    $region116: #{seq2seq_forward.7} parent=5 // pred_fallthru
      _
    %p3010 = scmp.le.s32.totalorder 2, %s32
    // Predicated region
    $region125: #{seq2seq_forward.7} parent=5 // pred_check
      %p3011 = pneg %p3010
    $region126: #{seq2seq_forward.7} parent=5 // pred_check_branch
      %3013 = sbr.rel (%p3011) target = $region128
    $region127: #{seq2seq_forward.7} parent=5 // pred_region
      %s3014 = ssub.s32 %s32, 2
      // Predicated region
      $region129: #{seq2seq_forward.7} parent=127 // pred_check
        %p3015 = pneg %p585
      $region130: #{seq2seq_forward.7} parent=127 // pred_check_branch
        %3017 = sbr.rel (%p3015) target = $region132
      $region131: #{seq2seq_forward.7} parent=127 // pred_region
        %p3018 = scmp.lt.s32.totalorder %s38, 1
        %s3019 = scalar_select %p3018, %s38, 1
        %s3020 = smul.addr %s3019, 8
        %s3021 = scalar_lea.vmem %s24, %s3020
      $region132: #{seq2seq_forward.7} parent=127 // pred_fallthru
        _
      // Predicated region
      $region133: #{seq2seq_forward.7} parent=127 // pred_check
        %p3022 = pneg %p611
      $region134: #{seq2seq_forward.7} parent=127 // pred_check_branch
        %3024 = sbr.rel (%p3022) target = $region136
      $region135: #{seq2seq_forward.7} parent=127 // pred_region
        %p3025 = scmp.lt.s32.totalorder %s38, 1
        %s3026 = scalar_select %p3025, %s38, 1
        %s3027 = smul.addr %s3026, 4
        %s3028 = smul.addr %s3027, 8
        %s3029 = scalar_lea.vmem %s25, %s3028
      $region136: #{seq2seq_forward.7} parent=127 // pred_fallthru
        _
    $region128: #{seq2seq_forward.7} parent=5 // pred_fallthru
      _
  $region6: #{seq2seq_forward.7} parent=0 // loop_footer
    %s36 = sadd.s32 1, %s32
  $region7: #{seq2seq_forward.7} parent=0 // loop_footer_branch
    %31 = sbr.rel target = $region3
  $region8: #{seq2seq_forward.7} parent=0 // loop_exit
    _

</llo_original>
